<compile_context>
chip_gen: v5e
topology: v5e:2x2
jax: 0.10.0
libtpu: 0.0.40
codegen_flags: <defaults>
</compile_context>

<pallas_src>
import jax
import jax.numpy as jnp
from jax import lax
from jax.experimental import pallas as pl
from jax.experimental.pallas import tpu as pltpu


# Geometry (the network is specialised to 28x28 inputs -> 16x16 feature maps).
IMG = 16                  # spatial size after the 13x13 valid conv
P = IMG * IMG             # 256 flattened pixels (row-major, p = i*16 + j)
K1 = 13                   # conv1 kernel size
K1P = 256                 # conv1 contraction (169 taps) zero-padded to 256
C1P = 128                 # conv1 output channels (8) zero-padded to 128 lanes
S = 32                    # first image row inside the padded flat buffers
PADF = 320                # padded flat buffer rows: 32 guard + 256 + 32 guard

_TAPS = [(t // 3 - 1, t % 3 - 1) for t in range(9)]   # (dh, dw), row-major


def _pick_conv4_groups():
    """Tap grouping for the K-fused conv4 matmuls, per MXU organisation."""
    kind = ""
    try:
        kind = jax.devices()[0].device_kind.lower()
    except Exception:
        pass
    if "v5" in kind:                 # four 128x128 MXUs: 3 independent K=384 dots
        return ((0, 3), (3, 3), (6, 3))
    if "v6" in kind:                 # two 256x256 MXUs: 2 dots, K=640 / 512
        return ((0, 5), (5, 4))
    return ((0, 9),)                 # v7x (and default): single K=1152 dot


_CONV4_GROUPS = _pick_conv4_groups()


def _net_kernel(patches_ref, w1_ref, b1_ref, w2_ref, b2_ref, w3_ref, w4_ref,
                w5_ref, o_ref, pad_a, pad_b, pad3, x2_s):
    f32 = jnp.float32
    bf16 = jnp.bfloat16

    # Width-wrap masks along the flattened pixel axis.  Recomputed per grid
    # step (cheap) so correctness does not depend on which TensorCore sees
    # program_id == 0 when the "parallel" batch axis is split across cores.
    j_idx = lax.broadcasted_iota(jnp.int32, (P, 128), 0) % IMG
    mask_l = (j_idx != 0).astype(f32)          # valid rows for dw = -1
    mask_r = (j_idx != IMG - 1).astype(f32)    # valid rows for dw = +1

    # Zero ONLY the guard rows of the padded flat buffers; the image rows
    # [S, S+P) are fully overwritten every grid step before they are read.
    guard = jnp.zeros((S, 128), f32)           # S == PADF - S - P == 32
    for buf in (pad_a, pad_b, pad3):
        buf[pl.ds(0, S), :] = guard
        buf[pl.ds(S + P, PADF - S - P), :] = guard

    def slab(pad_ref, dh, dw):
        """(P,128) f32 window of a padded flat buffer for conv tap (dh, dw)."""
        s = pad_ref[pl.ds(S + dh * IMG + dw, P), :]
        if dw < 0:
            s = s * mask_l
        elif dw > 0:
            s = s * mask_r
        return s

    # --- conv1 (13x13, 1->8, valid) + relu: bf16 operands on the MXU --------
    pats = patches_ref[0]                                            # (P,K1P) bf16
    y1 = jnp.dot(pats, w1_ref[...], preferred_element_type=f32)      # (P,128)
    y1 = jnp.maximum(y1 + b1_ref[...], 0.0)
    # --- conv2 (1x1, 8->1) + relu: lane reduction, stays f32 ----------------
    y2 = jnp.sum(y1 * w2_ref[...], axis=1, keepdims=True) + b2_ref[...]
    y2 = jnp.maximum(y2, 0.0)                                        # (P, 1)

    # --- conv3 (3x3, 1->128, pad 1) via lane-replicated f32 flat buffer -----
    # pad3 stays f32 so the residual recovered from it at the end is exact.
    pad3[pl.ds(S, P), :] = y2 * jnp.ones((1, 128), f32)
    x2 = jnp.zeros((P, 128), f32)
    for t, (dh, dw) in enumerate(_TAPS):
        x2 = x2 + slab(pad3, dh, dw) * w3_ref[t]          # (1,128) broadcast
    x2_s[...] = x2

    def fill(pad_ref, val):           # write relu(val) into the image rows
        pad_ref[pl.ds(S, P), :] = jnp.maximum(val, 0.0)

    def conv4(pad_ref):
        # K-grouped bf16 MXU dots: (256, 128*g) x (128*g, 128), f32 accumulate.
        acc = jnp.zeros((P, 128), f32)
        for g0, gn in _CONV4_GROUPS:
            lhs = jnp.concatenate(
                [slab(pad_ref, *_TAPS[t]).astype(bf16)
                 for t in range(g0, g0 + gn)], axis=1)     # (P, 128*gn) bf16
            acc = acc + jnp.dot(lhs, w4_ref[pl.ds(g0 * 128, gn * 128), :],
                                preferred_element_type=f32)
        return acc

    # --- 25 x [ conv4(relu(conv4(relu(out)))) + x2 ], all VMEM resident -----
    fill(pad_a, x2)                   # out_0 = x2

    def body(it, carry):
        fill(pad_b, conv4(pad_a))
        out = conv4(pad_b) + x2_s[...]        # residual add in f32
        fill(pad_a, out)                      # relu(out) feeds next iter / conv5
        return carry

    lax.fori_loop(0, 25, body, 0)

    # --- conv5 (3x3, 128->1, pad 1) on relu(out) + residual (f32 VPU/XLU) ---
    acc5 = jnp.zeros((P, 128), f32)
    for t, (dh, dw) in enumerate(_TAPS):
        acc5 = acc5 + slab(pad_a, dh, dw) * w5_ref[t]      # (1,128) over Cin
    out5 = jnp.sum(acc5, axis=1, keepdims=True)            # single lane reduce
    # pad3 lanes are exact f32 replicas of y2 (>= 0), so max recovers y2.
    residual = jnp.max(pad3[pl.ds(S, P), :], axis=1, keepdims=True)
    o_ref[0] = out5 + residual


# ----------------------------------------------------------------------------
# Parameter init (deterministic, Kaiming-normal fan_out like the module).
# ----------------------------------------------------------------------------
def init_params(key):
    ks = jax.random.split(key, 8)

    def w_init(k, shape, fan_out):
        return ((2.0 / fan_out) ** 0.5) * jax.random.normal(k, shape,
                                                            jnp.float32)

    def b_init(k, shape, fan_in):
        bound = 1.0 / fan_in ** 0.5
        return jax.random.uniform(k, shape, jnp.float32, -bound, bound)

    p = {}
    p["w1"] = w_init(ks[0], (K1 * K1, 8), 8 * K1 * K1)   # (169, 8)
    p["b1"] = b_init(ks[1], (1, 8), 1 * K1 * K1)
    p["w2"] = w_init(ks[2], (1, 8), 1 * 1 * 1)           # 1x1, 8 -> 1
    p["b2"] = b_init(ks[3], (1, 1), 8 * 1 * 1)
    p["w3"] = w_init(ks[4], (9, 1, 128), 128 * 9)        # (tap, 1,  cout)
    p["w4"] = w_init(ks[5], (9, 128, 128), 128 * 9)      # (tap, cin, cout)
    p["w5"] = w_init(ks[6], (9, 1, 128), 1 * 9)          # (tap, 1,  cin)
    return p


# ----------------------------------------------------------------------------
# Forward pass: ONE fused pallas_call; wrapper only does im2col / reshapes.
# ----------------------------------------------------------------------------
@jax.jit
def net_forward(x_nchw, params):
    N = x_nchw.shape[0]
    xs = x_nchw[:, 0]                                     # (N, 28, 28)

    # im2col patches for conv1: patches[n, i*16+j, kh*13+kw] = x[n, i+kh, j+kw]
    cols = [xs[:, kh:kh + IMG, kw:kw + IMG].reshape(N, P)
            for kh in range(K1) for kw in range(K1)]
    patches = jnp.stack(cols, axis=-1)                    # (N, 256, 169)
    patches = jnp.pad(patches, ((0, 0), (0, 0), (0, K1P - K1 * K1)))
    patches = patches.astype(jnp.bfloat16)                # bf16 MXU operand

    w1e = jnp.pad(params["w1"], ((0, K1P - K1 * K1), (0, C1P - 8)))
    w1e = w1e.astype(jnp.bfloat16)                        # bf16 MXU operand
    b1e = jnp.pad(params["b1"], ((0, 0), (0, C1P - 8)))
    w2e = jnp.pad(params["w2"], ((0, 0), (0, C1P - 8)))
    # conv4 weights K-stacked for the fused dots: rows [t*128:(t+1)*128] = tap t
    w4e = params["w4"].reshape(9 * 128, 128).astype(jnp.bfloat16)

    out_flat = pl.pallas_call(
        _net_kernel,
        out_shape=jax.ShapeDtypeStruct((N, P, 1), jnp.float32),
        grid=(N,),
        in_specs=[
            pl.BlockSpec((1, P, K1P), lambda n: (n, 0, 0)),     # patches (bf16)
            pl.BlockSpec((K1P, C1P), lambda n: (0, 0)),         # w1 (bf16)
            pl.BlockSpec((1, C1P), lambda n: (0, 0)),           # b1
            pl.BlockSpec((1, C1P), lambda n: (0, 0)),           # w2
            pl.BlockSpec((1, 1), lambda n: (0, 0)),             # b2
            pl.BlockSpec((9, 1, 128), lambda n: (0, 0, 0)),     # w3
            pl.BlockSpec((9 * 128, 128), lambda n: (0, 0)),     # w4 (bf16, K-stacked)
            pl.BlockSpec((9, 1, 128), lambda n: (0, 0, 0)),     # w5
        ],
        out_specs=pl.BlockSpec((1, P, 1), lambda n: (n, 0, 0)),
        scratch_shapes=[
            pltpu.VMEM((PADF, 128), jnp.float32),   # pad_a
            pltpu.VMEM((PADF, 128), jnp.float32),   # pad_b
            pltpu.VMEM((PADF, 128), jnp.float32),   # pad3 (conv3 in / residual)
            pltpu.VMEM((P, 128), jnp.float32),      # x2
        ],
        compiler_params=pltpu.CompilerParams(
            dimension_semantics=("parallel",)),
    )(patches, w1e, b1e, w2e, params["b2"], params["w3"], w4e, params["w5"])

    return out_flat.reshape(N, 1, IMG, IMG)               # NCHW, C = 1


# ----------------------------------------------------------------------------
# Pure-JAX reference (lax.conv, f32 HIGHEST precision) for correctness check.
# ----------------------------------------------------------------------------
def _conv_ref(x, k, pad):
    return lax.conv_general_dilated(
        x, k, (1, 1), [(pad, pad), (pad, pad)],
        dimension_numbers=("NHWC", "HWIO", "NHWC"),
        precision=lax.Precision.HIGHEST)


@jax.jit
def ref_forward(x_nchw, p):
    x = jnp.transpose(x_nchw, (0, 2, 3, 1))                      # (N,28,28,1)
    k1 = p["w1"].reshape(K1, K1, 1, 8)
    y = jax.nn.relu(_conv_ref(x, k1, 0) + p["b1"])
    k2 = p["w2"].reshape(1, 1, 8, 1)
    y = jax.nn.relu(_conv_ref(y, k2, 0) + p["b2"])
    residual = y
    k3 = p["w3"].reshape(3, 3, 1, 128)
    x2 = _conv_ref(y, k3, 1)
    k4 = p["w4"].reshape(3, 3, 128, 128)
    out = x2
    for _ in range(25):
        t = _conv_ref(jax.nn.relu(out), k4, 1)
        t = _conv_ref(jax.nn.relu(t), k4, 1)
        out = t + x2
    k5 = p["w5"].reshape(3, 3, 128)[..., None]                   # (3,3,128,1)
    out = _conv_ref(jax.nn.relu(out), k5, 1) + residual
    return jnp.transpose(out, (0, 3, 1, 2))


if __name__ == "__main__":
    key = jax.random.PRNGKey(0)
    kx, kp = jax.random.split(key)

    # NCHW input like PyTorch; 28x28 so the 13x13 valid conv yields 16x16.
    x = jax.random.normal(kx, (2, 1, 28, 28), jnp.float32)
    params = init_params(kp)

    out = jax.block_until_ready(net_forward(x, params))
    assert out.shape == (2, 1, 16, 16), out.shape

    ref = jax.block_until_ready(ref_forward(x, params))
    rel_err = float(jnp.max(jnp.abs(out - ref)) /
                    (jnp.max(jnp.abs(ref)) + 1e-6))
    # Tolerance is looser than the pure-f32 version: the MXU matmuls now use
    # bf16 operands (f32 accumulation) and the operand rounding compounds
    # across the 50 chained 3x3 convs of the recurrence.  Indexing / masking /
    # padding were validated exactly in the all-f32 variant of this kernel.
    assert rel_err < 1e-1, f"mismatch vs reference: rel_err={rel_err}"

    print("KERNEL_OK")
</pallas_src>

<mosaic_0001>
module attributes {stable_mosaic.version = 11 : i64} {
  func.func @_net_kernel(%arg0: i32, %arg1: memref<1x256x256xbf16, #tpu.memory_space<vmem>>, %arg2: memref<256x128xbf16, #tpu.memory_space<vmem>>, %arg3: memref<1x128xf32, #tpu.memory_space<vmem>>, %arg4: memref<1x128xf32, #tpu.memory_space<vmem>>, %arg5: memref<1x1xf32, #tpu.memory_space<vmem>>, %arg6: memref<9x1x128xf32, #tpu.memory_space<vmem>>, %arg7: memref<1152x128xbf16, #tpu.memory_space<vmem>>, %arg8: memref<9x1x128xf32, #tpu.memory_space<vmem>>, %arg9: memref<1x256x1xf32, #tpu.memory_space<vmem>>, %arg10: memref<320x128xf32, #tpu.memory_space<vmem>>, %arg11: memref<320x128xf32, #tpu.memory_space<vmem>>, %arg12: memref<320x128xf32, #tpu.memory_space<vmem>>, %arg13: memref<256x128xf32, #tpu.memory_space<vmem>>) attributes {dimension_semantics = [#tpu.dimension_semantics<parallel>], iteration_bounds = array<i64: 2>, scalar_prefetch = 0 : i64, scratch_operands = 4 : i64, tpu.core_type = #tpu.core_type<tc>, window_params = [{transform_indices = @transform_0, window_bounds = array<i64: 1, 256, 256>}, {pipeline_mode = #tpu.pipeline_mode<synchronous>, transform_indices = @transform_1, window_bounds = array<i64: 256, 128>}, {pipeline_mode = #tpu.pipeline_mode<synchronous>, transform_indices = @transform_2, window_bounds = array<i64: 1, 128>}, {pipeline_mode = #tpu.pipeline_mode<synchronous>, transform_indices = @transform_3, window_bounds = array<i64: 1, 128>}, {pipeline_mode = #tpu.pipeline_mode<synchronous>, transform_indices = @transform_4, window_bounds = array<i64: 1, 1>}, {pipeline_mode = #tpu.pipeline_mode<synchronous>, transform_indices = @transform_5, window_bounds = array<i64: 9, 1, 128>}, {pipeline_mode = #tpu.pipeline_mode<synchronous>, transform_indices = @transform_6, window_bounds = array<i64: 1152, 128>}, {pipeline_mode = #tpu.pipeline_mode<synchronous>, transform_indices = @transform_7, window_bounds = array<i64: 9, 1, 128>}, {transform_indices = @transform_8, window_bounds = array<i64: 1, 256, 1>}]} {
    %0 = tpu.iota {dimensions = array<i32: 0>} : vector<256x128xi32>
    %c16_i32 = arith.constant 16 : i32
    %c0_i32 = arith.constant 0 : i32
    %1 = arith.cmpi eq, %c16_i32, %c0_i32 : i32
    %c1_i32 = arith.constant 1 : i32
    %2 = arith.select %1, %c1_i32, %c16_i32 : i32
    %3 = vector.broadcast %2 : i32 to vector<256x128xi32>
    %4 = arith.remsi %0, %3 : vector<256x128xi32>
    %c0_i32_0 = arith.constant 0 : i32
    %5 = vector.broadcast %c0_i32_0 : i32 to vector<256x128xi32>
    %6 = arith.cmpi ne, %4, %5 : vector<256x128xi32>
    %c0_i32_1 = arith.constant 0 : i32
    %7 = vector.broadcast %c0_i32_1 : i32 to vector<256x128xi32>
    %8 = arith.cmpi slt, %4, %7 : vector<256x128xi32>
    %c0_i32_2 = arith.constant 0 : i32
    %9 = arith.cmpi slt, %2, %c0_i32_2 : i32
    %10 = vector.broadcast %9 : i1 to vector<256x128xi1>
    %11 = vector.broadcast %10 : vector<256x128xi1> to vector<256x128xi1>
    %12 = arith.xori %8, %11 : vector<256x128xi1>
    %13 = arith.andi %12, %6 : vector<256x128xi1>
    %14 = vector.broadcast %2 : i32 to vector<256x128xi32>
    %15 = arith.addi %4, %14 : vector<256x128xi32>
    %16 = arith.select %13, %15, %4 : vector<256x128xi1>, vector<256x128xi32>
    %c0_i32_3 = arith.constant 0 : i32
    %17 = vector.broadcast %c0_i32_3 : i32 to vector<256x128xi32>
    %18 = arith.cmpi ne, %16, %17 : vector<256x128xi32>
    %19 = arith.extui %18 : vector<256x128xi1> to vector<256x128xi32>
    %20 = arith.sitofp %19 : vector<256x128xi32> to vector<256x128xf32>
    %c15_i32 = arith.constant 15 : i32
    %21 = vector.broadcast %c15_i32 : i32 to vector<256x128xi32>
    %22 = arith.cmpi ne, %16, %21 : vector<256x128xi32>
    %23 = arith.extui %22 : vector<256x128xi1> to vector<256x128xi32>
    %24 = arith.sitofp %23 : vector<256x128xi32> to vector<256x128xf32>
    %cst = arith.constant 0.000000e+00 : f32
    %25 = vector.broadcast %cst : f32 to vector<32x128xf32>
    %c0 = arith.constant 0 : index
    %c0_4 = arith.constant 0 : index
    %26 = vector.load %arg10[%c0, %c0_4] : memref<320x128xf32, #tpu.memory_space<vmem>>, vector<32x128xf32>
    tpu.vector_store %arg10[%c0, %c0_4], %25 {strides = array<i32>} : memref<320x128xf32, #tpu.memory_space<vmem>>, vector<32x128xf32>,
    %c288 = arith.constant 288 : index
    %c0_5 = arith.constant 0 : index
    %27 = vector.load %arg10[%c288, %c0_5] : memref<320x128xf32, #tpu.memory_space<vmem>>, vector<32x128xf32>
    tpu.vector_store %arg10[%c288, %c0_5], %25 {strides = array<i32>} : memref<320x128xf32, #tpu.memory_space<vmem>>, vector<32x128xf32>,
    %c0_6 = arith.constant 0 : index
    %c0_7 = arith.constant 0 : index
    %28 = vector.load %arg11[%c0_6, %c0_7] : memref<320x128xf32, #tpu.memory_space<vmem>>, vector<32x128xf32>
    tpu.vector_store %arg11[%c0_6, %c0_7], %25 {strides = array<i32>} : memref<320x128xf32, #tpu.memory_space<vmem>>, vector<32x128xf32>,
    %c288_8 = arith.constant 288 : index
    %c0_9 = arith.constant 0 : index
    %29 = vector.load %arg11[%c288_8, %c0_9] : memref<320x128xf32, #tpu.memory_space<vmem>>, vector<32x128xf32>
    tpu.vector_store %arg11[%c288_8, %c0_9], %25 {strides = array<i32>} : memref<320x128xf32, #tpu.memory_space<vmem>>, vector<32x128xf32>,
    %c0_10 = arith.constant 0 : index
    %c0_11 = arith.constant 0 : index
    %30 = vector.load %arg12[%c0_10, %c0_11] : memref<320x128xf32, #tpu.memory_space<vmem>>, vector<32x128xf32>
    tpu.vector_store %arg12[%c0_10, %c0_11], %25 {strides = array<i32>} : memref<320x128xf32, #tpu.memory_space<vmem>>, vector<32x128xf32>,
    %c288_12 = arith.constant 288 : index
    %c0_13 = arith.constant 0 : index
    %31 = vector.load %arg12[%c288_12, %c0_13] : memref<320x128xf32, #tpu.memory_space<vmem>>, vector<32x128xf32>
    tpu.vector_store %arg12[%c288_12, %c0_13], %25 {strides = array<i32>} : memref<320x128xf32, #tpu.memory_space<vmem>>, vector<32x128xf32>,
    %c0_14 = arith.constant 0 : index
    %c0_15 = arith.constant 0 : index
    %c0_16 = arith.constant 0 : index
    %32 = vector.load %arg1[%c0_14, %c0_15, %c0_16] : memref<1x256x256xbf16, #tpu.memory_space<vmem>>, vector<1x256x256xbf16>
    %33 = vector.shape_cast %32 : vector<1x256x256xbf16> to vector<256x256xbf16>
    %c0_17 = arith.constant 0 : index
    %c0_18 = arith.constant 0 : index
    %34 = vector.load %arg2[%c0_17, %c0_18] : memref<256x128xbf16, #tpu.memory_space<vmem>>, vector<256x128xbf16>
    %cst_19 = arith.constant dense<0.000000e+00> : vector<256x128xf32>
    %35 = tpu.matmul %33, %34, %cst_19 {dimension_numbers = #tpu.dot_dimension_numbers<[1], [0], [0], [1], [0, 0, 1, 1], [], []>} : vector<256x256xbf16>, vector<256x128xbf16>, vector<256x128xf32> -> vector<256x128xf32>
    %c0_20 = arith.constant 0 : index
    %c0_21 = arith.constant 0 : index
    %36 = vector.load %arg3[%c0_20, %c0_21] : memref<1x128xf32, #tpu.memory_space<vmem>>, vector<1x128xf32>
    %37 = vector.broadcast %36 : vector<1x128xf32> to vector<256x128xf32>
    %38 = arith.addf %35, %37 : vector<256x128xf32>
    %cst_22 = arith.constant 0.000000e+00 : f32
    %39 = vector.broadcast %cst_22 : f32 to vector<256x128xf32>
    %40 = arith.maximumf %38, %39 : vector<256x128xf32>
    %c0_23 = arith.constant 0 : index
    %c0_24 = arith.constant 0 : index
    %41 = vector.load %arg4[%c0_23, %c0_24] : memref<1x128xf32, #tpu.memory_space<vmem>>, vector<1x128xf32>
    %42 = vector.broadcast %41 : vector<1x128xf32> to vector<256x128xf32>
    %43 = arith.mulf %40, %42 : vector<256x128xf32>
    %cst_25 = arith.constant dense<0.000000e+00> : vector<256xf32>
    %44 = vector.multi_reduction <add>, %43, %cst_25 [1] : vector<256x128xf32> to vector<256xf32>
    %45 = vector.shape_cast %44 : vector<256xf32> to vector<256x1xf32>
    %c0_26 = arith.constant 0 : index
    %c0_27 = arith.constant 0 : index
    %46 = vector.load %arg5[%c0_26, %c0_27] : memref<1x1xf32, #tpu.memory_space<vmem>>, vector<1x1xf32>
    %47 = vector.broadcast %46 : vector<1x1xf32> to vector<256x1xf32>
    %48 = arith.addf %45, %47 : vector<256x1xf32>
    %cst_28 = arith.constant 0.000000e+00 : f32
    %49 = vector.broadcast %cst_28 : f32 to vector<256x1xf32>
    %50 = arith.maximumf %48, %49 : vector<256x1xf32>
    %cst_29 = arith.constant 1.000000e+00 : f32
    %51 = vector.broadcast %cst_29 : f32 to vector<1x128xf32>
    %52 = vector.broadcast %50 : vector<256x1xf32> to vector<256x128xf32>
    %53 = vector.broadcast %51 : vector<1x128xf32> to vector<256x128xf32>
    %54 = arith.mulf %52, %53 : vector<256x128xf32>
    %c32 = arith.constant 32 : index
    %c0_30 = arith.constant 0 : index
    %55 = vector.load %arg12[%c32, %c0_30] : memref<320x128xf32, #tpu.memory_space<vmem>>, vector<256x128xf32>
    tpu.vector_store %arg12[%c32, %c0_30], %54 {strides = array<i32>} : memref<320x128xf32, #tpu.memory_space<vmem>>, vector<256x128xf32>,
    %cst_31 = arith.constant 0.000000e+00 : f32
    %56 = vector.broadcast %cst_31 : f32 to vector<256x128xf32>
    %c15 = arith.constant 15 : index
    %c0_32 = arith.constant 0 : index
    %57 = vector.load %arg12[%c15, %c0_32] : memref<320x128xf32, #tpu.memory_space<vmem>>, vector<256x128xf32>
    %58 = arith.mulf %57, %20 : vector<256x128xf32>
    %c0_33 = arith.constant 0 : index
    %c0_34 = arith.constant 0 : index
    %c0_35 = arith.constant 0 : index
    %59 = vector.load %arg6[%c0_33, %c0_34, %c0_35] : memref<9x1x128xf32, #tpu.memory_space<vmem>>, vector<1x1x128xf32>
    %60 = vector.shape_cast %59 : vector<1x1x128xf32> to vector<1x128xf32>
    %61 = vector.broadcast %60 : vector<1x128xf32> to vector<256x128xf32>
    %62 = arith.mulf %58, %61 : vector<256x128xf32>
    %63 = arith.addf %56, %62 : vector<256x128xf32>
    %c16 = arith.constant 16 : index
    %c0_36 = arith.constant 0 : index
    %64 = vector.load %arg12[%c16, %c0_36] : memref<320x128xf32, #tpu.memory_space<vmem>>, vector<256x128xf32>
    %c1 = arith.constant 1 : index
    %c0_37 = arith.constant 0 : index
    %c0_38 = arith.constant 0 : index
    %65 = vector.load %arg6[%c1, %c0_37, %c0_38] : memref<9x1x128xf32, #tpu.memory_space<vmem>>, vector<1x1x128xf32>
    %66 = vector.shape_cast %65 : vector<1x1x128xf32> to vector<1x128xf32>
    %67 = vector.broadcast %66 : vector<1x128xf32> to vector<256x128xf32>
    %68 = arith.mulf %64, %67 : vector<256x128xf32>
    %69 = arith.addf %63, %68 : vector<256x128xf32>
    %c17 = arith.constant 17 : index
    %c0_39 = arith.constant 0 : index
    %70 = vector.load %arg12[%c17, %c0_39] : memref<320x128xf32, #tpu.memory_space<vmem>>, vector<256x128xf32>
    %71 = arith.mulf %70, %24 : vector<256x128xf32>
    %c2 = arith.constant 2 : index
    %c0_40 = arith.constant 0 : index
    %c0_41 = arith.constant 0 : index
    %72 = vector.load %arg6[%c2, %c0_40, %c0_41] : memref<9x1x128xf32, #tpu.memory_space<vmem>>, vector<1x1x128xf32>
    %73 = vector.shape_cast %72 : vector<1x1x128xf32> to vector<1x128xf32>
    %74 = vector.broadcast %73 : vector<1x128xf32> to vector<256x128xf32>
    %75 = arith.mulf %71, %74 : vector<256x128xf32>
    %76 = arith.addf %69, %75 : vector<256x128xf32>
    %c31 = arith.constant 31 : index
    %c0_42 = arith.constant 0 : index
    %77 = vector.load %arg12[%c31, %c0_42] : memref<320x128xf32, #tpu.memory_space<vmem>>, vector<256x128xf32>
    %78 = arith.mulf %77, %20 : vector<256x128xf32>
    %c3 = arith.constant 3 : index
    %c0_43 = arith.constant 0 : index
    %c0_44 = arith.constant 0 : index
    %79 = vector.load %arg6[%c3, %c0_43, %c0_44] : memref<9x1x128xf32, #tpu.memory_space<vmem>>, vector<1x1x128xf32>
    %80 = vector.shape_cast %79 : vector<1x1x128xf32> to vector<1x128xf32>
    %81 = vector.broadcast %80 : vector<1x128xf32> to vector<256x128xf32>
    %82 = arith.mulf %78, %81 : vector<256x128xf32>
    %83 = arith.addf %76, %82 : vector<256x128xf32>
    %c32_45 = arith.constant 32 : index
    %c0_46 = arith.constant 0 : index
    %84 = vector.load %arg12[%c32_45, %c0_46] : memref<320x128xf32, #tpu.memory_space<vmem>>, vector<256x128xf32>
    %c4 = arith.constant 4 : index
    %c0_47 = arith.constant 0 : index
    %c0_48 = arith.constant 0 : index
    %85 = vector.load %arg6[%c4, %c0_47, %c0_48] : memref<9x1x128xf32, #tpu.memory_space<vmem>>, vector<1x1x128xf32>
    %86 = vector.shape_cast %85 : vector<1x1x128xf32> to vector<1x128xf32>
    %87 = vector.broadcast %86 : vector<1x128xf32> to vector<256x128xf32>
    %88 = arith.mulf %84, %87 : vector<256x128xf32>
    %89 = arith.addf %83, %88 : vector<256x128xf32>
    %c33 = arith.constant 33 : index
    %c0_49 = arith.constant 0 : index
    %90 = vector.load %arg12[%c33, %c0_49] : memref<320x128xf32, #tpu.memory_space<vmem>>, vector<256x128xf32>
    %91 = arith.mulf %90, %24 : vector<256x128xf32>
    %c5 = arith.constant 5 : index
    %c0_50 = arith.constant 0 : index
    %c0_51 = arith.constant 0 : index
    %92 = vector.load %arg6[%c5, %c0_50, %c0_51] : memref<9x1x128xf32, #tpu.memory_space<vmem>>, vector<1x1x128xf32>
    %93 = vector.shape_cast %92 : vector<1x1x128xf32> to vector<1x128xf32>
    %94 = vector.broadcast %93 : vector<1x128xf32> to vector<256x128xf32>
    %95 = arith.mulf %91, %94 : vector<256x128xf32>
    %96 = arith.addf %89, %95 : vector<256x128xf32>
    %c47 = arith.constant 47 : index
    %c0_52 = arith.constant 0 : index
    %97 = vector.load %arg12[%c47, %c0_52] : memref<320x128xf32, #tpu.memory_space<vmem>>, vector<256x128xf32>
    %98 = arith.mulf %97, %20 : vector<256x128xf32>
    %c6 = arith.constant 6 : index
    %c0_53 = arith.constant 0 : index
    %c0_54 = arith.constant 0 : index
    %99 = vector.load %arg6[%c6, %c0_53, %c0_54] : memref<9x1x128xf32, #tpu.memory_space<vmem>>, vector<1x1x128xf32>
    %100 = vector.shape_cast %99 : vector<1x1x128xf32> to vector<1x128xf32>
    %101 = vector.broadcast %100 : vector<1x128xf32> to vector<256x128xf32>
    %102 = arith.mulf %98, %101 : vector<256x128xf32>
    %103 = arith.addf %96, %102 : vector<256x128xf32>
    %c48 = arith.constant 48 : index
    %c0_55 = arith.constant 0 : index
    %104 = vector.load %arg12[%c48, %c0_55] : memref<320x128xf32, #tpu.memory_space<vmem>>, vector<256x128xf32>
    %c7 = arith.constant 7 : index
    %c0_56 = arith.constant 0 : index
    %c0_57 = arith.constant 0 : index
    %105 = vector.load %arg6[%c7, %c0_56, %c0_57] : memref<9x1x128xf32, #tpu.memory_space<vmem>>, vector<1x1x128xf32>
    %106 = vector.shape_cast %105 : vector<1x1x128xf32> to vector<1x128xf32>
    %107 = vector.broadcast %106 : vector<1x128xf32> to vector<256x128xf32>
    %108 = arith.mulf %104, %107 : vector<256x128xf32>
    %109 = arith.addf %103, %108 : vector<256x128xf32>
    %c49 = arith.constant 49 : index
    %c0_58 = arith.constant 0 : index
    %110 = vector.load %arg12[%c49, %c0_58] : memref<320x128xf32, #tpu.memory_space<vmem>>, vector<256x128xf32>
    %111 = arith.mulf %110, %24 : vector<256x128xf32>
    %c8 = arith.constant 8 : index
    %c0_59 = arith.constant 0 : index
    %c0_60 = arith.constant 0 : index
    %112 = vector.load %arg6[%c8, %c0_59, %c0_60] : memref<9x1x128xf32, #tpu.memory_space<vmem>>, vector<1x1x128xf32>
    %113 = vector.shape_cast %112 : vector<1x1x128xf32> to vector<1x128xf32>
    %114 = vector.broadcast %113 : vector<1x128xf32> to vector<256x128xf32>
    %115 = arith.mulf %111, %114 : vector<256x128xf32>
    %116 = arith.addf %109, %115 : vector<256x128xf32>
    %c0_61 = arith.constant 0 : index
    %c0_62 = arith.constant 0 : index
    %117 = vector.load %arg13[%c0_61, %c0_62] : memref<256x128xf32, #tpu.memory_space<vmem>>, vector<256x128xf32>
    tpu.vector_store %arg13[%c0_61, %c0_62], %116 {strides = array<i32>} : memref<256x128xf32, #tpu.memory_space<vmem>>, vector<256x128xf32>,
    %cst_63 = arith.constant 0.000000e+00 : f32
    %118 = vector.broadcast %cst_63 : f32 to vector<256x128xf32>
    %119 = arith.maximumf %116, %118 : vector<256x128xf32>
    %c32_64 = arith.constant 32 : index
    %c0_65 = arith.constant 0 : index
    %120 = vector.load %arg10[%c32_64, %c0_65] : memref<320x128xf32, #tpu.memory_space<vmem>>, vector<256x128xf32>
    tpu.vector_store %arg10[%c32_64, %c0_65], %119 {strides = array<i32>} : memref<320x128xf32, #tpu.memory_space<vmem>>, vector<256x128xf32>,
    %c0_i32_66 = arith.constant 0 : i32
    %c25_i32 = arith.constant 25 : i32
    %121 = arith.addi %c0_i32_66, %c25_i32 : i32
    %c1_i32_67 = arith.constant 1 : i32
    scf.for %arg14 = %c0_i32_66 to %121 step %c1_i32_67  : i32 {
      %cst_121 = arith.constant 0.000000e+00 : f32
      %192 = vector.broadcast %cst_121 : f32 to vector<256x128xf32>
      %c15_122 = arith.constant 15 : index
      %c0_123 = arith.constant 0 : index
      %193 = vector.load %arg10[%c15_122, %c0_123] : memref<320x128xf32, #tpu.memory_space<vmem>>, vector<256x128xf32>
      %194 = arith.mulf %193, %20 : vector<256x128xf32>
      %195 = arith.truncf %194 : vector<256x128xf32> to vector<256x128xbf16>
      %c16_124 = arith.constant 16 : index
      %c0_125 = arith.constant 0 : index
      %196 = vector.load %arg10[%c16_124, %c0_125] : memref<320x128xf32, #tpu.memory_space<vmem>>, vector<256x128xf32>
      %197 = arith.truncf %196 : vector<256x128xf32> to vector<256x128xbf16>
      %c17_126 = arith.constant 17 : index
      %c0_127 = arith.constant 0 : index
      %198 = vector.load %arg10[%c17_126, %c0_127] : memref<320x128xf32, #tpu.memory_space<vmem>>, vector<256x128xf32>
      %199 = arith.mulf %198, %24 : vector<256x128xf32>
      %200 = arith.truncf %199 : vector<256x128xf32> to vector<256x128xbf16>
      %c31_128 = arith.constant 31 : index
      %c0_129 = arith.constant 0 : index
      %201 = vector.load %arg10[%c31_128, %c0_129] : memref<320x128xf32, #tpu.memory_space<vmem>>, vector<256x128xf32>
      %202 = arith.mulf %201, %20 : vector<256x128xf32>
      %203 = arith.truncf %202 : vector<256x128xf32> to vector<256x128xbf16>
      %c32_130 = arith.constant 32 : index
      %c0_131 = arith.constant 0 : index
      %204 = vector.load %arg10[%c32_130, %c0_131] : memref<320x128xf32, #tpu.memory_space<vmem>>, vector<256x128xf32>
      %205 = arith.truncf %204 : vector<256x128xf32> to vector<256x128xbf16>
      %c33_132 = arith.constant 33 : index
      %c0_133 = arith.constant 0 : index
      %206 = vector.load %arg10[%c33_132, %c0_133] : memref<320x128xf32, #tpu.memory_space<vmem>>, vector<256x128xf32>
      %207 = arith.mulf %206, %24 : vector<256x128xf32>
      %208 = arith.truncf %207 : vector<256x128xf32> to vector<256x128xbf16>
      %c47_134 = arith.constant 47 : index
      %c0_135 = arith.constant 0 : index
      %209 = vector.load %arg10[%c47_134, %c0_135] : memref<320x128xf32, #tpu.memory_space<vmem>>, vector<256x128xf32>
      %210 = arith.mulf %209, %20 : vector<256x128xf32>
      %211 = arith.truncf %210 : vector<256x128xf32> to vector<256x128xbf16>
      %c48_136 = arith.constant 48 : index
      %c0_137 = arith.constant 0 : index
      %212 = vector.load %arg10[%c48_136, %c0_137] : memref<320x128xf32, #tpu.memory_space<vmem>>, vector<256x128xf32>
      %213 = arith.truncf %212 : vector<256x128xf32> to vector<256x128xbf16>
      %c49_138 = arith.constant 49 : index
      %c0_139 = arith.constant 0 : index
      %214 = vector.load %arg10[%c49_138, %c0_139] : memref<320x128xf32, #tpu.memory_space<vmem>>, vector<256x128xf32>
      %215 = arith.mulf %214, %24 : vector<256x128xf32>
      %216 = arith.truncf %215 : vector<256x128xf32> to vector<256x128xbf16>
      %217 = tpu.concatenate %195, %197, %200, %203, %205, %208, %211, %213, %216 in 1 : vector<256x128xbf16>, vector<256x128xbf16>, vector<256x128xbf16>, vector<256x128xbf16>, vector<256x128xbf16>, vector<256x128xbf16>, vector<256x128xbf16>, vector<256x128xbf16>, vector<256x128xbf16> -> vector<256x1152xbf16>
      %c0_140 = arith.constant 0 : index
      %c0_141 = arith.constant 0 : index
      %218 = vector.load %arg7[%c0_140, %c0_141] : memref<1152x128xbf16, #tpu.memory_space<vmem>>, vector<1152x128xbf16>
      %cst_142 = arith.constant dense<0.000000e+00> : vector<256x128xf32>
      %219 = tpu.matmul %217, %218, %cst_142 {dimension_numbers = #tpu.dot_dimension_numbers<[1], [0], [0], [1], [0, 0, 1, 1], [], []>} : vector<256x1152xbf16>, vector<1152x128xbf16>, vector<256x128xf32> -> vector<256x128xf32>
      %220 = arith.addf %192, %219 : vector<256x128xf32>
      %cst_143 = arith.constant 0.000000e+00 : f32
      %221 = vector.broadcast %cst_143 : f32 to vector<256x128xf32>
      %222 = arith.maximumf %220, %221 : vector<256x128xf32>
      %c32_144 = arith.constant 32 : index
      %c0_145 = arith.constant 0 : index
      %223 = vector.load %arg11[%c32_144, %c0_145] : memref<320x128xf32, #tpu.memory_space<vmem>>, vector<256x128xf32>
      tpu.vector_store %arg11[%c32_144, %c0_145], %222 {strides = array<i32>} : memref<320x128xf32, #tpu.memory_space<vmem>>, vector<256x128xf32>,
      %cst_146 = arith.constant 0.000000e+00 : f32
      %224 = vector.broadcast %cst_146 : f32 to vector<256x128xf32>
      %c15_147 = arith.constant 15 : index
      %c0_148 = arith.constant 0 : index
      %225 = vector.load %arg11[%c15_147, %c0_148] : memref<320x128xf32, #tpu.memory_space<vmem>>, vector<256x128xf32>
      %226 = arith.mulf %225, %20 : vector<256x128xf32>
      %227 = arith.truncf %226 : vector<256x128xf32> to vector<256x128xbf16>
      %c16_149 = arith.constant 16 : index
      %c0_150 = arith.constant 0 : index
      %228 = vector.load %arg11[%c16_149, %c0_150] : memref<320x128xf32, #tpu.memory_space<vmem>>, vector<256x128xf32>
      %229 = arith.truncf %228 : vector<256x128xf32> to vector<256x128xbf16>
      %c17_151 = arith.constant 17 : index
      %c0_152 = arith.constant 0 : index
      %230 = vector.load %arg11[%c17_151, %c0_152] : memref<320x128xf32, #tpu.memory_space<vmem>>, vector<256x128xf32>
      %231 = arith.mulf %230, %24 : vector<256x128xf32>
      %232 = arith.truncf %231 : vector<256x128xf32> to vector<256x128xbf16>
      %c31_153 = arith.constant 31 : index
      %c0_154 = arith.constant 0 : index
      %233 = vector.load %arg11[%c31_153, %c0_154] : memref<320x128xf32, #tpu.memory_space<vmem>>, vector<256x128xf32>
      %234 = arith.mulf %233, %20 : vector<256x128xf32>
      %235 = arith.truncf %234 : vector<256x128xf32> to vector<256x128xbf16>
      %c32_155 = arith.constant 32 : index
      %c0_156 = arith.constant 0 : index
      %236 = vector.load %arg11[%c32_155, %c0_156] : memref<320x128xf32, #tpu.memory_space<vmem>>, vector<256x128xf32>
      %237 = arith.truncf %236 : vector<256x128xf32> to vector<256x128xbf16>
      %c33_157 = arith.constant 33 : index
      %c0_158 = arith.constant 0 : index
      %238 = vector.load %arg11[%c33_157, %c0_158] : memref<320x128xf32, #tpu.memory_space<vmem>>, vector<256x128xf32>
      %239 = arith.mulf %238, %24 : vector<256x128xf32>
      %240 = arith.truncf %239 : vector<256x128xf32> to vector<256x128xbf16>
      %c47_159 = arith.constant 47 : index
      %c0_160 = arith.constant 0 : index
      %241 = vector.load %arg11[%c47_159, %c0_160] : memref<320x128xf32, #tpu.memory_space<vmem>>, vector<256x128xf32>
      %242 = arith.mulf %241, %20 : vector<256x128xf32>
      %243 = arith.truncf %242 : vector<256x128xf32> to vector<256x128xbf16>
      %c48_161 = arith.constant 48 : index
      %c0_162 = arith.constant 0 : index
      %244 = vector.load %arg11[%c48_161, %c0_162] : memref<320x128xf32, #tpu.memory_space<vmem>>, vector<256x128xf32>
      %245 = arith.truncf %244 : vector<256x128xf32> to vector<256x128xbf16>
      %c49_163 = arith.constant 49 : index
      %c0_164 = arith.constant 0 : index
      %246 = vector.load %arg11[%c49_163, %c0_164] : memref<320x128xf32, #tpu.memory_space<vmem>>, vector<256x128xf32>
      %247 = arith.mulf %246, %24 : vector<256x128xf32>
      %248 = arith.truncf %247 : vector<256x128xf32> to vector<256x128xbf16>
      %249 = tpu.concatenate %227, %229, %232, %235, %237, %240, %243, %245, %248 in 1 : vector<256x128xbf16>, vector<256x128xbf16>, vector<256x128xbf16>, vector<256x128xbf16>, vector<256x128xbf16>, vector<256x128xbf16>, vector<256x128xbf16>, vector<256x128xbf16>, vector<256x128xbf16> -> vector<256x1152xbf16>
      %c0_165 = arith.constant 0 : index
      %c0_166 = arith.constant 0 : index
      %250 = vector.load %arg7[%c0_165, %c0_166] : memref<1152x128xbf16, #tpu.memory_space<vmem>>, vector<1152x128xbf16>
      %cst_167 = arith.constant dense<0.000000e+00> : vector<256x128xf32>
      %251 = tpu.matmul %249, %250, %cst_167 {dimension_numbers = #tpu.dot_dimension_numbers<[1], [0], [0], [1], [0, 0, 1, 1], [], []>} : vector<256x1152xbf16>, vector<1152x128xbf16>, vector<256x128xf32> -> vector<256x128xf32>
      %252 = arith.addf %224, %251 : vector<256x128xf32>
      %c0_168 = arith.constant 0 : index
      %c0_169 = arith.constant 0 : index
      %253 = vector.load %arg13[%c0_168, %c0_169] : memref<256x128xf32, #tpu.memory_space<vmem>>, vector<256x128xf32>
      %254 = arith.addf %252, %253 : vector<256x128xf32>
      %cst_170 = arith.constant 0.000000e+00 : f32
      %255 = vector.broadcast %cst_170 : f32 to vector<256x128xf32>
      %256 = arith.maximumf %254, %255 : vector<256x128xf32>
      %c32_171 = arith.constant 32 : index
      %c0_172 = arith.constant 0 : index
      %257 = vector.load %arg10[%c32_171, %c0_172] : memref<320x128xf32, #tpu.memory_space<vmem>>, vector<256x128xf32>
      tpu.vector_store %arg10[%c32_171, %c0_172], %256 {strides = array<i32>} : memref<320x128xf32, #tpu.memory_space<vmem>>, vector<256x128xf32>,
    }
    %cst_68 = arith.constant 0.000000e+00 : f32
    %122 = vector.broadcast %cst_68 : f32 to vector<256x128xf32>
    %c15_69 = arith.constant 15 : index
    %c0_70 = arith.constant 0 : index
    %123 = vector.load %arg10[%c15_69, %c0_70] : memref<320x128xf32, #tpu.memory_space<vmem>>, vector<256x128xf32>
    %124 = arith.mulf %123, %20 : vector<256x128xf32>
    %c0_71 = arith.constant 0 : index
    %c0_72 = arith.constant 0 : index
    %c0_73 = arith.constant 0 : index
    %125 = vector.load %arg8[%c0_71, %c0_72, %c0_73] : memref<9x1x128xf32, #tpu.memory_space<vmem>>, vector<1x1x128xf32>
    %126 = vector.shape_cast %125 : vector<1x1x128xf32> to vector<1x128xf32>
    %127 = vector.broadcast %126 : vector<1x128xf32> to vector<256x128xf32>
    %128 = arith.mulf %124, %127 : vector<256x128xf32>
    %129 = arith.addf %122, %128 : vector<256x128xf32>
    %c16_74 = arith.constant 16 : index
    %c0_75 = arith.constant 0 : index
    %130 = vector.load %arg10[%c16_74, %c0_75] : memref<320x128xf32, #tpu.memory_space<vmem>>, vector<256x128xf32>
    %c1_76 = arith.constant 1 : index
    %c0_77 = arith.constant 0 : index
    %c0_78 = arith.constant 0 : index
    %131 = vector.load %arg8[%c1_76, %c0_77, %c0_78] : memref<9x1x128xf32, #tpu.memory_space<vmem>>, vector<1x1x128xf32>
    %132 = vector.shape_cast %131 : vector<1x1x128xf32> to vector<1x128xf32>
    %133 = vector.broadcast %132 : vector<1x128xf32> to vector<256x128xf32>
    %134 = arith.mulf %130, %133 : vector<256x128xf32>
    %135 = arith.addf %129, %134 : vector<256x128xf32>
    %c17_79 = arith.constant 17 : index
    %c0_80 = arith.constant 0 : index
    %136 = vector.load %arg10[%c17_79, %c0_80] : memref<320x128xf32, #tpu.memory_space<vmem>>, vector<256x128xf32>
    %137 = arith.mulf %136, %24 : vector<256x128xf32>
    %c2_81 = arith.constant 2 : index
    %c0_82 = arith.constant 0 : index
    %c0_83 = arith.constant 0 : index
    %138 = vector.load %arg8[%c2_81, %c0_82, %c0_83] : memref<9x1x128xf32, #tpu.memory_space<vmem>>, vector<1x1x128xf32>
    %139 = vector.shape_cast %138 : vector<1x1x128xf32> to vector<1x128xf32>
    %140 = vector.broadcast %139 : vector<1x128xf32> to vector<256x128xf32>
    %141 = arith.mulf %137, %140 : vector<256x128xf32>
    %142 = arith.addf %135, %141 : vector<256x128xf32>
    %c31_84 = arith.constant 31 : index
    %c0_85 = arith.constant 0 : index
    %143 = vector.load %arg10[%c31_84, %c0_85] : memref<320x128xf32, #tpu.memory_space<vmem>>, vector<256x128xf32>
    %144 = arith.mulf %143, %20 : vector<256x128xf32>
    %c3_86 = arith.constant 3 : index
    %c0_87 = arith.constant 0 : index
    %c0_88 = arith.constant 0 : index
    %145 = vector.load %arg8[%c3_86, %c0_87, %c0_88] : memref<9x1x128xf32, #tpu.memory_space<vmem>>, vector<1x1x128xf32>
    %146 = vector.shape_cast %145 : vector<1x1x128xf32> to vector<1x128xf32>
    %147 = vector.broadcast %146 : vector<1x128xf32> to vector<256x128xf32>
    %148 = arith.mulf %144, %147 : vector<256x128xf32>
    %149 = arith.addf %142, %148 : vector<256x128xf32>
    %c32_89 = arith.constant 32 : index
    %c0_90 = arith.constant 0 : index
    %150 = vector.load %arg10[%c32_89, %c0_90] : memref<320x128xf32, #tpu.memory_space<vmem>>, vector<256x128xf32>
    %c4_91 = arith.constant 4 : index
    %c0_92 = arith.constant 0 : index
    %c0_93 = arith.constant 0 : index
    %151 = vector.load %arg8[%c4_91, %c0_92, %c0_93] : memref<9x1x128xf32, #tpu.memory_space<vmem>>, vector<1x1x128xf32>
    %152 = vector.shape_cast %151 : vector<1x1x128xf32> to vector<1x128xf32>
    %153 = vector.broadcast %152 : vector<1x128xf32> to vector<256x128xf32>
    %154 = arith.mulf %150, %153 : vector<256x128xf32>
    %155 = arith.addf %149, %154 : vector<256x128xf32>
    %c33_94 = arith.constant 33 : index
    %c0_95 = arith.constant 0 : index
    %156 = vector.load %arg10[%c33_94, %c0_95] : memref<320x128xf32, #tpu.memory_space<vmem>>, vector<256x128xf32>
    %157 = arith.mulf %156, %24 : vector<256x128xf32>
    %c5_96 = arith.constant 5 : index
    %c0_97 = arith.constant 0 : index
    %c0_98 = arith.constant 0 : index
    %158 = vector.load %arg8[%c5_96, %c0_97, %c0_98] : memref<9x1x128xf32, #tpu.memory_space<vmem>>, vector<1x1x128xf32>
    %159 = vector.shape_cast %158 : vector<1x1x128xf32> to vector<1x128xf32>
    %160 = vector.broadcast %159 : vector<1x128xf32> to vector<256x128xf32>
    %161 = arith.mulf %157, %160 : vector<256x128xf32>
    %162 = arith.addf %155, %161 : vector<256x128xf32>
    %c47_99 = arith.constant 47 : index
    %c0_100 = arith.constant 0 : index
    %163 = vector.load %arg10[%c47_99, %c0_100] : memref<320x128xf32, #tpu.memory_space<vmem>>, vector<256x128xf32>
    %164 = arith.mulf %163, %20 : vector<256x128xf32>
    %c6_101 = arith.constant 6 : index
    %c0_102 = arith.constant 0 : index
    %c0_103 = arith.constant 0 : index
    %165 = vector.load %arg8[%c6_101, %c0_102, %c0_103] : memref<9x1x128xf32, #tpu.memory_space<vmem>>, vector<1x1x128xf32>
    %166 = vector.shape_cast %165 : vector<1x1x128xf32> to vector<1x128xf32>
    %167 = vector.broadcast %166 : vector<1x128xf32> to vector<256x128xf32>
    %168 = arith.mulf %164, %167 : vector<256x128xf32>
    %169 = arith.addf %162, %168 : vector<256x128xf32>
    %c48_104 = arith.constant 48 : index
    %c0_105 = arith.constant 0 : index
    %170 = vector.load %arg10[%c48_104, %c0_105] : memref<320x128xf32, #tpu.memory_space<vmem>>, vector<256x128xf32>
    %c7_106 = arith.constant 7 : index
    %c0_107 = arith.constant 0 : index
    %c0_108 = arith.constant 0 : index
    %171 = vector.load %arg8[%c7_106, %c0_107, %c0_108] : memref<9x1x128xf32, #tpu.memory_space<vmem>>, vector<1x1x128xf32>
    %172 = vector.shape_cast %171 : vector<1x1x128xf32> to vector<1x128xf32>
    %173 = vector.broadcast %172 : vector<1x128xf32> to vector<256x128xf32>
    %174 = arith.mulf %170, %173 : vector<256x128xf32>
    %175 = arith.addf %169, %174 : vector<256x128xf32>
    %c49_109 = arith.constant 49 : index
    %c0_110 = arith.constant 0 : index
    %176 = vector.load %arg10[%c49_109, %c0_110] : memref<320x128xf32, #tpu.memory_space<vmem>>, vector<256x128xf32>
    %177 = arith.mulf %176, %24 : vector<256x128xf32>
    %c8_111 = arith.constant 8 : index
    %c0_112 = arith.constant 0 : index
    %c0_113 = arith.constant 0 : index
    %178 = vector.load %arg8[%c8_111, %c0_112, %c0_113] : memref<9x1x128xf32, #tpu.memory_space<vmem>>, vector<1x1x128xf32>
    %179 = vector.shape_cast %178 : vector<1x1x128xf32> to vector<1x128xf32>
    %180 = vector.broadcast %179 : vector<1x128xf32> to vector<256x128xf32>
    %181 = arith.mulf %177, %180 : vector<256x128xf32>
    %182 = arith.addf %175, %181 : vector<256x128xf32>
    %cst_114 = arith.constant dense<0.000000e+00> : vector<256xf32>
    %183 = vector.multi_reduction <add>, %182, %cst_114 [1] : vector<256x128xf32> to vector<256xf32>
    %184 = vector.shape_cast %183 : vector<256xf32> to vector<256x1xf32>
    %c32_115 = arith.constant 32 : index
    %c0_116 = arith.constant 0 : index
    %185 = vector.load %arg12[%c32_115, %c0_116] : memref<320x128xf32, #tpu.memory_space<vmem>>, vector<256x128xf32>
    %cst_117 = arith.constant dense<0xFF800000> : vector<256xf32>
    %186 = vector.multi_reduction <maximumf>, %185, %cst_117 [1] : vector<256x128xf32> to vector<256xf32>
    %187 = vector.shape_cast %186 : vector<256xf32> to vector<256x1xf32>
    %188 = arith.addf %184, %187 : vector<256x1xf32>
    %c0_118 = arith.constant 0 : index
    %c0_119 = arith.constant 0 : index
    %c0_120 = arith.constant 0 : index
    %189 = vector.load %arg9[%c0_118, %c0_119, %c0_120] : memref<1x256x1xf32, #tpu.memory_space<vmem>>, vector<1x256x1xf32>
    %190 = vector.shape_cast %189 : vector<1x256x1xf32> to vector<256x1xf32>
    %191 = vector.shape_cast %188 : vector<256x1xf32> to vector<1x256x1xf32>
    tpu.vector_store %arg9[%c0_118, %c0_119, %c0_120], %191 {strides = array<i32>} : memref<1x256x1xf32, #tpu.memory_space<vmem>>, vector<1x256x1xf32>,
    return
  }
  func.func @transform_0(%arg0: i32) -> (i32, i32, i32) {
    %c0_i32 = arith.constant 0 : i32
    %c0_i32_0 = arith.constant 0 : i32
    %c0_i32_1 = arith.constant 0 : i32
    return %arg0, %c0_i32, %c0_i32_0 : i32, i32, i32
  }
  func.func @transform_1(%arg0: i32) -> (i32, i32) {
    %c0_i32 = arith.constant 0 : i32
    %c0_i32_0 = arith.constant 0 : i32
    %c0_i32_1 = arith.constant 0 : i32
    return %c0_i32, %c0_i32_0 : i32, i32
  }
  func.func @transform_2(%arg0: i32) -> (i32, i32) {
    %c0_i32 = arith.constant 0 : i32
    %c0_i32_0 = arith.constant 0 : i32
    %c0_i32_1 = arith.constant 0 : i32
    return %c0_i32, %c0_i32_0 : i32, i32
  }
  func.func @transform_3(%arg0: i32) -> (i32, i32) {
    %c0_i32 = arith.constant 0 : i32
    %c0_i32_0 = arith.constant 0 : i32
    %c0_i32_1 = arith.constant 0 : i32
    return %c0_i32, %c0_i32_0 : i32, i32
  }
  func.func @transform_4(%arg0: i32) -> (i32, i32) {
    %c0_i32 = arith.constant 0 : i32
    %c0_i32_0 = arith.constant 0 : i32
    %c0_i32_1 = arith.constant 0 : i32
    return %c0_i32, %c0_i32_0 : i32, i32
  }
  func.func @transform_5(%arg0: i32) -> (i32, i32, i32) {
    %c0_i32 = arith.constant 0 : i32
    %c0_i32_0 = arith.constant 0 : i32
    %c0_i32_1 = arith.constant 0 : i32
    %c0_i32_2 = arith.constant 0 : i32
    return %c0_i32, %c0_i32_0, %c0_i32_1 : i32, i32, i32
  }
  func.func @transform_6(%arg0: i32) -> (i32, i32) {
    %c0_i32 = arith.constant 0 : i32
    %c0_i32_0 = arith.constant 0 : i32
    %c0_i32_1 = arith.constant 0 : i32
    return %c0_i32, %c0_i32_0 : i32, i32
  }
  func.func @transform_7(%arg0: i32) -> (i32, i32, i32) {
    %c0_i32 = arith.constant 0 : i32
    %c0_i32_0 = arith.constant 0 : i32
    %c0_i32_1 = arith.constant 0 : i32
    %c0_i32_2 = arith.constant 0 : i32
    return %c0_i32, %c0_i32_0, %c0_i32_1 : i32, i32, i32
  }
  func.func @transform_8(%arg0: i32) -> (i32, i32, i32) {
    %c0_i32 = arith.constant 0 : i32
    %c0_i32_0 = arith.constant 0 : i32
    %c0_i32_1 = arith.constant 0 : i32
    return %arg0, %c0_i32, %c0_i32_0 : i32, i32, i32
  }
}

</mosaic_0001>

<llo_original>
// kernel: net_forward.1
$region0: #{net_forward.1}
  #allocation0 [shape = 'u32[]', space=smem, size = 0x4, offset = 0x4, fixed_abs, tag = 'smem constant byte address 0x4 - core index']
  #allocation1 [shape = 'u32[72,128]{1,0:T(1,128)}', space=vmem, size = 0x9000, scoped, tag = 'internal scratch']
  #allocation2 [shape = 'f32[320,128]{1,0:T(8,128)}', space=vmem, size = 0x28000, scoped, tag = 'scratch operand']
  #allocation3 [shape = 'f32[320,128]{1,0:T(8,128)}', space=vmem, size = 0x28000, scoped, tag = 'scratch operand']
  #allocation4 [shape = 'f32[320,128]{1,0:T(8,128)}', space=vmem, size = 0x28000, scoped, tag = 'scratch operand']
  #allocation5 [shape = 'f32[256,128]{1,0:T(8,128)}', space=vmem, size = 0x20000, scoped, tag = 'scratch operand']
  #allocation6 [shape = 'f32[1,1]{1,0:T(1,128)S(1)}', space=vmem, size = 0x200, scoped, tag = 'scoped memory for net_forward.1']
  %s0 = inlined_call_operand.vmem [shape: bf16[2,256,256], index: 0, kind: input, shape index: {}]
  %s1 = inlined_call_operand.vmem [shape: bf16[256,128], index: 1, kind: input, shape index: {}]
  %s2 = inlined_call_operand.vmem [shape: f32[1,128], index: 2, kind: input, shape index: {}]
  %s3 = inlined_call_operand.vmem [shape: f32[1,128], index: 3, kind: input, shape index: {}]
  %s4 = inlined_call_operand.<no memory space> [shape: f32[1,1], index: 4, kind: input, shape index: {}]
  %s5 = inlined_call_operand.vmem [shape: f32[9,1,128], index: 5, kind: input, shape index: {}]
  %s6 = inlined_call_operand.vmem [shape: bf16[1152,128], index: 6, kind: input, shape index: {}]
  %s7 = inlined_call_operand.vmem [shape: f32[9,1,128], index: 7, kind: input, shape index: {}]
  %s8 = inlined_call_operand.vmem [shape: f32[2,256,1], index: 8, kind: output, shape index: {}]
  %s9 = sld [smem:[#allocation0]]
  $region72: #{net_forward.1} parent=0
    _
  %s11 = ssub.s32 1, %s9
  %s12 = scalar_select 0, %s11, %s9
  %v13 = vstv %s4
  %14 = vst [vmem:[#allocation6] sm:$0x1] %v13
  loop: start=0, step=1, limit=4
  $region2: #{net_forward.1} parent=0 // loop_pre_header
    _
  $region3: #{net_forward.1} parent=0 // loop_header
    %s16 = sphi 0, %s20
    %p17 = scmp.ge.s32.totalorder %s16, 4
    %s26 = sphi 0, %s28
    %s29 = sphi 0, %s26
    %s30 = sphi 0, %s29
    %s46 = sphi 0, %s30
    %s50 = sphi 0, %s50
    %s52 = sphi 0, %s50
    %s53 = sphi 0, %s52
    %s67 = sphi 0, %s53
    %s71 = sphi 0, %s71
    %s73 = sphi 0, %s71
    %s74 = sphi 0, %s73
    %s88 = sphi 0, %s74
    %s92 = sphi 0, %s92
    %s94 = sphi 0, %s92
    %s95 = sphi 0, %s94
    %s109 = sphi 0, %s95
    %s113 = sphi 0, %s113
    %s115 = sphi 0, %s113
    %s116 = sphi 0, %s115
    %s130 = sphi 0, %s116
    %s134 = sphi 0, %s134
    %s136 = sphi 0, %s134
    %s137 = sphi 0, %s136
    %s151 = sphi 0, %s137
    %s155 = sphi 0, %s155
    %s157 = sphi 0, %s155
    %s158 = sphi 0, %s157
    %s172 = sphi 0, %s158
    %s176 = sphi 0, %s176
    %s178 = sphi 0, %s176
    %s179 = sphi 0, %s178
    %s193 = sphi 0, %s179
    %s199 = sphi 0, %s201
    %s202 = sphi 0, %s199
    %s203 = sphi 0, %s202
    %s219 = sphi 0, %s203
  $region4: #{net_forward.1} parent=0 // loop_header_branch
    %19 = sbr.rel (%p17) target = $region8
  $region5: #{net_forward.1} parent=0 // loop_body
    %s21 = ssub.s32 %s16, 1
    %s22 = ssub.s32 %s16, 2
    %s23 = sadd.s32 %s16, 1
    %s24 = ssub.s32 %s16, %s23
    %p25 = scmp.eq.s32.totalorder %s24, 0
    %s27 = sadd.s32 %s26, 1
    %s28 = scalar_select %p25, %s26, %s27
    %p31 = pneg %p25
    %p32 = scmp.eq.s32.totalorder %s16, 1
    %p33 = por %p31, %p32
    %p34 = scmp.ne.s32.totalorder %s26, %s29
    %p35 = scmp.eq.s32.totalorder %s16, 0
    %p36 = por %p34, %p35
    %p37 = scmp.ne.s32.totalorder %s26, %s29
    %p38 = scmp.eq.s32.totalorder %s21, 1
    %p39 = por %p37, %p38
    %p40 = scmp.ne.s32.totalorder %s29, %s30
    %p41 = scmp.eq.s32.totalorder %s21, 0
    %p42 = por %p40, %p41
    %p43 = scmp.ne.s32.totalorder %s29, %s30
    %p44 = scmp.eq.s32.totalorder %s22, 1
    %p45 = por %p43, %p44
    %p47 = scmp.ne.s32.totalorder %s30, %s46
    %p48 = scmp.eq.s32.totalorder %s22, 0
    %p49 = por %p47, %p48
    %s51 = sadd.s32 %s50, 1
    %p54 = scmp.eq.s32.totalorder %s16, 1
    %p55 = scmp.ne.s32.totalorder %s50, %s52
    %p56 = scmp.eq.s32.totalorder %s16, 0
    %p57 = por %p55, %p56
    %p58 = scmp.ne.s32.totalorder %s50, %s52
    %p59 = scmp.eq.s32.totalorder %s21, 1
    %p60 = por %p58, %p59
    %p61 = scmp.ne.s32.totalorder %s52, %s53
    %p62 = scmp.eq.s32.totalorder %s21, 0
    %p63 = por %p61, %p62
    %p64 = scmp.ne.s32.totalorder %s52, %s53
    %p65 = scmp.eq.s32.totalorder %s22, 1
    %p66 = por %p64, %p65
    %p68 = scmp.ne.s32.totalorder %s53, %s67
    %p69 = scmp.eq.s32.totalorder %s22, 0
    %p70 = por %p68, %p69
    %s72 = sadd.s32 %s71, 1
    %p75 = scmp.eq.s32.totalorder %s16, 1
    %p76 = scmp.ne.s32.totalorder %s71, %s73
    %p77 = scmp.eq.s32.totalorder %s16, 0
    %p78 = por %p76, %p77
    %p79 = scmp.ne.s32.totalorder %s71, %s73
    %p80 = scmp.eq.s32.totalorder %s21, 1
    %p81 = por %p79, %p80
    %p82 = scmp.ne.s32.totalorder %s73, %s74
    %p83 = scmp.eq.s32.totalorder %s21, 0
    %p84 = por %p82, %p83
    %p85 = scmp.ne.s32.totalorder %s73, %s74
    %p86 = scmp.eq.s32.totalorder %s22, 1
    %p87 = por %p85, %p86
    %p89 = scmp.ne.s32.totalorder %s74, %s88
    %p90 = scmp.eq.s32.totalorder %s22, 0
    %p91 = por %p89, %p90
    %s93 = sadd.s32 %s92, 1
    %p96 = scmp.eq.s32.totalorder %s16, 1
    %p97 = scmp.ne.s32.totalorder %s92, %s94
    %p98 = scmp.eq.s32.totalorder %s16, 0
    %p99 = por %p97, %p98
    %p100 = scmp.ne.s32.totalorder %s92, %s94
    %p101 = scmp.eq.s32.totalorder %s21, 1
    %p102 = por %p100, %p101
    %p103 = scmp.ne.s32.totalorder %s94, %s95
    %p104 = scmp.eq.s32.totalorder %s21, 0
    %p105 = por %p103, %p104
    %p106 = scmp.ne.s32.totalorder %s94, %s95
    %p107 = scmp.eq.s32.totalorder %s22, 1
    %p108 = por %p106, %p107
    %p110 = scmp.ne.s32.totalorder %s95, %s109
    %p111 = scmp.eq.s32.totalorder %s22, 0
    %p112 = por %p110, %p111
    %s114 = sadd.s32 %s113, 1
    %p117 = scmp.eq.s32.totalorder %s16, 1
    %p118 = scmp.ne.s32.totalorder %s113, %s115
    %p119 = scmp.eq.s32.totalorder %s16, 0
    %p120 = por %p118, %p119
    %p121 = scmp.ne.s32.totalorder %s113, %s115
    %p122 = scmp.eq.s32.totalorder %s21, 1
    %p123 = por %p121, %p122
    %p124 = scmp.ne.s32.totalorder %s115, %s116
    %p125 = scmp.eq.s32.totalorder %s21, 0
    %p126 = por %p124, %p125
    %p127 = scmp.ne.s32.totalorder %s115, %s116
    %p128 = scmp.eq.s32.totalorder %s22, 1
    %p129 = por %p127, %p128
    %p131 = scmp.ne.s32.totalorder %s116, %s130
    %p132 = scmp.eq.s32.totalorder %s22, 0
    %p133 = por %p131, %p132
    %s135 = sadd.s32 %s134, 1
    %p138 = scmp.eq.s32.totalorder %s16, 1
    %p139 = scmp.ne.s32.totalorder %s134, %s136
    %p140 = scmp.eq.s32.totalorder %s16, 0
    %p141 = por %p139, %p140
    %p142 = scmp.ne.s32.totalorder %s134, %s136
    %p143 = scmp.eq.s32.totalorder %s21, 1
    %p144 = por %p142, %p143
    %p145 = scmp.ne.s32.totalorder %s136, %s137
    %p146 = scmp.eq.s32.totalorder %s21, 0
    %p147 = por %p145, %p146
    %p148 = scmp.ne.s32.totalorder %s136, %s137
    %p149 = scmp.eq.s32.totalorder %s22, 1
    %p150 = por %p148, %p149
    %p152 = scmp.ne.s32.totalorder %s137, %s151
    %p153 = scmp.eq.s32.totalorder %s22, 0
    %p154 = por %p152, %p153
    %s156 = sadd.s32 %s155, 1
    %p159 = scmp.eq.s32.totalorder %s16, 1
    %p160 = scmp.ne.s32.totalorder %s155, %s157
    %p161 = scmp.eq.s32.totalorder %s16, 0
    %p162 = por %p160, %p161
    %p163 = scmp.ne.s32.totalorder %s155, %s157
    %p164 = scmp.eq.s32.totalorder %s21, 1
    %p165 = por %p163, %p164
    %p166 = scmp.ne.s32.totalorder %s157, %s158
    %p167 = scmp.eq.s32.totalorder %s21, 0
    %p168 = por %p166, %p167
    %p169 = scmp.ne.s32.totalorder %s157, %s158
    %p170 = scmp.eq.s32.totalorder %s22, 1
    %p171 = por %p169, %p170
    %p173 = scmp.ne.s32.totalorder %s158, %s172
    %p174 = scmp.eq.s32.totalorder %s22, 0
    %p175 = por %p173, %p174
    %s177 = sadd.s32 %s176, 1
    %p180 = scmp.eq.s32.totalorder %s16, 1
    %p181 = scmp.ne.s32.totalorder %s176, %s178
    %p182 = scmp.eq.s32.totalorder %s16, 0
    %p183 = por %p181, %p182
    %p184 = scmp.ne.s32.totalorder %s176, %s178
    %p185 = scmp.eq.s32.totalorder %s21, 1
    %p186 = por %p184, %p185
    %p187 = scmp.ne.s32.totalorder %s178, %s179
    %p188 = scmp.eq.s32.totalorder %s21, 0
    %p189 = por %p187, %p188
    %p190 = scmp.ne.s32.totalorder %s178, %s179
    %p191 = scmp.eq.s32.totalorder %s22, 1
    %p192 = por %p190, %p191
    %p194 = scmp.ne.s32.totalorder %s179, %s193
    %p195 = scmp.eq.s32.totalorder %s22, 0
    %p196 = por %p194, %p195
    %s197 = ssub.s32 %s16, %s23
    %p198 = scmp.eq.s32.totalorder %s197, 0
    %s200 = sadd.s32 %s199, 1
    %s201 = scalar_select %p198, %s199, %s200
    %p204 = pneg %p198
    %p205 = scmp.eq.s32.totalorder %s16, 1
    %p206 = por %p204, %p205
    %p207 = scmp.ne.s32.totalorder %s199, %s202
    %p208 = scmp.eq.s32.totalorder %s16, 0
    %p209 = por %p207, %p208
    %p210 = scmp.ne.s32.totalorder %s199, %s202
    %p211 = scmp.eq.s32.totalorder %s21, 1
    %p212 = por %p210, %p211
    %p213 = scmp.ne.s32.totalorder %s202, %s203
    %p214 = scmp.eq.s32.totalorder %s21, 0
    %p215 = por %p213, %p214
    %p216 = scmp.ne.s32.totalorder %s202, %s203
    %p217 = scmp.eq.s32.totalorder %s22, 1
    %p218 = por %p216, %p217
    %p220 = scmp.ne.s32.totalorder %s203, %s219
    %p221 = scmp.eq.s32.totalorder %s22, 0
    %p222 = por %p220, %p221
    %p223 = scmp.le.s32.totalorder 1, %s16
    %p224 = scmp.lt.s32.totalorder %s16, 3
    %p225 = pnand %p223, %p224
    %p226 = pneg %p225
    // Predicated region
    $region9: #{net_forward.1} parent=5 // pred_check
      _
    $region10: #{net_forward.1} parent=5 // pred_check_branch
      %228 = sbr.rel (%p225) target = $region12
    $region11: #{net_forward.1} parent=5 // pred_region
      %s229 = ssub.s32 %s16, 1
      // Predicated region
      $region13: #{net_forward.1} parent=11 // pred_check
        %p230 = pneg %p63
      $region14: #{net_forward.1} parent=11 // pred_check_branch
        %232 = sbr.rel (%p230) target = $region16
      $region15: #{net_forward.1} parent=11 // pred_region
        _
      $region16: #{net_forward.1} parent=11 // pred_fallthru
        _
      // Predicated region
      $region17: #{net_forward.1} parent=11 // pred_check
        %p233 = pneg %p84
      $region18: #{net_forward.1} parent=11 // pred_check_branch
        %235 = sbr.rel (%p233) target = $region20
      $region19: #{net_forward.1} parent=11 // pred_region
        _
      $region20: #{net_forward.1} parent=11 // pred_fallthru
        _
      // Predicated region
      $region21: #{net_forward.1} parent=11 // pred_check
        %p236 = pneg %p105
      $region22: #{net_forward.1} parent=11 // pred_check_branch
        %238 = sbr.rel (%p236) target = $region24
      $region23: #{net_forward.1} parent=11 // pred_region
        _
      $region24: #{net_forward.1} parent=11 // pred_fallthru
        _
      // Predicated region
      $region25: #{net_forward.1} parent=11 // pred_check
        %p239 = pneg %p126
      $region26: #{net_forward.1} parent=11 // pred_check_branch
        %241 = sbr.rel (%p239) target = $region28
      $region27: #{net_forward.1} parent=11 // pred_region
        _
      $region28: #{net_forward.1} parent=11 // pred_fallthru
        _
      // Predicated region
      $region29: #{net_forward.1} parent=11 // pred_check
        %p242 = pneg %p147
      $region30: #{net_forward.1} parent=11 // pred_check_branch
        %244 = sbr.rel (%p242) target = $region32
      $region31: #{net_forward.1} parent=11 // pred_region
        _
      $region32: #{net_forward.1} parent=11 // pred_fallthru
        _
      // Predicated region
      $region33: #{net_forward.1} parent=11 // pred_check
        %p245 = pneg %p168
      $region34: #{net_forward.1} parent=11 // pred_check_branch
        %247 = sbr.rel (%p245) target = $region36
      $region35: #{net_forward.1} parent=11 // pred_region
        _
      $region36: #{net_forward.1} parent=11 // pred_fallthru
        _
      // Predicated region
      $region37: #{net_forward.1} parent=11 // pred_check
        %p248 = pneg %p189
      $region38: #{net_forward.1} parent=11 // pred_check_branch
        %250 = sbr.rel (%p248) target = $region40
      $region39: #{net_forward.1} parent=11 // pred_region
        _
      $region40: #{net_forward.1} parent=11 // pred_fallthru
        _
    $region12: #{net_forward.1} parent=5 // pred_fallthru
      _
    %p251 = scmp.lt.s32.totalorder %s16, 2
    // Predicated region
    $region41: #{net_forward.1} parent=5 // pred_check
      %p252 = pneg %p251
    $region42: #{net_forward.1} parent=5 // pred_check_branch
      %254 = sbr.rel (%p252) target = $region44
    $region43: #{net_forward.1} parent=5 // pred_region
      // Predicated region
      $region45: #{net_forward.1} parent=43 // pred_check
        %p255 = pneg %p36
      $region46: #{net_forward.1} parent=43 // pred_check_branch
        %257 = sbr.rel (%p255) target = $region48
      $region47: #{net_forward.1} parent=43 // pred_region
        %p258 = scmp.lt.s32.totalorder %s16, 1
        %s259 = scalar_select %p258, %s16, 1
        %s260 = smul.addr %s259, 64
        %s261 = smul.addr %s260, 4
        %s262 = scalar_lea.vmem %s0, %s261
      $region48: #{net_forward.1} parent=43 // pred_fallthru
        _
    $region44: #{net_forward.1} parent=5 // pred_fallthru
      _
    %p263 = scmp.le.s32.totalorder 1, %s16
    %p264 = scmp.lt.s32.totalorder %s16, 3
    %p265 = pnand %p263, %p264
    %p266 = pneg %p265
    // Predicated region
    $region49: #{net_forward.1} parent=5 // pred_check
      _
    $region50: #{net_forward.1} parent=5 // pred_check_branch
      %268 = sbr.rel (%p265) target = $region52
    $region51: #{net_forward.1} parent=5 // pred_region
      %s269 = ssub.s32 %s16, 1
      %p270 = scmp.lt.s32.totalorder %s21, 1
      %s271 = scalar_select %p270, %s21, 1
      %s272 = smul.addr %s271, 64
      %s273 = smul.addr %s272, 4
      %s274 = scalar_lea.vmem %s0, %s273
      %p275 = pneg %p42
      %p276 = pneg %p39
      %p277 = pneg %p63
      %p278 = pneg %p60
      %p279 = pneg %p84
      %p280 = pneg %p81
      %p281 = pneg %p105
      %p282 = pneg %p102
      %p283 = pneg %p126
      %p284 = pneg %p123
      %p285 = pneg %p147
      %p286 = pneg %p144
      %p287 = pneg %p168
      %p288 = pneg %p165
      %p289 = pneg %p189
      %p290 = pneg %p186
      %p291 = pneg %p215
      %p292 = pneg %p212
      %p293 = scmp.lt.s32.totalorder %s21, 1
      %s294 = scalar_select %p293, %s21, 1
      %s295 = smul.addr %s294, 32
      %s296 = smul.addr %s295, 8
      %s297 = scalar_lea.vmem %s8, %s296
      %p298 = scmp.lt.s32.totalorder %s21, 1
      %s299 = scalar_select %p298, %s21, 1
      %s300 = smul.addr %s299, 64
      %s301 = smul.addr %s300, 4
      %s302 = scalar_lea.vmem %s0, %s301
      %p303 = scmp.lt.s32.totalorder %s21, 1
      %s304 = scalar_select %p303, %s21, 1
      %s305 = smul.addr %s304, 32
      %s306 = smul.addr %s305, 8
      %s307 = scalar_lea.vmem %s8, %s306
      %v308 = vlaneseq
      %v309 = vshrl.u32 %v308, 7
      %v310 = vadd.s32 %v309, 8
      %v311 = vadd.s32 %v309, 16
      %v312 = vadd.s32 %v309, 24
      %v313 = vadd.s32 %v309, 32
      %v314 = vadd.s32 %v309, 40
      %v315 = vadd.s32 %v309, 48
      %v316 = vadd.s32 %v309, 56
      %v317 = vadd.s32 %v309, 64
      %v318 = vadd.s32 %v309, 72
      %v319 = vadd.s32 %v309, 80
      %v320 = vadd.s32 %v309, 88
      %v321 = vadd.s32 %v309, 96
      %v322 = vadd.s32 %v309, 104
      %v323 = vadd.s32 %v309, 112
      %v324 = vadd.s32 %v309, 120
      %v325 = vadd.s32 %v309, 128
      %v326 = vadd.s32 %v309, 136
      %v327 = vadd.s32 %v309, 144
      %v328 = vadd.s32 %v309, 152
      %v329 = vadd.s32 %v309, 160
      %v330 = vadd.s32 %v309, 168
      %v331 = vadd.s32 %v309, 176
      %v332 = vadd.s32 %v309, 184
      %v333 = vadd.s32 %v309, 192
      %v334 = vadd.s32 %v309, 200
      %v335 = vadd.s32 %v309, 208
      %v336 = vadd.s32 %v309, 216
      %v337 = vadd.s32 %v309, 224
      %v338 = vadd.s32 %v309, 232
      %v339 = vadd.s32 %v309, 240
      %v340 = vadd.s32 %v309, 248
      %vm341 = vcmp.lt.s32.totalorder %v309, 0
      %v342 = vsub.s32 0, %v309
      %v343 = vsel %vm341, %v342, %v309
      %v344 = vshrl.u32 %v343, 4
      %v345 = vand.u32 %v343, 15
      %v346 = vsub.s32 0, %v345
      %v347 = vsel %vm341, %v346, %v345
      %vm348 = vcmp.lt.s32.totalorder %v310, 0
      %v349 = vsub.s32 0, %v310
      %v350 = vsel %vm348, %v349, %v310
      %v351 = vshrl.u32 %v350, 4
      %v352 = vand.u32 %v350, 15
      %v353 = vsub.s32 0, %v352
      %v354 = vsel %vm348, %v353, %v352
      %vm355 = vcmp.lt.s32.totalorder %v311, 0
      %v356 = vsub.s32 0, %v311
      %v357 = vsel %vm355, %v356, %v311
      %v358 = vshrl.u32 %v357, 4
      %v359 = vand.u32 %v357, 15
      %v360 = vsub.s32 0, %v359
      %v361 = vsel %vm355, %v360, %v359
      %vm362 = vcmp.lt.s32.totalorder %v312, 0
      %v363 = vsub.s32 0, %v312
      %v364 = vsel %vm362, %v363, %v312
      %v365 = vshrl.u32 %v364, 4
      %v366 = vand.u32 %v364, 15
      %v367 = vsub.s32 0, %v366
      %v368 = vsel %vm362, %v367, %v366
      %vm369 = vcmp.lt.s32.totalorder %v313, 0
      %v370 = vsub.s32 0, %v313
      %v371 = vsel %vm369, %v370, %v313
      %v372 = vshrl.u32 %v371, 4
      %v373 = vand.u32 %v371, 15
      %v374 = vsub.s32 0, %v373
      %v375 = vsel %vm369, %v374, %v373
      %vm376 = vcmp.lt.s32.totalorder %v314, 0
      %v377 = vsub.s32 0, %v314
      %v378 = vsel %vm376, %v377, %v314
      %v379 = vshrl.u32 %v378, 4
      %v380 = vand.u32 %v378, 15
      %v381 = vsub.s32 0, %v380
      %v382 = vsel %vm376, %v381, %v380
      %vm383 = vcmp.lt.s32.totalorder %v315, 0
      %v384 = vsub.s32 0, %v315
      %v385 = vsel %vm383, %v384, %v315
      %v386 = vshrl.u32 %v385, 4
      %v387 = vand.u32 %v385, 15
      %v388 = vsub.s32 0, %v387
      %v389 = vsel %vm383, %v388, %v387
      %vm390 = vcmp.lt.s32.totalorder %v316, 0
      %v391 = vsub.s32 0, %v316
      %v392 = vsel %vm390, %v391, %v316
      %v393 = vshrl.u32 %v392, 4
      %v394 = vand.u32 %v392, 15
      %v395 = vsub.s32 0, %v394
      %v396 = vsel %vm390, %v395, %v394
      %vm397 = vcmp.lt.s32.totalorder %v317, 0
      %v398 = vsub.s32 0, %v317
      %v399 = vsel %vm397, %v398, %v317
      %v400 = vshrl.u32 %v399, 4
      %v401 = vand.u32 %v399, 15
      %v402 = vsub.s32 0, %v401
      %v403 = vsel %vm397, %v402, %v401
      %vm404 = vcmp.lt.s32.totalorder %v318, 0
      %v405 = vsub.s32 0, %v318
      %v406 = vsel %vm404, %v405, %v318
      %v407 = vshrl.u32 %v406, 4
      %v408 = vand.u32 %v406, 15
      %v409 = vsub.s32 0, %v408
      %v410 = vsel %vm404, %v409, %v408
      %vm411 = vcmp.lt.s32.totalorder %v319, 0
      %v412 = vsub.s32 0, %v319
      %v413 = vsel %vm411, %v412, %v319
      %v414 = vshrl.u32 %v413, 4
      %v415 = vand.u32 %v413, 15
      %v416 = vsub.s32 0, %v415
      %v417 = vsel %vm411, %v416, %v415
      %vm418 = vcmp.lt.s32.totalorder %v320, 0
      %v419 = vsub.s32 0, %v320
      %v420 = vsel %vm418, %v419, %v320
      %v421 = vshrl.u32 %v420, 4
      %v422 = vand.u32 %v420, 15
      %v423 = vsub.s32 0, %v422
      %v424 = vsel %vm418, %v423, %v422
      %vm425 = vcmp.lt.s32.totalorder %v321, 0
      %v426 = vsub.s32 0, %v321
      %v427 = vsel %vm425, %v426, %v321
      %v428 = vshrl.u32 %v427, 4
      %v429 = vand.u32 %v427, 15
      %v430 = vsub.s32 0, %v429
      %v431 = vsel %vm425, %v430, %v429
      %vm432 = vcmp.lt.s32.totalorder %v322, 0
      %v433 = vsub.s32 0, %v322
      %v434 = vsel %vm432, %v433, %v322
      %v435 = vshrl.u32 %v434, 4
      %v436 = vand.u32 %v434, 15
      %v437 = vsub.s32 0, %v436
      %v438 = vsel %vm432, %v437, %v436
      %vm439 = vcmp.lt.s32.totalorder %v323, 0
      %v440 = vsub.s32 0, %v323
      %v441 = vsel %vm439, %v440, %v323
      %v442 = vshrl.u32 %v441, 4
      %v443 = vand.u32 %v441, 15
      %v444 = vsub.s32 0, %v443
      %v445 = vsel %vm439, %v444, %v443
      %vm446 = vcmp.lt.s32.totalorder %v324, 0
      %v447 = vsub.s32 0, %v324
      %v448 = vsel %vm446, %v447, %v324
      %v449 = vshrl.u32 %v448, 4
      %v450 = vand.u32 %v448, 15
      %v451 = vsub.s32 0, %v450
      %v452 = vsel %vm446, %v451, %v450
      %vm453 = vcmp.lt.s32.totalorder %v325, 0
      %v454 = vsub.s32 0, %v325
      %v455 = vsel %vm453, %v454, %v325
      %v456 = vshrl.u32 %v455, 4
      %v457 = vand.u32 %v455, 15
      %v458 = vsub.s32 0, %v457
      %v459 = vsel %vm453, %v458, %v457
      %vm460 = vcmp.lt.s32.totalorder %v326, 0
      %v461 = vsub.s32 0, %v326
      %v462 = vsel %vm460, %v461, %v326
      %v463 = vshrl.u32 %v462, 4
      %v464 = vand.u32 %v462, 15
      %v465 = vsub.s32 0, %v464
      %v466 = vsel %vm460, %v465, %v464
      %vm467 = vcmp.lt.s32.totalorder %v327, 0
      %v468 = vsub.s32 0, %v327
      %v469 = vsel %vm467, %v468, %v327
      %v470 = vshrl.u32 %v469, 4
      %v471 = vand.u32 %v469, 15
      %v472 = vsub.s32 0, %v471
      %v473 = vsel %vm467, %v472, %v471
      %vm474 = vcmp.lt.s32.totalorder %v328, 0
      %v475 = vsub.s32 0, %v328
      %v476 = vsel %vm474, %v475, %v328
      %v477 = vshrl.u32 %v476, 4
      %v478 = vand.u32 %v476, 15
      %v479 = vsub.s32 0, %v478
      %v480 = vsel %vm474, %v479, %v478
      %vm481 = vcmp.lt.s32.totalorder %v329, 0
      %v482 = vsub.s32 0, %v329
      %v483 = vsel %vm481, %v482, %v329
      %v484 = vshrl.u32 %v483, 4
      %v485 = vand.u32 %v483, 15
      %v486 = vsub.s32 0, %v485
      %v487 = vsel %vm481, %v486, %v485
      %vm488 = vcmp.lt.s32.totalorder %v330, 0
      %v489 = vsub.s32 0, %v330
      %v490 = vsel %vm488, %v489, %v330
      %v491 = vshrl.u32 %v490, 4
      %v492 = vand.u32 %v490, 15
      %v493 = vsub.s32 0, %v492
      %v494 = vsel %vm488, %v493, %v492
      %vm495 = vcmp.lt.s32.totalorder %v331, 0
      %v496 = vsub.s32 0, %v331
      %v497 = vsel %vm495, %v496, %v331
      %v498 = vshrl.u32 %v497, 4
      %v499 = vand.u32 %v497, 15
      %v500 = vsub.s32 0, %v499
      %v501 = vsel %vm495, %v500, %v499
      %vm502 = vcmp.lt.s32.totalorder %v332, 0
      %v503 = vsub.s32 0, %v332
      %v504 = vsel %vm502, %v503, %v332
      %v505 = vshrl.u32 %v504, 4
      %v506 = vand.u32 %v504, 15
      %v507 = vsub.s32 0, %v506
      %v508 = vsel %vm502, %v507, %v506
      %vm509 = vcmp.lt.s32.totalorder %v333, 0
      %v510 = vsub.s32 0, %v333
      %v511 = vsel %vm509, %v510, %v333
      %v512 = vshrl.u32 %v511, 4
      %v513 = vand.u32 %v511, 15
      %v514 = vsub.s32 0, %v513
      %v515 = vsel %vm509, %v514, %v513
      %vm516 = vcmp.lt.s32.totalorder %v334, 0
      %v517 = vsub.s32 0, %v334
      %v518 = vsel %vm516, %v517, %v334
      %v519 = vshrl.u32 %v518, 4
      %v520 = vand.u32 %v518, 15
      %v521 = vsub.s32 0, %v520
      %v522 = vsel %vm516, %v521, %v520
      %vm523 = vcmp.lt.s32.totalorder %v335, 0
      %v524 = vsub.s32 0, %v335
      %v525 = vsel %vm523, %v524, %v335
      %v526 = vshrl.u32 %v525, 4
      %v527 = vand.u32 %v525, 15
      %v528 = vsub.s32 0, %v527
      %v529 = vsel %vm523, %v528, %v527
      %vm530 = vcmp.lt.s32.totalorder %v336, 0
      %v531 = vsub.s32 0, %v336
      %v532 = vsel %vm530, %v531, %v336
      %v533 = vshrl.u32 %v532, 4
      %v534 = vand.u32 %v532, 15
      %v535 = vsub.s32 0, %v534
      %v536 = vsel %vm530, %v535, %v534
      %vm537 = vcmp.lt.s32.totalorder %v337, 0
      %v538 = vsub.s32 0, %v337
      %v539 = vsel %vm537, %v538, %v337
      %v540 = vshrl.u32 %v539, 4
      %v541 = vand.u32 %v539, 15
      %v542 = vsub.s32 0, %v541
      %v543 = vsel %vm537, %v542, %v541
      %vm544 = vcmp.lt.s32.totalorder %v338, 0
      %v545 = vsub.s32 0, %v338
      %v546 = vsel %vm544, %v545, %v338
      %v547 = vshrl.u32 %v546, 4
      %v548 = vand.u32 %v546, 15
      %v549 = vsub.s32 0, %v548
      %v550 = vsel %vm544, %v549, %v548
      %vm551 = vcmp.lt.s32.totalorder %v339, 0
      %v552 = vsub.s32 0, %v339
      %v553 = vsel %vm551, %v552, %v339
      %v554 = vshrl.u32 %v553, 4
      %v555 = vand.u32 %v553, 15
      %v556 = vsub.s32 0, %v555
      %v557 = vsel %vm551, %v556, %v555
      %vm558 = vcmp.lt.s32.totalorder %v340, 0
      %v559 = vsub.s32 0, %v340
      %v560 = vsel %vm558, %v559, %v340
      %v561 = vshrl.u32 %v560, 4
      %v562 = vand.u32 %v560, 15
      %v563 = vsub.s32 0, %v562
      %v564 = vsel %vm558, %v563, %v562
      %vm565 = vcmp.ne.s32.totalorder %v347, 0
      %vm566 = vcmp.ne.s32.totalorder %v354, 0
      %vm567 = vcmp.ne.s32.totalorder %v361, 0
      %vm568 = vcmp.ne.s32.totalorder %v368, 0
      %vm569 = vcmp.ne.s32.totalorder %v375, 0
      %vm570 = vcmp.ne.s32.totalorder %v382, 0
      %vm571 = vcmp.ne.s32.totalorder %v389, 0
      %vm572 = vcmp.ne.s32.totalorder %v396, 0
      %vm573 = vcmp.ne.s32.totalorder %v403, 0
      %vm574 = vcmp.ne.s32.totalorder %v410, 0
      %vm575 = vcmp.ne.s32.totalorder %v417, 0
      %vm576 = vcmp.ne.s32.totalorder %v424, 0
      %vm577 = vcmp.ne.s32.totalorder %v431, 0
      %vm578 = vcmp.ne.s32.totalorder %v438, 0
      %vm579 = vcmp.ne.s32.totalorder %v445, 0
      %vm580 = vcmp.ne.s32.totalorder %v452, 0
      %vm581 = vcmp.ne.s32.totalorder %v459, 0
      %vm582 = vcmp.ne.s32.totalorder %v466, 0
      %vm583 = vcmp.ne.s32.totalorder %v473, 0
      %vm584 = vcmp.ne.s32.totalorder %v480, 0
      %vm585 = vcmp.ne.s32.totalorder %v487, 0
      %vm586 = vcmp.ne.s32.totalorder %v494, 0
      %vm587 = vcmp.ne.s32.totalorder %v501, 0
      %vm588 = vcmp.ne.s32.totalorder %v508, 0
      %vm589 = vcmp.ne.s32.totalorder %v515, 0
      %vm590 = vcmp.ne.s32.totalorder %v522, 0
      %vm591 = vcmp.ne.s32.totalorder %v529, 0
      %vm592 = vcmp.ne.s32.totalorder %v536, 0
      %vm593 = vcmp.ne.s32.totalorder %v543, 0
      %vm594 = vcmp.ne.s32.totalorder %v550, 0
      %vm595 = vcmp.ne.s32.totalorder %v557, 0
      %vm596 = vcmp.ne.s32.totalorder %v564, 0
      %vm597 = vcmp.lt.s32.totalorder %v347, 0
      %vm598 = vcmp.lt.s32.totalorder %v354, 0
      %vm599 = vcmp.lt.s32.totalorder %v361, 0
      %vm600 = vcmp.lt.s32.totalorder %v368, 0
      %vm601 = vcmp.lt.s32.totalorder %v375, 0
      %vm602 = vcmp.lt.s32.totalorder %v382, 0
      %vm603 = vcmp.lt.s32.totalorder %v389, 0
      %vm604 = vcmp.lt.s32.totalorder %v396, 0
      %vm605 = vcmp.lt.s32.totalorder %v403, 0
      %vm606 = vcmp.lt.s32.totalorder %v410, 0
      %vm607 = vcmp.lt.s32.totalorder %v417, 0
      %vm608 = vcmp.lt.s32.totalorder %v424, 0
      %vm609 = vcmp.lt.s32.totalorder %v431, 0
      %vm610 = vcmp.lt.s32.totalorder %v438, 0
      %vm611 = vcmp.lt.s32.totalorder %v445, 0
      %vm612 = vcmp.lt.s32.totalorder %v452, 0
      %vm613 = vcmp.lt.s32.totalorder %v459, 0
      %vm614 = vcmp.lt.s32.totalorder %v466, 0
      %vm615 = vcmp.lt.s32.totalorder %v473, 0
      %vm616 = vcmp.lt.s32.totalorder %v480, 0
      %vm617 = vcmp.lt.s32.totalorder %v487, 0
      %vm618 = vcmp.lt.s32.totalorder %v494, 0
      %vm619 = vcmp.lt.s32.totalorder %v501, 0
      %vm620 = vcmp.lt.s32.totalorder %v508, 0
      %vm621 = vcmp.lt.s32.totalorder %v515, 0
      %vm622 = vcmp.lt.s32.totalorder %v522, 0
      %vm623 = vcmp.lt.s32.totalorder %v529, 0
      %vm624 = vcmp.lt.s32.totalorder %v536, 0
      %vm625 = vcmp.lt.s32.totalorder %v543, 0
      %vm626 = vcmp.lt.s32.totalorder %v550, 0
      %vm627 = vcmp.lt.s32.totalorder %v557, 0
      %vm628 = vcmp.lt.s32.totalorder %v564, 0
      %vm629 = vmand %vm597, %vm565
      %vm630 = vmand %vm598, %vm566
      %vm631 = vmand %vm599, %vm567
      %vm632 = vmand %vm600, %vm568
      %vm633 = vmand %vm601, %vm569
      %vm634 = vmand %vm602, %vm570
      %vm635 = vmand %vm603, %vm571
      %vm636 = vmand %vm604, %vm572
      %vm637 = vmand %vm605, %vm573
      %vm638 = vmand %vm606, %vm574
      %vm639 = vmand %vm607, %vm575
      %vm640 = vmand %vm608, %vm576
      %vm641 = vmand %vm609, %vm577
      %vm642 = vmand %vm610, %vm578
      %vm643 = vmand %vm611, %vm579
      %vm644 = vmand %vm612, %vm580
      %vm645 = vmand %vm613, %vm581
      %vm646 = vmand %vm614, %vm582
      %vm647 = vmand %vm615, %vm583
      %vm648 = vmand %vm616, %vm584
      %vm649 = vmand %vm617, %vm585
      %vm650 = vmand %vm618, %vm586
      %vm651 = vmand %vm619, %vm587
      %vm652 = vmand %vm620, %vm588
      %vm653 = vmand %vm621, %vm589
      %vm654 = vmand %vm622, %vm590
      %vm655 = vmand %vm623, %vm591
      %vm656 = vmand %vm624, %vm592
      %vm657 = vmand %vm625, %vm593
      %vm658 = vmand %vm626, %vm594
      %vm659 = vmand %vm627, %vm595
      %vm660 = vmand %vm628, %vm596
      %v661 = vadd.s32 %v347, 16
      %v662 = vadd.s32 %v354, 16
      %v663 = vadd.s32 %v361, 16
      %v664 = vadd.s32 %v368, 16
      %v665 = vadd.s32 %v375, 16
      %v666 = vadd.s32 %v382, 16
      %v667 = vadd.s32 %v389, 16
      %v668 = vadd.s32 %v396, 16
      %v669 = vadd.s32 %v403, 16
      %v670 = vadd.s32 %v410, 16
      %v671 = vadd.s32 %v417, 16
      %v672 = vadd.s32 %v424, 16
      %v673 = vadd.s32 %v431, 16
      %v674 = vadd.s32 %v438, 16
      %v675 = vadd.s32 %v445, 16
      %v676 = vadd.s32 %v452, 16
      %v677 = vadd.s32 %v459, 16
      %v678 = vadd.s32 %v466, 16
      %v679 = vadd.s32 %v473, 16
      %v680 = vadd.s32 %v480, 16
      %v681 = vadd.s32 %v487, 16
      %v682 = vadd.s32 %v494, 16
      %v683 = vadd.s32 %v501, 16
      %v684 = vadd.s32 %v508, 16
      %v685 = vadd.s32 %v515, 16
      %v686 = vadd.s32 %v522, 16
      %v687 = vadd.s32 %v529, 16
      %v688 = vadd.s32 %v536, 16
      %v689 = vadd.s32 %v543, 16
      %v690 = vadd.s32 %v550, 16
      %v691 = vadd.s32 %v557, 16
      %v692 = vadd.s32 %v564, 16
      %v693 = vsel %vm629, %v661, %v347
      %v694 = vsel %vm630, %v662, %v354
      %v695 = vsel %vm631, %v663, %v361
      %v696 = vsel %vm632, %v664, %v368
      %v697 = vsel %vm633, %v665, %v375
      %v698 = vsel %vm634, %v666, %v382
      %v699 = vsel %vm635, %v667, %v389
      %v700 = vsel %vm636, %v668, %v396
      %v701 = vsel %vm637, %v669, %v403
      %v702 = vsel %vm638, %v670, %v410
      %v703 = vsel %vm639, %v671, %v417
      %v704 = vsel %vm640, %v672, %v424
      %v705 = vsel %vm641, %v673, %v431
      %v706 = vsel %vm642, %v674, %v438
      %v707 = vsel %vm643, %v675, %v445
      %v708 = vsel %vm644, %v676, %v452
      %v709 = vsel %vm645, %v677, %v459
      %v710 = vsel %vm646, %v678, %v466
      %v711 = vsel %vm647, %v679, %v473
      %v712 = vsel %vm648, %v680, %v480
      %v713 = vsel %vm649, %v681, %v487
      %v714 = vsel %vm650, %v682, %v494
      %v715 = vsel %vm651, %v683, %v501
      %v716 = vsel %vm652, %v684, %v508
      %v717 = vsel %vm653, %v685, %v515
      %v718 = vsel %vm654, %v686, %v522
      %v719 = vsel %vm655, %v687, %v529
      %v720 = vsel %vm656, %v688, %v536
      %v721 = vsel %vm657, %v689, %v543
      %v722 = vsel %vm658, %v690, %v550
      %v723 = vsel %vm659, %v691, %v557
      %v724 = vsel %vm660, %v692, %v564
      %vm725 = vcmp.ne.s32.totalorder %v693, 0
      %vm726 = vcmp.ne.s32.totalorder %v694, 0
      %vm727 = vcmp.ne.s32.totalorder %v695, 0
      %vm728 = vcmp.ne.s32.totalorder %v696, 0
      %vm729 = vcmp.ne.s32.totalorder %v697, 0
      %vm730 = vcmp.ne.s32.totalorder %v698, 0
      %vm731 = vcmp.ne.s32.totalorder %v699, 0
      %vm732 = vcmp.ne.s32.totalorder %v700, 0
      %vm733 = vcmp.ne.s32.totalorder %v701, 0
      %vm734 = vcmp.ne.s32.totalorder %v702, 0
      %vm735 = vcmp.ne.s32.totalorder %v703, 0
      %vm736 = vcmp.ne.s32.totalorder %v704, 0
      %vm737 = vcmp.ne.s32.totalorder %v705, 0
      %vm738 = vcmp.ne.s32.totalorder %v706, 0
      %vm739 = vcmp.ne.s32.totalorder %v707, 0
      %vm740 = vcmp.ne.s32.totalorder %v708, 0
      %vm741 = vcmp.ne.s32.totalorder %v709, 0
      %vm742 = vcmp.ne.s32.totalorder %v710, 0
      %vm743 = vcmp.ne.s32.totalorder %v711, 0
      %vm744 = vcmp.ne.s32.totalorder %v712, 0
      %vm745 = vcmp.ne.s32.totalorder %v713, 0
      %vm746 = vcmp.ne.s32.totalorder %v714, 0
      %vm747 = vcmp.ne.s32.totalorder %v715, 0
      %vm748 = vcmp.ne.s32.totalorder %v716, 0
      %vm749 = vcmp.ne.s32.totalorder %v717, 0
      %vm750 = vcmp.ne.s32.totalorder %v718, 0
      %vm751 = vcmp.ne.s32.totalorder %v719, 0
      %vm752 = vcmp.ne.s32.totalorder %v720, 0
      %vm753 = vcmp.ne.s32.totalorder %v721, 0
      %vm754 = vcmp.ne.s32.totalorder %v722, 0
      %vm755 = vcmp.ne.s32.totalorder %v723, 0
      %vm756 = vcmp.ne.s32.totalorder %v724, 0
      %v757 = vsel %vm725, 1, 0
      %v758 = vsel %vm726, 1, 0
      %v759 = vsel %vm727, 1, 0
      %v760 = vsel %vm728, 1, 0
      %v761 = vsel %vm729, 1, 0
      %v762 = vsel %vm730, 1, 0
      %v763 = vsel %vm731, 1, 0
      %v764 = vsel %vm732, 1, 0
      %v765 = vsel %vm733, 1, 0
      %v766 = vsel %vm734, 1, 0
      %v767 = vsel %vm735, 1, 0
      %v768 = vsel %vm736, 1, 0
      %v769 = vsel %vm737, 1, 0
      %v770 = vsel %vm738, 1, 0
      %v771 = vsel %vm739, 1, 0
      %v772 = vsel %vm740, 1, 0
      %v773 = vsel %vm741, 1, 0
      %v774 = vsel %vm742, 1, 0
      %v775 = vsel %vm743, 1, 0
      %v776 = vsel %vm744, 1, 0
      %v777 = vsel %vm745, 1, 0
      %v778 = vsel %vm746, 1, 0
      %v779 = vsel %vm747, 1, 0
      %v780 = vsel %vm748, 1, 0
      %v781 = vsel %vm749, 1, 0
      %v782 = vsel %vm750, 1, 0
      %v783 = vsel %vm751, 1, 0
      %v784 = vsel %vm752, 1, 0
      %v785 = vsel %vm753, 1, 0
      %v786 = vsel %vm754, 1, 0
      %v787 = vsel %vm755, 1, 0
      %v788 = vsel %vm756, 1, 0
      %v789 = vcvt.s32.f32 %v757
      %v790 = vcvt.s32.f32 %v758
      %v791 = vcvt.s32.f32 %v759
      %v792 = vcvt.s32.f32 %v760
      %v793 = vcvt.s32.f32 %v761
      %v794 = vcvt.s32.f32 %v762
      %v795 = vcvt.s32.f32 %v763
      %v796 = vcvt.s32.f32 %v764
      %v797 = vcvt.s32.f32 %v765
      %v798 = vcvt.s32.f32 %v766
      %v799 = vcvt.s32.f32 %v767
      %v800 = vcvt.s32.f32 %v768
      %v801 = vcvt.s32.f32 %v769
      %v802 = vcvt.s32.f32 %v770
      %v803 = vcvt.s32.f32 %v771
      %v804 = vcvt.s32.f32 %v772
      %v805 = vcvt.s32.f32 %v773
      %v806 = vcvt.s32.f32 %v774
      %v807 = vcvt.s32.f32 %v775
      %v808 = vcvt.s32.f32 %v776
      %v809 = vcvt.s32.f32 %v777
      %v810 = vcvt.s32.f32 %v778
      %v811 = vcvt.s32.f32 %v779
      %v812 = vcvt.s32.f32 %v780
      %v813 = vcvt.s32.f32 %v781
      %v814 = vcvt.s32.f32 %v782
      %v815 = vcvt.s32.f32 %v783
      %v816 = vcvt.s32.f32 %v784
      %v817 = vcvt.s32.f32 %v785
      %v818 = vcvt.s32.f32 %v786
      %v819 = vcvt.s32.f32 %v787
      %v820 = vcvt.s32.f32 %v788
      %vm821 = vcmp.ne.s32.totalorder %v693, 15
      %vm822 = vcmp.ne.s32.totalorder %v694, 15
      %vm823 = vcmp.ne.s32.totalorder %v695, 15
      %vm824 = vcmp.ne.s32.totalorder %v696, 15
      %vm825 = vcmp.ne.s32.totalorder %v697, 15
      %vm826 = vcmp.ne.s32.totalorder %v698, 15
      %vm827 = vcmp.ne.s32.totalorder %v699, 15
      %vm828 = vcmp.ne.s32.totalorder %v700, 15
      %vm829 = vcmp.ne.s32.totalorder %v701, 15
      %vm830 = vcmp.ne.s32.totalorder %v702, 15
      %vm831 = vcmp.ne.s32.totalorder %v703, 15
      %vm832 = vcmp.ne.s32.totalorder %v704, 15
      %vm833 = vcmp.ne.s32.totalorder %v705, 15
      %vm834 = vcmp.ne.s32.totalorder %v706, 15
      %vm835 = vcmp.ne.s32.totalorder %v707, 15
      %vm836 = vcmp.ne.s32.totalorder %v708, 15
      %vm837 = vcmp.ne.s32.totalorder %v709, 15
      %vm838 = vcmp.ne.s32.totalorder %v710, 15
      %vm839 = vcmp.ne.s32.totalorder %v711, 15
      %vm840 = vcmp.ne.s32.totalorder %v712, 15
      %vm841 = vcmp.ne.s32.totalorder %v713, 15
      %vm842 = vcmp.ne.s32.totalorder %v714, 15
      %vm843 = vcmp.ne.s32.totalorder %v715, 15
      %vm844 = vcmp.ne.s32.totalorder %v716, 15
      %vm845 = vcmp.ne.s32.totalorder %v717, 15
      %vm846 = vcmp.ne.s32.totalorder %v718, 15
      %vm847 = vcmp.ne.s32.totalorder %v719, 15
      %vm848 = vcmp.ne.s32.totalorder %v720, 15
      %vm849 = vcmp.ne.s32.totalorder %v721, 15
      %vm850 = vcmp.ne.s32.totalorder %v722, 15
      %vm851 = vcmp.ne.s32.totalorder %v723, 15
      %vm852 = vcmp.ne.s32.totalorder %v724, 15
      %v853 = vsel %vm821, 1, 0
      %v854 = vsel %vm822, 1, 0
      %v855 = vsel %vm823, 1, 0
      %v856 = vsel %vm824, 1, 0
      %v857 = vsel %vm825, 1, 0
      %v858 = vsel %vm826, 1, 0
      %v859 = vsel %vm827, 1, 0
      %v860 = vsel %vm828, 1, 0
      %v861 = vsel %vm829, 1, 0
      %v862 = vsel %vm830, 1, 0
      %v863 = vsel %vm831, 1, 0
      %v864 = vsel %vm832, 1, 0
      %v865 = vsel %vm833, 1, 0
      %v866 = vsel %vm834, 1, 0
      %v867 = vsel %vm835, 1, 0
      %v868 = vsel %vm836, 1, 0
      %v869 = vsel %vm837, 1, 0
      %v870 = vsel %vm838, 1, 0
      %v871 = vsel %vm839, 1, 0
      %v872 = vsel %vm840, 1, 0
      %v873 = vsel %vm841, 1, 0
      %v874 = vsel %vm842, 1, 0
      %v875 = vsel %vm843, 1, 0
      %v876 = vsel %vm844, 1, 0
      %v877 = vsel %vm845, 1, 0
      %v878 = vsel %vm846, 1, 0
      %v879 = vsel %vm847, 1, 0
      %v880 = vsel %vm848, 1, 0
      %v881 = vsel %vm849, 1, 0
      %v882 = vsel %vm850, 1, 0
      %v883 = vsel %vm851, 1, 0
      %v884 = vsel %vm852, 1, 0
      %v885 = vcvt.s32.f32 %v853
      %v886 = vcvt.s32.f32 %v854
      %v887 = vcvt.s32.f32 %v855
      %v888 = vcvt.s32.f32 %v856
      %v889 = vcvt.s32.f32 %v857
      %v890 = vcvt.s32.f32 %v858
      %v891 = vcvt.s32.f32 %v859
      %v892 = vcvt.s32.f32 %v860
      %v893 = vcvt.s32.f32 %v861
      %v894 = vcvt.s32.f32 %v862
      %v895 = vcvt.s32.f32 %v863
      %v896 = vcvt.s32.f32 %v864
      %v897 = vcvt.s32.f32 %v865
      %v898 = vcvt.s32.f32 %v866
      %v899 = vcvt.s32.f32 %v867
      %v900 = vcvt.s32.f32 %v868
      %v901 = vcvt.s32.f32 %v869
      %v902 = vcvt.s32.f32 %v870
      %v903 = vcvt.s32.f32 %v871
      %v904 = vcvt.s32.f32 %v872
      %v905 = vcvt.s32.f32 %v873
      %v906 = vcvt.s32.f32 %v874
      %v907 = vcvt.s32.f32 %v875
      %v908 = vcvt.s32.f32 %v876
      %v909 = vcvt.s32.f32 %v877
      %v910 = vcvt.s32.f32 %v878
      %v911 = vcvt.s32.f32 %v879
      %v912 = vcvt.s32.f32 %v880
      %v913 = vcvt.s32.f32 %v881
      %v914 = vcvt.s32.f32 %v882
      %v915 = vcvt.s32.f32 %v883
      %v916 = vcvt.s32.f32 %v884
      %917 = vst [vmem:[#allocation2] sm:$0xff] 0.0
      %918 = vst [vmem:[#allocation2 + $0x8] sm:$0xff] 0.0
      %919 = vst [vmem:[#allocation2 + $0x10] sm:$0xff] 0.0
      %920 = vst [vmem:[#allocation2 + $0x18] sm:$0xff] 0.0
      %921 = vst [vmem:[#allocation2 + $0x120] sm:$0xff] 0.0
      %922 = vst [vmem:[#allocation2 + $0x128] sm:$0xff] 0.0
      %923 = vst [vmem:[#allocation2 + $0x130] sm:$0xff] 0.0
      %924 = vst [vmem:[#allocation2 + $0x138] sm:$0xff] 0.0
      %925 = vst [vmem:[#allocation3] sm:$0xff] 0.0
      %926 = vst [vmem:[#allocation3 + $0x8] sm:$0xff] 0.0
      %927 = vst [vmem:[#allocation3 + $0x10] sm:$0xff] 0.0
      %928 = vst [vmem:[#allocation3 + $0x18] sm:$0xff] 0.0
      %929 = vst [vmem:[#allocation3 + $0x120] sm:$0xff] 0.0
      %930 = vst [vmem:[#allocation3 + $0x128] sm:$0xff] 0.0
      %931 = vst [vmem:[#allocation3 + $0x130] sm:$0xff] 0.0
      %932 = vst [vmem:[#allocation3 + $0x138] sm:$0xff] 0.0
      %933 = vst [vmem:[#allocation4] sm:$0xff] 0.0
      %934 = vst [vmem:[#allocation4 + $0x8] sm:$0xff] 0.0
      %935 = vst [vmem:[#allocation4 + $0x10] sm:$0xff] 0.0
      %936 = vst [vmem:[#allocation4 + $0x18] sm:$0xff] 0.0
      %937 = vst [vmem:[#allocation4 + $0x120] sm:$0xff] 0.0
      %938 = vst [vmem:[#allocation4 + $0x128] sm:$0xff] 0.0
      %939 = vst [vmem:[#allocation4 + $0x130] sm:$0xff] 0.0
      %940 = vst [vmem:[#allocation4 + $0x138] sm:$0xff] 0.0
      %v941 = vld [vmem:[%s302] sm:$0xff]
      %v942 = vld [vmem:[%s302 + $0x8] sm:$0xff]
      %v943 = vld [vmem:[%s302 + $0x10] sm:$0xff]
      %v944 = vld [vmem:[%s302 + $0x18] sm:$0xff]
      %v945 = vld [vmem:[%s302 + $0x20] sm:$0xff]
      %v946 = vld [vmem:[%s302 + $0x28] sm:$0xff]
      %v947 = vld [vmem:[%s302 + $0x30] sm:$0xff]
      %v948 = vld [vmem:[%s302 + $0x38] sm:$0xff]
      %v949 = vld [vmem:[%s302 + $0x40] sm:$0xff]
      %v950 = vld [vmem:[%s302 + $0x48] sm:$0xff]
      %v951 = vld [vmem:[%s302 + $0x50] sm:$0xff]
      %v952 = vld [vmem:[%s302 + $0x58] sm:$0xff]
      %v953 = vld [vmem:[%s302 + $0x60] sm:$0xff]
      %v954 = vld [vmem:[%s302 + $0x68] sm:$0xff]
      %v955 = vld [vmem:[%s302 + $0x70] sm:$0xff]
      %v956 = vld [vmem:[%s302 + $0x78] sm:$0xff]
      %v957 = vld [vmem:[%s302 + $0x80] sm:$0xff]
      %v958 = vld [vmem:[%s302 + $0x88] sm:$0xff]
      %v959 = vld [vmem:[%s302 + $0x90] sm:$0xff]
      %v960 = vld [vmem:[%s302 + $0x98] sm:$0xff]
      %v961 = vld [vmem:[%s302 + $0xa0] sm:$0xff]
      %v962 = vld [vmem:[%s302 + $0xa8] sm:$0xff]
      %v963 = vld [vmem:[%s302 + $0xb0] sm:$0xff]
      %v964 = vld [vmem:[%s302 + $0xb8] sm:$0xff]
      %v965 = vld [vmem:[%s302 + $0xc0] sm:$0xff]
      %v966 = vld [vmem:[%s302 + $0xc8] sm:$0xff]
      %v967 = vld [vmem:[%s302 + $0xd0] sm:$0xff]
      %v968 = vld [vmem:[%s302 + $0xd8] sm:$0xff]
      %v969 = vld [vmem:[%s302 + $0xe0] sm:$0xff]
      %v970 = vld [vmem:[%s302 + $0xe8] sm:$0xff]
      %v971 = vld [vmem:[%s302 + $0xf0] sm:$0xff]
      %v972 = vld [vmem:[%s302 + $0xf8] sm:$0xff]
      %v973 = vld [vmem:[%s1] sm:$0xf]
      %v974 = vld [vmem:[%s1 + $0x4] sm:$0xf]
      %v975 = vld [vmem:[%s1 + $0x8] sm:$0xf]
      %v976 = vld [vmem:[%s1 + $0xc] sm:$0xf]
      %v977 = vld [vmem:[%s1 + $0x10] sm:$0xf]
      %v978 = vld [vmem:[%s1 + $0x14] sm:$0xf]
      %v979 = vld [vmem:[%s1 + $0x18] sm:$0xf]
      %v980 = vld [vmem:[%s1 + $0x1c] sm:$0xf]
      %v981 = vld [vmem:[%s1 + $0x20] sm:$0xf]
      %v982 = vld [vmem:[%s1 + $0x24] sm:$0xf]
      %v983 = vld [vmem:[%s1 + $0x28] sm:$0xf]
      %v984 = vld [vmem:[%s1 + $0x2c] sm:$0xf]
      %v985 = vld [vmem:[%s1 + $0x30] sm:$0xf]
      %v986 = vld [vmem:[%s1 + $0x34] sm:$0xf]
      %v987 = vld [vmem:[%s1 + $0x38] sm:$0xf]
      %v988 = vld [vmem:[%s1 + $0x3c] sm:$0xf]
      %v989 = vld [vmem:[%s1 + $0x40] sm:$0xf]
      %v990 = vld [vmem:[%s1 + $0x44] sm:$0xf]
      %v991 = vld [vmem:[%s1 + $0x48] sm:$0xf]
      %v992 = vld [vmem:[%s1 + $0x4c] sm:$0xf]
      %v993 = vld [vmem:[%s1 + $0x50] sm:$0xf]
      %v994 = vld [vmem:[%s1 + $0x54] sm:$0xf]
      %v995 = vld [vmem:[%s1 + $0x58] sm:$0xf]
      %v996 = vld [vmem:[%s1 + $0x5c] sm:$0xf]
      %v997 = vld [vmem:[%s1 + $0x60] sm:$0xf]
      %v998 = vld [vmem:[%s1 + $0x64] sm:$0xf]
      %v999 = vld [vmem:[%s1 + $0x68] sm:$0xf]
      %v1000 = vld [vmem:[%s1 + $0x6c] sm:$0xf]
      %v1001 = vld [vmem:[%s1 + $0x70] sm:$0xf]
      %v1002 = vld [vmem:[%s1 + $0x74] sm:$0xf]
      %v1003 = vld [vmem:[%s1 + $0x78] sm:$0xf]
      %v1004 = vld [vmem:[%s1 + $0x7c] sm:$0xf]
      %v1005 = vld [vmem:[%s2] sm:$0x1]
      %v1007 = vperm.slane %v1005, 0
      %v1041 = vunpack.c.l.b16 %v941
      %v1042 = vunpack.c.h.b16 %v941
      %v1043 = vunpack.c.l.b16 %v942
      %v1044 = vunpack.c.h.b16 %v942
      %v1045 = vunpack.c.l.b16 %v943
      %v1046 = vunpack.c.h.b16 %v943
      %v1047 = vunpack.c.l.b16 %v944
      %v1048 = vunpack.c.h.b16 %v944
      %v1049 = vunpack.c.l.b16 %v945
      %v1050 = vunpack.c.h.b16 %v945
      %v1051 = vunpack.c.l.b16 %v946
      %v1052 = vunpack.c.h.b16 %v946
      %v1053 = vunpack.c.l.b16 %v947
      %v1054 = vunpack.c.h.b16 %v947
      %v1055 = vunpack.c.l.b16 %v948
      %v1056 = vunpack.c.h.b16 %v948
      %v1057 = vunpack.c.l.b16 %v949
      %v1058 = vunpack.c.h.b16 %v949
      %v1059 = vunpack.c.l.b16 %v950
      %v1060 = vunpack.c.h.b16 %v950
      %v1061 = vunpack.c.l.b16 %v951
      %v1062 = vunpack.c.h.b16 %v951
      %v1063 = vunpack.c.l.b16 %v952
      %v1064 = vunpack.c.h.b16 %v952
      %v1065 = vunpack.c.l.b16 %v953
      %v1066 = vunpack.c.h.b16 %v953
      %v1067 = vunpack.c.l.b16 %v954
      %v1068 = vunpack.c.h.b16 %v954
      %v1069 = vunpack.c.l.b16 %v955
      %v1070 = vunpack.c.h.b16 %v955
      %v1071 = vunpack.c.l.b16 %v956
      %v1072 = vunpack.c.h.b16 %v956
      %v1073 = vunpack.c.l.b16 %v957
      %v1074 = vunpack.c.h.b16 %v957
      %v1075 = vunpack.c.l.b16 %v958
      %v1076 = vunpack.c.h.b16 %v958
      %v1077 = vunpack.c.l.b16 %v959
      %v1078 = vunpack.c.h.b16 %v959
      %v1079 = vunpack.c.l.b16 %v960
      %v1080 = vunpack.c.h.b16 %v960
      %v1081 = vunpack.c.l.b16 %v961
      %v1082 = vunpack.c.h.b16 %v961
      %v1083 = vunpack.c.l.b16 %v962
      %v1084 = vunpack.c.h.b16 %v962
      %v1085 = vunpack.c.l.b16 %v963
      %v1086 = vunpack.c.h.b16 %v963
      %v1087 = vunpack.c.l.b16 %v964
      %v1088 = vunpack.c.h.b16 %v964
      %v1089 = vunpack.c.l.b16 %v965
      %v1090 = vunpack.c.h.b16 %v965
      %v1091 = vunpack.c.l.b16 %v966
      %v1092 = vunpack.c.h.b16 %v966
      %v1093 = vunpack.c.l.b16 %v967
      %v1094 = vunpack.c.h.b16 %v967
      %v1095 = vunpack.c.l.b16 %v968
      %v1096 = vunpack.c.h.b16 %v968
      %v1097 = vunpack.c.l.b16 %v969
      %v1098 = vunpack.c.h.b16 %v969
      %v1099 = vunpack.c.l.b16 %v970
      %v1100 = vunpack.c.h.b16 %v970
      %v1101 = vunpack.c.l.b16 %v971
      %v1102 = vunpack.c.h.b16 %v971
      %v1103 = vunpack.c.l.b16 %v972
      %v1104 = vunpack.c.h.b16 %v972
      %v1105 = vpack.c.b16 %v1043, %v1041
      %v1106 = vpack.c.b16 %v1044, %v1042
      %v1107 = vpack.c.b16 %v1047, %v1045
      %v1108 = vpack.c.b16 %v1048, %v1046
      %v1109 = vpack.c.b16 %v1051, %v1049
      %v1110 = vpack.c.b16 %v1052, %v1050
      %v1111 = vpack.c.b16 %v1055, %v1053
      %v1112 = vpack.c.b16 %v1056, %v1054
      %v1113 = vpack.c.b16 %v1059, %v1057
      %v1114 = vpack.c.b16 %v1060, %v1058
      %v1115 = vpack.c.b16 %v1063, %v1061
      %v1116 = vpack.c.b16 %v1064, %v1062
      %v1117 = vpack.c.b16 %v1067, %v1065
      %v1118 = vpack.c.b16 %v1068, %v1066
      %v1119 = vpack.c.b16 %v1071, %v1069
      %v1120 = vpack.c.b16 %v1072, %v1070
      %v1121 = vpack.c.b16 %v1075, %v1073
      %v1122 = vpack.c.b16 %v1076, %v1074
      %v1123 = vpack.c.b16 %v1079, %v1077
      %v1124 = vpack.c.b16 %v1080, %v1078
      %v1125 = vpack.c.b16 %v1083, %v1081
      %v1126 = vpack.c.b16 %v1084, %v1082
      %v1127 = vpack.c.b16 %v1087, %v1085
      %v1128 = vpack.c.b16 %v1088, %v1086
      %v1129 = vpack.c.b16 %v1091, %v1089
      %v1130 = vpack.c.b16 %v1092, %v1090
      %v1131 = vpack.c.b16 %v1095, %v1093
      %v1132 = vpack.c.b16 %v1096, %v1094
      %v1133 = vpack.c.b16 %v1099, %v1097
      %v1134 = vpack.c.b16 %v1100, %v1098
      %v1135 = vpack.c.b16 %v1103, %v1101
      %v1136 = vpack.c.b16 %v1104, %v1102
      %v1201 = vunpack.c.l.b16 %v973
      %v1202 = vunpack.c.l.b16 %v974
      %v1203 = vunpack.c.l.b16 %v975
      %v1204 = vunpack.c.l.b16 %v976
      %v1205 = vunpack.c.l.b16 %v977
      %v1206 = vunpack.c.l.b16 %v978
      %v1207 = vunpack.c.l.b16 %v979
      %v1208 = vunpack.c.l.b16 %v980
      %v1209 = vunpack.c.l.b16 %v981
      %v1210 = vunpack.c.l.b16 %v982
      %v1211 = vunpack.c.l.b16 %v983
      %v1212 = vunpack.c.l.b16 %v984
      %v1213 = vunpack.c.l.b16 %v985
      %v1214 = vunpack.c.l.b16 %v986
      %v1215 = vunpack.c.l.b16 %v987
      %v1216 = vunpack.c.l.b16 %v988
      %v1217 = vunpack.c.l.b16 %v989
      %v1218 = vunpack.c.l.b16 %v990
      %v1219 = vunpack.c.l.b16 %v991
      %v1220 = vunpack.c.l.b16 %v992
      %v1221 = vunpack.c.l.b16 %v993
      %v1222 = vunpack.c.l.b16 %v994
      %v1223 = vunpack.c.l.b16 %v995
      %v1224 = vunpack.c.l.b16 %v996
      %v1225 = vunpack.c.l.b16 %v997
      %v1226 = vunpack.c.l.b16 %v998
      %v1227 = vunpack.c.l.b16 %v999
      %v1228 = vunpack.c.l.b16 %v1000
      %v1229 = vunpack.c.l.b16 %v1001
      %v1230 = vunpack.c.l.b16 %v1002
      %v1231 = vunpack.c.l.b16 %v1003
      %v1232 = vunpack.c.l.b16 %v1004
      %v1233 = vpack.c.b16 %v1202, %v1201
      %v1234 = vpack.c.b16 %v1204, %v1203
      %v1235 = vpack.c.b16 %v1206, %v1205
      %v1236 = vpack.c.b16 %v1208, %v1207
      %v1237 = vpack.c.b16 %v1210, %v1209
      %v1238 = vpack.c.b16 %v1212, %v1211
      %v1239 = vpack.c.b16 %v1214, %v1213
      %v1240 = vpack.c.b16 %v1216, %v1215
      %v1241 = vpack.c.b16 %v1218, %v1217
      %v1242 = vpack.c.b16 %v1220, %v1219
      %v1243 = vpack.c.b16 %v1222, %v1221
      %v1244 = vpack.c.b16 %v1224, %v1223
      %v1245 = vpack.c.b16 %v1226, %v1225
      %v1246 = vpack.c.b16 %v1228, %v1227
      %v1247 = vpack.c.b16 %v1230, %v1229
      %v1248 = vpack.c.b16 %v1232, %v1231
      %1265 = vmatpush.bf16.msra.mxu0 %v1240
      %1266 = vmatpush.bf16.msra.mxu0 %v1239
      %1267 = vmatpush.bf16.msra.mxu0 %v1238
      %1268 = vmatpush.bf16.msra.mxu0 %v1237
      %1269 = vmatpush.bf16.msra.mxu0 %v1236
      %1270 = vmatpush.bf16.msra.mxu0 %v1235
      %1271 = vmatpush.bf16.msra.mxu0 %v1234
      %1272 = vmatpush.bf16.msra.mxu0 %v1233
      %1273 = vmatmul.bf16.gmra.mxu0 %v1105
      %v1274 = vpop.f32.mrf.mxu0
      %v1275 = vadd.f32 %v1007, %v1274
      %v1276 = vpop.f32.mrf.mxu0
      %v1277 = vadd.f32 %v1007, %v1276
      %1278 = vmatmul.bf16.gmra.mxu0 %v1107
      %v1279 = vpop.f32.mrf.mxu0
      %v1280 = vadd.f32 %v1007, %v1279
      %v1281 = vpop.f32.mrf.mxu0
      %v1282 = vadd.f32 %v1007, %v1281
      %1283 = vmatmul.bf16.gmra.mxu0 %v1109
      %v1284 = vpop.f32.mrf.mxu0
      %v1285 = vadd.f32 %v1007, %v1284
      %v1286 = vpop.f32.mrf.mxu0
      %v1287 = vadd.f32 %v1007, %v1286
      %1288 = vmatmul.bf16.gmra.mxu0 %v1111
      %v1289 = vpop.f32.mrf.mxu0
      %v1290 = vadd.f32 %v1007, %v1289
      %v1291 = vpop.f32.mrf.mxu0
      %v1292 = vadd.f32 %v1007, %v1291
      %1293 = vmatmul.bf16.gmra.mxu0 %v1113
      %v1294 = vpop.f32.mrf.mxu0
      %v1295 = vadd.f32 %v1007, %v1294
      %v1296 = vpop.f32.mrf.mxu0
      %v1297 = vadd.f32 %v1007, %v1296
      %1298 = vmatmul.bf16.gmra.mxu0 %v1115
      %v1299 = vpop.f32.mrf.mxu0
      %v1300 = vadd.f32 %v1007, %v1299
      %v1301 = vpop.f32.mrf.mxu0
      %v1302 = vadd.f32 %v1007, %v1301
      %1303 = vmatmul.bf16.gmra.mxu0 %v1117
      %v1304 = vpop.f32.mrf.mxu0
      %v1305 = vadd.f32 %v1007, %v1304
      %v1306 = vpop.f32.mrf.mxu0
      %v1307 = vadd.f32 %v1007, %v1306
      %1308 = vmatmul.bf16.gmra.mxu0 %v1119
      %v1309 = vpop.f32.mrf.mxu0
      %v1310 = vadd.f32 %v1007, %v1309
      %v1311 = vpop.f32.mrf.mxu0
      %v1312 = vadd.f32 %v1007, %v1311
      %1313 = vmatmul.bf16.gmra.mxu0 %v1121
      %v1314 = vpop.f32.mrf.mxu0
      %v1315 = vadd.f32 %v1007, %v1314
      %v1316 = vpop.f32.mrf.mxu0
      %v1317 = vadd.f32 %v1007, %v1316
      %1318 = vmatmul.bf16.gmra.mxu0 %v1123
      %v1319 = vpop.f32.mrf.mxu0
      %v1320 = vadd.f32 %v1007, %v1319
      %v1321 = vpop.f32.mrf.mxu0
      %v1322 = vadd.f32 %v1007, %v1321
      %1323 = vmatmul.bf16.gmra.mxu0 %v1125
      %v1324 = vpop.f32.mrf.mxu0
      %v1325 = vadd.f32 %v1007, %v1324
      %v1326 = vpop.f32.mrf.mxu0
      %v1327 = vadd.f32 %v1007, %v1326
      %1328 = vmatmul.bf16.gmra.mxu0 %v1127
      %v1329 = vpop.f32.mrf.mxu0
      %v1330 = vadd.f32 %v1007, %v1329
      %v1331 = vpop.f32.mrf.mxu0
      %v1332 = vadd.f32 %v1007, %v1331
      %1333 = vmatmul.bf16.gmra.mxu0 %v1129
      %v1334 = vpop.f32.mrf.mxu0
      %v1335 = vadd.f32 %v1007, %v1334
      %v1336 = vpop.f32.mrf.mxu0
      %v1337 = vadd.f32 %v1007, %v1336
      %1338 = vmatmul.bf16.gmra.mxu0 %v1131
      %v1339 = vpop.f32.mrf.mxu0
      %v1340 = vadd.f32 %v1007, %v1339
      %v1341 = vpop.f32.mrf.mxu0
      %v1342 = vadd.f32 %v1007, %v1341
      %1343 = vmatmul.bf16.gmra.mxu0 %v1133
      %v1344 = vpop.f32.mrf.mxu0
      %v1345 = vadd.f32 %v1007, %v1344
      %v1346 = vpop.f32.mrf.mxu0
      %v1347 = vadd.f32 %v1007, %v1346
      %1348 = vmatmul.bf16.gmra.mxu0 %v1135
      %v1349 = vpop.f32.mrf.mxu0
      %v1350 = vadd.f32 %v1007, %v1349
      %v1351 = vpop.f32.mrf.mxu0
      %v1352 = vadd.f32 %v1007, %v1351
      %1353 = vdwg.mxu0
      %1354 = vmatpush.bf16.msra.mxu0 %v1248
      %1355 = vmatpush.bf16.msra.mxu0 %v1247
      %1356 = vmatpush.bf16.msra.mxu0 %v1246
      %1357 = vmatpush.bf16.msra.mxu0 %v1245
      %1358 = vmatpush.bf16.msra.mxu0 %v1244
      %1359 = vmatpush.bf16.msra.mxu0 %v1243
      %1360 = vmatpush.bf16.msra.mxu0 %v1242
      %1361 = vmatpush.bf16.msra.mxu0 %v1241
      %1362 = vmatmul.bf16.gmra.mxu0 %v1106
      %v1363 = vpop.f32.mrf.mxu0
      %v1364 = vadd.f32 %v1275, %v1363
      %v1365 = vpop.f32.mrf.mxu0
      %v1366 = vadd.f32 %v1277, %v1365
      %1367 = vmatmul.bf16.gmra.mxu0 %v1108
      %v1368 = vpop.f32.mrf.mxu0
      %v1369 = vadd.f32 %v1280, %v1368
      %v1370 = vpop.f32.mrf.mxu0
      %v1371 = vadd.f32 %v1282, %v1370
      %1372 = vmatmul.bf16.gmra.mxu0 %v1110
      %v1373 = vpop.f32.mrf.mxu0
      %v1374 = vadd.f32 %v1285, %v1373
      %v1375 = vpop.f32.mrf.mxu0
      %v1376 = vadd.f32 %v1287, %v1375
      %1377 = vmatmul.bf16.gmra.mxu0 %v1112
      %v1378 = vpop.f32.mrf.mxu0
      %v1379 = vadd.f32 %v1290, %v1378
      %v1380 = vpop.f32.mrf.mxu0
      %v1381 = vadd.f32 %v1292, %v1380
      %1382 = vmatmul.bf16.gmra.mxu0 %v1114
      %v1383 = vpop.f32.mrf.mxu0
      %v1384 = vadd.f32 %v1295, %v1383
      %v1385 = vpop.f32.mrf.mxu0
      %v1386 = vadd.f32 %v1297, %v1385
      %1387 = vmatmul.bf16.gmra.mxu0 %v1116
      %v1388 = vpop.f32.mrf.mxu0
      %v1389 = vadd.f32 %v1300, %v1388
      %v1390 = vpop.f32.mrf.mxu0
      %v1391 = vadd.f32 %v1302, %v1390
      %1392 = vmatmul.bf16.gmra.mxu0 %v1118
      %v1393 = vpop.f32.mrf.mxu0
      %v1394 = vadd.f32 %v1305, %v1393
      %v1395 = vpop.f32.mrf.mxu0
      %v1396 = vadd.f32 %v1307, %v1395
      %1397 = vmatmul.bf16.gmra.mxu0 %v1120
      %v1398 = vpop.f32.mrf.mxu0
      %v1399 = vadd.f32 %v1310, %v1398
      %v1400 = vpop.f32.mrf.mxu0
      %v1401 = vadd.f32 %v1312, %v1400
      %1402 = vmatmul.bf16.gmra.mxu0 %v1122
      %v1403 = vpop.f32.mrf.mxu0
      %v1404 = vadd.f32 %v1315, %v1403
      %v1405 = vpop.f32.mrf.mxu0
      %v1406 = vadd.f32 %v1317, %v1405
      %1407 = vmatmul.bf16.gmra.mxu0 %v1124
      %v1408 = vpop.f32.mrf.mxu0
      %v1409 = vadd.f32 %v1320, %v1408
      %v1410 = vpop.f32.mrf.mxu0
      %v1411 = vadd.f32 %v1322, %v1410
      %1412 = vmatmul.bf16.gmra.mxu0 %v1126
      %v1413 = vpop.f32.mrf.mxu0
      %v1414 = vadd.f32 %v1325, %v1413
      %v1415 = vpop.f32.mrf.mxu0
      %v1416 = vadd.f32 %v1327, %v1415
      %1417 = vmatmul.bf16.gmra.mxu0 %v1128
      %v1418 = vpop.f32.mrf.mxu0
      %v1419 = vadd.f32 %v1330, %v1418
      %v1420 = vpop.f32.mrf.mxu0
      %v1421 = vadd.f32 %v1332, %v1420
      %1422 = vmatmul.bf16.gmra.mxu0 %v1130
      %v1423 = vpop.f32.mrf.mxu0
      %v1424 = vadd.f32 %v1335, %v1423
      %v1425 = vpop.f32.mrf.mxu0
      %v1426 = vadd.f32 %v1337, %v1425
      %1427 = vmatmul.bf16.gmra.mxu0 %v1132
      %v1428 = vpop.f32.mrf.mxu0
      %v1429 = vadd.f32 %v1340, %v1428
      %v1430 = vpop.f32.mrf.mxu0
      %v1431 = vadd.f32 %v1342, %v1430
      %1432 = vmatmul.bf16.gmra.mxu0 %v1134
      %v1433 = vpop.f32.mrf.mxu0
      %v1434 = vadd.f32 %v1345, %v1433
      %v1435 = vpop.f32.mrf.mxu0
      %v1436 = vadd.f32 %v1347, %v1435
      %1437 = vmatmul.bf16.gmra.mxu0 %v1136
      %v1438 = vpop.f32.mrf.mxu0
      %v1439 = vadd.f32 %v1350, %v1438
      %v1440 = vpop.f32.mrf.mxu0
      %v1441 = vadd.f32 %v1352, %v1440
      %1442 = vdwg.mxu0
      %v1443 = vmax.f32 %v1364, 0.0
      %v1444 = vmax.f32 %v1366, 0.0
      %v1445 = vmax.f32 %v1369, 0.0
      %v1446 = vmax.f32 %v1371, 0.0
      %v1447 = vmax.f32 %v1374, 0.0
      %v1448 = vmax.f32 %v1376, 0.0
      %v1449 = vmax.f32 %v1379, 0.0
      %v1450 = vmax.f32 %v1381, 0.0
      %v1451 = vmax.f32 %v1384, 0.0
      %v1452 = vmax.f32 %v1386, 0.0
      %v1453 = vmax.f32 %v1389, 0.0
      %v1454 = vmax.f32 %v1391, 0.0
      %v1455 = vmax.f32 %v1394, 0.0
      %v1456 = vmax.f32 %v1396, 0.0
      %v1457 = vmax.f32 %v1399, 0.0
      %v1458 = vmax.f32 %v1401, 0.0
      %v1459 = vmax.f32 %v1404, 0.0
      %v1460 = vmax.f32 %v1406, 0.0
      %v1461 = vmax.f32 %v1409, 0.0
      %v1462 = vmax.f32 %v1411, 0.0
      %v1463 = vmax.f32 %v1414, 0.0
      %v1464 = vmax.f32 %v1416, 0.0
      %v1465 = vmax.f32 %v1419, 0.0
      %v1466 = vmax.f32 %v1421, 0.0
      %v1467 = vmax.f32 %v1424, 0.0
      %v1468 = vmax.f32 %v1426, 0.0
      %v1469 = vmax.f32 %v1429, 0.0
      %v1470 = vmax.f32 %v1431, 0.0
      %v1471 = vmax.f32 %v1434, 0.0
      %v1472 = vmax.f32 %v1436, 0.0
      %v1473 = vmax.f32 %v1439, 0.0
      %v1474 = vmax.f32 %v1441, 0.0
      %v1475 = vld [vmem:[%s3] sm:$0x1]
      %v1477 = vperm.slane %v1475, 0
      %v1479 = vmul.f32 %v1443, %v1477
      %v1480 = vmul.f32 %v1444, %v1477
      %v1481 = vmul.f32 %v1445, %v1477
      %v1482 = vmul.f32 %v1446, %v1477
      %v1483 = vmul.f32 %v1447, %v1477
      %v1484 = vmul.f32 %v1448, %v1477
      %v1485 = vmul.f32 %v1449, %v1477
      %v1486 = vmul.f32 %v1450, %v1477
      %v1487 = vmul.f32 %v1451, %v1477
      %v1488 = vmul.f32 %v1452, %v1477
      %v1489 = vmul.f32 %v1453, %v1477
      %v1490 = vmul.f32 %v1454, %v1477
      %v1491 = vmul.f32 %v1455, %v1477
      %v1492 = vmul.f32 %v1456, %v1477
      %v1493 = vmul.f32 %v1457, %v1477
      %v1494 = vmul.f32 %v1458, %v1477
      %v1495 = vmul.f32 %v1459, %v1477
      %v1496 = vmul.f32 %v1460, %v1477
      %v1497 = vmul.f32 %v1461, %v1477
      %v1498 = vmul.f32 %v1462, %v1477
      %v1499 = vmul.f32 %v1463, %v1477
      %v1500 = vmul.f32 %v1464, %v1477
      %v1501 = vmul.f32 %v1465, %v1477
      %v1502 = vmul.f32 %v1466, %v1477
      %v1503 = vmul.f32 %v1467, %v1477
      %v1504 = vmul.f32 %v1468, %v1477
      %v1505 = vmul.f32 %v1469, %v1477
      %v1506 = vmul.f32 %v1470, %v1477
      %v1507 = vmul.f32 %v1471, %v1477
      %v1508 = vmul.f32 %v1472, %v1477
      %v1509 = vmul.f32 %v1473, %v1477
      %v1510 = vmul.f32 %v1474, %v1477
      %1511 = vadd.xlane.f32.xlu0 %v1479
      %v1512 = vpop.xlane.xlu0 %1511
      %1513 = vadd.xlane.f32.xlu0 %v1480
      %v1514 = vpop.xlane.xlu0 %1513
      %1515 = vadd.xlane.f32.xlu0 %v1481
      %v1516 = vpop.xlane.xlu0 %1515
      %1517 = vadd.xlane.f32.xlu0 %v1482
      %v1518 = vpop.xlane.xlu0 %1517
      %1519 = vadd.xlane.f32.xlu0 %v1483
      %v1520 = vpop.xlane.xlu0 %1519
      %1521 = vadd.xlane.f32.xlu0 %v1484
      %v1522 = vpop.xlane.xlu0 %1521
      %1523 = vadd.xlane.f32.xlu0 %v1485
      %v1524 = vpop.xlane.xlu0 %1523
      %1525 = vadd.xlane.f32.xlu0 %v1486
      %v1526 = vpop.xlane.xlu0 %1525
      %1527 = vadd.xlane.f32.xlu0 %v1487
      %v1528 = vpop.xlane.xlu0 %1527
      %1529 = vadd.xlane.f32.xlu0 %v1488
      %v1530 = vpop.xlane.xlu0 %1529
      %1531 = vadd.xlane.f32.xlu0 %v1489
      %v1532 = vpop.xlane.xlu0 %1531
      %1533 = vadd.xlane.f32.xlu0 %v1490
      %v1534 = vpop.xlane.xlu0 %1533
      %1535 = vadd.xlane.f32.xlu0 %v1491
      %v1536 = vpop.xlane.xlu0 %1535
      %1537 = vadd.xlane.f32.xlu0 %v1492
      %v1538 = vpop.xlane.xlu0 %1537
      %1539 = vadd.xlane.f32.xlu0 %v1493
      %v1540 = vpop.xlane.xlu0 %1539
      %1541 = vadd.xlane.f32.xlu0 %v1494
      %v1542 = vpop.xlane.xlu0 %1541
      %1543 = vadd.xlane.f32.xlu0 %v1495
      %v1544 = vpop.xlane.xlu0 %1543
      %1545 = vadd.xlane.f32.xlu0 %v1496
      %v1546 = vpop.xlane.xlu0 %1545
      %1547 = vadd.xlane.f32.xlu0 %v1497
      %v1548 = vpop.xlane.xlu0 %1547
      %1549 = vadd.xlane.f32.xlu0 %v1498
      %v1550 = vpop.xlane.xlu0 %1549
      %1551 = vadd.xlane.f32.xlu0 %v1499
      %v1552 = vpop.xlane.xlu0 %1551
      %1553 = vadd.xlane.f32.xlu0 %v1500
      %v1554 = vpop.xlane.xlu0 %1553
      %1555 = vadd.xlane.f32.xlu0 %v1501
      %v1556 = vpop.xlane.xlu0 %1555
      %1557 = vadd.xlane.f32.xlu0 %v1502
      %v1558 = vpop.xlane.xlu0 %1557
      %1559 = vadd.xlane.f32.xlu0 %v1503
      %v1560 = vpop.xlane.xlu0 %1559
      %1561 = vadd.xlane.f32.xlu0 %v1504
      %v1562 = vpop.xlane.xlu0 %1561
      %1563 = vadd.xlane.f32.xlu0 %v1505
      %v1564 = vpop.xlane.xlu0 %1563
      %1565 = vadd.xlane.f32.xlu0 %v1506
      %v1566 = vpop.xlane.xlu0 %1565
      %1567 = vadd.xlane.f32.xlu0 %v1507
      %v1568 = vpop.xlane.xlu0 %1567
      %1569 = vadd.xlane.f32.xlu0 %v1508
      %v1570 = vpop.xlane.xlu0 %1569
      %1571 = vadd.xlane.f32.xlu0 %v1509
      %v1572 = vpop.xlane.xlu0 %1571
      %1573 = vadd.xlane.f32.xlu0 %v1510
      %v1574 = vpop.xlane.xlu0 %1573
      %v1575 = vld [vmem:[#allocation6] sm:$0x1]
      %v1577 = vperm.slane %v1575, 0
      %v1579 = vadd.f32 %v1512, %v1577
      %v1580 = vadd.f32 %v1514, %v1577
      %v1581 = vadd.f32 %v1516, %v1577
      %v1582 = vadd.f32 %v1518, %v1577
      %v1583 = vadd.f32 %v1520, %v1577
      %v1584 = vadd.f32 %v1522, %v1577
      %v1585 = vadd.f32 %v1524, %v1577
      %v1586 = vadd.f32 %v1526, %v1577
      %v1587 = vadd.f32 %v1528, %v1577
      %v1588 = vadd.f32 %v1530, %v1577
      %v1589 = vadd.f32 %v1532, %v1577
      %v1590 = vadd.f32 %v1534, %v1577
      %v1591 = vadd.f32 %v1536, %v1577
      %v1592 = vadd.f32 %v1538, %v1577
      %v1593 = vadd.f32 %v1540, %v1577
      %v1594 = vadd.f32 %v1542, %v1577
      %v1595 = vadd.f32 %v1544, %v1577
      %v1596 = vadd.f32 %v1546, %v1577
      %v1597 = vadd.f32 %v1548, %v1577
      %v1598 = vadd.f32 %v1550, %v1577
      %v1599 = vadd.f32 %v1552, %v1577
      %v1600 = vadd.f32 %v1554, %v1577
      %v1601 = vadd.f32 %v1556, %v1577
      %v1602 = vadd.f32 %v1558, %v1577
      %v1603 = vadd.f32 %v1560, %v1577
      %v1604 = vadd.f32 %v1562, %v1577
      %v1605 = vadd.f32 %v1564, %v1577
      %v1606 = vadd.f32 %v1566, %v1577
      %v1607 = vadd.f32 %v1568, %v1577
      %v1608 = vadd.f32 %v1570, %v1577
      %v1609 = vadd.f32 %v1572, %v1577
      %v1610 = vadd.f32 %v1574, %v1577
      %v1611 = vmax.f32 %v1579, 0.0
      %v1612 = vmax.f32 %v1580, 0.0
      %v1613 = vmax.f32 %v1581, 0.0
      %v1614 = vmax.f32 %v1582, 0.0
      %v1615 = vmax.f32 %v1583, 0.0
      %v1616 = vmax.f32 %v1584, 0.0
      %v1617 = vmax.f32 %v1585, 0.0
      %v1618 = vmax.f32 %v1586, 0.0
      %v1619 = vmax.f32 %v1587, 0.0
      %v1620 = vmax.f32 %v1588, 0.0
      %v1621 = vmax.f32 %v1589, 0.0
      %v1622 = vmax.f32 %v1590, 0.0
      %v1623 = vmax.f32 %v1591, 0.0
      %v1624 = vmax.f32 %v1592, 0.0
      %v1625 = vmax.f32 %v1593, 0.0
      %v1626 = vmax.f32 %v1594, 0.0
      %v1627 = vmax.f32 %v1595, 0.0
      %v1628 = vmax.f32 %v1596, 0.0
      %v1629 = vmax.f32 %v1597, 0.0
      %v1630 = vmax.f32 %v1598, 0.0
      %v1631 = vmax.f32 %v1599, 0.0
      %v1632 = vmax.f32 %v1600, 0.0
      %v1633 = vmax.f32 %v1601, 0.0
      %v1634 = vmax.f32 %v1602, 0.0
      %v1635 = vmax.f32 %v1603, 0.0
      %v1636 = vmax.f32 %v1604, 0.0
      %v1637 = vmax.f32 %v1605, 0.0
      %v1638 = vmax.f32 %v1606, 0.0
      %v1639 = vmax.f32 %v1607, 0.0
      %v1640 = vmax.f32 %v1608, 0.0
      %v1641 = vmax.f32 %v1609, 0.0
      %v1642 = vmax.f32 %v1610, 0.0
      %1644 = vset.pattern.permute.xlu0 0
      %1645 = vperm.xlu0 %1644, %v1611
      %v1646 = vpop.permute.xlu0 %1645
      %1649 = vset.pattern.permute.xlu0 0
      %1650 = vperm.xlu0 %1649, %v1612
      %v1651 = vpop.permute.xlu0 %1650
      %1654 = vset.pattern.permute.xlu0 0
      %1655 = vperm.xlu0 %1654, %v1613
      %v1656 = vpop.permute.xlu0 %1655
      %1659 = vset.pattern.permute.xlu0 0
      %1660 = vperm.xlu0 %1659, %v1614
      %v1661 = vpop.permute.xlu0 %1660
      %1664 = vset.pattern.permute.xlu0 0
      %1665 = vperm.xlu0 %1664, %v1615
      %v1666 = vpop.permute.xlu0 %1665
      %1669 = vset.pattern.permute.xlu0 0
      %1670 = vperm.xlu0 %1669, %v1616
      %v1671 = vpop.permute.xlu0 %1670
      %1674 = vset.pattern.permute.xlu0 0
      %1675 = vperm.xlu0 %1674, %v1617
      %v1676 = vpop.permute.xlu0 %1675
      %1679 = vset.pattern.permute.xlu0 0
      %1680 = vperm.xlu0 %1679, %v1618
      %v1681 = vpop.permute.xlu0 %1680
      %1684 = vset.pattern.permute.xlu0 0
      %1685 = vperm.xlu0 %1684, %v1619
      %v1686 = vpop.permute.xlu0 %1685
      %1689 = vset.pattern.permute.xlu0 0
      %1690 = vperm.xlu0 %1689, %v1620
      %v1691 = vpop.permute.xlu0 %1690
      %1694 = vset.pattern.permute.xlu0 0
      %1695 = vperm.xlu0 %1694, %v1621
      %v1696 = vpop.permute.xlu0 %1695
      %1699 = vset.pattern.permute.xlu0 0
      %1700 = vperm.xlu0 %1699, %v1622
      %v1701 = vpop.permute.xlu0 %1700
      %1704 = vset.pattern.permute.xlu0 0
      %1705 = vperm.xlu0 %1704, %v1623
      %v1706 = vpop.permute.xlu0 %1705
      %1709 = vset.pattern.permute.xlu0 0
      %1710 = vperm.xlu0 %1709, %v1624
      %v1711 = vpop.permute.xlu0 %1710
      %1714 = vset.pattern.permute.xlu0 0
      %1715 = vperm.xlu0 %1714, %v1625
      %v1716 = vpop.permute.xlu0 %1715
      %1719 = vset.pattern.permute.xlu0 0
      %1720 = vperm.xlu0 %1719, %v1626
      %v1721 = vpop.permute.xlu0 %1720
      %1724 = vset.pattern.permute.xlu0 0
      %1725 = vperm.xlu0 %1724, %v1627
      %v1726 = vpop.permute.xlu0 %1725
      %1729 = vset.pattern.permute.xlu0 0
      %1730 = vperm.xlu0 %1729, %v1628
      %v1731 = vpop.permute.xlu0 %1730
      %1734 = vset.pattern.permute.xlu0 0
      %1735 = vperm.xlu0 %1734, %v1629
      %v1736 = vpop.permute.xlu0 %1735
      %1739 = vset.pattern.permute.xlu0 0
      %1740 = vperm.xlu0 %1739, %v1630
      %v1741 = vpop.permute.xlu0 %1740
      %1744 = vset.pattern.permute.xlu0 0
      %1745 = vperm.xlu0 %1744, %v1631
      %v1746 = vpop.permute.xlu0 %1745
      %1749 = vset.pattern.permute.xlu0 0
      %1750 = vperm.xlu0 %1749, %v1632
      %v1751 = vpop.permute.xlu0 %1750
      %1754 = vset.pattern.permute.xlu0 0
      %1755 = vperm.xlu0 %1754, %v1633
      %v1756 = vpop.permute.xlu0 %1755
      %1759 = vset.pattern.permute.xlu0 0
      %1760 = vperm.xlu0 %1759, %v1634
      %v1761 = vpop.permute.xlu0 %1760
      %1764 = vset.pattern.permute.xlu0 0
      %1765 = vperm.xlu0 %1764, %v1635
      %v1766 = vpop.permute.xlu0 %1765
      %1769 = vset.pattern.permute.xlu0 0
      %1770 = vperm.xlu0 %1769, %v1636
      %v1771 = vpop.permute.xlu0 %1770
      %1774 = vset.pattern.permute.xlu0 0
      %1775 = vperm.xlu0 %1774, %v1637
      %v1776 = vpop.permute.xlu0 %1775
      %1779 = vset.pattern.permute.xlu0 0
      %1780 = vperm.xlu0 %1779, %v1638
      %v1781 = vpop.permute.xlu0 %1780
      %1784 = vset.pattern.permute.xlu0 0
      %1785 = vperm.xlu0 %1784, %v1639
      %v1786 = vpop.permute.xlu0 %1785
      %1789 = vset.pattern.permute.xlu0 0
      %1790 = vperm.xlu0 %1789, %v1640
      %v1791 = vpop.permute.xlu0 %1790
      %1794 = vset.pattern.permute.xlu0 0
      %1795 = vperm.xlu0 %1794, %v1641
      %v1796 = vpop.permute.xlu0 %1795
      %1799 = vset.pattern.permute.xlu0 0
      %1800 = vperm.xlu0 %1799, %v1642
      %v1801 = vpop.permute.xlu0 %1800
      %1803 = vst [vmem:[#allocation4 + $0x20] sm:$0xff] %v1646
      %1804 = vst [vmem:[#allocation4 + $0x28] sm:$0xff] %v1651
      %1805 = vst [vmem:[#allocation4 + $0x30] sm:$0xff] %v1656
      %1806 = vst [vmem:[#allocation4 + $0x38] sm:$0xff] %v1661
      %1807 = vst [vmem:[#allocation4 + $0x40] sm:$0xff] %v1666
      %1808 = vst [vmem:[#allocation4 + $0x48] sm:$0xff] %v1671
      %1809 = vst [vmem:[#allocation4 + $0x50] sm:$0xff] %v1676
      %1810 = vst [vmem:[#allocation4 + $0x58] sm:$0xff] %v1681
      %1811 = vst [vmem:[#allocation4 + $0x60] sm:$0xff] %v1686
      %1812 = vst [vmem:[#allocation4 + $0x68] sm:$0xff] %v1691
      %1813 = vst [vmem:[#allocation4 + $0x70] sm:$0xff] %v1696
      %1814 = vst [vmem:[#allocation4 + $0x78] sm:$0xff] %v1701
      %1815 = vst [vmem:[#allocation4 + $0x80] sm:$0xff] %v1706
      %1816 = vst [vmem:[#allocation4 + $0x88] sm:$0xff] %v1711
      %1817 = vst [vmem:[#allocation4 + $0x90] sm:$0xff] %v1716
      %1818 = vst [vmem:[#allocation4 + $0x98] sm:$0xff] %v1721
      %1819 = vst [vmem:[#allocation4 + $0xa0] sm:$0xff] %v1726
      %1820 = vst [vmem:[#allocation4 + $0xa8] sm:$0xff] %v1731
      %1821 = vst [vmem:[#allocation4 + $0xb0] sm:$0xff] %v1736
      %1822 = vst [vmem:[#allocation4 + $0xb8] sm:$0xff] %v1741
      %1823 = vst [vmem:[#allocation4 + $0xc0] sm:$0xff] %v1746
      %1824 = vst [vmem:[#allocation4 + $0xc8] sm:$0xff] %v1751
      %1825 = vst [vmem:[#allocation4 + $0xd0] sm:$0xff] %v1756
      %1826 = vst [vmem:[#allocation4 + $0xd8] sm:$0xff] %v1761
      %1827 = vst [vmem:[#allocation4 + $0xe0] sm:$0xff] %v1766
      %1828 = vst [vmem:[#allocation4 + $0xe8] sm:$0xff] %v1771
      %1829 = vst [vmem:[#allocation4 + $0xf0] sm:$0xff] %v1776
      %1830 = vst [vmem:[#allocation4 + $0xf8] sm:$0xff] %v1781
      %1831 = vst [vmem:[#allocation4 + $0x100] sm:$0xff] %v1786
      %1832 = vst [vmem:[#allocation4 + $0x108] sm:$0xff] %v1791
      %1833 = vst [vmem:[#allocation4 + $0x110] sm:$0xff] %v1796
      %1834 = vst [vmem:[#allocation4 + $0x118] sm:$0xff] %v1801
      %v1835 = vld [vmem:[#allocation4 + $0xf] sm:$0xff]
      %v1836 = vld [vmem:[#allocation4 + $0x17] sm:$0xff]
      %v1837 = vld [vmem:[#allocation4 + $0x1f] sm:$0xff]
      %v1838 = vld [vmem:[#allocation4 + $0x27] sm:$0xff]
      %v1839 = vld [vmem:[#allocation4 + $0x2f] sm:$0xff]
      %v1840 = vld [vmem:[#allocation4 + $0x37] sm:$0xff]
      %v1841 = vld [vmem:[#allocation4 + $0x3f] sm:$0xff]
      %v1842 = vld [vmem:[#allocation4 + $0x47] sm:$0xff]
      %v1843 = vld [vmem:[#allocation4 + $0x4f] sm:$0xff]
      %v1844 = vld [vmem:[#allocation4 + $0x57] sm:$0xff]
      %v1845 = vld [vmem:[#allocation4 + $0x5f] sm:$0xff]
      %v1846 = vld [vmem:[#allocation4 + $0x67] sm:$0xff]
      %v1847 = vld [vmem:[#allocation4 + $0x6f] sm:$0xff]
      %v1848 = vld [vmem:[#allocation4 + $0x77] sm:$0xff]
      %v1849 = vld [vmem:[#allocation4 + $0x7f] sm:$0xff]
      %v1850 = vld [vmem:[#allocation4 + $0x87] sm:$0xff]
      %v1851 = vld [vmem:[#allocation4 + $0x8f] sm:$0xff]
      %v1852 = vld [vmem:[#allocation4 + $0x97] sm:$0xff]
      %v1853 = vld [vmem:[#allocation4 + $0x9f] sm:$0xff]
      %v1854 = vld [vmem:[#allocation4 + $0xa7] sm:$0xff]
      %v1855 = vld [vmem:[#allocation4 + $0xaf] sm:$0xff]
      %v1856 = vld [vmem:[#allocation4 + $0xb7] sm:$0xff]
      %v1857 = vld [vmem:[#allocation4 + $0xbf] sm:$0xff]
      %v1858 = vld [vmem:[#allocation4 + $0xc7] sm:$0xff]
      %v1859 = vld [vmem:[#allocation4 + $0xcf] sm:$0xff]
      %v1860 = vld [vmem:[#allocation4 + $0xd7] sm:$0xff]
      %v1861 = vld [vmem:[#allocation4 + $0xdf] sm:$0xff]
      %v1862 = vld [vmem:[#allocation4 + $0xe7] sm:$0xff]
      %v1863 = vld [vmem:[#allocation4 + $0xef] sm:$0xff]
      %v1864 = vld [vmem:[#allocation4 + $0xf7] sm:$0xff]
      %v1865 = vld [vmem:[#allocation4 + $0xff] sm:$0xff]
      %v1866 = vld [vmem:[#allocation4 + $0x107] sm:$0xff]
      %v1867 = vmul.f32 %v1835, %v789
      %v1868 = vmul.f32 %v1836, %v790
      %v1869 = vmul.f32 %v1837, %v791
      %v1870 = vmul.f32 %v1838, %v792
      %v1871 = vmul.f32 %v1839, %v793
      %v1872 = vmul.f32 %v1840, %v794
      %v1873 = vmul.f32 %v1841, %v795
      %v1874 = vmul.f32 %v1842, %v796
      %v1875 = vmul.f32 %v1843, %v797
      %v1876 = vmul.f32 %v1844, %v798
      %v1877 = vmul.f32 %v1845, %v799
      %v1878 = vmul.f32 %v1846, %v800
      %v1879 = vmul.f32 %v1847, %v801
      %v1880 = vmul.f32 %v1848, %v802
      %v1881 = vmul.f32 %v1849, %v803
      %v1882 = vmul.f32 %v1850, %v804
      %v1883 = vmul.f32 %v1851, %v805
      %v1884 = vmul.f32 %v1852, %v806
      %v1885 = vmul.f32 %v1853, %v807
      %v1886 = vmul.f32 %v1854, %v808
      %v1887 = vmul.f32 %v1855, %v809
      %v1888 = vmul.f32 %v1856, %v810
      %v1889 = vmul.f32 %v1857, %v811
      %v1890 = vmul.f32 %v1858, %v812
      %v1891 = vmul.f32 %v1859, %v813
      %v1892 = vmul.f32 %v1860, %v814
      %v1893 = vmul.f32 %v1861, %v815
      %v1894 = vmul.f32 %v1862, %v816
      %v1895 = vmul.f32 %v1863, %v817
      %v1896 = vmul.f32 %v1864, %v818
      %v1897 = vmul.f32 %v1865, %v819
      %v1898 = vmul.f32 %v1866, %v820
      %v1899 = vld [vmem:[%s5] sm:$0x1]
      %v1901 = vperm.slane %v1899, 0
      %v1903 = vmul.f32 %v1867, %v1901
      %v1904 = vmul.f32 %v1868, %v1901
      %v1905 = vmul.f32 %v1869, %v1901
      %v1906 = vmul.f32 %v1870, %v1901
      %v1907 = vmul.f32 %v1871, %v1901
      %v1908 = vmul.f32 %v1872, %v1901
      %v1909 = vmul.f32 %v1873, %v1901
      %v1910 = vmul.f32 %v1874, %v1901
      %v1911 = vmul.f32 %v1875, %v1901
      %v1912 = vmul.f32 %v1876, %v1901
      %v1913 = vmul.f32 %v1877, %v1901
      %v1914 = vmul.f32 %v1878, %v1901
      %v1915 = vmul.f32 %v1879, %v1901
      %v1916 = vmul.f32 %v1880, %v1901
      %v1917 = vmul.f32 %v1881, %v1901
      %v1918 = vmul.f32 %v1882, %v1901
      %v1919 = vmul.f32 %v1883, %v1901
      %v1920 = vmul.f32 %v1884, %v1901
      %v1921 = vmul.f32 %v1885, %v1901
      %v1922 = vmul.f32 %v1886, %v1901
      %v1923 = vmul.f32 %v1887, %v1901
      %v1924 = vmul.f32 %v1888, %v1901
      %v1925 = vmul.f32 %v1889, %v1901
      %v1926 = vmul.f32 %v1890, %v1901
      %v1927 = vmul.f32 %v1891, %v1901
      %v1928 = vmul.f32 %v1892, %v1901
      %v1929 = vmul.f32 %v1893, %v1901
      %v1930 = vmul.f32 %v1894, %v1901
      %v1931 = vmul.f32 %v1895, %v1901
      %v1932 = vmul.f32 %v1896, %v1901
      %v1933 = vmul.f32 %v1897, %v1901
      %v1934 = vmul.f32 %v1898, %v1901
      %v1935 = vadd.f32 %v1903, 0.0
      %v1936 = vadd.f32 %v1904, 0.0
      %v1937 = vadd.f32 %v1905, 0.0
      %v1938 = vadd.f32 %v1906, 0.0
      %v1939 = vadd.f32 %v1907, 0.0
      %v1940 = vadd.f32 %v1908, 0.0
      %v1941 = vadd.f32 %v1909, 0.0
      %v1942 = vadd.f32 %v1910, 0.0
      %v1943 = vadd.f32 %v1911, 0.0
      %v1944 = vadd.f32 %v1912, 0.0
      %v1945 = vadd.f32 %v1913, 0.0
      %v1946 = vadd.f32 %v1914, 0.0
      %v1947 = vadd.f32 %v1915, 0.0
      %v1948 = vadd.f32 %v1916, 0.0
      %v1949 = vadd.f32 %v1917, 0.0
      %v1950 = vadd.f32 %v1918, 0.0
      %v1951 = vadd.f32 %v1919, 0.0
      %v1952 = vadd.f32 %v1920, 0.0
      %v1953 = vadd.f32 %v1921, 0.0
      %v1954 = vadd.f32 %v1922, 0.0
      %v1955 = vadd.f32 %v1923, 0.0
      %v1956 = vadd.f32 %v1924, 0.0
      %v1957 = vadd.f32 %v1925, 0.0
      %v1958 = vadd.f32 %v1926, 0.0
      %v1959 = vadd.f32 %v1927, 0.0
      %v1960 = vadd.f32 %v1928, 0.0
      %v1961 = vadd.f32 %v1929, 0.0
      %v1962 = vadd.f32 %v1930, 0.0
      %v1963 = vadd.f32 %v1931, 0.0
      %v1964 = vadd.f32 %v1932, 0.0
      %v1965 = vadd.f32 %v1933, 0.0
      %v1966 = vadd.f32 %v1934, 0.0
      %v1967 = vld [vmem:[#allocation4 + $0x10] sm:$0xff]
      %v1968 = vld [vmem:[#allocation4 + $0x18] sm:$0xff]
      %v1969 = vld [vmem:[#allocation4 + $0x20] sm:$0xff]
      %v1970 = vld [vmem:[#allocation4 + $0x28] sm:$0xff]
      %v1971 = vld [vmem:[#allocation4 + $0x30] sm:$0xff]
      %v1972 = vld [vmem:[#allocation4 + $0x38] sm:$0xff]
      %v1973 = vld [vmem:[#allocation4 + $0x40] sm:$0xff]
      %v1974 = vld [vmem:[#allocation4 + $0x48] sm:$0xff]
      %v1975 = vld [vmem:[#allocation4 + $0x50] sm:$0xff]
      %v1976 = vld [vmem:[#allocation4 + $0x58] sm:$0xff]
      %v1977 = vld [vmem:[#allocation4 + $0x60] sm:$0xff]
      %v1978 = vld [vmem:[#allocation4 + $0x68] sm:$0xff]
      %v1979 = vld [vmem:[#allocation4 + $0x70] sm:$0xff]
      %v1980 = vld [vmem:[#allocation4 + $0x78] sm:$0xff]
      %v1981 = vld [vmem:[#allocation4 + $0x80] sm:$0xff]
      %v1982 = vld [vmem:[#allocation4 + $0x88] sm:$0xff]
      %v1983 = vld [vmem:[#allocation4 + $0x90] sm:$0xff]
      %v1984 = vld [vmem:[#allocation4 + $0x98] sm:$0xff]
      %v1985 = vld [vmem:[#allocation4 + $0xa0] sm:$0xff]
      %v1986 = vld [vmem:[#allocation4 + $0xa8] sm:$0xff]
      %v1987 = vld [vmem:[#allocation4 + $0xb0] sm:$0xff]
      %v1988 = vld [vmem:[#allocation4 + $0xb8] sm:$0xff]
      %v1989 = vld [vmem:[#allocation4 + $0xc0] sm:$0xff]
      %v1990 = vld [vmem:[#allocation4 + $0xc8] sm:$0xff]
      %v1991 = vld [vmem:[#allocation4 + $0xd0] sm:$0xff]
      %v1992 = vld [vmem:[#allocation4 + $0xd8] sm:$0xff]
      %v1993 = vld [vmem:[#allocation4 + $0xe0] sm:$0xff]
      %v1994 = vld [vmem:[#allocation4 + $0xe8] sm:$0xff]
      %v1995 = vld [vmem:[#allocation4 + $0xf0] sm:$0xff]
      %v1996 = vld [vmem:[#allocation4 + $0xf8] sm:$0xff]
      %v1997 = vld [vmem:[#allocation4 + $0x100] sm:$0xff]
      %v1998 = vld [vmem:[#allocation4 + $0x108] sm:$0xff]
      %s1999 = scalar_lea.vmem %s5, 1
      %v2000 = vld [vmem:[%s1999] sm:$0x1]
      %v2002 = vperm.slane %v2000, 0
      %v2004 = vmul.f32 %v1967, %v2002
      %v2005 = vmul.f32 %v1968, %v2002
      %v2006 = vmul.f32 %v1969, %v2002
      %v2007 = vmul.f32 %v1970, %v2002
      %v2008 = vmul.f32 %v1971, %v2002
      %v2009 = vmul.f32 %v1972, %v2002
      %v2010 = vmul.f32 %v1973, %v2002
      %v2011 = vmul.f32 %v1974, %v2002
      %v2012 = vmul.f32 %v1975, %v2002
      %v2013 = vmul.f32 %v1976, %v2002
      %v2014 = vmul.f32 %v1977, %v2002
      %v2015 = vmul.f32 %v1978, %v2002
      %v2016 = vmul.f32 %v1979, %v2002
      %v2017 = vmul.f32 %v1980, %v2002
      %v2018 = vmul.f32 %v1981, %v2002
      %v2019 = vmul.f32 %v1982, %v2002
      %v2020 = vmul.f32 %v1983, %v2002
      %v2021 = vmul.f32 %v1984, %v2002
      %v2022 = vmul.f32 %v1985, %v2002
      %v2023 = vmul.f32 %v1986, %v2002
      %v2024 = vmul.f32 %v1987, %v2002
      %v2025 = vmul.f32 %v1988, %v2002
      %v2026 = vmul.f32 %v1989, %v2002
      %v2027 = vmul.f32 %v1990, %v2002
      %v2028 = vmul.f32 %v1991, %v2002
      %v2029 = vmul.f32 %v1992, %v2002
      %v2030 = vmul.f32 %v1993, %v2002
      %v2031 = vmul.f32 %v1994, %v2002
      %v2032 = vmul.f32 %v1995, %v2002
      %v2033 = vmul.f32 %v1996, %v2002
      %v2034 = vmul.f32 %v1997, %v2002
      %v2035 = vmul.f32 %v1998, %v2002
      %v2036 = vadd.f32 %v1935, %v2004
      %v2037 = vadd.f32 %v1936, %v2005
      %v2038 = vadd.f32 %v1937, %v2006
      %v2039 = vadd.f32 %v1938, %v2007
      %v2040 = vadd.f32 %v1939, %v2008
      %v2041 = vadd.f32 %v1940, %v2009
      %v2042 = vadd.f32 %v1941, %v2010
      %v2043 = vadd.f32 %v1942, %v2011
      %v2044 = vadd.f32 %v1943, %v2012
      %v2045 = vadd.f32 %v1944, %v2013
      %v2046 = vadd.f32 %v1945, %v2014
      %v2047 = vadd.f32 %v1946, %v2015
      %v2048 = vadd.f32 %v1947, %v2016
      %v2049 = vadd.f32 %v1948, %v2017
      %v2050 = vadd.f32 %v1949, %v2018
      %v2051 = vadd.f32 %v1950, %v2019
      %v2052 = vadd.f32 %v1951, %v2020
      %v2053 = vadd.f32 %v1952, %v2021
      %v2054 = vadd.f32 %v1953, %v2022
      %v2055 = vadd.f32 %v1954, %v2023
      %v2056 = vadd.f32 %v1955, %v2024
      %v2057 = vadd.f32 %v1956, %v2025
      %v2058 = vadd.f32 %v1957, %v2026
      %v2059 = vadd.f32 %v1958, %v2027
      %v2060 = vadd.f32 %v1959, %v2028
      %v2061 = vadd.f32 %v1960, %v2029
      %v2062 = vadd.f32 %v1961, %v2030
      %v2063 = vadd.f32 %v1962, %v2031
      %v2064 = vadd.f32 %v1963, %v2032
      %v2065 = vadd.f32 %v1964, %v2033
      %v2066 = vadd.f32 %v1965, %v2034
      %v2067 = vadd.f32 %v1966, %v2035
      %v2068 = vld [vmem:[#allocation4 + $0x11] sm:$0xff]
      %v2069 = vld [vmem:[#allocation4 + $0x19] sm:$0xff]
      %v2070 = vld [vmem:[#allocation4 + $0x21] sm:$0xff]
      %v2071 = vld [vmem:[#allocation4 + $0x29] sm:$0xff]
      %v2072 = vld [vmem:[#allocation4 + $0x31] sm:$0xff]
      %v2073 = vld [vmem:[#allocation4 + $0x39] sm:$0xff]
      %v2074 = vld [vmem:[#allocation4 + $0x41] sm:$0xff]
      %v2075 = vld [vmem:[#allocation4 + $0x49] sm:$0xff]
      %v2076 = vld [vmem:[#allocation4 + $0x51] sm:$0xff]
      %v2077 = vld [vmem:[#allocation4 + $0x59] sm:$0xff]
      %v2078 = vld [vmem:[#allocation4 + $0x61] sm:$0xff]
      %v2079 = vld [vmem:[#allocation4 + $0x69] sm:$0xff]
      %v2080 = vld [vmem:[#allocation4 + $0x71] sm:$0xff]
      %v2081 = vld [vmem:[#allocation4 + $0x79] sm:$0xff]
      %v2082 = vld [vmem:[#allocation4 + $0x81] sm:$0xff]
      %v2083 = vld [vmem:[#allocation4 + $0x89] sm:$0xff]
      %v2084 = vld [vmem:[#allocation4 + $0x91] sm:$0xff]
      %v2085 = vld [vmem:[#allocation4 + $0x99] sm:$0xff]
      %v2086 = vld [vmem:[#allocation4 + $0xa1] sm:$0xff]
      %v2087 = vld [vmem:[#allocation4 + $0xa9] sm:$0xff]
      %v2088 = vld [vmem:[#allocation4 + $0xb1] sm:$0xff]
      %v2089 = vld [vmem:[#allocation4 + $0xb9] sm:$0xff]
      %v2090 = vld [vmem:[#allocation4 + $0xc1] sm:$0xff]
      %v2091 = vld [vmem:[#allocation4 + $0xc9] sm:$0xff]
      %v2092 = vld [vmem:[#allocation4 + $0xd1] sm:$0xff]
      %v2093 = vld [vmem:[#allocation4 + $0xd9] sm:$0xff]
      %v2094 = vld [vmem:[#allocation4 + $0xe1] sm:$0xff]
      %v2095 = vld [vmem:[#allocation4 + $0xe9] sm:$0xff]
      %v2096 = vld [vmem:[#allocation4 + $0xf1] sm:$0xff]
      %v2097 = vld [vmem:[#allocation4 + $0xf9] sm:$0xff]
      %v2098 = vld [vmem:[#allocation4 + $0x101] sm:$0xff]
      %v2099 = vld [vmem:[#allocation4 + $0x109] sm:$0xff]
      %v2100 = vmul.f32 %v2068, %v885
      %v2101 = vmul.f32 %v2069, %v886
      %v2102 = vmul.f32 %v2070, %v887
      %v2103 = vmul.f32 %v2071, %v888
      %v2104 = vmul.f32 %v2072, %v889
      %v2105 = vmul.f32 %v2073, %v890
      %v2106 = vmul.f32 %v2074, %v891
      %v2107 = vmul.f32 %v2075, %v892
      %v2108 = vmul.f32 %v2076, %v893
      %v2109 = vmul.f32 %v2077, %v894
      %v2110 = vmul.f32 %v2078, %v895
      %v2111 = vmul.f32 %v2079, %v896
      %v2112 = vmul.f32 %v2080, %v897
      %v2113 = vmul.f32 %v2081, %v898
      %v2114 = vmul.f32 %v2082, %v899
      %v2115 = vmul.f32 %v2083, %v900
      %v2116 = vmul.f32 %v2084, %v901
      %v2117 = vmul.f32 %v2085, %v902
      %v2118 = vmul.f32 %v2086, %v903
      %v2119 = vmul.f32 %v2087, %v904
      %v2120 = vmul.f32 %v2088, %v905
      %v2121 = vmul.f32 %v2089, %v906
      %v2122 = vmul.f32 %v2090, %v907
      %v2123 = vmul.f32 %v2091, %v908
      %v2124 = vmul.f32 %v2092, %v909
      %v2125 = vmul.f32 %v2093, %v910
      %v2126 = vmul.f32 %v2094, %v911
      %v2127 = vmul.f32 %v2095, %v912
      %v2128 = vmul.f32 %v2096, %v913
      %v2129 = vmul.f32 %v2097, %v914
      %v2130 = vmul.f32 %v2098, %v915
      %v2131 = vmul.f32 %v2099, %v916
      %s2132 = scalar_lea.vmem %s5, 2
      %v2133 = vld [vmem:[%s2132] sm:$0x1]
      %v2135 = vperm.slane %v2133, 0
      %v2137 = vmul.f32 %v2100, %v2135
      %v2138 = vmul.f32 %v2101, %v2135
      %v2139 = vmul.f32 %v2102, %v2135
      %v2140 = vmul.f32 %v2103, %v2135
      %v2141 = vmul.f32 %v2104, %v2135
      %v2142 = vmul.f32 %v2105, %v2135
      %v2143 = vmul.f32 %v2106, %v2135
      %v2144 = vmul.f32 %v2107, %v2135
      %v2145 = vmul.f32 %v2108, %v2135
      %v2146 = vmul.f32 %v2109, %v2135
      %v2147 = vmul.f32 %v2110, %v2135
      %v2148 = vmul.f32 %v2111, %v2135
      %v2149 = vmul.f32 %v2112, %v2135
      %v2150 = vmul.f32 %v2113, %v2135
      %v2151 = vmul.f32 %v2114, %v2135
      %v2152 = vmul.f32 %v2115, %v2135
      %v2153 = vmul.f32 %v2116, %v2135
      %v2154 = vmul.f32 %v2117, %v2135
      %v2155 = vmul.f32 %v2118, %v2135
      %v2156 = vmul.f32 %v2119, %v2135
      %v2157 = vmul.f32 %v2120, %v2135
      %v2158 = vmul.f32 %v2121, %v2135
      %v2159 = vmul.f32 %v2122, %v2135
      %v2160 = vmul.f32 %v2123, %v2135
      %v2161 = vmul.f32 %v2124, %v2135
      %v2162 = vmul.f32 %v2125, %v2135
      %v2163 = vmul.f32 %v2126, %v2135
      %v2164 = vmul.f32 %v2127, %v2135
      %v2165 = vmul.f32 %v2128, %v2135
      %v2166 = vmul.f32 %v2129, %v2135
      %v2167 = vmul.f32 %v2130, %v2135
      %v2168 = vmul.f32 %v2131, %v2135
      %v2169 = vadd.f32 %v2036, %v2137
      %v2170 = vadd.f32 %v2037, %v2138
      %v2171 = vadd.f32 %v2038, %v2139
      %v2172 = vadd.f32 %v2039, %v2140
      %v2173 = vadd.f32 %v2040, %v2141
      %v2174 = vadd.f32 %v2041, %v2142
      %v2175 = vadd.f32 %v2042, %v2143
      %v2176 = vadd.f32 %v2043, %v2144
      %v2177 = vadd.f32 %v2044, %v2145
      %v2178 = vadd.f32 %v2045, %v2146
      %v2179 = vadd.f32 %v2046, %v2147
      %v2180 = vadd.f32 %v2047, %v2148
      %v2181 = vadd.f32 %v2048, %v2149
      %v2182 = vadd.f32 %v2049, %v2150
      %v2183 = vadd.f32 %v2050, %v2151
      %v2184 = vadd.f32 %v2051, %v2152
      %v2185 = vadd.f32 %v2052, %v2153
      %v2186 = vadd.f32 %v2053, %v2154
      %v2187 = vadd.f32 %v2054, %v2155
      %v2188 = vadd.f32 %v2055, %v2156
      %v2189 = vadd.f32 %v2056, %v2157
      %v2190 = vadd.f32 %v2057, %v2158
      %v2191 = vadd.f32 %v2058, %v2159
      %v2192 = vadd.f32 %v2059, %v2160
      %v2193 = vadd.f32 %v2060, %v2161
      %v2194 = vadd.f32 %v2061, %v2162
      %v2195 = vadd.f32 %v2062, %v2163
      %v2196 = vadd.f32 %v2063, %v2164
      %v2197 = vadd.f32 %v2064, %v2165
      %v2198 = vadd.f32 %v2065, %v2166
      %v2199 = vadd.f32 %v2066, %v2167
      %v2200 = vadd.f32 %v2067, %v2168
      %v2201 = vld [vmem:[#allocation4 + $0x10f] sm:$0xff]
      %v2202 = vld [vmem:[#allocation4 + $0x117] sm:$0xff]
      %v2203 = vmul.f32 %v1837, %v789
      %v2204 = vmul.f32 %v1838, %v790
      %v2205 = vmul.f32 %v1839, %v791
      %v2206 = vmul.f32 %v1840, %v792
      %v2207 = vmul.f32 %v1841, %v793
      %v2208 = vmul.f32 %v1842, %v794
      %v2209 = vmul.f32 %v1843, %v795
      %v2210 = vmul.f32 %v1844, %v796
      %v2211 = vmul.f32 %v1845, %v797
      %v2212 = vmul.f32 %v1846, %v798
      %v2213 = vmul.f32 %v1847, %v799
      %v2214 = vmul.f32 %v1848, %v800
      %v2215 = vmul.f32 %v1849, %v801
      %v2216 = vmul.f32 %v1850, %v802
      %v2217 = vmul.f32 %v1851, %v803
      %v2218 = vmul.f32 %v1852, %v804
      %v2219 = vmul.f32 %v1853, %v805
      %v2220 = vmul.f32 %v1854, %v806
      %v2221 = vmul.f32 %v1855, %v807
      %v2222 = vmul.f32 %v1856, %v808
      %v2223 = vmul.f32 %v1857, %v809
      %v2224 = vmul.f32 %v1858, %v810
      %v2225 = vmul.f32 %v1859, %v811
      %v2226 = vmul.f32 %v1860, %v812
      %v2227 = vmul.f32 %v1861, %v813
      %v2228 = vmul.f32 %v1862, %v814
      %v2229 = vmul.f32 %v1863, %v815
      %v2230 = vmul.f32 %v1864, %v816
      %v2231 = vmul.f32 %v1865, %v817
      %v2232 = vmul.f32 %v1866, %v818
      %v2233 = vmul.f32 %v2201, %v819
      %v2234 = vmul.f32 %v2202, %v820
      %s2235 = scalar_lea.vmem %s5, 3
      %v2236 = vld [vmem:[%s2235] sm:$0x1]
      %v2238 = vperm.slane %v2236, 0
      %v2240 = vmul.f32 %v2203, %v2238
      %v2241 = vmul.f32 %v2204, %v2238
      %v2242 = vmul.f32 %v2205, %v2238
      %v2243 = vmul.f32 %v2206, %v2238
      %v2244 = vmul.f32 %v2207, %v2238
      %v2245 = vmul.f32 %v2208, %v2238
      %v2246 = vmul.f32 %v2209, %v2238
      %v2247 = vmul.f32 %v2210, %v2238
      %v2248 = vmul.f32 %v2211, %v2238
      %v2249 = vmul.f32 %v2212, %v2238
      %v2250 = vmul.f32 %v2213, %v2238
      %v2251 = vmul.f32 %v2214, %v2238
      %v2252 = vmul.f32 %v2215, %v2238
      %v2253 = vmul.f32 %v2216, %v2238
      %v2254 = vmul.f32 %v2217, %v2238
      %v2255 = vmul.f32 %v2218, %v2238
      %v2256 = vmul.f32 %v2219, %v2238
      %v2257 = vmul.f32 %v2220, %v2238
      %v2258 = vmul.f32 %v2221, %v2238
      %v2259 = vmul.f32 %v2222, %v2238
      %v2260 = vmul.f32 %v2223, %v2238
      %v2261 = vmul.f32 %v2224, %v2238
      %v2262 = vmul.f32 %v2225, %v2238
      %v2263 = vmul.f32 %v2226, %v2238
      %v2264 = vmul.f32 %v2227, %v2238
      %v2265 = vmul.f32 %v2228, %v2238
      %v2266 = vmul.f32 %v2229, %v2238
      %v2267 = vmul.f32 %v2230, %v2238
      %v2268 = vmul.f32 %v2231, %v2238
      %v2269 = vmul.f32 %v2232, %v2238
      %v2270 = vmul.f32 %v2233, %v2238
      %v2271 = vmul.f32 %v2234, %v2238
      %v2272 = vadd.f32 %v2169, %v2240
      %v2273 = vadd.f32 %v2170, %v2241
      %v2274 = vadd.f32 %v2171, %v2242
      %v2275 = vadd.f32 %v2172, %v2243
      %v2276 = vadd.f32 %v2173, %v2244
      %v2277 = vadd.f32 %v2174, %v2245
      %v2278 = vadd.f32 %v2175, %v2246
      %v2279 = vadd.f32 %v2176, %v2247
      %v2280 = vadd.f32 %v2177, %v2248
      %v2281 = vadd.f32 %v2178, %v2249
      %v2282 = vadd.f32 %v2179, %v2250
      %v2283 = vadd.f32 %v2180, %v2251
      %v2284 = vadd.f32 %v2181, %v2252
      %v2285 = vadd.f32 %v2182, %v2253
      %v2286 = vadd.f32 %v2183, %v2254
      %v2287 = vadd.f32 %v2184, %v2255
      %v2288 = vadd.f32 %v2185, %v2256
      %v2289 = vadd.f32 %v2186, %v2257
      %v2290 = vadd.f32 %v2187, %v2258
      %v2291 = vadd.f32 %v2188, %v2259
      %v2292 = vadd.f32 %v2189, %v2260
      %v2293 = vadd.f32 %v2190, %v2261
      %v2294 = vadd.f32 %v2191, %v2262
      %v2295 = vadd.f32 %v2192, %v2263
      %v2296 = vadd.f32 %v2193, %v2264
      %v2297 = vadd.f32 %v2194, %v2265
      %v2298 = vadd.f32 %v2195, %v2266
      %v2299 = vadd.f32 %v2196, %v2267
      %v2300 = vadd.f32 %v2197, %v2268
      %v2301 = vadd.f32 %v2198, %v2269
      %v2302 = vadd.f32 %v2199, %v2270
      %v2303 = vadd.f32 %v2200, %v2271
      %v2304 = vld [vmem:[#allocation4 + $0x110] sm:$0xff]
      %v2305 = vld [vmem:[#allocation4 + $0x118] sm:$0xff]
      %s2306 = scalar_lea.vmem %s5, 4
      %v2307 = vld [vmem:[%s2306] sm:$0x1]
      %v2309 = vperm.slane %v2307, 0
      %v2311 = vmul.f32 %v1969, %v2309
      %v2312 = vmul.f32 %v1970, %v2309
      %v2313 = vmul.f32 %v1971, %v2309
      %v2314 = vmul.f32 %v1972, %v2309
      %v2315 = vmul.f32 %v1973, %v2309
      %v2316 = vmul.f32 %v1974, %v2309
      %v2317 = vmul.f32 %v1975, %v2309
      %v2318 = vmul.f32 %v1976, %v2309
      %v2319 = vmul.f32 %v1977, %v2309
      %v2320 = vmul.f32 %v1978, %v2309
      %v2321 = vmul.f32 %v1979, %v2309
      %v2322 = vmul.f32 %v1980, %v2309
      %v2323 = vmul.f32 %v1981, %v2309
      %v2324 = vmul.f32 %v1982, %v2309
      %v2325 = vmul.f32 %v1983, %v2309
      %v2326 = vmul.f32 %v1984, %v2309
      %v2327 = vmul.f32 %v1985, %v2309
      %v2328 = vmul.f32 %v1986, %v2309
      %v2329 = vmul.f32 %v1987, %v2309
      %v2330 = vmul.f32 %v1988, %v2309
      %v2331 = vmul.f32 %v1989, %v2309
      %v2332 = vmul.f32 %v1990, %v2309
      %v2333 = vmul.f32 %v1991, %v2309
      %v2334 = vmul.f32 %v1992, %v2309
      %v2335 = vmul.f32 %v1993, %v2309
      %v2336 = vmul.f32 %v1994, %v2309
      %v2337 = vmul.f32 %v1995, %v2309
      %v2338 = vmul.f32 %v1996, %v2309
      %v2339 = vmul.f32 %v1997, %v2309
      %v2340 = vmul.f32 %v1998, %v2309
      %v2341 = vmul.f32 %v2304, %v2309
      %v2342 = vmul.f32 %v2305, %v2309
      %v2343 = vadd.f32 %v2272, %v2311
      %v2344 = vadd.f32 %v2273, %v2312
      %v2345 = vadd.f32 %v2274, %v2313
      %v2346 = vadd.f32 %v2275, %v2314
      %v2347 = vadd.f32 %v2276, %v2315
      %v2348 = vadd.f32 %v2277, %v2316
      %v2349 = vadd.f32 %v2278, %v2317
      %v2350 = vadd.f32 %v2279, %v2318
      %v2351 = vadd.f32 %v2280, %v2319
      %v2352 = vadd.f32 %v2281, %v2320
      %v2353 = vadd.f32 %v2282, %v2321
      %v2354 = vadd.f32 %v2283, %v2322
      %v2355 = vadd.f32 %v2284, %v2323
      %v2356 = vadd.f32 %v2285, %v2324
      %v2357 = vadd.f32 %v2286, %v2325
      %v2358 = vadd.f32 %v2287, %v2326
      %v2359 = vadd.f32 %v2288, %v2327
      %v2360 = vadd.f32 %v2289, %v2328
      %v2361 = vadd.f32 %v2290, %v2329
      %v2362 = vadd.f32 %v2291, %v2330
      %v2363 = vadd.f32 %v2292, %v2331
      %v2364 = vadd.f32 %v2293, %v2332
      %v2365 = vadd.f32 %v2294, %v2333
      %v2366 = vadd.f32 %v2295, %v2334
      %v2367 = vadd.f32 %v2296, %v2335
      %v2368 = vadd.f32 %v2297, %v2336
      %v2369 = vadd.f32 %v2298, %v2337
      %v2370 = vadd.f32 %v2299, %v2338
      %v2371 = vadd.f32 %v2300, %v2339
      %v2372 = vadd.f32 %v2301, %v2340
      %v2373 = vadd.f32 %v2302, %v2341
      %v2374 = vadd.f32 %v2303, %v2342
      %v2375 = vld [vmem:[#allocation4 + $0x111] sm:$0xff]
      %v2376 = vld [vmem:[#allocation4 + $0x119] sm:$0xff]
      %v2377 = vmul.f32 %v2070, %v885
      %v2378 = vmul.f32 %v2071, %v886
      %v2379 = vmul.f32 %v2072, %v887
      %v2380 = vmul.f32 %v2073, %v888
      %v2381 = vmul.f32 %v2074, %v889
      %v2382 = vmul.f32 %v2075, %v890
      %v2383 = vmul.f32 %v2076, %v891
      %v2384 = vmul.f32 %v2077, %v892
      %v2385 = vmul.f32 %v2078, %v893
      %v2386 = vmul.f32 %v2079, %v894
      %v2387 = vmul.f32 %v2080, %v895
      %v2388 = vmul.f32 %v2081, %v896
      %v2389 = vmul.f32 %v2082, %v897
      %v2390 = vmul.f32 %v2083, %v898
      %v2391 = vmul.f32 %v2084, %v899
      %v2392 = vmul.f32 %v2085, %v900
      %v2393 = vmul.f32 %v2086, %v901
      %v2394 = vmul.f32 %v2087, %v902
      %v2395 = vmul.f32 %v2088, %v903
      %v2396 = vmul.f32 %v2089, %v904
      %v2397 = vmul.f32 %v2090, %v905
      %v2398 = vmul.f32 %v2091, %v906
      %v2399 = vmul.f32 %v2092, %v907
      %v2400 = vmul.f32 %v2093, %v908
      %v2401 = vmul.f32 %v2094, %v909
      %v2402 = vmul.f32 %v2095, %v910
      %v2403 = vmul.f32 %v2096, %v911
      %v2404 = vmul.f32 %v2097, %v912
      %v2405 = vmul.f32 %v2098, %v913
      %v2406 = vmul.f32 %v2099, %v914
      %v2407 = vmul.f32 %v2375, %v915
      %v2408 = vmul.f32 %v2376, %v916
      %s2409 = scalar_lea.vmem %s5, 5
      %v2410 = vld [vmem:[%s2409] sm:$0x1]
      %v2412 = vperm.slane %v2410, 0
      %v2414 = vmul.f32 %v2377, %v2412
      %v2415 = vmul.f32 %v2378, %v2412
      %v2416 = vmul.f32 %v2379, %v2412
      %v2417 = vmul.f32 %v2380, %v2412
      %v2418 = vmul.f32 %v2381, %v2412
      %v2419 = vmul.f32 %v2382, %v2412
      %v2420 = vmul.f32 %v2383, %v2412
      %v2421 = vmul.f32 %v2384, %v2412
      %v2422 = vmul.f32 %v2385, %v2412
      %v2423 = vmul.f32 %v2386, %v2412
      %v2424 = vmul.f32 %v2387, %v2412
      %v2425 = vmul.f32 %v2388, %v2412
      %v2426 = vmul.f32 %v2389, %v2412
      %v2427 = vmul.f32 %v2390, %v2412
      %v2428 = vmul.f32 %v2391, %v2412
      %v2429 = vmul.f32 %v2392, %v2412
      %v2430 = vmul.f32 %v2393, %v2412
      %v2431 = vmul.f32 %v2394, %v2412
      %v2432 = vmul.f32 %v2395, %v2412
      %v2433 = vmul.f32 %v2396, %v2412
      %v2434 = vmul.f32 %v2397, %v2412
      %v2435 = vmul.f32 %v2398, %v2412
      %v2436 = vmul.f32 %v2399, %v2412
      %v2437 = vmul.f32 %v2400, %v2412
      %v2438 = vmul.f32 %v2401, %v2412
      %v2439 = vmul.f32 %v2402, %v2412
      %v2440 = vmul.f32 %v2403, %v2412
      %v2441 = vmul.f32 %v2404, %v2412
      %v2442 = vmul.f32 %v2405, %v2412
      %v2443 = vmul.f32 %v2406, %v2412
      %v2444 = vmul.f32 %v2407, %v2412
      %v2445 = vmul.f32 %v2408, %v2412
      %v2446 = vadd.f32 %v2343, %v2414
      %v2447 = vadd.f32 %v2344, %v2415
      %v2448 = vadd.f32 %v2345, %v2416
      %v2449 = vadd.f32 %v2346, %v2417
      %v2450 = vadd.f32 %v2347, %v2418
      %v2451 = vadd.f32 %v2348, %v2419
      %v2452 = vadd.f32 %v2349, %v2420
      %v2453 = vadd.f32 %v2350, %v2421
      %v2454 = vadd.f32 %v2351, %v2422
      %v2455 = vadd.f32 %v2352, %v2423
      %v2456 = vadd.f32 %v2353, %v2424
      %v2457 = vadd.f32 %v2354, %v2425
      %v2458 = vadd.f32 %v2355, %v2426
      %v2459 = vadd.f32 %v2356, %v2427
      %v2460 = vadd.f32 %v2357, %v2428
      %v2461 = vadd.f32 %v2358, %v2429
      %v2462 = vadd.f32 %v2359, %v2430
      %v2463 = vadd.f32 %v2360, %v2431
      %v2464 = vadd.f32 %v2361, %v2432
      %v2465 = vadd.f32 %v2362, %v2433
      %v2466 = vadd.f32 %v2363, %v2434
      %v2467 = vadd.f32 %v2364, %v2435
      %v2468 = vadd.f32 %v2365, %v2436
      %v2469 = vadd.f32 %v2366, %v2437
      %v2470 = vadd.f32 %v2367, %v2438
      %v2471 = vadd.f32 %v2368, %v2439
      %v2472 = vadd.f32 %v2369, %v2440
      %v2473 = vadd.f32 %v2370, %v2441
      %v2474 = vadd.f32 %v2371, %v2442
      %v2475 = vadd.f32 %v2372, %v2443
      %v2476 = vadd.f32 %v2373, %v2444
      %v2477 = vadd.f32 %v2374, %v2445
      %v2478 = vld [vmem:[#allocation4 + $0x11f] sm:$0xff]
      %v2479 = vld [vmem:[#allocation4 + $0x127] sm:$0xff]
      %v2480 = vmul.f32 %v1839, %v789
      %v2481 = vmul.f32 %v1840, %v790
      %v2482 = vmul.f32 %v1841, %v791
      %v2483 = vmul.f32 %v1842, %v792
      %v2484 = vmul.f32 %v1843, %v793
      %v2485 = vmul.f32 %v1844, %v794
      %v2486 = vmul.f32 %v1845, %v795
      %v2487 = vmul.f32 %v1846, %v796
      %v2488 = vmul.f32 %v1847, %v797
      %v2489 = vmul.f32 %v1848, %v798
      %v2490 = vmul.f32 %v1849, %v799
      %v2491 = vmul.f32 %v1850, %v800
      %v2492 = vmul.f32 %v1851, %v801
      %v2493 = vmul.f32 %v1852, %v802
      %v2494 = vmul.f32 %v1853, %v803
      %v2495 = vmul.f32 %v1854, %v804
      %v2496 = vmul.f32 %v1855, %v805
      %v2497 = vmul.f32 %v1856, %v806
      %v2498 = vmul.f32 %v1857, %v807
      %v2499 = vmul.f32 %v1858, %v808
      %v2500 = vmul.f32 %v1859, %v809
      %v2501 = vmul.f32 %v1860, %v810
      %v2502 = vmul.f32 %v1861, %v811
      %v2503 = vmul.f32 %v1862, %v812
      %v2504 = vmul.f32 %v1863, %v813
      %v2505 = vmul.f32 %v1864, %v814
      %v2506 = vmul.f32 %v1865, %v815
      %v2507 = vmul.f32 %v1866, %v816
      %v2508 = vmul.f32 %v2201, %v817
      %v2509 = vmul.f32 %v2202, %v818
      %v2510 = vmul.f32 %v2478, %v819
      %v2511 = vmul.f32 %v2479, %v820
      %s2512 = scalar_lea.vmem %s5, 6
      %v2513 = vld [vmem:[%s2512] sm:$0x1]
      %v2515 = vperm.slane %v2513, 0
      %v2517 = vmul.f32 %v2480, %v2515
      %v2518 = vmul.f32 %v2481, %v2515
      %v2519 = vmul.f32 %v2482, %v2515
      %v2520 = vmul.f32 %v2483, %v2515
      %v2521 = vmul.f32 %v2484, %v2515
      %v2522 = vmul.f32 %v2485, %v2515
      %v2523 = vmul.f32 %v2486, %v2515
      %v2524 = vmul.f32 %v2487, %v2515
      %v2525 = vmul.f32 %v2488, %v2515
      %v2526 = vmul.f32 %v2489, %v2515
      %v2527 = vmul.f32 %v2490, %v2515
      %v2528 = vmul.f32 %v2491, %v2515
      %v2529 = vmul.f32 %v2492, %v2515
      %v2530 = vmul.f32 %v2493, %v2515
      %v2531 = vmul.f32 %v2494, %v2515
      %v2532 = vmul.f32 %v2495, %v2515
      %v2533 = vmul.f32 %v2496, %v2515
      %v2534 = vmul.f32 %v2497, %v2515
      %v2535 = vmul.f32 %v2498, %v2515
      %v2536 = vmul.f32 %v2499, %v2515
      %v2537 = vmul.f32 %v2500, %v2515
      %v2538 = vmul.f32 %v2501, %v2515
      %v2539 = vmul.f32 %v2502, %v2515
      %v2540 = vmul.f32 %v2503, %v2515
      %v2541 = vmul.f32 %v2504, %v2515
      %v2542 = vmul.f32 %v2505, %v2515
      %v2543 = vmul.f32 %v2506, %v2515
      %v2544 = vmul.f32 %v2507, %v2515
      %v2545 = vmul.f32 %v2508, %v2515
      %v2546 = vmul.f32 %v2509, %v2515
      %v2547 = vmul.f32 %v2510, %v2515
      %v2548 = vmul.f32 %v2511, %v2515
      %v2549 = vadd.f32 %v2446, %v2517
      %v2550 = vadd.f32 %v2447, %v2518
      %v2551 = vadd.f32 %v2448, %v2519
      %v2552 = vadd.f32 %v2449, %v2520
      %v2553 = vadd.f32 %v2450, %v2521
      %v2554 = vadd.f32 %v2451, %v2522
      %v2555 = vadd.f32 %v2452, %v2523
      %v2556 = vadd.f32 %v2453, %v2524
      %v2557 = vadd.f32 %v2454, %v2525
      %v2558 = vadd.f32 %v2455, %v2526
      %v2559 = vadd.f32 %v2456, %v2527
      %v2560 = vadd.f32 %v2457, %v2528
      %v2561 = vadd.f32 %v2458, %v2529
      %v2562 = vadd.f32 %v2459, %v2530
      %v2563 = vadd.f32 %v2460, %v2531
      %v2564 = vadd.f32 %v2461, %v2532
      %v2565 = vadd.f32 %v2462, %v2533
      %v2566 = vadd.f32 %v2463, %v2534
      %v2567 = vadd.f32 %v2464, %v2535
      %v2568 = vadd.f32 %v2465, %v2536
      %v2569 = vadd.f32 %v2466, %v2537
      %v2570 = vadd.f32 %v2467, %v2538
      %v2571 = vadd.f32 %v2468, %v2539
      %v2572 = vadd.f32 %v2469, %v2540
      %v2573 = vadd.f32 %v2470, %v2541
      %v2574 = vadd.f32 %v2471, %v2542
      %v2575 = vadd.f32 %v2472, %v2543
      %v2576 = vadd.f32 %v2473, %v2544
      %v2577 = vadd.f32 %v2474, %v2545
      %v2578 = vadd.f32 %v2475, %v2546
      %v2579 = vadd.f32 %v2476, %v2547
      %v2580 = vadd.f32 %v2477, %v2548
      %v2581 = vld [vmem:[#allocation4 + $0x120] sm:$0xff]
      %v2582 = vld [vmem:[#allocation4 + $0x128] sm:$0xff]
      %s2583 = scalar_lea.vmem %s5, 7
      %v2584 = vld [vmem:[%s2583] sm:$0x1]
      %v2586 = vperm.slane %v2584, 0
      %v2588 = vmul.f32 %v1971, %v2586
      %v2589 = vmul.f32 %v1972, %v2586
      %v2590 = vmul.f32 %v1973, %v2586
      %v2591 = vmul.f32 %v1974, %v2586
      %v2592 = vmul.f32 %v1975, %v2586
      %v2593 = vmul.f32 %v1976, %v2586
      %v2594 = vmul.f32 %v1977, %v2586
      %v2595 = vmul.f32 %v1978, %v2586
      %v2596 = vmul.f32 %v1979, %v2586
      %v2597 = vmul.f32 %v1980, %v2586
      %v2598 = vmul.f32 %v1981, %v2586
      %v2599 = vmul.f32 %v1982, %v2586
      %v2600 = vmul.f32 %v1983, %v2586
      %v2601 = vmul.f32 %v1984, %v2586
      %v2602 = vmul.f32 %v1985, %v2586
      %v2603 = vmul.f32 %v1986, %v2586
      %v2604 = vmul.f32 %v1987, %v2586
      %v2605 = vmul.f32 %v1988, %v2586
      %v2606 = vmul.f32 %v1989, %v2586
      %v2607 = vmul.f32 %v1990, %v2586
      %v2608 = vmul.f32 %v1991, %v2586
      %v2609 = vmul.f32 %v1992, %v2586
      %v2610 = vmul.f32 %v1993, %v2586
      %v2611 = vmul.f32 %v1994, %v2586
      %v2612 = vmul.f32 %v1995, %v2586
      %v2613 = vmul.f32 %v1996, %v2586
      %v2614 = vmul.f32 %v1997, %v2586
      %v2615 = vmul.f32 %v1998, %v2586
      %v2616 = vmul.f32 %v2304, %v2586
      %v2617 = vmul.f32 %v2305, %v2586
      %v2618 = vmul.f32 %v2581, %v2586
      %v2619 = vmul.f32 %v2582, %v2586
      %v2620 = vadd.f32 %v2549, %v2588
      %v2621 = vadd.f32 %v2550, %v2589
      %v2622 = vadd.f32 %v2551, %v2590
      %v2623 = vadd.f32 %v2552, %v2591
      %v2624 = vadd.f32 %v2553, %v2592
      %v2625 = vadd.f32 %v2554, %v2593
      %v2626 = vadd.f32 %v2555, %v2594
      %v2627 = vadd.f32 %v2556, %v2595
      %v2628 = vadd.f32 %v2557, %v2596
      %v2629 = vadd.f32 %v2558, %v2597
      %v2630 = vadd.f32 %v2559, %v2598
      %v2631 = vadd.f32 %v2560, %v2599
      %v2632 = vadd.f32 %v2561, %v2600
      %v2633 = vadd.f32 %v2562, %v2601
      %v2634 = vadd.f32 %v2563, %v2602
      %v2635 = vadd.f32 %v2564, %v2603
      %v2636 = vadd.f32 %v2565, %v2604
      %v2637 = vadd.f32 %v2566, %v2605
      %v2638 = vadd.f32 %v2567, %v2606
      %v2639 = vadd.f32 %v2568, %v2607
      %v2640 = vadd.f32 %v2569, %v2608
      %v2641 = vadd.f32 %v2570, %v2609
      %v2642 = vadd.f32 %v2571, %v2610
      %v2643 = vadd.f32 %v2572, %v2611
      %v2644 = vadd.f32 %v2573, %v2612
      %v2645 = vadd.f32 %v2574, %v2613
      %v2646 = vadd.f32 %v2575, %v2614
      %v2647 = vadd.f32 %v2576, %v2615
      %v2648 = vadd.f32 %v2577, %v2616
      %v2649 = vadd.f32 %v2578, %v2617
      %v2650 = vadd.f32 %v2579, %v2618
      %v2651 = vadd.f32 %v2580, %v2619
      %v2652 = vld [vmem:[#allocation4 + $0x121] sm:$0xff]
      %v2653 = vld [vmem:[#allocation4 + $0x129] sm:$0xff]
      %v2654 = vmul.f32 %v2072, %v885
      %v2655 = vmul.f32 %v2073, %v886
      %v2656 = vmul.f32 %v2074, %v887
      %v2657 = vmul.f32 %v2075, %v888
      %v2658 = vmul.f32 %v2076, %v889
      %v2659 = vmul.f32 %v2077, %v890
      %v2660 = vmul.f32 %v2078, %v891
      %v2661 = vmul.f32 %v2079, %v892
      %v2662 = vmul.f32 %v2080, %v893
      %v2663 = vmul.f32 %v2081, %v894
      %v2664 = vmul.f32 %v2082, %v895
      %v2665 = vmul.f32 %v2083, %v896
      %v2666 = vmul.f32 %v2084, %v897
      %v2667 = vmul.f32 %v2085, %v898
      %v2668 = vmul.f32 %v2086, %v899
      %v2669 = vmul.f32 %v2087, %v900
      %v2670 = vmul.f32 %v2088, %v901
      %v2671 = vmul.f32 %v2089, %v902
      %v2672 = vmul.f32 %v2090, %v903
      %v2673 = vmul.f32 %v2091, %v904
      %v2674 = vmul.f32 %v2092, %v905
      %v2675 = vmul.f32 %v2093, %v906
      %v2676 = vmul.f32 %v2094, %v907
      %v2677 = vmul.f32 %v2095, %v908
      %v2678 = vmul.f32 %v2096, %v909
      %v2679 = vmul.f32 %v2097, %v910
      %v2680 = vmul.f32 %v2098, %v911
      %v2681 = vmul.f32 %v2099, %v912
      %v2682 = vmul.f32 %v2375, %v913
      %v2683 = vmul.f32 %v2376, %v914
      %v2684 = vmul.f32 %v2652, %v915
      %v2685 = vmul.f32 %v2653, %v916
      %s2686 = scalar_lea.vmem %s5, 8
      %v2687 = vld [vmem:[%s2686] sm:$0x1]
      %v2689 = vperm.slane %v2687, 0
      %v2691 = vmul.f32 %v2654, %v2689
      %v2692 = vmul.f32 %v2655, %v2689
      %v2693 = vmul.f32 %v2656, %v2689
      %v2694 = vmul.f32 %v2657, %v2689
      %v2695 = vmul.f32 %v2658, %v2689
      %v2696 = vmul.f32 %v2659, %v2689
      %v2697 = vmul.f32 %v2660, %v2689
      %v2698 = vmul.f32 %v2661, %v2689
      %v2699 = vmul.f32 %v2662, %v2689
      %v2700 = vmul.f32 %v2663, %v2689
      %v2701 = vmul.f32 %v2664, %v2689
      %v2702 = vmul.f32 %v2665, %v2689
      %v2703 = vmul.f32 %v2666, %v2689
      %v2704 = vmul.f32 %v2667, %v2689
      %v2705 = vmul.f32 %v2668, %v2689
      %v2706 = vmul.f32 %v2669, %v2689
      %v2707 = vmul.f32 %v2670, %v2689
      %v2708 = vmul.f32 %v2671, %v2689
      %v2709 = vmul.f32 %v2672, %v2689
      %v2710 = vmul.f32 %v2673, %v2689
      %v2711 = vmul.f32 %v2674, %v2689
      %v2712 = vmul.f32 %v2675, %v2689
      %v2713 = vmul.f32 %v2676, %v2689
      %v2714 = vmul.f32 %v2677, %v2689
      %v2715 = vmul.f32 %v2678, %v2689
      %v2716 = vmul.f32 %v2679, %v2689
      %v2717 = vmul.f32 %v2680, %v2689
      %v2718 = vmul.f32 %v2681, %v2689
      %v2719 = vmul.f32 %v2682, %v2689
      %v2720 = vmul.f32 %v2683, %v2689
      %v2721 = vmul.f32 %v2684, %v2689
      %v2722 = vmul.f32 %v2685, %v2689
      %v2723 = vadd.f32 %v2620, %v2691
      %v2724 = vadd.f32 %v2621, %v2692
      %v2725 = vadd.f32 %v2622, %v2693
      %v2726 = vadd.f32 %v2623, %v2694
      %v2727 = vadd.f32 %v2624, %v2695
      %v2728 = vadd.f32 %v2625, %v2696
      %v2729 = vadd.f32 %v2626, %v2697
      %v2730 = vadd.f32 %v2627, %v2698
      %v2731 = vadd.f32 %v2628, %v2699
      %v2732 = vadd.f32 %v2629, %v2700
      %v2733 = vadd.f32 %v2630, %v2701
      %v2734 = vadd.f32 %v2631, %v2702
      %v2735 = vadd.f32 %v2632, %v2703
      %v2736 = vadd.f32 %v2633, %v2704
      %v2737 = vadd.f32 %v2634, %v2705
      %v2738 = vadd.f32 %v2635, %v2706
      %v2739 = vadd.f32 %v2636, %v2707
      %v2740 = vadd.f32 %v2637, %v2708
      %v2741 = vadd.f32 %v2638, %v2709
      %v2742 = vadd.f32 %v2639, %v2710
      %v2743 = vadd.f32 %v2640, %v2711
      %v2744 = vadd.f32 %v2641, %v2712
      %v2745 = vadd.f32 %v2642, %v2713
      %v2746 = vadd.f32 %v2643, %v2714
      %v2747 = vadd.f32 %v2644, %v2715
      %v2748 = vadd.f32 %v2645, %v2716
      %v2749 = vadd.f32 %v2646, %v2717
      %v2750 = vadd.f32 %v2647, %v2718
      %v2751 = vadd.f32 %v2648, %v2719
      %v2752 = vadd.f32 %v2649, %v2720
      %v2753 = vadd.f32 %v2650, %v2721
      %v2754 = vadd.f32 %v2651, %v2722
      %2755 = vst [vmem:[#allocation5] sm:$0xff] %v2723
      %2756 = vst [vmem:[#allocation5 + $0x8] sm:$0xff] %v2724
      %2757 = vst [vmem:[#allocation5 + $0x10] sm:$0xff] %v2725
      %2758 = vst [vmem:[#allocation5 + $0x18] sm:$0xff] %v2726
      %2759 = vst [vmem:[#allocation5 + $0x20] sm:$0xff] %v2727
      %2760 = vst [vmem:[#allocation5 + $0x28] sm:$0xff] %v2728
      %2761 = vst [vmem:[#allocation5 + $0x30] sm:$0xff] %v2729
      %2762 = vst [vmem:[#allocation5 + $0x38] sm:$0xff] %v2730
      %2763 = vst [vmem:[#allocation5 + $0x40] sm:$0xff] %v2731
      %2764 = vst [vmem:[#allocation5 + $0x48] sm:$0xff] %v2732
      %2765 = vst [vmem:[#allocation5 + $0x50] sm:$0xff] %v2733
      %2766 = vst [vmem:[#allocation5 + $0x58] sm:$0xff] %v2734
      %2767 = vst [vmem:[#allocation5 + $0x60] sm:$0xff] %v2735
      %2768 = vst [vmem:[#allocation5 + $0x68] sm:$0xff] %v2736
      %2769 = vst [vmem:[#allocation5 + $0x70] sm:$0xff] %v2737
      %2770 = vst [vmem:[#allocation5 + $0x78] sm:$0xff] %v2738
      %2771 = vst [vmem:[#allocation5 + $0x80] sm:$0xff] %v2739
      %2772 = vst [vmem:[#allocation5 + $0x88] sm:$0xff] %v2740
      %2773 = vst [vmem:[#allocation5 + $0x90] sm:$0xff] %v2741
      %2774 = vst [vmem:[#allocation5 + $0x98] sm:$0xff] %v2742
      %2775 = vst [vmem:[#allocation5 + $0xa0] sm:$0xff] %v2743
      %2776 = vst [vmem:[#allocation5 + $0xa8] sm:$0xff] %v2744
      %2777 = vst [vmem:[#allocation5 + $0xb0] sm:$0xff] %v2745
      %2778 = vst [vmem:[#allocation5 + $0xb8] sm:$0xff] %v2746
      %2779 = vst [vmem:[#allocation5 + $0xc0] sm:$0xff] %v2747
      %2780 = vst [vmem:[#allocation5 + $0xc8] sm:$0xff] %v2748
      %2781 = vst [vmem:[#allocation5 + $0xd0] sm:$0xff] %v2749
      %2782 = vst [vmem:[#allocation5 + $0xd8] sm:$0xff] %v2750
      %2783 = vst [vmem:[#allocation5 + $0xe0] sm:$0xff] %v2751
      %2784 = vst [vmem:[#allocation5 + $0xe8] sm:$0xff] %v2752
      %2785 = vst [vmem:[#allocation5 + $0xf0] sm:$0xff] %v2753
      %2786 = vst [vmem:[#allocation5 + $0xf8] sm:$0xff] %v2754
      %v2787 = vmax.f32 %v2723, 0.0
      %v2788 = vmax.f32 %v2724, 0.0
      %v2789 = vmax.f32 %v2725, 0.0
      %v2790 = vmax.f32 %v2726, 0.0
      %v2791 = vmax.f32 %v2727, 0.0
      %v2792 = vmax.f32 %v2728, 0.0
      %v2793 = vmax.f32 %v2729, 0.0
      %v2794 = vmax.f32 %v2730, 0.0
      %v2795 = vmax.f32 %v2731, 0.0
      %v2796 = vmax.f32 %v2732, 0.0
      %v2797 = vmax.f32 %v2733, 0.0
      %v2798 = vmax.f32 %v2734, 0.0
      %v2799 = vmax.f32 %v2735, 0.0
      %v2800 = vmax.f32 %v2736, 0.0
      %v2801 = vmax.f32 %v2737, 0.0
      %v2802 = vmax.f32 %v2738, 0.0
      %v2803 = vmax.f32 %v2739, 0.0
      %v2804 = vmax.f32 %v2740, 0.0
      %v2805 = vmax.f32 %v2741, 0.0
      %v2806 = vmax.f32 %v2742, 0.0
      %v2807 = vmax.f32 %v2743, 0.0
      %v2808 = vmax.f32 %v2744, 0.0
      %v2809 = vmax.f32 %v2745, 0.0
      %v2810 = vmax.f32 %v2746, 0.0
      %v2811 = vmax.f32 %v2747, 0.0
      %v2812 = vmax.f32 %v2748, 0.0
      %v2813 = vmax.f32 %v2749, 0.0
      %v2814 = vmax.f32 %v2750, 0.0
      %v2815 = vmax.f32 %v2751, 0.0
      %v2816 = vmax.f32 %v2752, 0.0
      %v2817 = vmax.f32 %v2753, 0.0
      %v2818 = vmax.f32 %v2754, 0.0
      %2819 = vst [vmem:[#allocation2 + $0x20] sm:$0xff] %v2787
      %2820 = vst [vmem:[#allocation2 + $0x28] sm:$0xff] %v2788
      %2821 = vst [vmem:[#allocation2 + $0x30] sm:$0xff] %v2789
      %2822 = vst [vmem:[#allocation2 + $0x38] sm:$0xff] %v2790
      %2823 = vst [vmem:[#allocation2 + $0x40] sm:$0xff] %v2791
      %2824 = vst [vmem:[#allocation2 + $0x48] sm:$0xff] %v2792
      %2825 = vst [vmem:[#allocation2 + $0x50] sm:$0xff] %v2793
      %2826 = vst [vmem:[#allocation2 + $0x58] sm:$0xff] %v2794
      %2827 = vst [vmem:[#allocation2 + $0x60] sm:$0xff] %v2795
      %2828 = vst [vmem:[#allocation2 + $0x68] sm:$0xff] %v2796
      %2829 = vst [vmem:[#allocation2 + $0x70] sm:$0xff] %v2797
      %2830 = vst [vmem:[#allocation2 + $0x78] sm:$0xff] %v2798
      %2831 = vst [vmem:[#allocation2 + $0x80] sm:$0xff] %v2799
      %2832 = vst [vmem:[#allocation2 + $0x88] sm:$0xff] %v2800
      %2833 = vst [vmem:[#allocation2 + $0x90] sm:$0xff] %v2801
      %2834 = vst [vmem:[#allocation2 + $0x98] sm:$0xff] %v2802
      %2835 = vst [vmem:[#allocation2 + $0xa0] sm:$0xff] %v2803
      %2836 = vst [vmem:[#allocation2 + $0xa8] sm:$0xff] %v2804
      %2837 = vst [vmem:[#allocation2 + $0xb0] sm:$0xff] %v2805
      %2838 = vst [vmem:[#allocation2 + $0xb8] sm:$0xff] %v2806
      %2839 = vst [vmem:[#allocation2 + $0xc0] sm:$0xff] %v2807
      %2840 = vst [vmem:[#allocation2 + $0xc8] sm:$0xff] %v2808
      %2841 = vst [vmem:[#allocation2 + $0xd0] sm:$0xff] %v2809
      %2842 = vst [vmem:[#allocation2 + $0xd8] sm:$0xff] %v2810
      %2843 = vst [vmem:[#allocation2 + $0xe0] sm:$0xff] %v2811
      %2844 = vst [vmem:[#allocation2 + $0xe8] sm:$0xff] %v2812
      %2845 = vst [vmem:[#allocation2 + $0xf0] sm:$0xff] %v2813
      %2846 = vst [vmem:[#allocation2 + $0xf8] sm:$0xff] %v2814
      %2847 = vst [vmem:[#allocation2 + $0x100] sm:$0xff] %v2815
      %2848 = vst [vmem:[#allocation2 + $0x108] sm:$0xff] %v2816
      %2849 = vst [vmem:[#allocation2 + $0x110] sm:$0xff] %v2817
      %2850 = vst [vmem:[#allocation2 + $0x118] sm:$0xff] %v2818
      loop: start=0, step=1, limit=25
      $region53: #{net_forward.1} parent=51 // loop_pre_header
        _
      $region54: #{net_forward.1} parent=51 // loop_header
        %s2852 = sphi 0, %s2856
        %p2853 = scmp.ge.s32.totalorder %s2852, 25
      $region55: #{net_forward.1} parent=51 // loop_header_branch
        %2855 = sbr.rel (%p2853) target = $region59
      $region56: #{net_forward.1} parent=51 // loop_body
        %v2857 = vld [vmem:[#allocation2 + $0xf] sm:$0xff]
        %v2858 = vld [vmem:[#allocation2 + $0x17] sm:$0xff]
        %v2859 = vld [vmem:[#allocation2 + $0x1f] sm:$0xff]
        %v2860 = vld [vmem:[#allocation2 + $0x27] sm:$0xff]
        %v2861 = vld [vmem:[#allocation2 + $0x2f] sm:$0xff]
        %v2862 = vld [vmem:[#allocation2 + $0x37] sm:$0xff]
        %v2863 = vld [vmem:[#allocation2 + $0x3f] sm:$0xff]
        %v2864 = vld [vmem:[#allocation2 + $0x47] sm:$0xff]
        %v2865 = vld [vmem:[#allocation2 + $0x4f] sm:$0xff]
        %v2866 = vld [vmem:[#allocation2 + $0x57] sm:$0xff]
        %v2867 = vld [vmem:[#allocation2 + $0x5f] sm:$0xff]
        %v2868 = vld [vmem:[#allocation2 + $0x67] sm:$0xff]
        %v2869 = vld [vmem:[#allocation2 + $0x6f] sm:$0xff]
        %v2870 = vld [vmem:[#allocation2 + $0x77] sm:$0xff]
        %v2871 = vld [vmem:[#allocation2 + $0x7f] sm:$0xff]
        %v2872 = vld [vmem:[#allocation2 + $0x87] sm:$0xff]
        %v2873 = vld [vmem:[#allocation2 + $0x8f] sm:$0xff]
        %v2874 = vld [vmem:[#allocation2 + $0x97] sm:$0xff]
        %v2875 = vld [vmem:[#allocation2 + $0x9f] sm:$0xff]
        %v2876 = vld [vmem:[#allocation2 + $0xa7] sm:$0xff]
        %v2877 = vld [vmem:[#allocation2 + $0xaf] sm:$0xff]
        %v2878 = vld [vmem:[#allocation2 + $0xb7] sm:$0xff]
        %v2879 = vld [vmem:[#allocation2 + $0xbf] sm:$0xff]
        %v2880 = vld [vmem:[#allocation2 + $0xc7] sm:$0xff]
        %v2881 = vld [vmem:[#allocation2 + $0xcf] sm:$0xff]
        %v2882 = vld [vmem:[#allocation2 + $0xd7] sm:$0xff]
        %v2883 = vld [vmem:[#allocation2 + $0xdf] sm:$0xff]
        %v2884 = vld [vmem:[#allocation2 + $0xe7] sm:$0xff]
        %v2885 = vld [vmem:[#allocation2 + $0xef] sm:$0xff]
        %v2886 = vld [vmem:[#allocation2 + $0xf7] sm:$0xff]
        %v2887 = vld [vmem:[#allocation2 + $0xff] sm:$0xff]
        %v2888 = vld [vmem:[#allocation2 + $0x107] sm:$0xff]
        %v2889 = vmul.f32 %v2857, %v789
        %v2890 = vmul.f32 %v2858, %v790
        %v2891 = vmul.f32 %v2859, %v791
        %v2892 = vmul.f32 %v2860, %v792
        %v2893 = vmul.f32 %v2861, %v793
        %v2894 = vmul.f32 %v2862, %v794
        %v2895 = vmul.f32 %v2863, %v795
        %v2896 = vmul.f32 %v2864, %v796
        %v2897 = vmul.f32 %v2865, %v797
        %v2898 = vmul.f32 %v2866, %v798
        %v2899 = vmul.f32 %v2867, %v799
        %v2900 = vmul.f32 %v2868, %v800
        %v2901 = vmul.f32 %v2869, %v801
        %v2902 = vmul.f32 %v2870, %v802
        %v2903 = vmul.f32 %v2871, %v803
        %v2904 = vmul.f32 %v2872, %v804
        %v2905 = vmul.f32 %v2873, %v805
        %v2906 = vmul.f32 %v2874, %v806
        %v2907 = vmul.f32 %v2875, %v807
        %v2908 = vmul.f32 %v2876, %v808
        %v2909 = vmul.f32 %v2877, %v809
        %v2910 = vmul.f32 %v2878, %v810
        %v2911 = vmul.f32 %v2879, %v811
        %v2912 = vmul.f32 %v2880, %v812
        %v2913 = vmul.f32 %v2881, %v813
        %v2914 = vmul.f32 %v2882, %v814
        %v2915 = vmul.f32 %v2883, %v815
        %v2916 = vmul.f32 %v2884, %v816
        %v2917 = vmul.f32 %v2885, %v817
        %v2918 = vmul.f32 %v2886, %v818
        %v2919 = vmul.f32 %v2887, %v819
        %v2920 = vmul.f32 %v2888, %v820
        %v2921 = vpack.c.bf16 %v2889, %v2889
        %v2922 = vpack.c.bf16 %v2890, %v2890
        %v2923 = vpack.c.bf16 %v2891, %v2891
        %v2924 = vpack.c.bf16 %v2892, %v2892
        %v2925 = vpack.c.bf16 %v2893, %v2893
        %v2926 = vpack.c.bf16 %v2894, %v2894
        %v2927 = vpack.c.bf16 %v2895, %v2895
        %v2928 = vpack.c.bf16 %v2896, %v2896
        %v2929 = vpack.c.bf16 %v2897, %v2897
        %v2930 = vpack.c.bf16 %v2898, %v2898
        %v2931 = vpack.c.bf16 %v2899, %v2899
        %v2932 = vpack.c.bf16 %v2900, %v2900
        %v2933 = vpack.c.bf16 %v2901, %v2901
        %v2934 = vpack.c.bf16 %v2902, %v2902
        %v2935 = vpack.c.bf16 %v2903, %v2903
        %v2936 = vpack.c.bf16 %v2904, %v2904
        %v2937 = vpack.c.bf16 %v2905, %v2905
        %v2938 = vpack.c.bf16 %v2906, %v2906
        %v2939 = vpack.c.bf16 %v2907, %v2907
        %v2940 = vpack.c.bf16 %v2908, %v2908
        %v2941 = vpack.c.bf16 %v2909, %v2909
        %v2942 = vpack.c.bf16 %v2910, %v2910
        %v2943 = vpack.c.bf16 %v2911, %v2911
        %v2944 = vpack.c.bf16 %v2912, %v2912
        %v2945 = vpack.c.bf16 %v2913, %v2913
        %v2946 = vpack.c.bf16 %v2914, %v2914
        %v2947 = vpack.c.bf16 %v2915, %v2915
        %v2948 = vpack.c.bf16 %v2916, %v2916
        %v2949 = vpack.c.bf16 %v2917, %v2917
        %v2950 = vpack.c.bf16 %v2918, %v2918
        %v2951 = vpack.c.bf16 %v2919, %v2919
        %v2952 = vpack.c.bf16 %v2920, %v2920
        %v2953 = vld [vmem:[#allocation2 + $0x10] sm:$0xff]
        %v2954 = vld [vmem:[#allocation2 + $0x18] sm:$0xff]
        %v2955 = vld [vmem:[#allocation2 + $0x20] sm:$0xff]
        %v2956 = vld [vmem:[#allocation2 + $0x28] sm:$0xff]
        %v2957 = vld [vmem:[#allocation2 + $0x30] sm:$0xff]
        %v2958 = vld [vmem:[#allocation2 + $0x38] sm:$0xff]
        %v2959 = vld [vmem:[#allocation2 + $0x40] sm:$0xff]
        %v2960 = vld [vmem:[#allocation2 + $0x48] sm:$0xff]
        %v2961 = vld [vmem:[#allocation2 + $0x50] sm:$0xff]
        %v2962 = vld [vmem:[#allocation2 + $0x58] sm:$0xff]
        %v2963 = vld [vmem:[#allocation2 + $0x60] sm:$0xff]
        %v2964 = vld [vmem:[#allocation2 + $0x68] sm:$0xff]
        %v2965 = vld [vmem:[#allocation2 + $0x70] sm:$0xff]
        %v2966 = vld [vmem:[#allocation2 + $0x78] sm:$0xff]
        %v2967 = vld [vmem:[#allocation2 + $0x80] sm:$0xff]
        %v2968 = vld [vmem:[#allocation2 + $0x88] sm:$0xff]
        %v2969 = vld [vmem:[#allocation2 + $0x90] sm:$0xff]
        %v2970 = vld [vmem:[#allocation2 + $0x98] sm:$0xff]
        %v2971 = vld [vmem:[#allocation2 + $0xa0] sm:$0xff]
        %v2972 = vld [vmem:[#allocation2 + $0xa8] sm:$0xff]
        %v2973 = vld [vmem:[#allocation2 + $0xb0] sm:$0xff]
        %v2974 = vld [vmem:[#allocation2 + $0xb8] sm:$0xff]
        %v2975 = vld [vmem:[#allocation2 + $0xc0] sm:$0xff]
        %v2976 = vld [vmem:[#allocation2 + $0xc8] sm:$0xff]
        %v2977 = vld [vmem:[#allocation2 + $0xd0] sm:$0xff]
        %v2978 = vld [vmem:[#allocation2 + $0xd8] sm:$0xff]
        %v2979 = vld [vmem:[#allocation2 + $0xe0] sm:$0xff]
        %v2980 = vld [vmem:[#allocation2 + $0xe8] sm:$0xff]
        %v2981 = vld [vmem:[#allocation2 + $0xf0] sm:$0xff]
        %v2982 = vld [vmem:[#allocation2 + $0xf8] sm:$0xff]
        %v2983 = vld [vmem:[#allocation2 + $0x100] sm:$0xff]
        %v2984 = vld [vmem:[#allocation2 + $0x108] sm:$0xff]
        %v2985 = vpack.c.bf16 %v2953, %v2953
        %v2986 = vpack.c.bf16 %v2954, %v2954
        %v2987 = vpack.c.bf16 %v2955, %v2955
        %v2988 = vpack.c.bf16 %v2956, %v2956
        %v2989 = vpack.c.bf16 %v2957, %v2957
        %v2990 = vpack.c.bf16 %v2958, %v2958
        %v2991 = vpack.c.bf16 %v2959, %v2959
        %v2992 = vpack.c.bf16 %v2960, %v2960
        %v2993 = vpack.c.bf16 %v2961, %v2961
        %v2994 = vpack.c.bf16 %v2962, %v2962
        %v2995 = vpack.c.bf16 %v2963, %v2963
        %v2996 = vpack.c.bf16 %v2964, %v2964
        %v2997 = vpack.c.bf16 %v2965, %v2965
        %v2998 = vpack.c.bf16 %v2966, %v2966
        %v2999 = vpack.c.bf16 %v2967, %v2967
        %v3000 = vpack.c.bf16 %v2968, %v2968
        %v3001 = vpack.c.bf16 %v2969, %v2969
        %v3002 = vpack.c.bf16 %v2970, %v2970
        %v3003 = vpack.c.bf16 %v2971, %v2971
        %v3004 = vpack.c.bf16 %v2972, %v2972
        %v3005 = vpack.c.bf16 %v2973, %v2973
        %v3006 = vpack.c.bf16 %v2974, %v2974
        %v3007 = vpack.c.bf16 %v2975, %v2975
        %v3008 = vpack.c.bf16 %v2976, %v2976
        %v3009 = vpack.c.bf16 %v2977, %v2977
        %v3010 = vpack.c.bf16 %v2978, %v2978
        %v3011 = vpack.c.bf16 %v2979, %v2979
        %v3012 = vpack.c.bf16 %v2980, %v2980
        %v3013 = vpack.c.bf16 %v2981, %v2981
        %v3014 = vpack.c.bf16 %v2982, %v2982
        %v3015 = vpack.c.bf16 %v2983, %v2983
        %v3016 = vpack.c.bf16 %v2984, %v2984
        %v3017 = vld [vmem:[#allocation2 + $0x11] sm:$0xff]
        %v3018 = vld [vmem:[#allocation2 + $0x19] sm:$0xff]
        %v3019 = vld [vmem:[#allocation2 + $0x21] sm:$0xff]
        %v3020 = vld [vmem:[#allocation2 + $0x29] sm:$0xff]
        %v3021 = vld [vmem:[#allocation2 + $0x31] sm:$0xff]
        %v3022 = vld [vmem:[#allocation2 + $0x39] sm:$0xff]
        %v3023 = vld [vmem:[#allocation2 + $0x41] sm:$0xff]
        %v3024 = vld [vmem:[#allocation2 + $0x49] sm:$0xff]
        %v3025 = vld [vmem:[#allocation2 + $0x51] sm:$0xff]
        %v3026 = vld [vmem:[#allocation2 + $0x59] sm:$0xff]
        %v3027 = vld [vmem:[#allocation2 + $0x61] sm:$0xff]
        %v3028 = vld [vmem:[#allocation2 + $0x69] sm:$0xff]
        %v3029 = vld [vmem:[#allocation2 + $0x71] sm:$0xff]
        %v3030 = vld [vmem:[#allocation2 + $0x79] sm:$0xff]
        %v3031 = vld [vmem:[#allocation2 + $0x81] sm:$0xff]
        %v3032 = vld [vmem:[#allocation2 + $0x89] sm:$0xff]
        %v3033 = vld [vmem:[#allocation2 + $0x91] sm:$0xff]
        %v3034 = vld [vmem:[#allocation2 + $0x99] sm:$0xff]
        %v3035 = vld [vmem:[#allocation2 + $0xa1] sm:$0xff]
        %v3036 = vld [vmem:[#allocation2 + $0xa9] sm:$0xff]
        %v3037 = vld [vmem:[#allocation2 + $0xb1] sm:$0xff]
        %v3038 = vld [vmem:[#allocation2 + $0xb9] sm:$0xff]
        %v3039 = vld [vmem:[#allocation2 + $0xc1] sm:$0xff]
        %v3040 = vld [vmem:[#allocation2 + $0xc9] sm:$0xff]
        %v3041 = vld [vmem:[#allocation2 + $0xd1] sm:$0xff]
        %v3042 = vld [vmem:[#allocation2 + $0xd9] sm:$0xff]
        %v3043 = vld [vmem:[#allocation2 + $0xe1] sm:$0xff]
        %v3044 = vld [vmem:[#allocation2 + $0xe9] sm:$0xff]
        %v3045 = vld [vmem:[#allocation2 + $0xf1] sm:$0xff]
        %v3046 = vld [vmem:[#allocation2 + $0xf9] sm:$0xff]
        %v3047 = vld [vmem:[#allocation2 + $0x101] sm:$0xff]
        %v3048 = vld [vmem:[#allocation2 + $0x109] sm:$0xff]
        %v3049 = vmul.f32 %v3017, %v885
        %v3050 = vmul.f32 %v3018, %v886
        %v3051 = vmul.f32 %v3019, %v887
        %v3052 = vmul.f32 %v3020, %v888
        %v3053 = vmul.f32 %v3021, %v889
        %v3054 = vmul.f32 %v3022, %v890
        %v3055 = vmul.f32 %v3023, %v891
        %v3056 = vmul.f32 %v3024, %v892
        %v3057 = vmul.f32 %v3025, %v893
        %v3058 = vmul.f32 %v3026, %v894
        %v3059 = vmul.f32 %v3027, %v895
        %v3060 = vmul.f32 %v3028, %v896
        %v3061 = vmul.f32 %v3029, %v897
        %v3062 = vmul.f32 %v3030, %v898
        %v3063 = vmul.f32 %v3031, %v899
        %v3064 = vmul.f32 %v3032, %v900
        %v3065 = vmul.f32 %v3033, %v901
        %v3066 = vmul.f32 %v3034, %v902
        %v3067 = vmul.f32 %v3035, %v903
        %v3068 = vmul.f32 %v3036, %v904
        %v3069 = vmul.f32 %v3037, %v905
        %v3070 = vmul.f32 %v3038, %v906
        %v3071 = vmul.f32 %v3039, %v907
        %v3072 = vmul.f32 %v3040, %v908
        %v3073 = vmul.f32 %v3041, %v909
        %v3074 = vmul.f32 %v3042, %v910
        %v3075 = vmul.f32 %v3043, %v911
        %v3076 = vmul.f32 %v3044, %v912
        %v3077 = vmul.f32 %v3045, %v913
        %v3078 = vmul.f32 %v3046, %v914
        %v3079 = vmul.f32 %v3047, %v915
        %v3080 = vmul.f32 %v3048, %v916
        %v3081 = vpack.c.bf16 %v3049, %v3049
        %v3082 = vpack.c.bf16 %v3050, %v3050
        %v3083 = vpack.c.bf16 %v3051, %v3051
        %v3084 = vpack.c.bf16 %v3052, %v3052
        %v3085 = vpack.c.bf16 %v3053, %v3053
        %v3086 = vpack.c.bf16 %v3054, %v3054
        %v3087 = vpack.c.bf16 %v3055, %v3055
        %v3088 = vpack.c.bf16 %v3056, %v3056
        %v3089 = vpack.c.bf16 %v3057, %v3057
        %v3090 = vpack.c.bf16 %v3058, %v3058
        %v3091 = vpack.c.bf16 %v3059, %v3059
        %v3092 = vpack.c.bf16 %v3060, %v3060
        %v3093 = vpack.c.bf16 %v3061, %v3061
        %v3094 = vpack.c.bf16 %v3062, %v3062
        %v3095 = vpack.c.bf16 %v3063, %v3063
        %v3096 = vpack.c.bf16 %v3064, %v3064
        %v3097 = vpack.c.bf16 %v3065, %v3065
        %v3098 = vpack.c.bf16 %v3066, %v3066
        %v3099 = vpack.c.bf16 %v3067, %v3067
        %v3100 = vpack.c.bf16 %v3068, %v3068
        %v3101 = vpack.c.bf16 %v3069, %v3069
        %v3102 = vpack.c.bf16 %v3070, %v3070
        %v3103 = vpack.c.bf16 %v3071, %v3071
        %v3104 = vpack.c.bf16 %v3072, %v3072
        %v3105 = vpack.c.bf16 %v3073, %v3073
        %v3106 = vpack.c.bf16 %v3074, %v3074
        %v3107 = vpack.c.bf16 %v3075, %v3075
        %v3108 = vpack.c.bf16 %v3076, %v3076
        %v3109 = vpack.c.bf16 %v3077, %v3077
        %v3110 = vpack.c.bf16 %v3078, %v3078
        %v3111 = vpack.c.bf16 %v3079, %v3079
        %v3112 = vpack.c.bf16 %v3080, %v3080
        %v3113 = vld [vmem:[#allocation2 + $0x10f] sm:$0xff]
        %v3114 = vld [vmem:[#allocation2 + $0x117] sm:$0xff]
        %v3115 = vmul.f32 %v2859, %v789
        %v3116 = vmul.f32 %v2860, %v790
        %v3117 = vmul.f32 %v2861, %v791
        %v3118 = vmul.f32 %v2862, %v792
        %v3119 = vmul.f32 %v2863, %v793
        %v3120 = vmul.f32 %v2864, %v794
        %v3121 = vmul.f32 %v2865, %v795
        %v3122 = vmul.f32 %v2866, %v796
        %v3123 = vmul.f32 %v2867, %v797
        %v3124 = vmul.f32 %v2868, %v798
        %v3125 = vmul.f32 %v2869, %v799
        %v3126 = vmul.f32 %v2870, %v800
        %v3127 = vmul.f32 %v2871, %v801
        %v3128 = vmul.f32 %v2872, %v802
        %v3129 = vmul.f32 %v2873, %v803
        %v3130 = vmul.f32 %v2874, %v804
        %v3131 = vmul.f32 %v2875, %v805
        %v3132 = vmul.f32 %v2876, %v806
        %v3133 = vmul.f32 %v2877, %v807
        %v3134 = vmul.f32 %v2878, %v808
        %v3135 = vmul.f32 %v2879, %v809
        %v3136 = vmul.f32 %v2880, %v810
        %v3137 = vmul.f32 %v2881, %v811
        %v3138 = vmul.f32 %v2882, %v812
        %v3139 = vmul.f32 %v2883, %v813
        %v3140 = vmul.f32 %v2884, %v814
        %v3141 = vmul.f32 %v2885, %v815
        %v3142 = vmul.f32 %v2886, %v816
        %v3143 = vmul.f32 %v2887, %v817
        %v3144 = vmul.f32 %v2888, %v818
        %v3145 = vmul.f32 %v3113, %v819
        %v3146 = vmul.f32 %v3114, %v820
        %v3147 = vpack.c.bf16 %v3115, %v3115
        %v3148 = vpack.c.bf16 %v3116, %v3116
        %v3149 = vpack.c.bf16 %v3117, %v3117
        %v3150 = vpack.c.bf16 %v3118, %v3118
        %v3151 = vpack.c.bf16 %v3119, %v3119
        %v3152 = vpack.c.bf16 %v3120, %v3120
        %v3153 = vpack.c.bf16 %v3121, %v3121
        %v3154 = vpack.c.bf16 %v3122, %v3122
        %v3155 = vpack.c.bf16 %v3123, %v3123
        %v3156 = vpack.c.bf16 %v3124, %v3124
        %v3157 = vpack.c.bf16 %v3125, %v3125
        %v3158 = vpack.c.bf16 %v3126, %v3126
        %v3159 = vpack.c.bf16 %v3127, %v3127
        %v3160 = vpack.c.bf16 %v3128, %v3128
        %v3161 = vpack.c.bf16 %v3129, %v3129
        %v3162 = vpack.c.bf16 %v3130, %v3130
        %v3163 = vpack.c.bf16 %v3131, %v3131
        %v3164 = vpack.c.bf16 %v3132, %v3132
        %v3165 = vpack.c.bf16 %v3133, %v3133
        %v3166 = vpack.c.bf16 %v3134, %v3134
        %v3167 = vpack.c.bf16 %v3135, %v3135
        %v3168 = vpack.c.bf16 %v3136, %v3136
        %v3169 = vpack.c.bf16 %v3137, %v3137
        %v3170 = vpack.c.bf16 %v3138, %v3138
        %v3171 = vpack.c.bf16 %v3139, %v3139
        %v3172 = vpack.c.bf16 %v3140, %v3140
        %v3173 = vpack.c.bf16 %v3141, %v3141
        %v3174 = vpack.c.bf16 %v3142, %v3142
        %v3175 = vpack.c.bf16 %v3143, %v3143
        %v3176 = vpack.c.bf16 %v3144, %v3144
        %v3177 = vpack.c.bf16 %v3145, %v3145
        %v3178 = vpack.c.bf16 %v3146, %v3146
        %v3179 = vld [vmem:[#allocation2 + $0x110] sm:$0xff]
        %v3180 = vld [vmem:[#allocation2 + $0x118] sm:$0xff]
        %v3181 = vpack.c.bf16 %v3179, %v3179
        %v3182 = vpack.c.bf16 %v3180, %v3180
        %v3183 = vld [vmem:[#allocation2 + $0x111] sm:$0xff]
        %v3184 = vld [vmem:[#allocation2 + $0x119] sm:$0xff]
        %v3185 = vmul.f32 %v3019, %v885
        %v3186 = vmul.f32 %v3020, %v886
        %v3187 = vmul.f32 %v3021, %v887
        %v3188 = vmul.f32 %v3022, %v888
        %v3189 = vmul.f32 %v3023, %v889
        %v3190 = vmul.f32 %v3024, %v890
        %v3191 = vmul.f32 %v3025, %v891
        %v3192 = vmul.f32 %v3026, %v892
        %v3193 = vmul.f32 %v3027, %v893
        %v3194 = vmul.f32 %v3028, %v894
        %v3195 = vmul.f32 %v3029, %v895
        %v3196 = vmul.f32 %v3030, %v896
        %v3197 = vmul.f32 %v3031, %v897
        %v3198 = vmul.f32 %v3032, %v898
        %v3199 = vmul.f32 %v3033, %v899
        %v3200 = vmul.f32 %v3034, %v900
        %v3201 = vmul.f32 %v3035, %v901
        %v3202 = vmul.f32 %v3036, %v902
        %v3203 = vmul.f32 %v3037, %v903
        %v3204 = vmul.f32 %v3038, %v904
        %v3205 = vmul.f32 %v3039, %v905
        %v3206 = vmul.f32 %v3040, %v906
        %v3207 = vmul.f32 %v3041, %v907
        %v3208 = vmul.f32 %v3042, %v908
        %v3209 = vmul.f32 %v3043, %v909
        %v3210 = vmul.f32 %v3044, %v910
        %v3211 = vmul.f32 %v3045, %v911
        %v3212 = vmul.f32 %v3046, %v912
        %v3213 = vmul.f32 %v3047, %v913
        %v3214 = vmul.f32 %v3048, %v914
        %v3215 = vmul.f32 %v3183, %v915
        %v3216 = vmul.f32 %v3184, %v916
        %v3217 = vpack.c.bf16 %v3185, %v3185
        %v3218 = vpack.c.bf16 %v3186, %v3186
        %v3219 = vpack.c.bf16 %v3187, %v3187
        %v3220 = vpack.c.bf16 %v3188, %v3188
        %v3221 = vpack.c.bf16 %v3189, %v3189
        %v3222 = vpack.c.bf16 %v3190, %v3190
        %v3223 = vpack.c.bf16 %v3191, %v3191
        %v3224 = vpack.c.bf16 %v3192, %v3192
        %v3225 = vpack.c.bf16 %v3193, %v3193
        %v3226 = vpack.c.bf16 %v3194, %v3194
        %v3227 = vpack.c.bf16 %v3195, %v3195
        %v3228 = vpack.c.bf16 %v3196, %v3196
        %v3229 = vpack.c.bf16 %v3197, %v3197
        %v3230 = vpack.c.bf16 %v3198, %v3198
        %v3231 = vpack.c.bf16 %v3199, %v3199
        %v3232 = vpack.c.bf16 %v3200, %v3200
        %v3233 = vpack.c.bf16 %v3201, %v3201
        %v3234 = vpack.c.bf16 %v3202, %v3202
        %v3235 = vpack.c.bf16 %v3203, %v3203
        %v3236 = vpack.c.bf16 %v3204, %v3204
        %v3237 = vpack.c.bf16 %v3205, %v3205
        %v3238 = vpack.c.bf16 %v3206, %v3206
        %v3239 = vpack.c.bf16 %v3207, %v3207
        %v3240 = vpack.c.bf16 %v3208, %v3208
        %v3241 = vpack.c.bf16 %v3209, %v3209
        %v3242 = vpack.c.bf16 %v3210, %v3210
        %v3243 = vpack.c.bf16 %v3211, %v3211
        %v3244 = vpack.c.bf16 %v3212, %v3212
        %v3245 = vpack.c.bf16 %v3213, %v3213
        %v3246 = vpack.c.bf16 %v3214, %v3214
        %v3247 = vpack.c.bf16 %v3215, %v3215
        %v3248 = vpack.c.bf16 %v3216, %v3216
        %v3249 = vld [vmem:[#allocation2 + $0x11f] sm:$0xff]
        %v3250 = vld [vmem:[#allocation2 + $0x127] sm:$0xff]
        %v3251 = vmul.f32 %v2861, %v789
        %v3252 = vmul.f32 %v2862, %v790
        %v3253 = vmul.f32 %v2863, %v791
        %v3254 = vmul.f32 %v2864, %v792
        %v3255 = vmul.f32 %v2865, %v793
        %v3256 = vmul.f32 %v2866, %v794
        %v3257 = vmul.f32 %v2867, %v795
        %v3258 = vmul.f32 %v2868, %v796
        %v3259 = vmul.f32 %v2869, %v797
        %v3260 = vmul.f32 %v2870, %v798
        %v3261 = vmul.f32 %v2871, %v799
        %v3262 = vmul.f32 %v2872, %v800
        %v3263 = vmul.f32 %v2873, %v801
        %v3264 = vmul.f32 %v2874, %v802
        %v3265 = vmul.f32 %v2875, %v803
        %v3266 = vmul.f32 %v2876, %v804
        %v3267 = vmul.f32 %v2877, %v805
        %v3268 = vmul.f32 %v2878, %v806
        %v3269 = vmul.f32 %v2879, %v807
        %v3270 = vmul.f32 %v2880, %v808
        %v3271 = vmul.f32 %v2881, %v809
        %v3272 = vmul.f32 %v2882, %v810
        %v3273 = vmul.f32 %v2883, %v811
        %v3274 = vmul.f32 %v2884, %v812
        %v3275 = vmul.f32 %v2885, %v813
        %v3276 = vmul.f32 %v2886, %v814
        %v3277 = vmul.f32 %v2887, %v815
        %v3278 = vmul.f32 %v2888, %v816
        %v3279 = vmul.f32 %v3113, %v817
        %v3280 = vmul.f32 %v3114, %v818
        %v3281 = vmul.f32 %v3249, %v819
        %v3282 = vmul.f32 %v3250, %v820
        %v3283 = vpack.c.bf16 %v3251, %v3251
        %v3284 = vpack.c.bf16 %v3252, %v3252
        %v3285 = vpack.c.bf16 %v3253, %v3253
        %v3286 = vpack.c.bf16 %v3254, %v3254
        %v3287 = vpack.c.bf16 %v3255, %v3255
        %v3288 = vpack.c.bf16 %v3256, %v3256
        %v3289 = vpack.c.bf16 %v3257, %v3257
        %v3290 = vpack.c.bf16 %v3258, %v3258
        %v3291 = vpack.c.bf16 %v3259, %v3259
        %v3292 = vpack.c.bf16 %v3260, %v3260
        %v3293 = vpack.c.bf16 %v3261, %v3261
        %v3294 = vpack.c.bf16 %v3262, %v3262
        %v3295 = vpack.c.bf16 %v3263, %v3263
        %v3296 = vpack.c.bf16 %v3264, %v3264
        %v3297 = vpack.c.bf16 %v3265, %v3265
        %v3298 = vpack.c.bf16 %v3266, %v3266
        %v3299 = vpack.c.bf16 %v3267, %v3267
        %v3300 = vpack.c.bf16 %v3268, %v3268
        %v3301 = vpack.c.bf16 %v3269, %v3269
        %v3302 = vpack.c.bf16 %v3270, %v3270
        %v3303 = vpack.c.bf16 %v3271, %v3271
        %v3304 = vpack.c.bf16 %v3272, %v3272
        %v3305 = vpack.c.bf16 %v3273, %v3273
        %v3306 = vpack.c.bf16 %v3274, %v3274
        %v3307 = vpack.c.bf16 %v3275, %v3275
        %v3308 = vpack.c.bf16 %v3276, %v3276
        %v3309 = vpack.c.bf16 %v3277, %v3277
        %v3310 = vpack.c.bf16 %v3278, %v3278
        %v3311 = vpack.c.bf16 %v3279, %v3279
        %v3312 = vpack.c.bf16 %v3280, %v3280
        %v3313 = vpack.c.bf16 %v3281, %v3281
        %v3314 = vpack.c.bf16 %v3282, %v3282
        %v3315 = vld [vmem:[#allocation2 + $0x120] sm:$0xff]
        %v3316 = vld [vmem:[#allocation2 + $0x128] sm:$0xff]
        %v3317 = vpack.c.bf16 %v3315, %v3315
        %v3318 = vpack.c.bf16 %v3316, %v3316
        %v3319 = vld [vmem:[#allocation2 + $0x121] sm:$0xff]
        %v3320 = vld [vmem:[#allocation2 + $0x129] sm:$0xff]
        %v3321 = vmul.f32 %v3021, %v885
        %v3322 = vmul.f32 %v3022, %v886
        %v3323 = vmul.f32 %v3023, %v887
        %v3324 = vmul.f32 %v3024, %v888
        %v3325 = vmul.f32 %v3025, %v889
        %v3326 = vmul.f32 %v3026, %v890
        %v3327 = vmul.f32 %v3027, %v891
        %v3328 = vmul.f32 %v3028, %v892
        %v3329 = vmul.f32 %v3029, %v893
        %v3330 = vmul.f32 %v3030, %v894
        %v3331 = vmul.f32 %v3031, %v895
        %v3332 = vmul.f32 %v3032, %v896
        %v3333 = vmul.f32 %v3033, %v897
        %v3334 = vmul.f32 %v3034, %v898
        %v3335 = vmul.f32 %v3035, %v899
        %v3336 = vmul.f32 %v3036, %v900
        %v3337 = vmul.f32 %v3037, %v901
        %v3338 = vmul.f32 %v3038, %v902
        %v3339 = vmul.f32 %v3039, %v903
        %v3340 = vmul.f32 %v3040, %v904
        %v3341 = vmul.f32 %v3041, %v905
        %v3342 = vmul.f32 %v3042, %v906
        %v3343 = vmul.f32 %v3043, %v907
        %v3344 = vmul.f32 %v3044, %v908
        %v3345 = vmul.f32 %v3045, %v909
        %v3346 = vmul.f32 %v3046, %v910
        %v3347 = vmul.f32 %v3047, %v911
        %v3348 = vmul.f32 %v3048, %v912
        %v3349 = vmul.f32 %v3183, %v913
        %v3350 = vmul.f32 %v3184, %v914
        %v3351 = vmul.f32 %v3319, %v915
        %v3352 = vmul.f32 %v3320, %v916
        %v3353 = vpack.c.bf16 %v3321, %v3321
        %v3354 = vpack.c.bf16 %v3322, %v3322
        %v3355 = vpack.c.bf16 %v3323, %v3323
        %v3356 = vpack.c.bf16 %v3324, %v3324
        %v3357 = vpack.c.bf16 %v3325, %v3325
        %v3358 = vpack.c.bf16 %v3326, %v3326
        %v3359 = vpack.c.bf16 %v3327, %v3327
        %v3360 = vpack.c.bf16 %v3328, %v3328
        %v3361 = vpack.c.bf16 %v3329, %v3329
        %v3362 = vpack.c.bf16 %v3330, %v3330
        %v3363 = vpack.c.bf16 %v3331, %v3331
        %v3364 = vpack.c.bf16 %v3332, %v3332
        %v3365 = vpack.c.bf16 %v3333, %v3333
        %v3366 = vpack.c.bf16 %v3334, %v3334
        %v3367 = vpack.c.bf16 %v3335, %v3335
        %v3368 = vpack.c.bf16 %v3336, %v3336
        %v3369 = vpack.c.bf16 %v3337, %v3337
        %v3370 = vpack.c.bf16 %v3338, %v3338
        %v3371 = vpack.c.bf16 %v3339, %v3339
        %v3372 = vpack.c.bf16 %v3340, %v3340
        %v3373 = vpack.c.bf16 %v3341, %v3341
        %v3374 = vpack.c.bf16 %v3342, %v3342
        %v3375 = vpack.c.bf16 %v3343, %v3343
        %v3376 = vpack.c.bf16 %v3344, %v3344
        %v3377 = vpack.c.bf16 %v3345, %v3345
        %v3378 = vpack.c.bf16 %v3346, %v3346
        %v3379 = vpack.c.bf16 %v3347, %v3347
        %v3380 = vpack.c.bf16 %v3348, %v3348
        %v3381 = vpack.c.bf16 %v3349, %v3349
        %v3382 = vpack.c.bf16 %v3350, %v3350
        %v3383 = vpack.c.bf16 %v3351, %v3351
        %v3384 = vpack.c.bf16 %v3352, %v3352
        %v3417 = vunpack.c.l.b16 %v2921
        %v3418 = vunpack.c.l.b16 %v2922
        %v3419 = vunpack.c.l.b16 %v2923
        %v3420 = vunpack.c.l.b16 %v2924
        %v3421 = vunpack.c.l.b16 %v2925
        %v3422 = vunpack.c.l.b16 %v2926
        %v3423 = vunpack.c.l.b16 %v2927
        %v3424 = vunpack.c.l.b16 %v2928
        %v3425 = vunpack.c.l.b16 %v2929
        %v3426 = vunpack.c.l.b16 %v2930
        %v3427 = vunpack.c.l.b16 %v2931
        %v3428 = vunpack.c.l.b16 %v2932
        %v3429 = vunpack.c.l.b16 %v2933
        %v3430 = vunpack.c.l.b16 %v2934
        %v3431 = vunpack.c.l.b16 %v2935
        %v3432 = vunpack.c.l.b16 %v2936
        %v3433 = vunpack.c.l.b16 %v2937
        %v3434 = vunpack.c.l.b16 %v2938
        %v3435 = vunpack.c.l.b16 %v2939
        %v3436 = vunpack.c.l.b16 %v2940
        %v3437 = vunpack.c.l.b16 %v2941
        %v3438 = vunpack.c.l.b16 %v2942
        %v3439 = vunpack.c.l.b16 %v2943
        %v3440 = vunpack.c.l.b16 %v2944
        %v3441 = vunpack.c.l.b16 %v2945
        %v3442 = vunpack.c.l.b16 %v2946
        %v3443 = vunpack.c.l.b16 %v2947
        %v3444 = vunpack.c.l.b16 %v2948
        %v3445 = vunpack.c.l.b16 %v2949
        %v3446 = vunpack.c.l.b16 %v2950
        %v3447 = vunpack.c.l.b16 %v2951
        %v3448 = vunpack.c.l.b16 %v2952
        %v3449 = vpack.c.b16 %v3418, %v3417
        %v3450 = vpack.c.b16 %v3420, %v3419
        %v3451 = vpack.c.b16 %v3422, %v3421
        %v3452 = vpack.c.b16 %v3424, %v3423
        %v3453 = vpack.c.b16 %v3426, %v3425
        %v3454 = vpack.c.b16 %v3428, %v3427
        %v3455 = vpack.c.b16 %v3430, %v3429
        %v3456 = vpack.c.b16 %v3432, %v3431
        %v3457 = vpack.c.b16 %v3434, %v3433
        %v3458 = vpack.c.b16 %v3436, %v3435
        %v3459 = vpack.c.b16 %v3438, %v3437
        %v3460 = vpack.c.b16 %v3440, %v3439
        %v3461 = vpack.c.b16 %v3442, %v3441
        %v3462 = vpack.c.b16 %v3444, %v3443
        %v3463 = vpack.c.b16 %v3446, %v3445
        %v3464 = vpack.c.b16 %v3448, %v3447
        %v3513 = vunpack.c.l.b16 %v2985
        %v3514 = vunpack.c.l.b16 %v2986
        %v3515 = vunpack.c.l.b16 %v2987
        %v3516 = vunpack.c.l.b16 %v2988
        %v3517 = vunpack.c.l.b16 %v2989
        %v3518 = vunpack.c.l.b16 %v2990
        %v3519 = vunpack.c.l.b16 %v2991
        %v3520 = vunpack.c.l.b16 %v2992
        %v3521 = vunpack.c.l.b16 %v2993
        %v3522 = vunpack.c.l.b16 %v2994
        %v3523 = vunpack.c.l.b16 %v2995
        %v3524 = vunpack.c.l.b16 %v2996
        %v3525 = vunpack.c.l.b16 %v2997
        %v3526 = vunpack.c.l.b16 %v2998
        %v3527 = vunpack.c.l.b16 %v2999
        %v3528 = vunpack.c.l.b16 %v3000
        %v3529 = vunpack.c.l.b16 %v3001
        %v3530 = vunpack.c.l.b16 %v3002
        %v3531 = vunpack.c.l.b16 %v3003
        %v3532 = vunpack.c.l.b16 %v3004
        %v3533 = vunpack.c.l.b16 %v3005
        %v3534 = vunpack.c.l.b16 %v3006
        %v3535 = vunpack.c.l.b16 %v3007
        %v3536 = vunpack.c.l.b16 %v3008
        %v3537 = vunpack.c.l.b16 %v3009
        %v3538 = vunpack.c.l.b16 %v3010
        %v3539 = vunpack.c.l.b16 %v3011
        %v3540 = vunpack.c.l.b16 %v3012
        %v3541 = vunpack.c.l.b16 %v3013
        %v3542 = vunpack.c.l.b16 %v3014
        %v3543 = vunpack.c.l.b16 %v3015
        %v3544 = vunpack.c.l.b16 %v3016
        %v3545 = vpack.c.b16 %v3514, %v3513
        %v3546 = vpack.c.b16 %v3516, %v3515
        %v3547 = vpack.c.b16 %v3518, %v3517
        %v3548 = vpack.c.b16 %v3520, %v3519
        %v3549 = vpack.c.b16 %v3522, %v3521
        %v3550 = vpack.c.b16 %v3524, %v3523
        %v3551 = vpack.c.b16 %v3526, %v3525
        %v3552 = vpack.c.b16 %v3528, %v3527
        %v3553 = vpack.c.b16 %v3530, %v3529
        %v3554 = vpack.c.b16 %v3532, %v3531
        %v3555 = vpack.c.b16 %v3534, %v3533
        %v3556 = vpack.c.b16 %v3536, %v3535
        %v3557 = vpack.c.b16 %v3538, %v3537
        %v3558 = vpack.c.b16 %v3540, %v3539
        %v3559 = vpack.c.b16 %v3542, %v3541
        %v3560 = vpack.c.b16 %v3544, %v3543
        %v3609 = vunpack.c.l.b16 %v3081
        %v3610 = vunpack.c.l.b16 %v3082
        %v3611 = vunpack.c.l.b16 %v3083
        %v3612 = vunpack.c.l.b16 %v3084
        %v3613 = vunpack.c.l.b16 %v3085
        %v3614 = vunpack.c.l.b16 %v3086
        %v3615 = vunpack.c.l.b16 %v3087
        %v3616 = vunpack.c.l.b16 %v3088
        %v3617 = vunpack.c.l.b16 %v3089
        %v3618 = vunpack.c.l.b16 %v3090
        %v3619 = vunpack.c.l.b16 %v3091
        %v3620 = vunpack.c.l.b16 %v3092
        %v3621 = vunpack.c.l.b16 %v3093
        %v3622 = vunpack.c.l.b16 %v3094
        %v3623 = vunpack.c.l.b16 %v3095
        %v3624 = vunpack.c.l.b16 %v3096
        %v3625 = vunpack.c.l.b16 %v3097
        %v3626 = vunpack.c.l.b16 %v3098
        %v3627 = vunpack.c.l.b16 %v3099
        %v3628 = vunpack.c.l.b16 %v3100
        %v3629 = vunpack.c.l.b16 %v3101
        %v3630 = vunpack.c.l.b16 %v3102
        %v3631 = vunpack.c.l.b16 %v3103
        %v3632 = vunpack.c.l.b16 %v3104
        %v3633 = vunpack.c.l.b16 %v3105
        %v3634 = vunpack.c.l.b16 %v3106
        %v3635 = vunpack.c.l.b16 %v3107
        %v3636 = vunpack.c.l.b16 %v3108
        %v3637 = vunpack.c.l.b16 %v3109
        %v3638 = vunpack.c.l.b16 %v3110
        %v3639 = vunpack.c.l.b16 %v3111
        %v3640 = vunpack.c.l.b16 %v3112
        %v3641 = vpack.c.b16 %v3610, %v3609
        %v3642 = vpack.c.b16 %v3612, %v3611
        %v3643 = vpack.c.b16 %v3614, %v3613
        %v3644 = vpack.c.b16 %v3616, %v3615
        %v3645 = vpack.c.b16 %v3618, %v3617
        %v3646 = vpack.c.b16 %v3620, %v3619
        %v3647 = vpack.c.b16 %v3622, %v3621
        %v3648 = vpack.c.b16 %v3624, %v3623
        %v3649 = vpack.c.b16 %v3626, %v3625
        %v3650 = vpack.c.b16 %v3628, %v3627
        %v3651 = vpack.c.b16 %v3630, %v3629
        %v3652 = vpack.c.b16 %v3632, %v3631
        %v3653 = vpack.c.b16 %v3634, %v3633
        %v3654 = vpack.c.b16 %v3636, %v3635
        %v3655 = vpack.c.b16 %v3638, %v3637
        %v3656 = vpack.c.b16 %v3640, %v3639
        %v3705 = vunpack.c.l.b16 %v3147
        %v3706 = vunpack.c.l.b16 %v3148
        %v3707 = vunpack.c.l.b16 %v3149
        %v3708 = vunpack.c.l.b16 %v3150
        %v3709 = vunpack.c.l.b16 %v3151
        %v3710 = vunpack.c.l.b16 %v3152
        %v3711 = vunpack.c.l.b16 %v3153
        %v3712 = vunpack.c.l.b16 %v3154
        %v3713 = vunpack.c.l.b16 %v3155
        %v3714 = vunpack.c.l.b16 %v3156
        %v3715 = vunpack.c.l.b16 %v3157
        %v3716 = vunpack.c.l.b16 %v3158
        %v3717 = vunpack.c.l.b16 %v3159
        %v3718 = vunpack.c.l.b16 %v3160
        %v3719 = vunpack.c.l.b16 %v3161
        %v3720 = vunpack.c.l.b16 %v3162
        %v3721 = vunpack.c.l.b16 %v3163
        %v3722 = vunpack.c.l.b16 %v3164
        %v3723 = vunpack.c.l.b16 %v3165
        %v3724 = vunpack.c.l.b16 %v3166
        %v3725 = vunpack.c.l.b16 %v3167
        %v3726 = vunpack.c.l.b16 %v3168
        %v3727 = vunpack.c.l.b16 %v3169
        %v3728 = vunpack.c.l.b16 %v3170
        %v3729 = vunpack.c.l.b16 %v3171
        %v3730 = vunpack.c.l.b16 %v3172
        %v3731 = vunpack.c.l.b16 %v3173
        %v3732 = vunpack.c.l.b16 %v3174
        %v3733 = vunpack.c.l.b16 %v3175
        %v3734 = vunpack.c.l.b16 %v3176
        %v3735 = vunpack.c.l.b16 %v3177
        %v3736 = vunpack.c.l.b16 %v3178
        %v3737 = vpack.c.b16 %v3706, %v3705
        %v3738 = vpack.c.b16 %v3708, %v3707
        %v3739 = vpack.c.b16 %v3710, %v3709
        %v3740 = vpack.c.b16 %v3712, %v3711
        %v3741 = vpack.c.b16 %v3714, %v3713
        %v3742 = vpack.c.b16 %v3716, %v3715
        %v3743 = vpack.c.b16 %v3718, %v3717
        %v3744 = vpack.c.b16 %v3720, %v3719
        %v3745 = vpack.c.b16 %v3722, %v3721
        %v3746 = vpack.c.b16 %v3724, %v3723
        %v3747 = vpack.c.b16 %v3726, %v3725
        %v3748 = vpack.c.b16 %v3728, %v3727
        %v3749 = vpack.c.b16 %v3730, %v3729
        %v3750 = vpack.c.b16 %v3732, %v3731
        %v3751 = vpack.c.b16 %v3734, %v3733
        %v3752 = vpack.c.b16 %v3736, %v3735
        %v3771 = vunpack.c.l.b16 %v3181
        %v3772 = vunpack.c.l.b16 %v3182
        %v3773 = vpack.c.b16 %v3772, %v3771
        %v3807 = vunpack.c.l.b16 %v3217
        %v3808 = vunpack.c.l.b16 %v3218
        %v3809 = vunpack.c.l.b16 %v3219
        %v3810 = vunpack.c.l.b16 %v3220
        %v3811 = vunpack.c.l.b16 %v3221
        %v3812 = vunpack.c.l.b16 %v3222
        %v3813 = vunpack.c.l.b16 %v3223
        %v3814 = vunpack.c.l.b16 %v3224
        %v3815 = vunpack.c.l.b16 %v3225
        %v3816 = vunpack.c.l.b16 %v3226
        %v3817 = vunpack.c.l.b16 %v3227
        %v3818 = vunpack.c.l.b16 %v3228
        %v3819 = vunpack.c.l.b16 %v3229
        %v3820 = vunpack.c.l.b16 %v3230
        %v3821 = vunpack.c.l.b16 %v3231
        %v3822 = vunpack.c.l.b16 %v3232
        %v3823 = vunpack.c.l.b16 %v3233
        %v3824 = vunpack.c.l.b16 %v3234
        %v3825 = vunpack.c.l.b16 %v3235
        %v3826 = vunpack.c.l.b16 %v3236
        %v3827 = vunpack.c.l.b16 %v3237
        %v3828 = vunpack.c.l.b16 %v3238
        %v3829 = vunpack.c.l.b16 %v3239
        %v3830 = vunpack.c.l.b16 %v3240
        %v3831 = vunpack.c.l.b16 %v3241
        %v3832 = vunpack.c.l.b16 %v3242
        %v3833 = vunpack.c.l.b16 %v3243
        %v3834 = vunpack.c.l.b16 %v3244
        %v3835 = vunpack.c.l.b16 %v3245
        %v3836 = vunpack.c.l.b16 %v3246
        %v3837 = vunpack.c.l.b16 %v3247
        %v3838 = vunpack.c.l.b16 %v3248
        %v3839 = vpack.c.b16 %v3808, %v3807
        %v3840 = vpack.c.b16 %v3810, %v3809
        %v3841 = vpack.c.b16 %v3812, %v3811
        %v3842 = vpack.c.b16 %v3814, %v3813
        %v3843 = vpack.c.b16 %v3816, %v3815
        %v3844 = vpack.c.b16 %v3818, %v3817
        %v3845 = vpack.c.b16 %v3820, %v3819
        %v3846 = vpack.c.b16 %v3822, %v3821
        %v3847 = vpack.c.b16 %v3824, %v3823
        %v3848 = vpack.c.b16 %v3826, %v3825
        %v3849 = vpack.c.b16 %v3828, %v3827
        %v3850 = vpack.c.b16 %v3830, %v3829
        %v3851 = vpack.c.b16 %v3832, %v3831
        %v3852 = vpack.c.b16 %v3834, %v3833
        %v3853 = vpack.c.b16 %v3836, %v3835
        %v3854 = vpack.c.b16 %v3838, %v3837
        %v3903 = vunpack.c.l.b16 %v3283
        %v3904 = vunpack.c.l.b16 %v3284
        %v3905 = vunpack.c.l.b16 %v3285
        %v3906 = vunpack.c.l.b16 %v3286
        %v3907 = vunpack.c.l.b16 %v3287
        %v3908 = vunpack.c.l.b16 %v3288
        %v3909 = vunpack.c.l.b16 %v3289
        %v3910 = vunpack.c.l.b16 %v3290
        %v3911 = vunpack.c.l.b16 %v3291
        %v3912 = vunpack.c.l.b16 %v3292
        %v3913 = vunpack.c.l.b16 %v3293
        %v3914 = vunpack.c.l.b16 %v3294
        %v3915 = vunpack.c.l.b16 %v3295
        %v3916 = vunpack.c.l.b16 %v3296
        %v3917 = vunpack.c.l.b16 %v3297
        %v3918 = vunpack.c.l.b16 %v3298
        %v3919 = vunpack.c.l.b16 %v3299
        %v3920 = vunpack.c.l.b16 %v3300
        %v3921 = vunpack.c.l.b16 %v3301
        %v3922 = vunpack.c.l.b16 %v3302
        %v3923 = vunpack.c.l.b16 %v3303
        %v3924 = vunpack.c.l.b16 %v3304
        %v3925 = vunpack.c.l.b16 %v3305
        %v3926 = vunpack.c.l.b16 %v3306
        %v3927 = vunpack.c.l.b16 %v3307
        %v3928 = vunpack.c.l.b16 %v3308
        %v3929 = vunpack.c.l.b16 %v3309
        %v3930 = vunpack.c.l.b16 %v3310
        %v3931 = vunpack.c.l.b16 %v3311
        %v3932 = vunpack.c.l.b16 %v3312
        %v3933 = vunpack.c.l.b16 %v3313
        %v3934 = vunpack.c.l.b16 %v3314
        %v3935 = vpack.c.b16 %v3904, %v3903
        %v3936 = vpack.c.b16 %v3906, %v3905
        %v3937 = vpack.c.b16 %v3908, %v3907
        %v3938 = vpack.c.b16 %v3910, %v3909
        %v3939 = vpack.c.b16 %v3912, %v3911
        %v3940 = vpack.c.b16 %v3914, %v3913
        %v3941 = vpack.c.b16 %v3916, %v3915
        %v3942 = vpack.c.b16 %v3918, %v3917
        %v3943 = vpack.c.b16 %v3920, %v3919
        %v3944 = vpack.c.b16 %v3922, %v3921
        %v3945 = vpack.c.b16 %v3924, %v3923
        %v3946 = vpack.c.b16 %v3926, %v3925
        %v3947 = vpack.c.b16 %v3928, %v3927
        %v3948 = vpack.c.b16 %v3930, %v3929
        %v3949 = vpack.c.b16 %v3932, %v3931
        %v3950 = vpack.c.b16 %v3934, %v3933
        %v3969 = vunpack.c.l.b16 %v3317
        %v3970 = vunpack.c.l.b16 %v3318
        %v3971 = vpack.c.b16 %v3970, %v3969
        %v4005 = vunpack.c.l.b16 %v3353
        %v4006 = vunpack.c.l.b16 %v3354
        %v4007 = vunpack.c.l.b16 %v3355
        %v4008 = vunpack.c.l.b16 %v3356
        %v4009 = vunpack.c.l.b16 %v3357
        %v4010 = vunpack.c.l.b16 %v3358
        %v4011 = vunpack.c.l.b16 %v3359
        %v4012 = vunpack.c.l.b16 %v3360
        %v4013 = vunpack.c.l.b16 %v3361
        %v4014 = vunpack.c.l.b16 %v3362
        %v4015 = vunpack.c.l.b16 %v3363
        %v4016 = vunpack.c.l.b16 %v3364
        %v4017 = vunpack.c.l.b16 %v3365
        %v4018 = vunpack.c.l.b16 %v3366
        %v4019 = vunpack.c.l.b16 %v3367
        %v4020 = vunpack.c.l.b16 %v3368
        %v4021 = vunpack.c.l.b16 %v3369
        %v4022 = vunpack.c.l.b16 %v3370
        %v4023 = vunpack.c.l.b16 %v3371
        %v4024 = vunpack.c.l.b16 %v3372
        %v4025 = vunpack.c.l.b16 %v3373
        %v4026 = vunpack.c.l.b16 %v3374
        %v4027 = vunpack.c.l.b16 %v3375
        %v4028 = vunpack.c.l.b16 %v3376
        %v4029 = vunpack.c.l.b16 %v3377
        %v4030 = vunpack.c.l.b16 %v3378
        %v4031 = vunpack.c.l.b16 %v3379
        %v4032 = vunpack.c.l.b16 %v3380
        %v4033 = vunpack.c.l.b16 %v3381
        %v4034 = vunpack.c.l.b16 %v3382
        %v4035 = vunpack.c.l.b16 %v3383
        %v4036 = vunpack.c.l.b16 %v3384
        %v4037 = vpack.c.b16 %v4006, %v4005
        %v4038 = vpack.c.b16 %v4008, %v4007
        %v4039 = vpack.c.b16 %v4010, %v4009
        %v4040 = vpack.c.b16 %v4012, %v4011
        %v4041 = vpack.c.b16 %v4014, %v4013
        %v4042 = vpack.c.b16 %v4016, %v4015
        %v4043 = vpack.c.b16 %v4018, %v4017
        %v4044 = vpack.c.b16 %v4020, %v4019
        %v4045 = vpack.c.b16 %v4022, %v4021
        %v4046 = vpack.c.b16 %v4024, %v4023
        %v4047 = vpack.c.b16 %v4026, %v4025
        %v4048 = vpack.c.b16 %v4028, %v4027
        %v4049 = vpack.c.b16 %v4030, %v4029
        %v4050 = vpack.c.b16 %v4032, %v4031
        %v4051 = vpack.c.b16 %v4034, %v4033
        %v4052 = vpack.c.b16 %v4036, %v4035
        %v4069 = vld [vmem:[%s6] sm:$0xf]
        %v4070 = vld [vmem:[%s6 + $0x4] sm:$0xf]
        %v4071 = vld [vmem:[%s6 + $0x8] sm:$0xf]
        %v4072 = vld [vmem:[%s6 + $0xc] sm:$0xf]
        %v4073 = vld [vmem:[%s6 + $0x10] sm:$0xf]
        %v4074 = vld [vmem:[%s6 + $0x14] sm:$0xf]
        %v4075 = vld [vmem:[%s6 + $0x18] sm:$0xf]
        %v4076 = vld [vmem:[%s6 + $0x1c] sm:$0xf]
        %v4077 = vld [vmem:[%s6 + $0x20] sm:$0xf]
        %v4078 = vld [vmem:[%s6 + $0x24] sm:$0xf]
        %v4079 = vld [vmem:[%s6 + $0x28] sm:$0xf]
        %v4080 = vld [vmem:[%s6 + $0x2c] sm:$0xf]
        %v4081 = vld [vmem:[%s6 + $0x30] sm:$0xf]
        %v4082 = vld [vmem:[%s6 + $0x34] sm:$0xf]
        %v4083 = vld [vmem:[%s6 + $0x38] sm:$0xf]
        %v4084 = vld [vmem:[%s6 + $0x3c] sm:$0xf]
        %v4085 = vld [vmem:[%s6 + $0x40] sm:$0xf]
        %v4086 = vld [vmem:[%s6 + $0x44] sm:$0xf]
        %v4087 = vld [vmem:[%s6 + $0x48] sm:$0xf]
        %v4088 = vld [vmem:[%s6 + $0x4c] sm:$0xf]
        %v4089 = vld [vmem:[%s6 + $0x50] sm:$0xf]
        %v4090 = vld [vmem:[%s6 + $0x54] sm:$0xf]
        %v4091 = vld [vmem:[%s6 + $0x58] sm:$0xf]
        %v4092 = vld [vmem:[%s6 + $0x5c] sm:$0xf]
        %v4093 = vld [vmem:[%s6 + $0x60] sm:$0xf]
        %v4094 = vld [vmem:[%s6 + $0x64] sm:$0xf]
        %v4095 = vld [vmem:[%s6 + $0x68] sm:$0xf]
        %v4096 = vld [vmem:[%s6 + $0x6c] sm:$0xf]
        %v4097 = vld [vmem:[%s6 + $0x70] sm:$0xf]
        %v4098 = vld [vmem:[%s6 + $0x74] sm:$0xf]
        %v4099 = vld [vmem:[%s6 + $0x78] sm:$0xf]
        %v4100 = vld [vmem:[%s6 + $0x7c] sm:$0xf]
        %v4101 = vld [vmem:[%s6 + $0x80] sm:$0xf]
        %v4102 = vld [vmem:[%s6 + $0x84] sm:$0xf]
        %v4103 = vld [vmem:[%s6 + $0x88] sm:$0xf]
        %v4104 = vld [vmem:[%s6 + $0x8c] sm:$0xf]
        %v4105 = vld [vmem:[%s6 + $0x90] sm:$0xf]
        %v4106 = vld [vmem:[%s6 + $0x94] sm:$0xf]
        %v4107 = vld [vmem:[%s6 + $0x98] sm:$0xf]
        %v4108 = vld [vmem:[%s6 + $0x9c] sm:$0xf]
        %v4109 = vld [vmem:[%s6 + $0xa0] sm:$0xf]
        %v4110 = vld [vmem:[%s6 + $0xa4] sm:$0xf]
        %v4111 = vld [vmem:[%s6 + $0xa8] sm:$0xf]
        %v4112 = vld [vmem:[%s6 + $0xac] sm:$0xf]
        %v4113 = vld [vmem:[%s6 + $0xb0] sm:$0xf]
        %v4114 = vld [vmem:[%s6 + $0xb4] sm:$0xf]
        %v4115 = vld [vmem:[%s6 + $0xb8] sm:$0xf]
        %v4116 = vld [vmem:[%s6 + $0xbc] sm:$0xf]
        %v4117 = vld [vmem:[%s6 + $0xc0] sm:$0xf]
        %v4118 = vld [vmem:[%s6 + $0xc4] sm:$0xf]
        %v4119 = vld [vmem:[%s6 + $0xc8] sm:$0xf]
        %v4120 = vld [vmem:[%s6 + $0xcc] sm:$0xf]
        %v4121 = vld [vmem:[%s6 + $0xd0] sm:$0xf]
        %v4122 = vld [vmem:[%s6 + $0xd4] sm:$0xf]
        %v4123 = vld [vmem:[%s6 + $0xd8] sm:$0xf]
        %v4124 = vld [vmem:[%s6 + $0xdc] sm:$0xf]
        %v4125 = vld [vmem:[%s6 + $0xe0] sm:$0xf]
        %v4126 = vld [vmem:[%s6 + $0xe4] sm:$0xf]
        %v4127 = vld [vmem:[%s6 + $0xe8] sm:$0xf]
        %v4128 = vld [vmem:[%s6 + $0xec] sm:$0xf]
        %v4129 = vld [vmem:[%s6 + $0xf0] sm:$0xf]
        %v4130 = vld [vmem:[%s6 + $0xf4] sm:$0xf]
        %v4131 = vld [vmem:[%s6 + $0xf8] sm:$0xf]
        %v4132 = vld [vmem:[%s6 + $0xfc] sm:$0xf]
        %v4133 = vld [vmem:[%s6 + $0x100] sm:$0xf]
        %v4134 = vld [vmem:[%s6 + $0x104] sm:$0xf]
        %v4135 = vld [vmem:[%s6 + $0x108] sm:$0xf]
        %v4136 = vld [vmem:[%s6 + $0x10c] sm:$0xf]
        %v4137 = vld [vmem:[%s6 + $0x110] sm:$0xf]
        %v4138 = vld [vmem:[%s6 + $0x114] sm:$0xf]
        %v4139 = vld [vmem:[%s6 + $0x118] sm:$0xf]
        %v4140 = vld [vmem:[%s6 + $0x11c] sm:$0xf]
        %v4141 = vld [vmem:[%s6 + $0x120] sm:$0xf]
        %v4142 = vld [vmem:[%s6 + $0x124] sm:$0xf]
        %v4143 = vld [vmem:[%s6 + $0x128] sm:$0xf]
        %v4144 = vld [vmem:[%s6 + $0x12c] sm:$0xf]
        %v4145 = vld [vmem:[%s6 + $0x130] sm:$0xf]
        %v4146 = vld [vmem:[%s6 + $0x134] sm:$0xf]
        %v4147 = vld [vmem:[%s6 + $0x138] sm:$0xf]
        %v4148 = vld [vmem:[%s6 + $0x13c] sm:$0xf]
        %v4149 = vld [vmem:[%s6 + $0x140] sm:$0xf]
        %v4150 = vld [vmem:[%s6 + $0x144] sm:$0xf]
        %v4151 = vld [vmem:[%s6 + $0x148] sm:$0xf]
        %v4152 = vld [vmem:[%s6 + $0x14c] sm:$0xf]
        %v4153 = vld [vmem:[%s6 + $0x150] sm:$0xf]
        %v4154 = vld [vmem:[%s6 + $0x154] sm:$0xf]
        %v4155 = vld [vmem:[%s6 + $0x158] sm:$0xf]
        %v4156 = vld [vmem:[%s6 + $0x15c] sm:$0xf]
        %v4157 = vld [vmem:[%s6 + $0x160] sm:$0xf]
        %v4158 = vld [vmem:[%s6 + $0x164] sm:$0xf]
        %v4159 = vld [vmem:[%s6 + $0x168] sm:$0xf]
        %v4160 = vld [vmem:[%s6 + $0x16c] sm:$0xf]
        %v4161 = vld [vmem:[%s6 + $0x170] sm:$0xf]
        %v4162 = vld [vmem:[%s6 + $0x174] sm:$0xf]
        %v4163 = vld [vmem:[%s6 + $0x178] sm:$0xf]
        %v4164 = vld [vmem:[%s6 + $0x17c] sm:$0xf]
        %v4165 = vld [vmem:[%s6 + $0x180] sm:$0xf]
        %v4166 = vld [vmem:[%s6 + $0x184] sm:$0xf]
        %v4167 = vld [vmem:[%s6 + $0x188] sm:$0xf]
        %v4168 = vld [vmem:[%s6 + $0x18c] sm:$0xf]
        %v4169 = vld [vmem:[%s6 + $0x190] sm:$0xf]
        %v4170 = vld [vmem:[%s6 + $0x194] sm:$0xf]
        %v4171 = vld [vmem:[%s6 + $0x198] sm:$0xf]
        %v4172 = vld [vmem:[%s6 + $0x19c] sm:$0xf]
        %v4173 = vld [vmem:[%s6 + $0x1a0] sm:$0xf]
        %v4174 = vld [vmem:[%s6 + $0x1a4] sm:$0xf]
        %v4175 = vld [vmem:[%s6 + $0x1a8] sm:$0xf]
        %v4176 = vld [vmem:[%s6 + $0x1ac] sm:$0xf]
        %v4177 = vld [vmem:[%s6 + $0x1b0] sm:$0xf]
        %v4178 = vld [vmem:[%s6 + $0x1b4] sm:$0xf]
        %v4179 = vld [vmem:[%s6 + $0x1b8] sm:$0xf]
        %v4180 = vld [vmem:[%s6 + $0x1bc] sm:$0xf]
        %v4181 = vld [vmem:[%s6 + $0x1c0] sm:$0xf]
        %v4182 = vld [vmem:[%s6 + $0x1c4] sm:$0xf]
        %v4183 = vld [vmem:[%s6 + $0x1c8] sm:$0xf]
        %v4184 = vld [vmem:[%s6 + $0x1cc] sm:$0xf]
        %v4185 = vld [vmem:[%s6 + $0x1d0] sm:$0xf]
        %v4186 = vld [vmem:[%s6 + $0x1d4] sm:$0xf]
        %v4187 = vld [vmem:[%s6 + $0x1d8] sm:$0xf]
        %v4188 = vld [vmem:[%s6 + $0x1dc] sm:$0xf]
        %v4189 = vld [vmem:[%s6 + $0x1e0] sm:$0xf]
        %v4190 = vld [vmem:[%s6 + $0x1e4] sm:$0xf]
        %v4191 = vld [vmem:[%s6 + $0x1e8] sm:$0xf]
        %v4192 = vld [vmem:[%s6 + $0x1ec] sm:$0xf]
        %v4193 = vld [vmem:[%s6 + $0x1f0] sm:$0xf]
        %v4194 = vld [vmem:[%s6 + $0x1f4] sm:$0xf]
        %v4195 = vld [vmem:[%s6 + $0x1f8] sm:$0xf]
        %v4196 = vld [vmem:[%s6 + $0x1fc] sm:$0xf]
        %v4197 = vld [vmem:[%s6 + $0x200] sm:$0xf]
        %v4198 = vld [vmem:[%s6 + $0x204] sm:$0xf]
        %v4199 = vld [vmem:[%s6 + $0x208] sm:$0xf]
        %v4200 = vld [vmem:[%s6 + $0x20c] sm:$0xf]
        %v4201 = vld [vmem:[%s6 + $0x210] sm:$0xf]
        %v4202 = vld [vmem:[%s6 + $0x214] sm:$0xf]
        %v4203 = vld [vmem:[%s6 + $0x218] sm:$0xf]
        %v4204 = vld [vmem:[%s6 + $0x21c] sm:$0xf]
        %v4205 = vld [vmem:[%s6 + $0x220] sm:$0xf]
        %v4206 = vld [vmem:[%s6 + $0x224] sm:$0xf]
        %v4207 = vld [vmem:[%s6 + $0x228] sm:$0xf]
        %v4208 = vld [vmem:[%s6 + $0x22c] sm:$0xf]
        %v4209 = vld [vmem:[%s6 + $0x230] sm:$0xf]
        %v4210 = vld [vmem:[%s6 + $0x234] sm:$0xf]
        %v4211 = vld [vmem:[%s6 + $0x238] sm:$0xf]
        %v4212 = vld [vmem:[%s6 + $0x23c] sm:$0xf]
        %v4357 = vunpack.c.l.b16 %v4069
        %v4358 = vunpack.c.l.b16 %v4070
        %v4359 = vunpack.c.l.b16 %v4071
        %v4360 = vunpack.c.l.b16 %v4072
        %v4361 = vunpack.c.l.b16 %v4073
        %v4362 = vunpack.c.l.b16 %v4074
        %v4363 = vunpack.c.l.b16 %v4075
        %v4364 = vunpack.c.l.b16 %v4076
        %v4365 = vunpack.c.l.b16 %v4077
        %v4366 = vunpack.c.l.b16 %v4078
        %v4367 = vunpack.c.l.b16 %v4079
        %v4368 = vunpack.c.l.b16 %v4080
        %v4369 = vunpack.c.l.b16 %v4081
        %v4370 = vunpack.c.l.b16 %v4082
        %v4371 = vunpack.c.l.b16 %v4083
        %v4372 = vunpack.c.l.b16 %v4084
        %v4373 = vunpack.c.l.b16 %v4085
        %v4374 = vunpack.c.l.b16 %v4086
        %v4375 = vunpack.c.l.b16 %v4087
        %v4376 = vunpack.c.l.b16 %v4088
        %v4377 = vunpack.c.l.b16 %v4089
        %v4378 = vunpack.c.l.b16 %v4090
        %v4379 = vunpack.c.l.b16 %v4091
        %v4380 = vunpack.c.l.b16 %v4092
        %v4381 = vunpack.c.l.b16 %v4093
        %v4382 = vunpack.c.l.b16 %v4094
        %v4383 = vunpack.c.l.b16 %v4095
        %v4384 = vunpack.c.l.b16 %v4096
        %v4385 = vunpack.c.l.b16 %v4097
        %v4386 = vunpack.c.l.b16 %v4098
        %v4387 = vunpack.c.l.b16 %v4099
        %v4388 = vunpack.c.l.b16 %v4100
        %v4389 = vunpack.c.l.b16 %v4101
        %v4390 = vunpack.c.l.b16 %v4102
        %v4391 = vunpack.c.l.b16 %v4103
        %v4392 = vunpack.c.l.b16 %v4104
        %v4393 = vunpack.c.l.b16 %v4105
        %v4394 = vunpack.c.l.b16 %v4106
        %v4395 = vunpack.c.l.b16 %v4107
        %v4396 = vunpack.c.l.b16 %v4108
        %v4397 = vunpack.c.l.b16 %v4109
        %v4398 = vunpack.c.l.b16 %v4110
        %v4399 = vunpack.c.l.b16 %v4111
        %v4400 = vunpack.c.l.b16 %v4112
        %v4401 = vunpack.c.l.b16 %v4113
        %v4402 = vunpack.c.l.b16 %v4114
        %v4403 = vunpack.c.l.b16 %v4115
        %v4404 = vunpack.c.l.b16 %v4116
        %v4405 = vunpack.c.l.b16 %v4117
        %v4406 = vunpack.c.l.b16 %v4118
        %v4407 = vunpack.c.l.b16 %v4119
        %v4408 = vunpack.c.l.b16 %v4120
        %v4409 = vunpack.c.l.b16 %v4121
        %v4410 = vunpack.c.l.b16 %v4122
        %v4411 = vunpack.c.l.b16 %v4123
        %v4412 = vunpack.c.l.b16 %v4124
        %v4413 = vunpack.c.l.b16 %v4125
        %v4414 = vunpack.c.l.b16 %v4126
        %v4415 = vunpack.c.l.b16 %v4127
        %v4416 = vunpack.c.l.b16 %v4128
        %v4417 = vunpack.c.l.b16 %v4129
        %v4418 = vunpack.c.l.b16 %v4130
        %v4419 = vunpack.c.l.b16 %v4131
        %v4420 = vunpack.c.l.b16 %v4132
        %v4421 = vunpack.c.l.b16 %v4133
        %v4422 = vunpack.c.l.b16 %v4134
        %v4423 = vunpack.c.l.b16 %v4135
        %v4424 = vunpack.c.l.b16 %v4136
        %v4425 = vunpack.c.l.b16 %v4137
        %v4426 = vunpack.c.l.b16 %v4138
        %v4427 = vunpack.c.l.b16 %v4139
        %v4428 = vunpack.c.l.b16 %v4140
        %v4429 = vunpack.c.l.b16 %v4141
        %v4430 = vunpack.c.l.b16 %v4142
        %v4431 = vunpack.c.l.b16 %v4143
        %v4432 = vunpack.c.l.b16 %v4144
        %v4433 = vunpack.c.l.b16 %v4145
        %v4434 = vunpack.c.l.b16 %v4146
        %v4435 = vunpack.c.l.b16 %v4147
        %v4436 = vunpack.c.l.b16 %v4148
        %v4437 = vunpack.c.l.b16 %v4149
        %v4438 = vunpack.c.l.b16 %v4150
        %v4439 = vunpack.c.l.b16 %v4151
        %v4440 = vunpack.c.l.b16 %v4152
        %v4441 = vunpack.c.l.b16 %v4153
        %v4442 = vunpack.c.l.b16 %v4154
        %v4443 = vunpack.c.l.b16 %v4155
        %v4444 = vunpack.c.l.b16 %v4156
        %v4445 = vunpack.c.l.b16 %v4157
        %v4446 = vunpack.c.l.b16 %v4158
        %v4447 = vunpack.c.l.b16 %v4159
        %v4448 = vunpack.c.l.b16 %v4160
        %v4449 = vunpack.c.l.b16 %v4161
        %v4450 = vunpack.c.l.b16 %v4162
        %v4451 = vunpack.c.l.b16 %v4163
        %v4452 = vunpack.c.l.b16 %v4164
        %v4453 = vunpack.c.l.b16 %v4165
        %v4454 = vunpack.c.l.b16 %v4166
        %v4455 = vunpack.c.l.b16 %v4167
        %v4456 = vunpack.c.l.b16 %v4168
        %v4457 = vunpack.c.l.b16 %v4169
        %v4458 = vunpack.c.l.b16 %v4170
        %v4459 = vunpack.c.l.b16 %v4171
        %v4460 = vunpack.c.l.b16 %v4172
        %v4461 = vunpack.c.l.b16 %v4173
        %v4462 = vunpack.c.l.b16 %v4174
        %v4463 = vunpack.c.l.b16 %v4175
        %v4464 = vunpack.c.l.b16 %v4176
        %v4465 = vunpack.c.l.b16 %v4177
        %v4466 = vunpack.c.l.b16 %v4178
        %v4467 = vunpack.c.l.b16 %v4179
        %v4468 = vunpack.c.l.b16 %v4180
        %v4469 = vunpack.c.l.b16 %v4181
        %v4470 = vunpack.c.l.b16 %v4182
        %v4471 = vunpack.c.l.b16 %v4183
        %v4472 = vunpack.c.l.b16 %v4184
        %v4473 = vunpack.c.l.b16 %v4185
        %v4474 = vunpack.c.l.b16 %v4186
        %v4475 = vunpack.c.l.b16 %v4187
        %v4476 = vunpack.c.l.b16 %v4188
        %v4477 = vunpack.c.l.b16 %v4189
        %v4478 = vunpack.c.l.b16 %v4190
        %v4479 = vunpack.c.l.b16 %v4191
        %v4480 = vunpack.c.l.b16 %v4192
        %v4481 = vunpack.c.l.b16 %v4193
        %v4482 = vunpack.c.l.b16 %v4194
        %v4483 = vunpack.c.l.b16 %v4195
        %v4484 = vunpack.c.l.b16 %v4196
        %v4485 = vunpack.c.l.b16 %v4197
        %v4486 = vunpack.c.l.b16 %v4198
        %v4487 = vunpack.c.l.b16 %v4199
        %v4488 = vunpack.c.l.b16 %v4200
        %v4489 = vunpack.c.l.b16 %v4201
        %v4490 = vunpack.c.l.b16 %v4202
        %v4491 = vunpack.c.l.b16 %v4203
        %v4492 = vunpack.c.l.b16 %v4204
        %v4493 = vunpack.c.l.b16 %v4205
        %v4494 = vunpack.c.l.b16 %v4206
        %v4495 = vunpack.c.l.b16 %v4207
        %v4496 = vunpack.c.l.b16 %v4208
        %v4497 = vunpack.c.l.b16 %v4209
        %v4498 = vunpack.c.l.b16 %v4210
        %v4499 = vunpack.c.l.b16 %v4211
        %v4500 = vunpack.c.l.b16 %v4212
        %v4501 = vpack.c.b16 %v4358, %v4357
        %v4502 = vpack.c.b16 %v4360, %v4359
        %v4503 = vpack.c.b16 %v4362, %v4361
        %v4504 = vpack.c.b16 %v4364, %v4363
        %v4505 = vpack.c.b16 %v4366, %v4365
        %v4506 = vpack.c.b16 %v4368, %v4367
        %v4507 = vpack.c.b16 %v4370, %v4369
        %v4508 = vpack.c.b16 %v4372, %v4371
        %v4509 = vpack.c.b16 %v4374, %v4373
        %v4510 = vpack.c.b16 %v4376, %v4375
        %v4511 = vpack.c.b16 %v4378, %v4377
        %v4512 = vpack.c.b16 %v4380, %v4379
        %v4513 = vpack.c.b16 %v4382, %v4381
        %v4514 = vpack.c.b16 %v4384, %v4383
        %v4515 = vpack.c.b16 %v4386, %v4385
        %v4516 = vpack.c.b16 %v4388, %v4387
        %v4517 = vpack.c.b16 %v4390, %v4389
        %v4518 = vpack.c.b16 %v4392, %v4391
        %v4519 = vpack.c.b16 %v4394, %v4393
        %v4520 = vpack.c.b16 %v4396, %v4395
        %v4521 = vpack.c.b16 %v4398, %v4397
        %v4522 = vpack.c.b16 %v4400, %v4399
        %v4523 = vpack.c.b16 %v4402, %v4401
        %v4524 = vpack.c.b16 %v4404, %v4403
        %v4525 = vpack.c.b16 %v4406, %v4405
        %v4526 = vpack.c.b16 %v4408, %v4407
        %v4527 = vpack.c.b16 %v4410, %v4409
        %v4528 = vpack.c.b16 %v4412, %v4411
        %v4529 = vpack.c.b16 %v4414, %v4413
        %v4530 = vpack.c.b16 %v4416, %v4415
        %v4531 = vpack.c.b16 %v4418, %v4417
        %v4532 = vpack.c.b16 %v4420, %v4419
        %v4533 = vpack.c.b16 %v4422, %v4421
        %v4534 = vpack.c.b16 %v4424, %v4423
        %v4535 = vpack.c.b16 %v4426, %v4425
        %v4536 = vpack.c.b16 %v4428, %v4427
        %v4537 = vpack.c.b16 %v4430, %v4429
        %v4538 = vpack.c.b16 %v4432, %v4431
        %v4539 = vpack.c.b16 %v4434, %v4433
        %v4540 = vpack.c.b16 %v4436, %v4435
        %v4541 = vpack.c.b16 %v4438, %v4437
        %v4542 = vpack.c.b16 %v4440, %v4439
        %v4543 = vpack.c.b16 %v4442, %v4441
        %v4544 = vpack.c.b16 %v4444, %v4443
        %v4545 = vpack.c.b16 %v4446, %v4445
        %v4546 = vpack.c.b16 %v4448, %v4447
        %v4547 = vpack.c.b16 %v4450, %v4449
        %v4548 = vpack.c.b16 %v4452, %v4451
        %v4549 = vpack.c.b16 %v4454, %v4453
        %v4550 = vpack.c.b16 %v4456, %v4455
        %v4551 = vpack.c.b16 %v4458, %v4457
        %v4552 = vpack.c.b16 %v4460, %v4459
        %v4553 = vpack.c.b16 %v4462, %v4461
        %v4554 = vpack.c.b16 %v4464, %v4463
        %v4555 = vpack.c.b16 %v4466, %v4465
        %v4556 = vpack.c.b16 %v4468, %v4467
        %v4557 = vpack.c.b16 %v4470, %v4469
        %v4558 = vpack.c.b16 %v4472, %v4471
        %v4559 = vpack.c.b16 %v4474, %v4473
        %v4560 = vpack.c.b16 %v4476, %v4475
        %v4561 = vpack.c.b16 %v4478, %v4477
        %v4562 = vpack.c.b16 %v4480, %v4479
        %v4563 = vpack.c.b16 %v4482, %v4481
        %v4564 = vpack.c.b16 %v4484, %v4483
        %v4565 = vpack.c.b16 %v4486, %v4485
        %v4566 = vpack.c.b16 %v4488, %v4487
        %v4567 = vpack.c.b16 %v4490, %v4489
        %v4568 = vpack.c.b16 %v4492, %v4491
        %v4569 = vpack.c.b16 %v4494, %v4493
        %v4570 = vpack.c.b16 %v4496, %v4495
        %v4571 = vpack.c.b16 %v4498, %v4497
        %v4572 = vpack.c.b16 %v4500, %v4499
        %4645 = vmatpush.bf16.msra.mxu0 %v4508
        %4646 = vmatpush.bf16.msra.mxu0 %v4507
        %4647 = vmatpush.bf16.msra.mxu0 %v4506
        %4648 = vmatpush.bf16.msra.mxu0 %v4505
        %4649 = vmatpush.bf16.msra.mxu0 %v4504
        %4650 = vmatpush.bf16.msra.mxu0 %v4503
        %4651 = vmatpush.bf16.msra.mxu0 %v4502
        %4652 = vmatpush.bf16.msra.mxu0 %v4501
        %4653 = vmatmul.bf16.gmra.mxu0 %v3449
        %v4654 = vpop.f32.mrf.mxu0
        %v4655 = vadd.f32 0.0, %v4654
        %v4656 = vpop.f32.mrf.mxu0
        %v4657 = vadd.f32 0.0, %v4656
        %4658 = vmatmul.bf16.gmra.mxu0 %v3450
        %v4659 = vpop.f32.mrf.mxu0
        %v4660 = vadd.f32 0.0, %v4659
        %v4661 = vpop.f32.mrf.mxu0
        %v4662 = vadd.f32 0.0, %v4661
        %4663 = vmatmul.bf16.gmra.mxu0 %v3451
        %v4664 = vpop.f32.mrf.mxu0
        %v4665 = vadd.f32 0.0, %v4664
        %v4666 = vpop.f32.mrf.mxu0
        %v4667 = vadd.f32 0.0, %v4666
        %4668 = vmatmul.bf16.gmra.mxu0 %v3452
        %v4669 = vpop.f32.mrf.mxu0
        %v4670 = vadd.f32 0.0, %v4669
        %v4671 = vpop.f32.mrf.mxu0
        %v4672 = vadd.f32 0.0, %v4671
        %4673 = vmatmul.bf16.gmra.mxu0 %v3453
        %v4674 = vpop.f32.mrf.mxu0
        %v4675 = vadd.f32 0.0, %v4674
        %v4676 = vpop.f32.mrf.mxu0
        %v4677 = vadd.f32 0.0, %v4676
        %4678 = vmatmul.bf16.gmra.mxu0 %v3454
        %v4679 = vpop.f32.mrf.mxu0
        %v4680 = vadd.f32 0.0, %v4679
        %v4681 = vpop.f32.mrf.mxu0
        %v4682 = vadd.f32 0.0, %v4681
        %4683 = vmatmul.bf16.gmra.mxu0 %v3455
        %v4684 = vpop.f32.mrf.mxu0
        %v4685 = vadd.f32 0.0, %v4684
        %v4686 = vpop.f32.mrf.mxu0
        %v4687 = vadd.f32 0.0, %v4686
        %4688 = vmatmul.bf16.gmra.mxu0 %v3456
        %v4689 = vpop.f32.mrf.mxu0
        %v4690 = vadd.f32 0.0, %v4689
        %v4691 = vpop.f32.mrf.mxu0
        %v4692 = vadd.f32 0.0, %v4691
        %4693 = vmatmul.bf16.gmra.mxu0 %v3457
        %v4694 = vpop.f32.mrf.mxu0
        %v4695 = vadd.f32 0.0, %v4694
        %v4696 = vpop.f32.mrf.mxu0
        %v4697 = vadd.f32 0.0, %v4696
        %4698 = vmatmul.bf16.gmra.mxu0 %v3458
        %v4699 = vpop.f32.mrf.mxu0
        %v4700 = vadd.f32 0.0, %v4699
        %v4701 = vpop.f32.mrf.mxu0
        %v4702 = vadd.f32 0.0, %v4701
        %4703 = vmatmul.bf16.gmra.mxu0 %v3459
        %v4704 = vpop.f32.mrf.mxu0
        %v4705 = vadd.f32 0.0, %v4704
        %v4706 = vpop.f32.mrf.mxu0
        %v4707 = vadd.f32 0.0, %v4706
        %4708 = vmatmul.bf16.gmra.mxu0 %v3460
        %v4709 = vpop.f32.mrf.mxu0
        %v4710 = vadd.f32 0.0, %v4709
        %v4711 = vpop.f32.mrf.mxu0
        %v4712 = vadd.f32 0.0, %v4711
        %4713 = vmatmul.bf16.gmra.mxu0 %v3461
        %v4714 = vpop.f32.mrf.mxu0
        %v4715 = vadd.f32 0.0, %v4714
        %v4716 = vpop.f32.mrf.mxu0
        %v4717 = vadd.f32 0.0, %v4716
        %4718 = vmatmul.bf16.gmra.mxu0 %v3462
        %v4719 = vpop.f32.mrf.mxu0
        %v4720 = vadd.f32 0.0, %v4719
        %v4721 = vpop.f32.mrf.mxu0
        %v4722 = vadd.f32 0.0, %v4721
        %4723 = vmatmul.bf16.gmra.mxu0 %v3463
        %v4724 = vpop.f32.mrf.mxu0
        %v4725 = vadd.f32 0.0, %v4724
        %v4726 = vpop.f32.mrf.mxu0
        %v4727 = vadd.f32 0.0, %v4726
        %4728 = vmatmul.bf16.gmra.mxu0 %v3464
        %v4729 = vpop.f32.mrf.mxu0
        %v4730 = vadd.f32 0.0, %v4729
        %v4731 = vpop.f32.mrf.mxu0
        %v4732 = vadd.f32 0.0, %v4731
        %4733 = vdwg.mxu0
        %4734 = vmatpush.bf16.msra.mxu0 %v4516
        %4735 = vmatpush.bf16.msra.mxu0 %v4515
        %4736 = vmatpush.bf16.msra.mxu0 %v4514
        %4737 = vmatpush.bf16.msra.mxu0 %v4513
        %4738 = vmatpush.bf16.msra.mxu0 %v4512
        %4739 = vmatpush.bf16.msra.mxu0 %v4511
        %4740 = vmatpush.bf16.msra.mxu0 %v4510
        %4741 = vmatpush.bf16.msra.mxu0 %v4509
        %4742 = vmatmul.bf16.gmra.mxu0 %v3545
        %v4743 = vpop.f32.mrf.mxu0
        %v4744 = vadd.f32 %v4655, %v4743
        %v4745 = vpop.f32.mrf.mxu0
        %v4746 = vadd.f32 %v4657, %v4745
        %4747 = vmatmul.bf16.gmra.mxu0 %v3546
        %v4748 = vpop.f32.mrf.mxu0
        %v4749 = vadd.f32 %v4660, %v4748
        %v4750 = vpop.f32.mrf.mxu0
        %v4751 = vadd.f32 %v4662, %v4750
        %4752 = vmatmul.bf16.gmra.mxu0 %v3547
        %v4753 = vpop.f32.mrf.mxu0
        %v4754 = vadd.f32 %v4665, %v4753
        %v4755 = vpop.f32.mrf.mxu0
        %v4756 = vadd.f32 %v4667, %v4755
        %4757 = vmatmul.bf16.gmra.mxu0 %v3548
        %v4758 = vpop.f32.mrf.mxu0
        %v4759 = vadd.f32 %v4670, %v4758
        %v4760 = vpop.f32.mrf.mxu0
        %v4761 = vadd.f32 %v4672, %v4760
        %4762 = vmatmul.bf16.gmra.mxu0 %v3549
        %v4763 = vpop.f32.mrf.mxu0
        %v4764 = vadd.f32 %v4675, %v4763
        %v4765 = vpop.f32.mrf.mxu0
        %v4766 = vadd.f32 %v4677, %v4765
        %4767 = vmatmul.bf16.gmra.mxu0 %v3550
        %v4768 = vpop.f32.mrf.mxu0
        %v4769 = vadd.f32 %v4680, %v4768
        %v4770 = vpop.f32.mrf.mxu0
        %v4771 = vadd.f32 %v4682, %v4770
        %4772 = vmatmul.bf16.gmra.mxu0 %v3551
        %v4773 = vpop.f32.mrf.mxu0
        %v4774 = vadd.f32 %v4685, %v4773
        %v4775 = vpop.f32.mrf.mxu0
        %v4776 = vadd.f32 %v4687, %v4775
        %4777 = vmatmul.bf16.gmra.mxu0 %v3552
        %v4778 = vpop.f32.mrf.mxu0
        %v4779 = vadd.f32 %v4690, %v4778
        %v4780 = vpop.f32.mrf.mxu0
        %v4781 = vadd.f32 %v4692, %v4780
        %4782 = vmatmul.bf16.gmra.mxu0 %v3553
        %v4783 = vpop.f32.mrf.mxu0
        %v4784 = vadd.f32 %v4695, %v4783
        %v4785 = vpop.f32.mrf.mxu0
        %v4786 = vadd.f32 %v4697, %v4785
        %4787 = vmatmul.bf16.gmra.mxu0 %v3554
        %v4788 = vpop.f32.mrf.mxu0
        %v4789 = vadd.f32 %v4700, %v4788
        %v4790 = vpop.f32.mrf.mxu0
        %v4791 = vadd.f32 %v4702, %v4790
        %4792 = vmatmul.bf16.gmra.mxu0 %v3555
        %v4793 = vpop.f32.mrf.mxu0
        %v4794 = vadd.f32 %v4705, %v4793
        %v4795 = vpop.f32.mrf.mxu0
        %v4796 = vadd.f32 %v4707, %v4795
        %4797 = vmatmul.bf16.gmra.mxu0 %v3556
        %v4798 = vpop.f32.mrf.mxu0
        %v4799 = vadd.f32 %v4710, %v4798
        %v4800 = vpop.f32.mrf.mxu0
        %v4801 = vadd.f32 %v4712, %v4800
        %4802 = vmatmul.bf16.gmra.mxu0 %v3557
        %v4803 = vpop.f32.mrf.mxu0
        %v4804 = vadd.f32 %v4715, %v4803
        %v4805 = vpop.f32.mrf.mxu0
        %v4806 = vadd.f32 %v4717, %v4805
        %4807 = vmatmul.bf16.gmra.mxu0 %v3558
        %v4808 = vpop.f32.mrf.mxu0
        %v4809 = vadd.f32 %v4720, %v4808
        %v4810 = vpop.f32.mrf.mxu0
        %v4811 = vadd.f32 %v4722, %v4810
        %4812 = vmatmul.bf16.gmra.mxu0 %v3559
        %v4813 = vpop.f32.mrf.mxu0
        %v4814 = vadd.f32 %v4725, %v4813
        %v4815 = vpop.f32.mrf.mxu0
        %v4816 = vadd.f32 %v4727, %v4815
        %4817 = vmatmul.bf16.gmra.mxu0 %v3560
        %v4818 = vpop.f32.mrf.mxu0
        %v4819 = vadd.f32 %v4730, %v4818
        %v4820 = vpop.f32.mrf.mxu0
        %v4821 = vadd.f32 %v4732, %v4820
        %4822 = vdwg.mxu0
        %4823 = vmatpush.bf16.msra.mxu0 %v4524
        %4824 = vmatpush.bf16.msra.mxu0 %v4523
        %4825 = vmatpush.bf16.msra.mxu0 %v4522
        %4826 = vmatpush.bf16.msra.mxu0 %v4521
        %4827 = vmatpush.bf16.msra.mxu0 %v4520
        %4828 = vmatpush.bf16.msra.mxu0 %v4519
        %4829 = vmatpush.bf16.msra.mxu0 %v4518
        %4830 = vmatpush.bf16.msra.mxu0 %v4517
        %4831 = vmatmul.bf16.gmra.mxu0 %v3641
        %v4832 = vpop.f32.mrf.mxu0
        %v4833 = vadd.f32 %v4744, %v4832
        %v4834 = vpop.f32.mrf.mxu0
        %v4835 = vadd.f32 %v4746, %v4834
        %4836 = vmatmul.bf16.gmra.mxu0 %v3642
        %v4837 = vpop.f32.mrf.mxu0
        %v4838 = vadd.f32 %v4749, %v4837
        %v4839 = vpop.f32.mrf.mxu0
        %v4840 = vadd.f32 %v4751, %v4839
        %4841 = vmatmul.bf16.gmra.mxu0 %v3643
        %v4842 = vpop.f32.mrf.mxu0
        %v4843 = vadd.f32 %v4754, %v4842
        %v4844 = vpop.f32.mrf.mxu0
        %v4845 = vadd.f32 %v4756, %v4844
        %4846 = vmatmul.bf16.gmra.mxu0 %v3644
        %v4847 = vpop.f32.mrf.mxu0
        %v4848 = vadd.f32 %v4759, %v4847
        %v4849 = vpop.f32.mrf.mxu0
        %v4850 = vadd.f32 %v4761, %v4849
        %4851 = vmatmul.bf16.gmra.mxu0 %v3645
        %v4852 = vpop.f32.mrf.mxu0
        %v4853 = vadd.f32 %v4764, %v4852
        %v4854 = vpop.f32.mrf.mxu0
        %v4855 = vadd.f32 %v4766, %v4854
        %4856 = vmatmul.bf16.gmra.mxu0 %v3646
        %v4857 = vpop.f32.mrf.mxu0
        %v4858 = vadd.f32 %v4769, %v4857
        %v4859 = vpop.f32.mrf.mxu0
        %v4860 = vadd.f32 %v4771, %v4859
        %4861 = vmatmul.bf16.gmra.mxu0 %v3647
        %v4862 = vpop.f32.mrf.mxu0
        %v4863 = vadd.f32 %v4774, %v4862
        %v4864 = vpop.f32.mrf.mxu0
        %v4865 = vadd.f32 %v4776, %v4864
        %4866 = vmatmul.bf16.gmra.mxu0 %v3648
        %v4867 = vpop.f32.mrf.mxu0
        %v4868 = vadd.f32 %v4779, %v4867
        %v4869 = vpop.f32.mrf.mxu0
        %v4870 = vadd.f32 %v4781, %v4869
        %4871 = vmatmul.bf16.gmra.mxu0 %v3649
        %v4872 = vpop.f32.mrf.mxu0
        %v4873 = vadd.f32 %v4784, %v4872
        %v4874 = vpop.f32.mrf.mxu0
        %v4875 = vadd.f32 %v4786, %v4874
        %4876 = vmatmul.bf16.gmra.mxu0 %v3650
        %v4877 = vpop.f32.mrf.mxu0
        %v4878 = vadd.f32 %v4789, %v4877
        %v4879 = vpop.f32.mrf.mxu0
        %v4880 = vadd.f32 %v4791, %v4879
        %4881 = vmatmul.bf16.gmra.mxu0 %v3651
        %v4882 = vpop.f32.mrf.mxu0
        %v4883 = vadd.f32 %v4794, %v4882
        %v4884 = vpop.f32.mrf.mxu0
        %v4885 = vadd.f32 %v4796, %v4884
        %4886 = vmatmul.bf16.gmra.mxu0 %v3652
        %v4887 = vpop.f32.mrf.mxu0
        %v4888 = vadd.f32 %v4799, %v4887
        %v4889 = vpop.f32.mrf.mxu0
        %v4890 = vadd.f32 %v4801, %v4889
        %4891 = vmatmul.bf16.gmra.mxu0 %v3653
        %v4892 = vpop.f32.mrf.mxu0
        %v4893 = vadd.f32 %v4804, %v4892
        %v4894 = vpop.f32.mrf.mxu0
        %v4895 = vadd.f32 %v4806, %v4894
        %4896 = vmatmul.bf16.gmra.mxu0 %v3654
        %v4897 = vpop.f32.mrf.mxu0
        %v4898 = vadd.f32 %v4809, %v4897
        %v4899 = vpop.f32.mrf.mxu0
        %v4900 = vadd.f32 %v4811, %v4899
        %4901 = vmatmul.bf16.gmra.mxu0 %v3655
        %v4902 = vpop.f32.mrf.mxu0
        %v4903 = vadd.f32 %v4814, %v4902
        %v4904 = vpop.f32.mrf.mxu0
        %v4905 = vadd.f32 %v4816, %v4904
        %4906 = vmatmul.bf16.gmra.mxu0 %v3656
        %v4907 = vpop.f32.mrf.mxu0
        %v4908 = vadd.f32 %v4819, %v4907
        %v4909 = vpop.f32.mrf.mxu0
        %v4910 = vadd.f32 %v4821, %v4909
        %4911 = vdwg.mxu0
        %4912 = vmatpush.bf16.msra.mxu0 %v4532
        %4913 = vmatpush.bf16.msra.mxu0 %v4531
        %4914 = vmatpush.bf16.msra.mxu0 %v4530
        %4915 = vmatpush.bf16.msra.mxu0 %v4529
        %4916 = vmatpush.bf16.msra.mxu0 %v4528
        %4917 = vmatpush.bf16.msra.mxu0 %v4527
        %4918 = vmatpush.bf16.msra.mxu0 %v4526
        %4919 = vmatpush.bf16.msra.mxu0 %v4525
        %4920 = vmatmul.bf16.gmra.mxu0 %v3737
        %v4921 = vpop.f32.mrf.mxu0
        %v4922 = vadd.f32 %v4833, %v4921
        %v4923 = vpop.f32.mrf.mxu0
        %v4924 = vadd.f32 %v4835, %v4923
        %4925 = vmatmul.bf16.gmra.mxu0 %v3738
        %v4926 = vpop.f32.mrf.mxu0
        %v4927 = vadd.f32 %v4838, %v4926
        %v4928 = vpop.f32.mrf.mxu0
        %v4929 = vadd.f32 %v4840, %v4928
        %4930 = vmatmul.bf16.gmra.mxu0 %v3739
        %v4931 = vpop.f32.mrf.mxu0
        %v4932 = vadd.f32 %v4843, %v4931
        %v4933 = vpop.f32.mrf.mxu0
        %v4934 = vadd.f32 %v4845, %v4933
        %4935 = vmatmul.bf16.gmra.mxu0 %v3740
        %v4936 = vpop.f32.mrf.mxu0
        %v4937 = vadd.f32 %v4848, %v4936
        %v4938 = vpop.f32.mrf.mxu0
        %v4939 = vadd.f32 %v4850, %v4938
        %4940 = vmatmul.bf16.gmra.mxu0 %v3741
        %v4941 = vpop.f32.mrf.mxu0
        %v4942 = vadd.f32 %v4853, %v4941
        %v4943 = vpop.f32.mrf.mxu0
        %v4944 = vadd.f32 %v4855, %v4943
        %4945 = vmatmul.bf16.gmra.mxu0 %v3742
        %v4946 = vpop.f32.mrf.mxu0
        %v4947 = vadd.f32 %v4858, %v4946
        %v4948 = vpop.f32.mrf.mxu0
        %v4949 = vadd.f32 %v4860, %v4948
        %4950 = vmatmul.bf16.gmra.mxu0 %v3743
        %v4951 = vpop.f32.mrf.mxu0
        %v4952 = vadd.f32 %v4863, %v4951
        %v4953 = vpop.f32.mrf.mxu0
        %v4954 = vadd.f32 %v4865, %v4953
        %4955 = vmatmul.bf16.gmra.mxu0 %v3744
        %v4956 = vpop.f32.mrf.mxu0
        %v4957 = vadd.f32 %v4868, %v4956
        %v4958 = vpop.f32.mrf.mxu0
        %v4959 = vadd.f32 %v4870, %v4958
        %4960 = vmatmul.bf16.gmra.mxu0 %v3745
        %v4961 = vpop.f32.mrf.mxu0
        %v4962 = vadd.f32 %v4873, %v4961
        %v4963 = vpop.f32.mrf.mxu0
        %v4964 = vadd.f32 %v4875, %v4963
        %4965 = vmatmul.bf16.gmra.mxu0 %v3746
        %v4966 = vpop.f32.mrf.mxu0
        %v4967 = vadd.f32 %v4878, %v4966
        %v4968 = vpop.f32.mrf.mxu0
        %v4969 = vadd.f32 %v4880, %v4968
        %4970 = vmatmul.bf16.gmra.mxu0 %v3747
        %v4971 = vpop.f32.mrf.mxu0
        %v4972 = vadd.f32 %v4883, %v4971
        %v4973 = vpop.f32.mrf.mxu0
        %v4974 = vadd.f32 %v4885, %v4973
        %4975 = vmatmul.bf16.gmra.mxu0 %v3748
        %v4976 = vpop.f32.mrf.mxu0
        %v4977 = vadd.f32 %v4888, %v4976
        %v4978 = vpop.f32.mrf.mxu0
        %v4979 = vadd.f32 %v4890, %v4978
        %4980 = vmatmul.bf16.gmra.mxu0 %v3749
        %v4981 = vpop.f32.mrf.mxu0
        %v4982 = vadd.f32 %v4893, %v4981
        %v4983 = vpop.f32.mrf.mxu0
        %v4984 = vadd.f32 %v4895, %v4983
        %4985 = vmatmul.bf16.gmra.mxu0 %v3750
        %v4986 = vpop.f32.mrf.mxu0
        %v4987 = vadd.f32 %v4898, %v4986
        %v4988 = vpop.f32.mrf.mxu0
        %v4989 = vadd.f32 %v4900, %v4988
        %4990 = vmatmul.bf16.gmra.mxu0 %v3751
        %v4991 = vpop.f32.mrf.mxu0
        %v4992 = vadd.f32 %v4903, %v4991
        %v4993 = vpop.f32.mrf.mxu0
        %v4994 = vadd.f32 %v4905, %v4993
        %4995 = vmatmul.bf16.gmra.mxu0 %v3752
        %v4996 = vpop.f32.mrf.mxu0
        %v4997 = vadd.f32 %v4908, %v4996
        %v4998 = vpop.f32.mrf.mxu0
        %v4999 = vadd.f32 %v4910, %v4998
        %5000 = vdwg.mxu0
        %5001 = vmatpush.bf16.msra.mxu0 %v4540
        %5002 = vmatpush.bf16.msra.mxu0 %v4539
        %5003 = vmatpush.bf16.msra.mxu0 %v4538
        %5004 = vmatpush.bf16.msra.mxu0 %v4537
        %5005 = vmatpush.bf16.msra.mxu0 %v4536
        %5006 = vmatpush.bf16.msra.mxu0 %v4535
        %5007 = vmatpush.bf16.msra.mxu0 %v4534
        %5008 = vmatpush.bf16.msra.mxu0 %v4533
        %5009 = vmatmul.bf16.gmra.mxu0 %v3546
        %v5010 = vpop.f32.mrf.mxu0
        %v5011 = vadd.f32 %v4922, %v5010
        %v5012 = vpop.f32.mrf.mxu0
        %v5013 = vadd.f32 %v4924, %v5012
        %5014 = vmatmul.bf16.gmra.mxu0 %v3547
        %v5015 = vpop.f32.mrf.mxu0
        %v5016 = vadd.f32 %v4927, %v5015
        %v5017 = vpop.f32.mrf.mxu0
        %v5018 = vadd.f32 %v4929, %v5017
        %5019 = vmatmul.bf16.gmra.mxu0 %v3548
        %v5020 = vpop.f32.mrf.mxu0
        %v5021 = vadd.f32 %v4932, %v5020
        %v5022 = vpop.f32.mrf.mxu0
        %v5023 = vadd.f32 %v4934, %v5022
        %5024 = vmatmul.bf16.gmra.mxu0 %v3549
        %v5025 = vpop.f32.mrf.mxu0
        %v5026 = vadd.f32 %v4937, %v5025
        %v5027 = vpop.f32.mrf.mxu0
        %v5028 = vadd.f32 %v4939, %v5027
        %5029 = vmatmul.bf16.gmra.mxu0 %v3550
        %v5030 = vpop.f32.mrf.mxu0
        %v5031 = vadd.f32 %v4942, %v5030
        %v5032 = vpop.f32.mrf.mxu0
        %v5033 = vadd.f32 %v4944, %v5032
        %5034 = vmatmul.bf16.gmra.mxu0 %v3551
        %v5035 = vpop.f32.mrf.mxu0
        %v5036 = vadd.f32 %v4947, %v5035
        %v5037 = vpop.f32.mrf.mxu0
        %v5038 = vadd.f32 %v4949, %v5037
        %5039 = vmatmul.bf16.gmra.mxu0 %v3552
        %v5040 = vpop.f32.mrf.mxu0
        %v5041 = vadd.f32 %v4952, %v5040
        %v5042 = vpop.f32.mrf.mxu0
        %v5043 = vadd.f32 %v4954, %v5042
        %5044 = vmatmul.bf16.gmra.mxu0 %v3553
        %v5045 = vpop.f32.mrf.mxu0
        %v5046 = vadd.f32 %v4957, %v5045
        %v5047 = vpop.f32.mrf.mxu0
        %v5048 = vadd.f32 %v4959, %v5047
        %5049 = vmatmul.bf16.gmra.mxu0 %v3554
        %v5050 = vpop.f32.mrf.mxu0
        %v5051 = vadd.f32 %v4962, %v5050
        %v5052 = vpop.f32.mrf.mxu0
        %v5053 = vadd.f32 %v4964, %v5052
        %5054 = vmatmul.bf16.gmra.mxu0 %v3555
        %v5055 = vpop.f32.mrf.mxu0
        %v5056 = vadd.f32 %v4967, %v5055
        %v5057 = vpop.f32.mrf.mxu0
        %v5058 = vadd.f32 %v4969, %v5057
        %5059 = vmatmul.bf16.gmra.mxu0 %v3556
        %v5060 = vpop.f32.mrf.mxu0
        %v5061 = vadd.f32 %v4972, %v5060
        %v5062 = vpop.f32.mrf.mxu0
        %v5063 = vadd.f32 %v4974, %v5062
        %5064 = vmatmul.bf16.gmra.mxu0 %v3557
        %v5065 = vpop.f32.mrf.mxu0
        %v5066 = vadd.f32 %v4977, %v5065
        %v5067 = vpop.f32.mrf.mxu0
        %v5068 = vadd.f32 %v4979, %v5067
        %5069 = vmatmul.bf16.gmra.mxu0 %v3558
        %v5070 = vpop.f32.mrf.mxu0
        %v5071 = vadd.f32 %v4982, %v5070
        %v5072 = vpop.f32.mrf.mxu0
        %v5073 = vadd.f32 %v4984, %v5072
        %5074 = vmatmul.bf16.gmra.mxu0 %v3559
        %v5075 = vpop.f32.mrf.mxu0
        %v5076 = vadd.f32 %v4987, %v5075
        %v5077 = vpop.f32.mrf.mxu0
        %v5078 = vadd.f32 %v4989, %v5077
        %5079 = vmatmul.bf16.gmra.mxu0 %v3560
        %v5080 = vpop.f32.mrf.mxu0
        %v5081 = vadd.f32 %v4992, %v5080
        %v5082 = vpop.f32.mrf.mxu0
        %v5083 = vadd.f32 %v4994, %v5082
        %5084 = vmatmul.bf16.gmra.mxu0 %v3773
        %v5085 = vpop.f32.mrf.mxu0
        %v5086 = vadd.f32 %v4997, %v5085
        %v5087 = vpop.f32.mrf.mxu0
        %v5088 = vadd.f32 %v4999, %v5087
        %5089 = vdwg.mxu0
        %5090 = vmatpush.bf16.msra.mxu0 %v4548
        %5091 = vmatpush.bf16.msra.mxu0 %v4547
        %5092 = vmatpush.bf16.msra.mxu0 %v4546
        %5093 = vmatpush.bf16.msra.mxu0 %v4545
        %5094 = vmatpush.bf16.msra.mxu0 %v4544
        %5095 = vmatpush.bf16.msra.mxu0 %v4543
        %5096 = vmatpush.bf16.msra.mxu0 %v4542
        %5097 = vmatpush.bf16.msra.mxu0 %v4541
        %5098 = vmatmul.bf16.gmra.mxu0 %v3839
        %v5099 = vpop.f32.mrf.mxu0
        %v5100 = vadd.f32 %v5011, %v5099
        %v5101 = vpop.f32.mrf.mxu0
        %v5102 = vadd.f32 %v5013, %v5101
        %5103 = vmatmul.bf16.gmra.mxu0 %v3840
        %v5104 = vpop.f32.mrf.mxu0
        %v5105 = vadd.f32 %v5016, %v5104
        %v5106 = vpop.f32.mrf.mxu0
        %v5107 = vadd.f32 %v5018, %v5106
        %5108 = vmatmul.bf16.gmra.mxu0 %v3841
        %v5109 = vpop.f32.mrf.mxu0
        %v5110 = vadd.f32 %v5021, %v5109
        %v5111 = vpop.f32.mrf.mxu0
        %v5112 = vadd.f32 %v5023, %v5111
        %5113 = vmatmul.bf16.gmra.mxu0 %v3842
        %v5114 = vpop.f32.mrf.mxu0
        %v5115 = vadd.f32 %v5026, %v5114
        %v5116 = vpop.f32.mrf.mxu0
        %v5117 = vadd.f32 %v5028, %v5116
        %5118 = vmatmul.bf16.gmra.mxu0 %v3843
        %v5119 = vpop.f32.mrf.mxu0
        %v5120 = vadd.f32 %v5031, %v5119
        %v5121 = vpop.f32.mrf.mxu0
        %v5122 = vadd.f32 %v5033, %v5121
        %5123 = vmatmul.bf16.gmra.mxu0 %v3844
        %v5124 = vpop.f32.mrf.mxu0
        %v5125 = vadd.f32 %v5036, %v5124
        %v5126 = vpop.f32.mrf.mxu0
        %v5127 = vadd.f32 %v5038, %v5126
        %5128 = vmatmul.bf16.gmra.mxu0 %v3845
        %v5129 = vpop.f32.mrf.mxu0
        %v5130 = vadd.f32 %v5041, %v5129
        %v5131 = vpop.f32.mrf.mxu0
        %v5132 = vadd.f32 %v5043, %v5131
        %5133 = vmatmul.bf16.gmra.mxu0 %v3846
        %v5134 = vpop.f32.mrf.mxu0
        %v5135 = vadd.f32 %v5046, %v5134
        %v5136 = vpop.f32.mrf.mxu0
        %v5137 = vadd.f32 %v5048, %v5136
        %5138 = vmatmul.bf16.gmra.mxu0 %v3847
        %v5139 = vpop.f32.mrf.mxu0
        %v5140 = vadd.f32 %v5051, %v5139
        %v5141 = vpop.f32.mrf.mxu0
        %v5142 = vadd.f32 %v5053, %v5141
        %5143 = vmatmul.bf16.gmra.mxu0 %v3848
        %v5144 = vpop.f32.mrf.mxu0
        %v5145 = vadd.f32 %v5056, %v5144
        %v5146 = vpop.f32.mrf.mxu0
        %v5147 = vadd.f32 %v5058, %v5146
        %5148 = vmatmul.bf16.gmra.mxu0 %v3849
        %v5149 = vpop.f32.mrf.mxu0
        %v5150 = vadd.f32 %v5061, %v5149
        %v5151 = vpop.f32.mrf.mxu0
        %v5152 = vadd.f32 %v5063, %v5151
        %5153 = vmatmul.bf16.gmra.mxu0 %v3850
        %v5154 = vpop.f32.mrf.mxu0
        %v5155 = vadd.f32 %v5066, %v5154
        %v5156 = vpop.f32.mrf.mxu0
        %v5157 = vadd.f32 %v5068, %v5156
        %5158 = vmatmul.bf16.gmra.mxu0 %v3851
        %v5159 = vpop.f32.mrf.mxu0
        %v5160 = vadd.f32 %v5071, %v5159
        %v5161 = vpop.f32.mrf.mxu0
        %v5162 = vadd.f32 %v5073, %v5161
        %5163 = vmatmul.bf16.gmra.mxu0 %v3852
        %v5164 = vpop.f32.mrf.mxu0
        %v5165 = vadd.f32 %v5076, %v5164
        %v5166 = vpop.f32.mrf.mxu0
        %v5167 = vadd.f32 %v5078, %v5166
        %5168 = vmatmul.bf16.gmra.mxu0 %v3853
        %v5169 = vpop.f32.mrf.mxu0
        %v5170 = vadd.f32 %v5081, %v5169
        %v5171 = vpop.f32.mrf.mxu0
        %v5172 = vadd.f32 %v5083, %v5171
        %5173 = vmatmul.bf16.gmra.mxu0 %v3854
        %v5174 = vpop.f32.mrf.mxu0
        %v5175 = vadd.f32 %v5086, %v5174
        %v5176 = vpop.f32.mrf.mxu0
        %v5177 = vadd.f32 %v5088, %v5176
        %5178 = vdwg.mxu0
        %5179 = vmatpush.bf16.msra.mxu0 %v4556
        %5180 = vmatpush.bf16.msra.mxu0 %v4555
        %5181 = vmatpush.bf16.msra.mxu0 %v4554
        %5182 = vmatpush.bf16.msra.mxu0 %v4553
        %5183 = vmatpush.bf16.msra.mxu0 %v4552
        %5184 = vmatpush.bf16.msra.mxu0 %v4551
        %5185 = vmatpush.bf16.msra.mxu0 %v4550
        %5186 = vmatpush.bf16.msra.mxu0 %v4549
        %5187 = vmatmul.bf16.gmra.mxu0 %v3935
        %v5188 = vpop.f32.mrf.mxu0
        %v5189 = vadd.f32 %v5100, %v5188
        %v5190 = vpop.f32.mrf.mxu0
        %v5191 = vadd.f32 %v5102, %v5190
        %5192 = vmatmul.bf16.gmra.mxu0 %v3936
        %v5193 = vpop.f32.mrf.mxu0
        %v5194 = vadd.f32 %v5105, %v5193
        %v5195 = vpop.f32.mrf.mxu0
        %v5196 = vadd.f32 %v5107, %v5195
        %5197 = vmatmul.bf16.gmra.mxu0 %v3937
        %v5198 = vpop.f32.mrf.mxu0
        %v5199 = vadd.f32 %v5110, %v5198
        %v5200 = vpop.f32.mrf.mxu0
        %v5201 = vadd.f32 %v5112, %v5200
        %5202 = vmatmul.bf16.gmra.mxu0 %v3938
        %v5203 = vpop.f32.mrf.mxu0
        %v5204 = vadd.f32 %v5115, %v5203
        %v5205 = vpop.f32.mrf.mxu0
        %v5206 = vadd.f32 %v5117, %v5205
        %5207 = vmatmul.bf16.gmra.mxu0 %v3939
        %v5208 = vpop.f32.mrf.mxu0
        %v5209 = vadd.f32 %v5120, %v5208
        %v5210 = vpop.f32.mrf.mxu0
        %v5211 = vadd.f32 %v5122, %v5210
        %5212 = vmatmul.bf16.gmra.mxu0 %v3940
        %v5213 = vpop.f32.mrf.mxu0
        %v5214 = vadd.f32 %v5125, %v5213
        %v5215 = vpop.f32.mrf.mxu0
        %v5216 = vadd.f32 %v5127, %v5215
        %5217 = vmatmul.bf16.gmra.mxu0 %v3941
        %v5218 = vpop.f32.mrf.mxu0
        %v5219 = vadd.f32 %v5130, %v5218
        %v5220 = vpop.f32.mrf.mxu0
        %v5221 = vadd.f32 %v5132, %v5220
        %5222 = vmatmul.bf16.gmra.mxu0 %v3942
        %v5223 = vpop.f32.mrf.mxu0
        %v5224 = vadd.f32 %v5135, %v5223
        %v5225 = vpop.f32.mrf.mxu0
        %v5226 = vadd.f32 %v5137, %v5225
        %5227 = vmatmul.bf16.gmra.mxu0 %v3943
        %v5228 = vpop.f32.mrf.mxu0
        %v5229 = vadd.f32 %v5140, %v5228
        %v5230 = vpop.f32.mrf.mxu0
        %v5231 = vadd.f32 %v5142, %v5230
        %5232 = vmatmul.bf16.gmra.mxu0 %v3944
        %v5233 = vpop.f32.mrf.mxu0
        %v5234 = vadd.f32 %v5145, %v5233
        %v5235 = vpop.f32.mrf.mxu0
        %v5236 = vadd.f32 %v5147, %v5235
        %5237 = vmatmul.bf16.gmra.mxu0 %v3945
        %v5238 = vpop.f32.mrf.mxu0
        %v5239 = vadd.f32 %v5150, %v5238
        %v5240 = vpop.f32.mrf.mxu0
        %v5241 = vadd.f32 %v5152, %v5240
        %5242 = vmatmul.bf16.gmra.mxu0 %v3946
        %v5243 = vpop.f32.mrf.mxu0
        %v5244 = vadd.f32 %v5155, %v5243
        %v5245 = vpop.f32.mrf.mxu0
        %v5246 = vadd.f32 %v5157, %v5245
        %5247 = vmatmul.bf16.gmra.mxu0 %v3947
        %v5248 = vpop.f32.mrf.mxu0
        %v5249 = vadd.f32 %v5160, %v5248
        %v5250 = vpop.f32.mrf.mxu0
        %v5251 = vadd.f32 %v5162, %v5250
        %5252 = vmatmul.bf16.gmra.mxu0 %v3948
        %v5253 = vpop.f32.mrf.mxu0
        %v5254 = vadd.f32 %v5165, %v5253
        %v5255 = vpop.f32.mrf.mxu0
        %v5256 = vadd.f32 %v5167, %v5255
        %5257 = vmatmul.bf16.gmra.mxu0 %v3949
        %v5258 = vpop.f32.mrf.mxu0
        %v5259 = vadd.f32 %v5170, %v5258
        %v5260 = vpop.f32.mrf.mxu0
        %v5261 = vadd.f32 %v5172, %v5260
        %5262 = vmatmul.bf16.gmra.mxu0 %v3950
        %v5263 = vpop.f32.mrf.mxu0
        %v5264 = vadd.f32 %v5175, %v5263
        %v5265 = vpop.f32.mrf.mxu0
        %v5266 = vadd.f32 %v5177, %v5265
        %5267 = vdwg.mxu0
        %5268 = vmatpush.bf16.msra.mxu0 %v4564
        %5269 = vmatpush.bf16.msra.mxu0 %v4563
        %5270 = vmatpush.bf16.msra.mxu0 %v4562
        %5271 = vmatpush.bf16.msra.mxu0 %v4561
        %5272 = vmatpush.bf16.msra.mxu0 %v4560
        %5273 = vmatpush.bf16.msra.mxu0 %v4559
        %5274 = vmatpush.bf16.msra.mxu0 %v4558
        %5275 = vmatpush.bf16.msra.mxu0 %v4557
        %5276 = vmatmul.bf16.gmra.mxu0 %v3547
        %v5277 = vpop.f32.mrf.mxu0
        %v5278 = vadd.f32 %v5189, %v5277
        %v5279 = vpop.f32.mrf.mxu0
        %v5280 = vadd.f32 %v5191, %v5279
        %5281 = vmatmul.bf16.gmra.mxu0 %v3548
        %v5282 = vpop.f32.mrf.mxu0
        %v5283 = vadd.f32 %v5194, %v5282
        %v5284 = vpop.f32.mrf.mxu0
        %v5285 = vadd.f32 %v5196, %v5284
        %5286 = vmatmul.bf16.gmra.mxu0 %v3549
        %v5287 = vpop.f32.mrf.mxu0
        %v5288 = vadd.f32 %v5199, %v5287
        %v5289 = vpop.f32.mrf.mxu0
        %v5290 = vadd.f32 %v5201, %v5289
        %5291 = vmatmul.bf16.gmra.mxu0 %v3550
        %v5292 = vpop.f32.mrf.mxu0
        %v5293 = vadd.f32 %v5204, %v5292
        %v5294 = vpop.f32.mrf.mxu0
        %v5295 = vadd.f32 %v5206, %v5294
        %5296 = vmatmul.bf16.gmra.mxu0 %v3551
        %v5297 = vpop.f32.mrf.mxu0
        %v5298 = vadd.f32 %v5209, %v5297
        %v5299 = vpop.f32.mrf.mxu0
        %v5300 = vadd.f32 %v5211, %v5299
        %5301 = vmatmul.bf16.gmra.mxu0 %v3552
        %v5302 = vpop.f32.mrf.mxu0
        %v5303 = vadd.f32 %v5214, %v5302
        %v5304 = vpop.f32.mrf.mxu0
        %v5305 = vadd.f32 %v5216, %v5304
        %5306 = vmatmul.bf16.gmra.mxu0 %v3553
        %v5307 = vpop.f32.mrf.mxu0
        %v5308 = vadd.f32 %v5219, %v5307
        %v5309 = vpop.f32.mrf.mxu0
        %v5310 = vadd.f32 %v5221, %v5309
        %5311 = vmatmul.bf16.gmra.mxu0 %v3554
        %v5312 = vpop.f32.mrf.mxu0
        %v5313 = vadd.f32 %v5224, %v5312
        %v5314 = vpop.f32.mrf.mxu0
        %v5315 = vadd.f32 %v5226, %v5314
        %5316 = vmatmul.bf16.gmra.mxu0 %v3555
        %v5317 = vpop.f32.mrf.mxu0
        %v5318 = vadd.f32 %v5229, %v5317
        %v5319 = vpop.f32.mrf.mxu0
        %v5320 = vadd.f32 %v5231, %v5319
        %5321 = vmatmul.bf16.gmra.mxu0 %v3556
        %v5322 = vpop.f32.mrf.mxu0
        %v5323 = vadd.f32 %v5234, %v5322
        %v5324 = vpop.f32.mrf.mxu0
        %v5325 = vadd.f32 %v5236, %v5324
        %5326 = vmatmul.bf16.gmra.mxu0 %v3557
        %v5327 = vpop.f32.mrf.mxu0
        %v5328 = vadd.f32 %v5239, %v5327
        %v5329 = vpop.f32.mrf.mxu0
        %v5330 = vadd.f32 %v5241, %v5329
        %5331 = vmatmul.bf16.gmra.mxu0 %v3558
        %v5332 = vpop.f32.mrf.mxu0
        %v5333 = vadd.f32 %v5244, %v5332
        %v5334 = vpop.f32.mrf.mxu0
        %v5335 = vadd.f32 %v5246, %v5334
        %5336 = vmatmul.bf16.gmra.mxu0 %v3559
        %v5337 = vpop.f32.mrf.mxu0
        %v5338 = vadd.f32 %v5249, %v5337
        %v5339 = vpop.f32.mrf.mxu0
        %v5340 = vadd.f32 %v5251, %v5339
        %5341 = vmatmul.bf16.gmra.mxu0 %v3560
        %v5342 = vpop.f32.mrf.mxu0
        %v5343 = vadd.f32 %v5254, %v5342
        %v5344 = vpop.f32.mrf.mxu0
        %v5345 = vadd.f32 %v5256, %v5344
        %5346 = vmatmul.bf16.gmra.mxu0 %v3773
        %v5347 = vpop.f32.mrf.mxu0
        %v5348 = vadd.f32 %v5259, %v5347
        %v5349 = vpop.f32.mrf.mxu0
        %v5350 = vadd.f32 %v5261, %v5349
        %5351 = vmatmul.bf16.gmra.mxu0 %v3971
        %v5352 = vpop.f32.mrf.mxu0
        %v5353 = vadd.f32 %v5264, %v5352
        %v5354 = vpop.f32.mrf.mxu0
        %v5355 = vadd.f32 %v5266, %v5354
        %5356 = vdwg.mxu0
        %5357 = vmatpush.bf16.msra.mxu0 %v4572
        %5358 = vmatpush.bf16.msra.mxu0 %v4571
        %5359 = vmatpush.bf16.msra.mxu0 %v4570
        %5360 = vmatpush.bf16.msra.mxu0 %v4569
        %5361 = vmatpush.bf16.msra.mxu0 %v4568
        %5362 = vmatpush.bf16.msra.mxu0 %v4567
        %5363 = vmatpush.bf16.msra.mxu0 %v4566
        %5364 = vmatpush.bf16.msra.mxu0 %v4565
        %5365 = vmatmul.bf16.gmra.mxu0 %v4037
        %v5366 = vpop.f32.mrf.mxu0
        %v5367 = vadd.f32 %v5278, %v5366
        %v5368 = vpop.f32.mrf.mxu0
        %v5369 = vadd.f32 %v5280, %v5368
        %5370 = vmatmul.bf16.gmra.mxu0 %v4038
        %v5371 = vpop.f32.mrf.mxu0
        %v5372 = vadd.f32 %v5283, %v5371
        %v5373 = vpop.f32.mrf.mxu0
        %v5374 = vadd.f32 %v5285, %v5373
        %5375 = vmatmul.bf16.gmra.mxu0 %v4039
        %v5376 = vpop.f32.mrf.mxu0
        %v5377 = vadd.f32 %v5288, %v5376
        %v5378 = vpop.f32.mrf.mxu0
        %v5379 = vadd.f32 %v5290, %v5378
        %5380 = vmatmul.bf16.gmra.mxu0 %v4040
        %v5381 = vpop.f32.mrf.mxu0
        %v5382 = vadd.f32 %v5293, %v5381
        %v5383 = vpop.f32.mrf.mxu0
        %v5384 = vadd.f32 %v5295, %v5383
        %5385 = vmatmul.bf16.gmra.mxu0 %v4041
        %v5386 = vpop.f32.mrf.mxu0
        %v5387 = vadd.f32 %v5298, %v5386
        %v5388 = vpop.f32.mrf.mxu0
        %v5389 = vadd.f32 %v5300, %v5388
        %5390 = vmatmul.bf16.gmra.mxu0 %v4042
        %v5391 = vpop.f32.mrf.mxu0
        %v5392 = vadd.f32 %v5303, %v5391
        %v5393 = vpop.f32.mrf.mxu0
        %v5394 = vadd.f32 %v5305, %v5393
        %5395 = vmatmul.bf16.gmra.mxu0 %v4043
        %v5396 = vpop.f32.mrf.mxu0
        %v5397 = vadd.f32 %v5308, %v5396
        %v5398 = vpop.f32.mrf.mxu0
        %v5399 = vadd.f32 %v5310, %v5398
        %5400 = vmatmul.bf16.gmra.mxu0 %v4044
        %v5401 = vpop.f32.mrf.mxu0
        %v5402 = vadd.f32 %v5313, %v5401
        %v5403 = vpop.f32.mrf.mxu0
        %v5404 = vadd.f32 %v5315, %v5403
        %5405 = vmatmul.bf16.gmra.mxu0 %v4045
        %v5406 = vpop.f32.mrf.mxu0
        %v5407 = vadd.f32 %v5318, %v5406
        %v5408 = vpop.f32.mrf.mxu0
        %v5409 = vadd.f32 %v5320, %v5408
        %5410 = vmatmul.bf16.gmra.mxu0 %v4046
        %v5411 = vpop.f32.mrf.mxu0
        %v5412 = vadd.f32 %v5323, %v5411
        %v5413 = vpop.f32.mrf.mxu0
        %v5414 = vadd.f32 %v5325, %v5413
        %5415 = vmatmul.bf16.gmra.mxu0 %v4047
        %v5416 = vpop.f32.mrf.mxu0
        %v5417 = vadd.f32 %v5328, %v5416
        %v5418 = vpop.f32.mrf.mxu0
        %v5419 = vadd.f32 %v5330, %v5418
        %5420 = vmatmul.bf16.gmra.mxu0 %v4048
        %v5421 = vpop.f32.mrf.mxu0
        %v5422 = vadd.f32 %v5333, %v5421
        %v5423 = vpop.f32.mrf.mxu0
        %v5424 = vadd.f32 %v5335, %v5423
        %5425 = vmatmul.bf16.gmra.mxu0 %v4049
        %v5426 = vpop.f32.mrf.mxu0
        %v5427 = vadd.f32 %v5338, %v5426
        %v5428 = vpop.f32.mrf.mxu0
        %v5429 = vadd.f32 %v5340, %v5428
        %5430 = vmatmul.bf16.gmra.mxu0 %v4050
        %v5431 = vpop.f32.mrf.mxu0
        %v5432 = vadd.f32 %v5343, %v5431
        %v5433 = vpop.f32.mrf.mxu0
        %v5434 = vadd.f32 %v5345, %v5433
        %5435 = vmatmul.bf16.gmra.mxu0 %v4051
        %v5436 = vpop.f32.mrf.mxu0
        %v5437 = vadd.f32 %v5348, %v5436
        %v5438 = vpop.f32.mrf.mxu0
        %v5439 = vadd.f32 %v5350, %v5438
        %5440 = vmatmul.bf16.gmra.mxu0 %v4052
        %v5441 = vpop.f32.mrf.mxu0
        %v5442 = vadd.f32 %v5353, %v5441
        %v5443 = vpop.f32.mrf.mxu0
        %v5444 = vadd.f32 %v5355, %v5443
        %5445 = vdwg.mxu0
        %v5446 = vmax.f32 %v5367, 0.0
        %v5447 = vmax.f32 %v5369, 0.0
        %v5448 = vmax.f32 %v5372, 0.0
        %v5449 = vmax.f32 %v5374, 0.0
        %v5450 = vmax.f32 %v5377, 0.0
        %v5451 = vmax.f32 %v5379, 0.0
        %v5452 = vmax.f32 %v5382, 0.0
        %v5453 = vmax.f32 %v5384, 0.0
        %v5454 = vmax.f32 %v5387, 0.0
        %v5455 = vmax.f32 %v5389, 0.0
        %v5456 = vmax.f32 %v5392, 0.0
        %v5457 = vmax.f32 %v5394, 0.0
        %v5458 = vmax.f32 %v5397, 0.0
        %v5459 = vmax.f32 %v5399, 0.0
        %v5460 = vmax.f32 %v5402, 0.0
        %v5461 = vmax.f32 %v5404, 0.0
        %v5462 = vmax.f32 %v5407, 0.0
        %v5463 = vmax.f32 %v5409, 0.0
        %v5464 = vmax.f32 %v5412, 0.0
        %v5465 = vmax.f32 %v5414, 0.0
        %v5466 = vmax.f32 %v5417, 0.0
        %v5467 = vmax.f32 %v5419, 0.0
        %v5468 = vmax.f32 %v5422, 0.0
        %v5469 = vmax.f32 %v5424, 0.0
        %v5470 = vmax.f32 %v5427, 0.0
        %v5471 = vmax.f32 %v5429, 0.0
        %v5472 = vmax.f32 %v5432, 0.0
        %v5473 = vmax.f32 %v5434, 0.0
        %v5474 = vmax.f32 %v5437, 0.0
        %v5475 = vmax.f32 %v5439, 0.0
        %v5476 = vmax.f32 %v5442, 0.0
        %v5477 = vmax.f32 %v5444, 0.0
        %5478 = vst [vmem:[#allocation3 + $0x20] sm:$0xff] %v5446
        %5479 = vst [vmem:[#allocation3 + $0x28] sm:$0xff] %v5447
        %5480 = vst [vmem:[#allocation3 + $0x30] sm:$0xff] %v5448
        %5481 = vst [vmem:[#allocation3 + $0x38] sm:$0xff] %v5449
        %5482 = vst [vmem:[#allocation3 + $0x40] sm:$0xff] %v5450
        %5483 = vst [vmem:[#allocation3 + $0x48] sm:$0xff] %v5451
        %5484 = vst [vmem:[#allocation3 + $0x50] sm:$0xff] %v5452
        %5485 = vst [vmem:[#allocation3 + $0x58] sm:$0xff] %v5453
        %5486 = vst [vmem:[#allocation3 + $0x60] sm:$0xff] %v5454
        %5487 = vst [vmem:[#allocation3 + $0x68] sm:$0xff] %v5455
        %5488 = vst [vmem:[#allocation3 + $0x70] sm:$0xff] %v5456
        %5489 = vst [vmem:[#allocation3 + $0x78] sm:$0xff] %v5457
        %5490 = vst [vmem:[#allocation3 + $0x80] sm:$0xff] %v5458
        %5491 = vst [vmem:[#allocation3 + $0x88] sm:$0xff] %v5459
        %5492 = vst [vmem:[#allocation3 + $0x90] sm:$0xff] %v5460
        %5493 = vst [vmem:[#allocation3 + $0x98] sm:$0xff] %v5461
        %5494 = vst [vmem:[#allocation3 + $0xa0] sm:$0xff] %v5462
        %5495 = vst [vmem:[#allocation3 + $0xa8] sm:$0xff] %v5463
        %5496 = vst [vmem:[#allocation3 + $0xb0] sm:$0xff] %v5464
        %5497 = vst [vmem:[#allocation3 + $0xb8] sm:$0xff] %v5465
        %5498 = vst [vmem:[#allocation3 + $0xc0] sm:$0xff] %v5466
        %5499 = vst [vmem:[#allocation3 + $0xc8] sm:$0xff] %v5467
        %5500 = vst [vmem:[#allocation3 + $0xd0] sm:$0xff] %v5468
        %5501 = vst [vmem:[#allocation3 + $0xd8] sm:$0xff] %v5469
        %5502 = vst [vmem:[#allocation3 + $0xe0] sm:$0xff] %v5470
        %5503 = vst [vmem:[#allocation3 + $0xe8] sm:$0xff] %v5471
        %5504 = vst [vmem:[#allocation3 + $0xf0] sm:$0xff] %v5472
        %5505 = vst [vmem:[#allocation3 + $0xf8] sm:$0xff] %v5473
        %5506 = vst [vmem:[#allocation3 + $0x100] sm:$0xff] %v5474
        %5507 = vst [vmem:[#allocation3 + $0x108] sm:$0xff] %v5475
        %5508 = vst [vmem:[#allocation3 + $0x110] sm:$0xff] %v5476
        %5509 = vst [vmem:[#allocation3 + $0x118] sm:$0xff] %v5477
        %v5510 = vld [vmem:[#allocation3 + $0xf] sm:$0xff]
        %v5511 = vld [vmem:[#allocation3 + $0x17] sm:$0xff]
        %v5512 = vld [vmem:[#allocation3 + $0x1f] sm:$0xff]
        %v5513 = vld [vmem:[#allocation3 + $0x27] sm:$0xff]
        %v5514 = vld [vmem:[#allocation3 + $0x2f] sm:$0xff]
        %v5515 = vld [vmem:[#allocation3 + $0x37] sm:$0xff]
        %v5516 = vld [vmem:[#allocation3 + $0x3f] sm:$0xff]
        %v5517 = vld [vmem:[#allocation3 + $0x47] sm:$0xff]
        %v5518 = vld [vmem:[#allocation3 + $0x4f] sm:$0xff]
        %v5519 = vld [vmem:[#allocation3 + $0x57] sm:$0xff]
        %v5520 = vld [vmem:[#allocation3 + $0x5f] sm:$0xff]
        %v5521 = vld [vmem:[#allocation3 + $0x67] sm:$0xff]
        %v5522 = vld [vmem:[#allocation3 + $0x6f] sm:$0xff]
        %v5523 = vld [vmem:[#allocation3 + $0x77] sm:$0xff]
        %v5524 = vld [vmem:[#allocation3 + $0x7f] sm:$0xff]
        %v5525 = vld [vmem:[#allocation3 + $0x87] sm:$0xff]
        %v5526 = vld [vmem:[#allocation3 + $0x8f] sm:$0xff]
        %v5527 = vld [vmem:[#allocation3 + $0x97] sm:$0xff]
        %v5528 = vld [vmem:[#allocation3 + $0x9f] sm:$0xff]
        %v5529 = vld [vmem:[#allocation3 + $0xa7] sm:$0xff]
        %v5530 = vld [vmem:[#allocation3 + $0xaf] sm:$0xff]
        %v5531 = vld [vmem:[#allocation3 + $0xb7] sm:$0xff]
        %v5532 = vld [vmem:[#allocation3 + $0xbf] sm:$0xff]
        %v5533 = vld [vmem:[#allocation3 + $0xc7] sm:$0xff]
        %v5534 = vld [vmem:[#allocation3 + $0xcf] sm:$0xff]
        %v5535 = vld [vmem:[#allocation3 + $0xd7] sm:$0xff]
        %v5536 = vld [vmem:[#allocation3 + $0xdf] sm:$0xff]
        %v5537 = vld [vmem:[#allocation3 + $0xe7] sm:$0xff]
        %v5538 = vld [vmem:[#allocation3 + $0xef] sm:$0xff]
        %v5539 = vld [vmem:[#allocation3 + $0xf7] sm:$0xff]
        %v5540 = vld [vmem:[#allocation3 + $0xff] sm:$0xff]
        %v5541 = vld [vmem:[#allocation3 + $0x107] sm:$0xff]
        %v5542 = vmul.f32 %v5510, %v789
        %v5543 = vmul.f32 %v5511, %v790
        %v5544 = vmul.f32 %v5512, %v791
        %v5545 = vmul.f32 %v5513, %v792
        %v5546 = vmul.f32 %v5514, %v793
        %v5547 = vmul.f32 %v5515, %v794
        %v5548 = vmul.f32 %v5516, %v795
        %v5549 = vmul.f32 %v5517, %v796
        %v5550 = vmul.f32 %v5518, %v797
        %v5551 = vmul.f32 %v5519, %v798
        %v5552 = vmul.f32 %v5520, %v799
        %v5553 = vmul.f32 %v5521, %v800
        %v5554 = vmul.f32 %v5522, %v801
        %v5555 = vmul.f32 %v5523, %v802
        %v5556 = vmul.f32 %v5524, %v803
        %v5557 = vmul.f32 %v5525, %v804
        %v5558 = vmul.f32 %v5526, %v805
        %v5559 = vmul.f32 %v5527, %v806
        %v5560 = vmul.f32 %v5528, %v807
        %v5561 = vmul.f32 %v5529, %v808
        %v5562 = vmul.f32 %v5530, %v809
        %v5563 = vmul.f32 %v5531, %v810
        %v5564 = vmul.f32 %v5532, %v811
        %v5565 = vmul.f32 %v5533, %v812
        %v5566 = vmul.f32 %v5534, %v813
        %v5567 = vmul.f32 %v5535, %v814
        %v5568 = vmul.f32 %v5536, %v815
        %v5569 = vmul.f32 %v5537, %v816
        %v5570 = vmul.f32 %v5538, %v817
        %v5571 = vmul.f32 %v5539, %v818
        %v5572 = vmul.f32 %v5540, %v819
        %v5573 = vmul.f32 %v5541, %v820
        %v5574 = vpack.c.bf16 %v5542, %v5542
        %v5575 = vpack.c.bf16 %v5543, %v5543
        %v5576 = vpack.c.bf16 %v5544, %v5544
        %v5577 = vpack.c.bf16 %v5545, %v5545
        %v5578 = vpack.c.bf16 %v5546, %v5546
        %v5579 = vpack.c.bf16 %v5547, %v5547
        %v5580 = vpack.c.bf16 %v5548, %v5548
        %v5581 = vpack.c.bf16 %v5549, %v5549
        %v5582 = vpack.c.bf16 %v5550, %v5550
        %v5583 = vpack.c.bf16 %v5551, %v5551
        %v5584 = vpack.c.bf16 %v5552, %v5552
        %v5585 = vpack.c.bf16 %v5553, %v5553
        %v5586 = vpack.c.bf16 %v5554, %v5554
        %v5587 = vpack.c.bf16 %v5555, %v5555
        %v5588 = vpack.c.bf16 %v5556, %v5556
        %v5589 = vpack.c.bf16 %v5557, %v5557
        %v5590 = vpack.c.bf16 %v5558, %v5558
        %v5591 = vpack.c.bf16 %v5559, %v5559
        %v5592 = vpack.c.bf16 %v5560, %v5560
        %v5593 = vpack.c.bf16 %v5561, %v5561
        %v5594 = vpack.c.bf16 %v5562, %v5562
        %v5595 = vpack.c.bf16 %v5563, %v5563
        %v5596 = vpack.c.bf16 %v5564, %v5564
        %v5597 = vpack.c.bf16 %v5565, %v5565
        %v5598 = vpack.c.bf16 %v5566, %v5566
        %v5599 = vpack.c.bf16 %v5567, %v5567
        %v5600 = vpack.c.bf16 %v5568, %v5568
        %v5601 = vpack.c.bf16 %v5569, %v5569
        %v5602 = vpack.c.bf16 %v5570, %v5570
        %v5603 = vpack.c.bf16 %v5571, %v5571
        %v5604 = vpack.c.bf16 %v5572, %v5572
        %v5605 = vpack.c.bf16 %v5573, %v5573
        %v5606 = vld [vmem:[#allocation3 + $0x10] sm:$0xff]
        %v5607 = vld [vmem:[#allocation3 + $0x18] sm:$0xff]
        %v5608 = vld [vmem:[#allocation3 + $0x20] sm:$0xff]
        %v5609 = vld [vmem:[#allocation3 + $0x28] sm:$0xff]
        %v5610 = vld [vmem:[#allocation3 + $0x30] sm:$0xff]
        %v5611 = vld [vmem:[#allocation3 + $0x38] sm:$0xff]
        %v5612 = vld [vmem:[#allocation3 + $0x40] sm:$0xff]
        %v5613 = vld [vmem:[#allocation3 + $0x48] sm:$0xff]
        %v5614 = vld [vmem:[#allocation3 + $0x50] sm:$0xff]
        %v5615 = vld [vmem:[#allocation3 + $0x58] sm:$0xff]
        %v5616 = vld [vmem:[#allocation3 + $0x60] sm:$0xff]
        %v5617 = vld [vmem:[#allocation3 + $0x68] sm:$0xff]
        %v5618 = vld [vmem:[#allocation3 + $0x70] sm:$0xff]
        %v5619 = vld [vmem:[#allocation3 + $0x78] sm:$0xff]
        %v5620 = vld [vmem:[#allocation3 + $0x80] sm:$0xff]
        %v5621 = vld [vmem:[#allocation3 + $0x88] sm:$0xff]
        %v5622 = vld [vmem:[#allocation3 + $0x90] sm:$0xff]
        %v5623 = vld [vmem:[#allocation3 + $0x98] sm:$0xff]
        %v5624 = vld [vmem:[#allocation3 + $0xa0] sm:$0xff]
        %v5625 = vld [vmem:[#allocation3 + $0xa8] sm:$0xff]
        %v5626 = vld [vmem:[#allocation3 + $0xb0] sm:$0xff]
        %v5627 = vld [vmem:[#allocation3 + $0xb8] sm:$0xff]
        %v5628 = vld [vmem:[#allocation3 + $0xc0] sm:$0xff]
        %v5629 = vld [vmem:[#allocation3 + $0xc8] sm:$0xff]
        %v5630 = vld [vmem:[#allocation3 + $0xd0] sm:$0xff]
        %v5631 = vld [vmem:[#allocation3 + $0xd8] sm:$0xff]
        %v5632 = vld [vmem:[#allocation3 + $0xe0] sm:$0xff]
        %v5633 = vld [vmem:[#allocation3 + $0xe8] sm:$0xff]
        %v5634 = vld [vmem:[#allocation3 + $0xf0] sm:$0xff]
        %v5635 = vld [vmem:[#allocation3 + $0xf8] sm:$0xff]
        %v5636 = vld [vmem:[#allocation3 + $0x100] sm:$0xff]
        %v5637 = vld [vmem:[#allocation3 + $0x108] sm:$0xff]
        %v5638 = vpack.c.bf16 %v5606, %v5606
        %v5639 = vpack.c.bf16 %v5607, %v5607
        %v5640 = vpack.c.bf16 %v5608, %v5608
        %v5641 = vpack.c.bf16 %v5609, %v5609
        %v5642 = vpack.c.bf16 %v5610, %v5610
        %v5643 = vpack.c.bf16 %v5611, %v5611
        %v5644 = vpack.c.bf16 %v5612, %v5612
        %v5645 = vpack.c.bf16 %v5613, %v5613
        %v5646 = vpack.c.bf16 %v5614, %v5614
        %v5647 = vpack.c.bf16 %v5615, %v5615
        %v5648 = vpack.c.bf16 %v5616, %v5616
        %v5649 = vpack.c.bf16 %v5617, %v5617
        %v5650 = vpack.c.bf16 %v5618, %v5618
        %v5651 = vpack.c.bf16 %v5619, %v5619
        %v5652 = vpack.c.bf16 %v5620, %v5620
        %v5653 = vpack.c.bf16 %v5621, %v5621
        %v5654 = vpack.c.bf16 %v5622, %v5622
        %v5655 = vpack.c.bf16 %v5623, %v5623
        %v5656 = vpack.c.bf16 %v5624, %v5624
        %v5657 = vpack.c.bf16 %v5625, %v5625
        %v5658 = vpack.c.bf16 %v5626, %v5626
        %v5659 = vpack.c.bf16 %v5627, %v5627
        %v5660 = vpack.c.bf16 %v5628, %v5628
        %v5661 = vpack.c.bf16 %v5629, %v5629
        %v5662 = vpack.c.bf16 %v5630, %v5630
        %v5663 = vpack.c.bf16 %v5631, %v5631
        %v5664 = vpack.c.bf16 %v5632, %v5632
        %v5665 = vpack.c.bf16 %v5633, %v5633
        %v5666 = vpack.c.bf16 %v5634, %v5634
        %v5667 = vpack.c.bf16 %v5635, %v5635
        %v5668 = vpack.c.bf16 %v5636, %v5636
        %v5669 = vpack.c.bf16 %v5637, %v5637
        %v5670 = vld [vmem:[#allocation3 + $0x11] sm:$0xff]
        %v5671 = vld [vmem:[#allocation3 + $0x19] sm:$0xff]
        %v5672 = vld [vmem:[#allocation3 + $0x21] sm:$0xff]
        %v5673 = vld [vmem:[#allocation3 + $0x29] sm:$0xff]
        %v5674 = vld [vmem:[#allocation3 + $0x31] sm:$0xff]
        %v5675 = vld [vmem:[#allocation3 + $0x39] sm:$0xff]
        %v5676 = vld [vmem:[#allocation3 + $0x41] sm:$0xff]
        %v5677 = vld [vmem:[#allocation3 + $0x49] sm:$0xff]
        %v5678 = vld [vmem:[#allocation3 + $0x51] sm:$0xff]
        %v5679 = vld [vmem:[#allocation3 + $0x59] sm:$0xff]
        %v5680 = vld [vmem:[#allocation3 + $0x61] sm:$0xff]
        %v5681 = vld [vmem:[#allocation3 + $0x69] sm:$0xff]
        %v5682 = vld [vmem:[#allocation3 + $0x71] sm:$0xff]
        %v5683 = vld [vmem:[#allocation3 + $0x79] sm:$0xff]
        %v5684 = vld [vmem:[#allocation3 + $0x81] sm:$0xff]
        %v5685 = vld [vmem:[#allocation3 + $0x89] sm:$0xff]
        %v5686 = vld [vmem:[#allocation3 + $0x91] sm:$0xff]
        %v5687 = vld [vmem:[#allocation3 + $0x99] sm:$0xff]
        %v5688 = vld [vmem:[#allocation3 + $0xa1] sm:$0xff]
        %v5689 = vld [vmem:[#allocation3 + $0xa9] sm:$0xff]
        %v5690 = vld [vmem:[#allocation3 + $0xb1] sm:$0xff]
        %v5691 = vld [vmem:[#allocation3 + $0xb9] sm:$0xff]
        %v5692 = vld [vmem:[#allocation3 + $0xc1] sm:$0xff]
        %v5693 = vld [vmem:[#allocation3 + $0xc9] sm:$0xff]
        %v5694 = vld [vmem:[#allocation3 + $0xd1] sm:$0xff]
        %v5695 = vld [vmem:[#allocation3 + $0xd9] sm:$0xff]
        %v5696 = vld [vmem:[#allocation3 + $0xe1] sm:$0xff]
        %v5697 = vld [vmem:[#allocation3 + $0xe9] sm:$0xff]
        %v5698 = vld [vmem:[#allocation3 + $0xf1] sm:$0xff]
        %v5699 = vld [vmem:[#allocation3 + $0xf9] sm:$0xff]
        %v5700 = vld [vmem:[#allocation3 + $0x101] sm:$0xff]
        %v5701 = vld [vmem:[#allocation3 + $0x109] sm:$0xff]
        %v5702 = vmul.f32 %v5670, %v885
        %v5703 = vmul.f32 %v5671, %v886
        %v5704 = vmul.f32 %v5672, %v887
        %v5705 = vmul.f32 %v5673, %v888
        %v5706 = vmul.f32 %v5674, %v889
        %v5707 = vmul.f32 %v5675, %v890
        %v5708 = vmul.f32 %v5676, %v891
        %v5709 = vmul.f32 %v5677, %v892
        %v5710 = vmul.f32 %v5678, %v893
        %v5711 = vmul.f32 %v5679, %v894
        %v5712 = vmul.f32 %v5680, %v895
        %v5713 = vmul.f32 %v5681, %v896
        %v5714 = vmul.f32 %v5682, %v897
        %v5715 = vmul.f32 %v5683, %v898
        %v5716 = vmul.f32 %v5684, %v899
        %v5717 = vmul.f32 %v5685, %v900
        %v5718 = vmul.f32 %v5686, %v901
        %v5719 = vmul.f32 %v5687, %v902
        %v5720 = vmul.f32 %v5688, %v903
        %v5721 = vmul.f32 %v5689, %v904
        %v5722 = vmul.f32 %v5690, %v905
        %v5723 = vmul.f32 %v5691, %v906
        %v5724 = vmul.f32 %v5692, %v907
        %v5725 = vmul.f32 %v5693, %v908
        %v5726 = vmul.f32 %v5694, %v909
        %v5727 = vmul.f32 %v5695, %v910
        %v5728 = vmul.f32 %v5696, %v911
        %v5729 = vmul.f32 %v5697, %v912
        %v5730 = vmul.f32 %v5698, %v913
        %v5731 = vmul.f32 %v5699, %v914
        %v5732 = vmul.f32 %v5700, %v915
        %v5733 = vmul.f32 %v5701, %v916
        %v5734 = vpack.c.bf16 %v5702, %v5702
        %v5735 = vpack.c.bf16 %v5703, %v5703
        %v5736 = vpack.c.bf16 %v5704, %v5704
        %v5737 = vpack.c.bf16 %v5705, %v5705
        %v5738 = vpack.c.bf16 %v5706, %v5706
        %v5739 = vpack.c.bf16 %v5707, %v5707
        %v5740 = vpack.c.bf16 %v5708, %v5708
        %v5741 = vpack.c.bf16 %v5709, %v5709
        %v5742 = vpack.c.bf16 %v5710, %v5710
        %v5743 = vpack.c.bf16 %v5711, %v5711
        %v5744 = vpack.c.bf16 %v5712, %v5712
        %v5745 = vpack.c.bf16 %v5713, %v5713
        %v5746 = vpack.c.bf16 %v5714, %v5714
        %v5747 = vpack.c.bf16 %v5715, %v5715
        %v5748 = vpack.c.bf16 %v5716, %v5716
        %v5749 = vpack.c.bf16 %v5717, %v5717
        %v5750 = vpack.c.bf16 %v5718, %v5718
        %v5751 = vpack.c.bf16 %v5719, %v5719
        %v5752 = vpack.c.bf16 %v5720, %v5720
        %v5753 = vpack.c.bf16 %v5721, %v5721
        %v5754 = vpack.c.bf16 %v5722, %v5722
        %v5755 = vpack.c.bf16 %v5723, %v5723
        %v5756 = vpack.c.bf16 %v5724, %v5724
        %v5757 = vpack.c.bf16 %v5725, %v5725
        %v5758 = vpack.c.bf16 %v5726, %v5726
        %v5759 = vpack.c.bf16 %v5727, %v5727
        %v5760 = vpack.c.bf16 %v5728, %v5728
        %v5761 = vpack.c.bf16 %v5729, %v5729
        %v5762 = vpack.c.bf16 %v5730, %v5730
        %v5763 = vpack.c.bf16 %v5731, %v5731
        %v5764 = vpack.c.bf16 %v5732, %v5732
        %v5765 = vpack.c.bf16 %v5733, %v5733
        %v5766 = vld [vmem:[#allocation3 + $0x10f] sm:$0xff]
        %v5767 = vld [vmem:[#allocation3 + $0x117] sm:$0xff]
        %v5768 = vmul.f32 %v5512, %v789
        %v5769 = vmul.f32 %v5513, %v790
        %v5770 = vmul.f32 %v5514, %v791
        %v5771 = vmul.f32 %v5515, %v792
        %v5772 = vmul.f32 %v5516, %v793
        %v5773 = vmul.f32 %v5517, %v794
        %v5774 = vmul.f32 %v5518, %v795
        %v5775 = vmul.f32 %v5519, %v796
        %v5776 = vmul.f32 %v5520, %v797
        %v5777 = vmul.f32 %v5521, %v798
        %v5778 = vmul.f32 %v5522, %v799
        %v5779 = vmul.f32 %v5523, %v800
        %v5780 = vmul.f32 %v5524, %v801
        %v5781 = vmul.f32 %v5525, %v802
        %v5782 = vmul.f32 %v5526, %v803
        %v5783 = vmul.f32 %v5527, %v804
        %v5784 = vmul.f32 %v5528, %v805
        %v5785 = vmul.f32 %v5529, %v806
        %v5786 = vmul.f32 %v5530, %v807
        %v5787 = vmul.f32 %v5531, %v808
        %v5788 = vmul.f32 %v5532, %v809
        %v5789 = vmul.f32 %v5533, %v810
        %v5790 = vmul.f32 %v5534, %v811
        %v5791 = vmul.f32 %v5535, %v812
        %v5792 = vmul.f32 %v5536, %v813
        %v5793 = vmul.f32 %v5537, %v814
        %v5794 = vmul.f32 %v5538, %v815
        %v5795 = vmul.f32 %v5539, %v816
        %v5796 = vmul.f32 %v5540, %v817
        %v5797 = vmul.f32 %v5541, %v818
        %v5798 = vmul.f32 %v5766, %v819
        %v5799 = vmul.f32 %v5767, %v820
        %v5800 = vpack.c.bf16 %v5768, %v5768
        %v5801 = vpack.c.bf16 %v5769, %v5769
        %v5802 = vpack.c.bf16 %v5770, %v5770
        %v5803 = vpack.c.bf16 %v5771, %v5771
        %v5804 = vpack.c.bf16 %v5772, %v5772
        %v5805 = vpack.c.bf16 %v5773, %v5773
        %v5806 = vpack.c.bf16 %v5774, %v5774
        %v5807 = vpack.c.bf16 %v5775, %v5775
        %v5808 = vpack.c.bf16 %v5776, %v5776
        %v5809 = vpack.c.bf16 %v5777, %v5777
        %v5810 = vpack.c.bf16 %v5778, %v5778
        %v5811 = vpack.c.bf16 %v5779, %v5779
        %v5812 = vpack.c.bf16 %v5780, %v5780
        %v5813 = vpack.c.bf16 %v5781, %v5781
        %v5814 = vpack.c.bf16 %v5782, %v5782
        %v5815 = vpack.c.bf16 %v5783, %v5783
        %v5816 = vpack.c.bf16 %v5784, %v5784
        %v5817 = vpack.c.bf16 %v5785, %v5785
        %v5818 = vpack.c.bf16 %v5786, %v5786
        %v5819 = vpack.c.bf16 %v5787, %v5787
        %v5820 = vpack.c.bf16 %v5788, %v5788
        %v5821 = vpack.c.bf16 %v5789, %v5789
        %v5822 = vpack.c.bf16 %v5790, %v5790
        %v5823 = vpack.c.bf16 %v5791, %v5791
        %v5824 = vpack.c.bf16 %v5792, %v5792
        %v5825 = vpack.c.bf16 %v5793, %v5793
        %v5826 = vpack.c.bf16 %v5794, %v5794
        %v5827 = vpack.c.bf16 %v5795, %v5795
        %v5828 = vpack.c.bf16 %v5796, %v5796
        %v5829 = vpack.c.bf16 %v5797, %v5797
        %v5830 = vpack.c.bf16 %v5798, %v5798
        %v5831 = vpack.c.bf16 %v5799, %v5799
        %v5832 = vld [vmem:[#allocation3 + $0x110] sm:$0xff]
        %v5833 = vld [vmem:[#allocation3 + $0x118] sm:$0xff]
        %v5834 = vpack.c.bf16 %v5832, %v5832
        %v5835 = vpack.c.bf16 %v5833, %v5833
        %v5836 = vld [vmem:[#allocation3 + $0x111] sm:$0xff]
        %v5837 = vld [vmem:[#allocation3 + $0x119] sm:$0xff]
        %v5838 = vmul.f32 %v5672, %v885
        %v5839 = vmul.f32 %v5673, %v886
        %v5840 = vmul.f32 %v5674, %v887
        %v5841 = vmul.f32 %v5675, %v888
        %v5842 = vmul.f32 %v5676, %v889
        %v5843 = vmul.f32 %v5677, %v890
        %v5844 = vmul.f32 %v5678, %v891
        %v5845 = vmul.f32 %v5679, %v892
        %v5846 = vmul.f32 %v5680, %v893
        %v5847 = vmul.f32 %v5681, %v894
        %v5848 = vmul.f32 %v5682, %v895
        %v5849 = vmul.f32 %v5683, %v896
        %v5850 = vmul.f32 %v5684, %v897
        %v5851 = vmul.f32 %v5685, %v898
        %v5852 = vmul.f32 %v5686, %v899
        %v5853 = vmul.f32 %v5687, %v900
        %v5854 = vmul.f32 %v5688, %v901
        %v5855 = vmul.f32 %v5689, %v902
        %v5856 = vmul.f32 %v5690, %v903
        %v5857 = vmul.f32 %v5691, %v904
        %v5858 = vmul.f32 %v5692, %v905
        %v5859 = vmul.f32 %v5693, %v906
        %v5860 = vmul.f32 %v5694, %v907
        %v5861 = vmul.f32 %v5695, %v908
        %v5862 = vmul.f32 %v5696, %v909
        %v5863 = vmul.f32 %v5697, %v910
        %v5864 = vmul.f32 %v5698, %v911
        %v5865 = vmul.f32 %v5699, %v912
        %v5866 = vmul.f32 %v5700, %v913
        %v5867 = vmul.f32 %v5701, %v914
        %v5868 = vmul.f32 %v5836, %v915
        %v5869 = vmul.f32 %v5837, %v916
        %v5870 = vpack.c.bf16 %v5838, %v5838
        %v5871 = vpack.c.bf16 %v5839, %v5839
        %v5872 = vpack.c.bf16 %v5840, %v5840
        %v5873 = vpack.c.bf16 %v5841, %v5841
        %v5874 = vpack.c.bf16 %v5842, %v5842
        %v5875 = vpack.c.bf16 %v5843, %v5843
        %v5876 = vpack.c.bf16 %v5844, %v5844
        %v5877 = vpack.c.bf16 %v5845, %v5845
        %v5878 = vpack.c.bf16 %v5846, %v5846
        %v5879 = vpack.c.bf16 %v5847, %v5847
        %v5880 = vpack.c.bf16 %v5848, %v5848
        %v5881 = vpack.c.bf16 %v5849, %v5849
        %v5882 = vpack.c.bf16 %v5850, %v5850
        %v5883 = vpack.c.bf16 %v5851, %v5851
        %v5884 = vpack.c.bf16 %v5852, %v5852
        %v5885 = vpack.c.bf16 %v5853, %v5853
        %v5886 = vpack.c.bf16 %v5854, %v5854
        %v5887 = vpack.c.bf16 %v5855, %v5855
        %v5888 = vpack.c.bf16 %v5856, %v5856
        %v5889 = vpack.c.bf16 %v5857, %v5857
        %v5890 = vpack.c.bf16 %v5858, %v5858
        %v5891 = vpack.c.bf16 %v5859, %v5859
        %v5892 = vpack.c.bf16 %v5860, %v5860
        %v5893 = vpack.c.bf16 %v5861, %v5861
        %v5894 = vpack.c.bf16 %v5862, %v5862
        %v5895 = vpack.c.bf16 %v5863, %v5863
        %v5896 = vpack.c.bf16 %v5864, %v5864
        %v5897 = vpack.c.bf16 %v5865, %v5865
        %v5898 = vpack.c.bf16 %v5866, %v5866
        %v5899 = vpack.c.bf16 %v5867, %v5867
        %v5900 = vpack.c.bf16 %v5868, %v5868
        %v5901 = vpack.c.bf16 %v5869, %v5869
        %v5902 = vld [vmem:[#allocation3 + $0x11f] sm:$0xff]
        %v5903 = vld [vmem:[#allocation3 + $0x127] sm:$0xff]
        %v5904 = vmul.f32 %v5514, %v789
        %v5905 = vmul.f32 %v5515, %v790
        %v5906 = vmul.f32 %v5516, %v791
        %v5907 = vmul.f32 %v5517, %v792
        %v5908 = vmul.f32 %v5518, %v793
        %v5909 = vmul.f32 %v5519, %v794
        %v5910 = vmul.f32 %v5520, %v795
        %v5911 = vmul.f32 %v5521, %v796
        %v5912 = vmul.f32 %v5522, %v797
        %v5913 = vmul.f32 %v5523, %v798
        %v5914 = vmul.f32 %v5524, %v799
        %v5915 = vmul.f32 %v5525, %v800
        %v5916 = vmul.f32 %v5526, %v801
        %v5917 = vmul.f32 %v5527, %v802
        %v5918 = vmul.f32 %v5528, %v803
        %v5919 = vmul.f32 %v5529, %v804
        %v5920 = vmul.f32 %v5530, %v805
        %v5921 = vmul.f32 %v5531, %v806
        %v5922 = vmul.f32 %v5532, %v807
        %v5923 = vmul.f32 %v5533, %v808
        %v5924 = vmul.f32 %v5534, %v809
        %v5925 = vmul.f32 %v5535, %v810
        %v5926 = vmul.f32 %v5536, %v811
        %v5927 = vmul.f32 %v5537, %v812
        %v5928 = vmul.f32 %v5538, %v813
        %v5929 = vmul.f32 %v5539, %v814
        %v5930 = vmul.f32 %v5540, %v815
        %v5931 = vmul.f32 %v5541, %v816
        %v5932 = vmul.f32 %v5766, %v817
        %v5933 = vmul.f32 %v5767, %v818
        %v5934 = vmul.f32 %v5902, %v819
        %v5935 = vmul.f32 %v5903, %v820
        %v5936 = vpack.c.bf16 %v5904, %v5904
        %v5937 = vpack.c.bf16 %v5905, %v5905
        %v5938 = vpack.c.bf16 %v5906, %v5906
        %v5939 = vpack.c.bf16 %v5907, %v5907
        %v5940 = vpack.c.bf16 %v5908, %v5908
        %v5941 = vpack.c.bf16 %v5909, %v5909
        %v5942 = vpack.c.bf16 %v5910, %v5910
        %v5943 = vpack.c.bf16 %v5911, %v5911
        %v5944 = vpack.c.bf16 %v5912, %v5912
        %v5945 = vpack.c.bf16 %v5913, %v5913
        %v5946 = vpack.c.bf16 %v5914, %v5914
        %v5947 = vpack.c.bf16 %v5915, %v5915
        %v5948 = vpack.c.bf16 %v5916, %v5916
        %v5949 = vpack.c.bf16 %v5917, %v5917
        %v5950 = vpack.c.bf16 %v5918, %v5918
        %v5951 = vpack.c.bf16 %v5919, %v5919
        %v5952 = vpack.c.bf16 %v5920, %v5920
        %v5953 = vpack.c.bf16 %v5921, %v5921
        %v5954 = vpack.c.bf16 %v5922, %v5922
        %v5955 = vpack.c.bf16 %v5923, %v5923
        %v5956 = vpack.c.bf16 %v5924, %v5924
        %v5957 = vpack.c.bf16 %v5925, %v5925
        %v5958 = vpack.c.bf16 %v5926, %v5926
        %v5959 = vpack.c.bf16 %v5927, %v5927
        %v5960 = vpack.c.bf16 %v5928, %v5928
        %v5961 = vpack.c.bf16 %v5929, %v5929
        %v5962 = vpack.c.bf16 %v5930, %v5930
        %v5963 = vpack.c.bf16 %v5931, %v5931
        %v5964 = vpack.c.bf16 %v5932, %v5932
        %v5965 = vpack.c.bf16 %v5933, %v5933
        %v5966 = vpack.c.bf16 %v5934, %v5934
        %v5967 = vpack.c.bf16 %v5935, %v5935
        %v5968 = vld [vmem:[#allocation3 + $0x120] sm:$0xff]
        %v5969 = vld [vmem:[#allocation3 + $0x128] sm:$0xff]
        %v5970 = vpack.c.bf16 %v5968, %v5968
        %v5971 = vpack.c.bf16 %v5969, %v5969
        %v5972 = vld [vmem:[#allocation3 + $0x121] sm:$0xff]
        %v5973 = vld [vmem:[#allocation3 + $0x129] sm:$0xff]
        %v5974 = vmul.f32 %v5674, %v885
        %v5975 = vmul.f32 %v5675, %v886
        %v5976 = vmul.f32 %v5676, %v887
        %v5977 = vmul.f32 %v5677, %v888
        %v5978 = vmul.f32 %v5678, %v889
        %v5979 = vmul.f32 %v5679, %v890
        %v5980 = vmul.f32 %v5680, %v891
        %v5981 = vmul.f32 %v5681, %v892
        %v5982 = vmul.f32 %v5682, %v893
        %v5983 = vmul.f32 %v5683, %v894
        %v5984 = vmul.f32 %v5684, %v895
        %v5985 = vmul.f32 %v5685, %v896
        %v5986 = vmul.f32 %v5686, %v897
        %v5987 = vmul.f32 %v5687, %v898
        %v5988 = vmul.f32 %v5688, %v899
        %v5989 = vmul.f32 %v5689, %v900
        %v5990 = vmul.f32 %v5690, %v901
        %v5991 = vmul.f32 %v5691, %v902
        %v5992 = vmul.f32 %v5692, %v903
        %v5993 = vmul.f32 %v5693, %v904
        %v5994 = vmul.f32 %v5694, %v905
        %v5995 = vmul.f32 %v5695, %v906
        %v5996 = vmul.f32 %v5696, %v907
        %v5997 = vmul.f32 %v5697, %v908
        %v5998 = vmul.f32 %v5698, %v909
        %v5999 = vmul.f32 %v5699, %v910
        %v6000 = vmul.f32 %v5700, %v911
        %v6001 = vmul.f32 %v5701, %v912
        %v6002 = vmul.f32 %v5836, %v913
        %v6003 = vmul.f32 %v5837, %v914
        %v6004 = vmul.f32 %v5972, %v915
        %v6005 = vmul.f32 %v5973, %v916
        %v6006 = vpack.c.bf16 %v5974, %v5974
        %v6007 = vpack.c.bf16 %v5975, %v5975
        %v6008 = vpack.c.bf16 %v5976, %v5976
        %v6009 = vpack.c.bf16 %v5977, %v5977
        %v6010 = vpack.c.bf16 %v5978, %v5978
        %v6011 = vpack.c.bf16 %v5979, %v5979
        %v6012 = vpack.c.bf16 %v5980, %v5980
        %v6013 = vpack.c.bf16 %v5981, %v5981
        %v6014 = vpack.c.bf16 %v5982, %v5982
        %v6015 = vpack.c.bf16 %v5983, %v5983
        %v6016 = vpack.c.bf16 %v5984, %v5984
        %v6017 = vpack.c.bf16 %v5985, %v5985
        %v6018 = vpack.c.bf16 %v5986, %v5986
        %v6019 = vpack.c.bf16 %v5987, %v5987
        %v6020 = vpack.c.bf16 %v5988, %v5988
        %v6021 = vpack.c.bf16 %v5989, %v5989
        %v6022 = vpack.c.bf16 %v5990, %v5990
        %v6023 = vpack.c.bf16 %v5991, %v5991
        %v6024 = vpack.c.bf16 %v5992, %v5992
        %v6025 = vpack.c.bf16 %v5993, %v5993
        %v6026 = vpack.c.bf16 %v5994, %v5994
        %v6027 = vpack.c.bf16 %v5995, %v5995
        %v6028 = vpack.c.bf16 %v5996, %v5996
        %v6029 = vpack.c.bf16 %v5997, %v5997
        %v6030 = vpack.c.bf16 %v5998, %v5998
        %v6031 = vpack.c.bf16 %v5999, %v5999
        %v6032 = vpack.c.bf16 %v6000, %v6000
        %v6033 = vpack.c.bf16 %v6001, %v6001
        %v6034 = vpack.c.bf16 %v6002, %v6002
        %v6035 = vpack.c.bf16 %v6003, %v6003
        %v6036 = vpack.c.bf16 %v6004, %v6004
        %v6037 = vpack.c.bf16 %v6005, %v6005
        %v6070 = vunpack.c.l.b16 %v5574
        %v6071 = vunpack.c.l.b16 %v5575
        %v6072 = vunpack.c.l.b16 %v5576
        %v6073 = vunpack.c.l.b16 %v5577
        %v6074 = vunpack.c.l.b16 %v5578
        %v6075 = vunpack.c.l.b16 %v5579
        %v6076 = vunpack.c.l.b16 %v5580
        %v6077 = vunpack.c.l.b16 %v5581
        %v6078 = vunpack.c.l.b16 %v5582
        %v6079 = vunpack.c.l.b16 %v5583
        %v6080 = vunpack.c.l.b16 %v5584
        %v6081 = vunpack.c.l.b16 %v5585
        %v6082 = vunpack.c.l.b16 %v5586
        %v6083 = vunpack.c.l.b16 %v5587
        %v6084 = vunpack.c.l.b16 %v5588
        %v6085 = vunpack.c.l.b16 %v5589
        %v6086 = vunpack.c.l.b16 %v5590
        %v6087 = vunpack.c.l.b16 %v5591
        %v6088 = vunpack.c.l.b16 %v5592
        %v6089 = vunpack.c.l.b16 %v5593
        %v6090 = vunpack.c.l.b16 %v5594
        %v6091 = vunpack.c.l.b16 %v5595
        %v6092 = vunpack.c.l.b16 %v5596
        %v6093 = vunpack.c.l.b16 %v5597
        %v6094 = vunpack.c.l.b16 %v5598
        %v6095 = vunpack.c.l.b16 %v5599
        %v6096 = vunpack.c.l.b16 %v5600
        %v6097 = vunpack.c.l.b16 %v5601
        %v6098 = vunpack.c.l.b16 %v5602
        %v6099 = vunpack.c.l.b16 %v5603
        %v6100 = vunpack.c.l.b16 %v5604
        %v6101 = vunpack.c.l.b16 %v5605
        %v6102 = vpack.c.b16 %v6071, %v6070
        %v6103 = vpack.c.b16 %v6073, %v6072
        %v6104 = vpack.c.b16 %v6075, %v6074
        %v6105 = vpack.c.b16 %v6077, %v6076
        %v6106 = vpack.c.b16 %v6079, %v6078
        %v6107 = vpack.c.b16 %v6081, %v6080
        %v6108 = vpack.c.b16 %v6083, %v6082
        %v6109 = vpack.c.b16 %v6085, %v6084
        %v6110 = vpack.c.b16 %v6087, %v6086
        %v6111 = vpack.c.b16 %v6089, %v6088
        %v6112 = vpack.c.b16 %v6091, %v6090
        %v6113 = vpack.c.b16 %v6093, %v6092
        %v6114 = vpack.c.b16 %v6095, %v6094
        %v6115 = vpack.c.b16 %v6097, %v6096
        %v6116 = vpack.c.b16 %v6099, %v6098
        %v6117 = vpack.c.b16 %v6101, %v6100
        %v6166 = vunpack.c.l.b16 %v5638
        %v6167 = vunpack.c.l.b16 %v5639
        %v6168 = vunpack.c.l.b16 %v5640
        %v6169 = vunpack.c.l.b16 %v5641
        %v6170 = vunpack.c.l.b16 %v5642
        %v6171 = vunpack.c.l.b16 %v5643
        %v6172 = vunpack.c.l.b16 %v5644
        %v6173 = vunpack.c.l.b16 %v5645
        %v6174 = vunpack.c.l.b16 %v5646
        %v6175 = vunpack.c.l.b16 %v5647
        %v6176 = vunpack.c.l.b16 %v5648
        %v6177 = vunpack.c.l.b16 %v5649
        %v6178 = vunpack.c.l.b16 %v5650
        %v6179 = vunpack.c.l.b16 %v5651
        %v6180 = vunpack.c.l.b16 %v5652
        %v6181 = vunpack.c.l.b16 %v5653
        %v6182 = vunpack.c.l.b16 %v5654
        %v6183 = vunpack.c.l.b16 %v5655
        %v6184 = vunpack.c.l.b16 %v5656
        %v6185 = vunpack.c.l.b16 %v5657
        %v6186 = vunpack.c.l.b16 %v5658
        %v6187 = vunpack.c.l.b16 %v5659
        %v6188 = vunpack.c.l.b16 %v5660
        %v6189 = vunpack.c.l.b16 %v5661
        %v6190 = vunpack.c.l.b16 %v5662
        %v6191 = vunpack.c.l.b16 %v5663
        %v6192 = vunpack.c.l.b16 %v5664
        %v6193 = vunpack.c.l.b16 %v5665
        %v6194 = vunpack.c.l.b16 %v5666
        %v6195 = vunpack.c.l.b16 %v5667
        %v6196 = vunpack.c.l.b16 %v5668
        %v6197 = vunpack.c.l.b16 %v5669
        %v6198 = vpack.c.b16 %v6167, %v6166
        %v6199 = vpack.c.b16 %v6169, %v6168
        %v6200 = vpack.c.b16 %v6171, %v6170
        %v6201 = vpack.c.b16 %v6173, %v6172
        %v6202 = vpack.c.b16 %v6175, %v6174
        %v6203 = vpack.c.b16 %v6177, %v6176
        %v6204 = vpack.c.b16 %v6179, %v6178
        %v6205 = vpack.c.b16 %v6181, %v6180
        %v6206 = vpack.c.b16 %v6183, %v6182
        %v6207 = vpack.c.b16 %v6185, %v6184
        %v6208 = vpack.c.b16 %v6187, %v6186
        %v6209 = vpack.c.b16 %v6189, %v6188
        %v6210 = vpack.c.b16 %v6191, %v6190
        %v6211 = vpack.c.b16 %v6193, %v6192
        %v6212 = vpack.c.b16 %v6195, %v6194
        %v6213 = vpack.c.b16 %v6197, %v6196
        %v6262 = vunpack.c.l.b16 %v5734
        %v6263 = vunpack.c.l.b16 %v5735
        %v6264 = vunpack.c.l.b16 %v5736
        %v6265 = vunpack.c.l.b16 %v5737
        %v6266 = vunpack.c.l.b16 %v5738
        %v6267 = vunpack.c.l.b16 %v5739
        %v6268 = vunpack.c.l.b16 %v5740
        %v6269 = vunpack.c.l.b16 %v5741
        %v6270 = vunpack.c.l.b16 %v5742
        %v6271 = vunpack.c.l.b16 %v5743
        %v6272 = vunpack.c.l.b16 %v5744
        %v6273 = vunpack.c.l.b16 %v5745
        %v6274 = vunpack.c.l.b16 %v5746
        %v6275 = vunpack.c.l.b16 %v5747
        %v6276 = vunpack.c.l.b16 %v5748
        %v6277 = vunpack.c.l.b16 %v5749
        %v6278 = vunpack.c.l.b16 %v5750
        %v6279 = vunpack.c.l.b16 %v5751
        %v6280 = vunpack.c.l.b16 %v5752
        %v6281 = vunpack.c.l.b16 %v5753
        %v6282 = vunpack.c.l.b16 %v5754
        %v6283 = vunpack.c.l.b16 %v5755
        %v6284 = vunpack.c.l.b16 %v5756
        %v6285 = vunpack.c.l.b16 %v5757
        %v6286 = vunpack.c.l.b16 %v5758
        %v6287 = vunpack.c.l.b16 %v5759
        %v6288 = vunpack.c.l.b16 %v5760
        %v6289 = vunpack.c.l.b16 %v5761
        %v6290 = vunpack.c.l.b16 %v5762
        %v6291 = vunpack.c.l.b16 %v5763
        %v6292 = vunpack.c.l.b16 %v5764
        %v6293 = vunpack.c.l.b16 %v5765
        %v6294 = vpack.c.b16 %v6263, %v6262
        %v6295 = vpack.c.b16 %v6265, %v6264
        %v6296 = vpack.c.b16 %v6267, %v6266
        %v6297 = vpack.c.b16 %v6269, %v6268
        %v6298 = vpack.c.b16 %v6271, %v6270
        %v6299 = vpack.c.b16 %v6273, %v6272
        %v6300 = vpack.c.b16 %v6275, %v6274
        %v6301 = vpack.c.b16 %v6277, %v6276
        %v6302 = vpack.c.b16 %v6279, %v6278
        %v6303 = vpack.c.b16 %v6281, %v6280
        %v6304 = vpack.c.b16 %v6283, %v6282
        %v6305 = vpack.c.b16 %v6285, %v6284
        %v6306 = vpack.c.b16 %v6287, %v6286
        %v6307 = vpack.c.b16 %v6289, %v6288
        %v6308 = vpack.c.b16 %v6291, %v6290
        %v6309 = vpack.c.b16 %v6293, %v6292
        %v6358 = vunpack.c.l.b16 %v5800
        %v6359 = vunpack.c.l.b16 %v5801
        %v6360 = vunpack.c.l.b16 %v5802
        %v6361 = vunpack.c.l.b16 %v5803
        %v6362 = vunpack.c.l.b16 %v5804
        %v6363 = vunpack.c.l.b16 %v5805
        %v6364 = vunpack.c.l.b16 %v5806
        %v6365 = vunpack.c.l.b16 %v5807
        %v6366 = vunpack.c.l.b16 %v5808
        %v6367 = vunpack.c.l.b16 %v5809
        %v6368 = vunpack.c.l.b16 %v5810
        %v6369 = vunpack.c.l.b16 %v5811
        %v6370 = vunpack.c.l.b16 %v5812
        %v6371 = vunpack.c.l.b16 %v5813
        %v6372 = vunpack.c.l.b16 %v5814
        %v6373 = vunpack.c.l.b16 %v5815
        %v6374 = vunpack.c.l.b16 %v5816
        %v6375 = vunpack.c.l.b16 %v5817
        %v6376 = vunpack.c.l.b16 %v5818
        %v6377 = vunpack.c.l.b16 %v5819
        %v6378 = vunpack.c.l.b16 %v5820
        %v6379 = vunpack.c.l.b16 %v5821
        %v6380 = vunpack.c.l.b16 %v5822
        %v6381 = vunpack.c.l.b16 %v5823
        %v6382 = vunpack.c.l.b16 %v5824
        %v6383 = vunpack.c.l.b16 %v5825
        %v6384 = vunpack.c.l.b16 %v5826
        %v6385 = vunpack.c.l.b16 %v5827
        %v6386 = vunpack.c.l.b16 %v5828
        %v6387 = vunpack.c.l.b16 %v5829
        %v6388 = vunpack.c.l.b16 %v5830
        %v6389 = vunpack.c.l.b16 %v5831
        %v6390 = vpack.c.b16 %v6359, %v6358
        %v6391 = vpack.c.b16 %v6361, %v6360
        %v6392 = vpack.c.b16 %v6363, %v6362
        %v6393 = vpack.c.b16 %v6365, %v6364
        %v6394 = vpack.c.b16 %v6367, %v6366
        %v6395 = vpack.c.b16 %v6369, %v6368
        %v6396 = vpack.c.b16 %v6371, %v6370
        %v6397 = vpack.c.b16 %v6373, %v6372
        %v6398 = vpack.c.b16 %v6375, %v6374
        %v6399 = vpack.c.b16 %v6377, %v6376
        %v6400 = vpack.c.b16 %v6379, %v6378
        %v6401 = vpack.c.b16 %v6381, %v6380
        %v6402 = vpack.c.b16 %v6383, %v6382
        %v6403 = vpack.c.b16 %v6385, %v6384
        %v6404 = vpack.c.b16 %v6387, %v6386
        %v6405 = vpack.c.b16 %v6389, %v6388
        %v6424 = vunpack.c.l.b16 %v5834
        %v6425 = vunpack.c.l.b16 %v5835
        %v6426 = vpack.c.b16 %v6425, %v6424
        %v6460 = vunpack.c.l.b16 %v5870
        %v6461 = vunpack.c.l.b16 %v5871
        %v6462 = vunpack.c.l.b16 %v5872
        %v6463 = vunpack.c.l.b16 %v5873
        %v6464 = vunpack.c.l.b16 %v5874
        %v6465 = vunpack.c.l.b16 %v5875
        %v6466 = vunpack.c.l.b16 %v5876
        %v6467 = vunpack.c.l.b16 %v5877
        %v6468 = vunpack.c.l.b16 %v5878
        %v6469 = vunpack.c.l.b16 %v5879
        %v6470 = vunpack.c.l.b16 %v5880
        %v6471 = vunpack.c.l.b16 %v5881
        %v6472 = vunpack.c.l.b16 %v5882
        %v6473 = vunpack.c.l.b16 %v5883
        %v6474 = vunpack.c.l.b16 %v5884
        %v6475 = vunpack.c.l.b16 %v5885
        %v6476 = vunpack.c.l.b16 %v5886
        %v6477 = vunpack.c.l.b16 %v5887
        %v6478 = vunpack.c.l.b16 %v5888
        %v6479 = vunpack.c.l.b16 %v5889
        %v6480 = vunpack.c.l.b16 %v5890
        %v6481 = vunpack.c.l.b16 %v5891
        %v6482 = vunpack.c.l.b16 %v5892
        %v6483 = vunpack.c.l.b16 %v5893
        %v6484 = vunpack.c.l.b16 %v5894
        %v6485 = vunpack.c.l.b16 %v5895
        %v6486 = vunpack.c.l.b16 %v5896
        %v6487 = vunpack.c.l.b16 %v5897
        %v6488 = vunpack.c.l.b16 %v5898
        %v6489 = vunpack.c.l.b16 %v5899
        %v6490 = vunpack.c.l.b16 %v5900
        %v6491 = vunpack.c.l.b16 %v5901
        %v6492 = vpack.c.b16 %v6461, %v6460
        %v6493 = vpack.c.b16 %v6463, %v6462
        %v6494 = vpack.c.b16 %v6465, %v6464
        %v6495 = vpack.c.b16 %v6467, %v6466
        %v6496 = vpack.c.b16 %v6469, %v6468
        %v6497 = vpack.c.b16 %v6471, %v6470
        %v6498 = vpack.c.b16 %v6473, %v6472
        %v6499 = vpack.c.b16 %v6475, %v6474
        %v6500 = vpack.c.b16 %v6477, %v6476
        %v6501 = vpack.c.b16 %v6479, %v6478
        %v6502 = vpack.c.b16 %v6481, %v6480
        %v6503 = vpack.c.b16 %v6483, %v6482
        %v6504 = vpack.c.b16 %v6485, %v6484
        %v6505 = vpack.c.b16 %v6487, %v6486
        %v6506 = vpack.c.b16 %v6489, %v6488
        %v6507 = vpack.c.b16 %v6491, %v6490
        %v6556 = vunpack.c.l.b16 %v5936
        %v6557 = vunpack.c.l.b16 %v5937
        %v6558 = vunpack.c.l.b16 %v5938
        %v6559 = vunpack.c.l.b16 %v5939
        %v6560 = vunpack.c.l.b16 %v5940
        %v6561 = vunpack.c.l.b16 %v5941
        %v6562 = vunpack.c.l.b16 %v5942
        %v6563 = vunpack.c.l.b16 %v5943
        %v6564 = vunpack.c.l.b16 %v5944
        %v6565 = vunpack.c.l.b16 %v5945
        %v6566 = vunpack.c.l.b16 %v5946
        %v6567 = vunpack.c.l.b16 %v5947
        %v6568 = vunpack.c.l.b16 %v5948
        %v6569 = vunpack.c.l.b16 %v5949
        %v6570 = vunpack.c.l.b16 %v5950
        %v6571 = vunpack.c.l.b16 %v5951
        %v6572 = vunpack.c.l.b16 %v5952
        %v6573 = vunpack.c.l.b16 %v5953
        %v6574 = vunpack.c.l.b16 %v5954
        %v6575 = vunpack.c.l.b16 %v5955
        %v6576 = vunpack.c.l.b16 %v5956
        %v6577 = vunpack.c.l.b16 %v5957
        %v6578 = vunpack.c.l.b16 %v5958
        %v6579 = vunpack.c.l.b16 %v5959
        %v6580 = vunpack.c.l.b16 %v5960
        %v6581 = vunpack.c.l.b16 %v5961
        %v6582 = vunpack.c.l.b16 %v5962
        %v6583 = vunpack.c.l.b16 %v5963
        %v6584 = vunpack.c.l.b16 %v5964
        %v6585 = vunpack.c.l.b16 %v5965
        %v6586 = vunpack.c.l.b16 %v5966
        %v6587 = vunpack.c.l.b16 %v5967
        %v6588 = vpack.c.b16 %v6557, %v6556
        %v6589 = vpack.c.b16 %v6559, %v6558
        %v6590 = vpack.c.b16 %v6561, %v6560
        %v6591 = vpack.c.b16 %v6563, %v6562
        %v6592 = vpack.c.b16 %v6565, %v6564
        %v6593 = vpack.c.b16 %v6567, %v6566
        %v6594 = vpack.c.b16 %v6569, %v6568
        %v6595 = vpack.c.b16 %v6571, %v6570
        %v6596 = vpack.c.b16 %v6573, %v6572
        %v6597 = vpack.c.b16 %v6575, %v6574
        %v6598 = vpack.c.b16 %v6577, %v6576
        %v6599 = vpack.c.b16 %v6579, %v6578
        %v6600 = vpack.c.b16 %v6581, %v6580
        %v6601 = vpack.c.b16 %v6583, %v6582
        %v6602 = vpack.c.b16 %v6585, %v6584
        %v6603 = vpack.c.b16 %v6587, %v6586
        %v6622 = vunpack.c.l.b16 %v5970
        %v6623 = vunpack.c.l.b16 %v5971
        %v6624 = vpack.c.b16 %v6623, %v6622
        %v6658 = vunpack.c.l.b16 %v6006
        %v6659 = vunpack.c.l.b16 %v6007
        %v6660 = vunpack.c.l.b16 %v6008
        %v6661 = vunpack.c.l.b16 %v6009
        %v6662 = vunpack.c.l.b16 %v6010
        %v6663 = vunpack.c.l.b16 %v6011
        %v6664 = vunpack.c.l.b16 %v6012
        %v6665 = vunpack.c.l.b16 %v6013
        %v6666 = vunpack.c.l.b16 %v6014
        %v6667 = vunpack.c.l.b16 %v6015
        %v6668 = vunpack.c.l.b16 %v6016
        %v6669 = vunpack.c.l.b16 %v6017
        %v6670 = vunpack.c.l.b16 %v6018
        %v6671 = vunpack.c.l.b16 %v6019
        %v6672 = vunpack.c.l.b16 %v6020
        %v6673 = vunpack.c.l.b16 %v6021
        %v6674 = vunpack.c.l.b16 %v6022
        %v6675 = vunpack.c.l.b16 %v6023
        %v6676 = vunpack.c.l.b16 %v6024
        %v6677 = vunpack.c.l.b16 %v6025
        %v6678 = vunpack.c.l.b16 %v6026
        %v6679 = vunpack.c.l.b16 %v6027
        %v6680 = vunpack.c.l.b16 %v6028
        %v6681 = vunpack.c.l.b16 %v6029
        %v6682 = vunpack.c.l.b16 %v6030
        %v6683 = vunpack.c.l.b16 %v6031
        %v6684 = vunpack.c.l.b16 %v6032
        %v6685 = vunpack.c.l.b16 %v6033
        %v6686 = vunpack.c.l.b16 %v6034
        %v6687 = vunpack.c.l.b16 %v6035
        %v6688 = vunpack.c.l.b16 %v6036
        %v6689 = vunpack.c.l.b16 %v6037
        %v6690 = vpack.c.b16 %v6659, %v6658
        %v6691 = vpack.c.b16 %v6661, %v6660
        %v6692 = vpack.c.b16 %v6663, %v6662
        %v6693 = vpack.c.b16 %v6665, %v6664
        %v6694 = vpack.c.b16 %v6667, %v6666
        %v6695 = vpack.c.b16 %v6669, %v6668
        %v6696 = vpack.c.b16 %v6671, %v6670
        %v6697 = vpack.c.b16 %v6673, %v6672
        %v6698 = vpack.c.b16 %v6675, %v6674
        %v6699 = vpack.c.b16 %v6677, %v6676
        %v6700 = vpack.c.b16 %v6679, %v6678
        %v6701 = vpack.c.b16 %v6681, %v6680
        %v6702 = vpack.c.b16 %v6683, %v6682
        %v6703 = vpack.c.b16 %v6685, %v6684
        %v6704 = vpack.c.b16 %v6687, %v6686
        %v6705 = vpack.c.b16 %v6689, %v6688
        %v6722 = vld [vmem:[%s6] sm:$0xf]
        %v6723 = vld [vmem:[%s6 + $0x4] sm:$0xf]
        %v6724 = vld [vmem:[%s6 + $0x8] sm:$0xf]
        %v6725 = vld [vmem:[%s6 + $0xc] sm:$0xf]
        %v6726 = vld [vmem:[%s6 + $0x10] sm:$0xf]
        %v6727 = vld [vmem:[%s6 + $0x14] sm:$0xf]
        %v6728 = vld [vmem:[%s6 + $0x18] sm:$0xf]
        %v6729 = vld [vmem:[%s6 + $0x1c] sm:$0xf]
        %v6730 = vld [vmem:[%s6 + $0x20] sm:$0xf]
        %v6731 = vld [vmem:[%s6 + $0x24] sm:$0xf]
        %v6732 = vld [vmem:[%s6 + $0x28] sm:$0xf]
        %v6733 = vld [vmem:[%s6 + $0x2c] sm:$0xf]
        %v6734 = vld [vmem:[%s6 + $0x30] sm:$0xf]
        %v6735 = vld [vmem:[%s6 + $0x34] sm:$0xf]
        %v6736 = vld [vmem:[%s6 + $0x38] sm:$0xf]
        %v6737 = vld [vmem:[%s6 + $0x3c] sm:$0xf]
        %v6738 = vld [vmem:[%s6 + $0x40] sm:$0xf]
        %v6739 = vld [vmem:[%s6 + $0x44] sm:$0xf]
        %v6740 = vld [vmem:[%s6 + $0x48] sm:$0xf]
        %v6741 = vld [vmem:[%s6 + $0x4c] sm:$0xf]
        %v6742 = vld [vmem:[%s6 + $0x50] sm:$0xf]
        %v6743 = vld [vmem:[%s6 + $0x54] sm:$0xf]
        %v6744 = vld [vmem:[%s6 + $0x58] sm:$0xf]
        %v6745 = vld [vmem:[%s6 + $0x5c] sm:$0xf]
        %v6746 = vld [vmem:[%s6 + $0x60] sm:$0xf]
        %v6747 = vld [vmem:[%s6 + $0x64] sm:$0xf]
        %v6748 = vld [vmem:[%s6 + $0x68] sm:$0xf]
        %v6749 = vld [vmem:[%s6 + $0x6c] sm:$0xf]
        %v6750 = vld [vmem:[%s6 + $0x70] sm:$0xf]
        %v6751 = vld [vmem:[%s6 + $0x74] sm:$0xf]
        %v6752 = vld [vmem:[%s6 + $0x78] sm:$0xf]
        %v6753 = vld [vmem:[%s6 + $0x7c] sm:$0xf]
        %v6754 = vld [vmem:[%s6 + $0x80] sm:$0xf]
        %v6755 = vld [vmem:[%s6 + $0x84] sm:$0xf]
        %v6756 = vld [vmem:[%s6 + $0x88] sm:$0xf]
        %v6757 = vld [vmem:[%s6 + $0x8c] sm:$0xf]
        %v6758 = vld [vmem:[%s6 + $0x90] sm:$0xf]
        %v6759 = vld [vmem:[%s6 + $0x94] sm:$0xf]
        %v6760 = vld [vmem:[%s6 + $0x98] sm:$0xf]
        %v6761 = vld [vmem:[%s6 + $0x9c] sm:$0xf]
        %v6762 = vld [vmem:[%s6 + $0xa0] sm:$0xf]
        %v6763 = vld [vmem:[%s6 + $0xa4] sm:$0xf]
        %v6764 = vld [vmem:[%s6 + $0xa8] sm:$0xf]
        %v6765 = vld [vmem:[%s6 + $0xac] sm:$0xf]
        %v6766 = vld [vmem:[%s6 + $0xb0] sm:$0xf]
        %v6767 = vld [vmem:[%s6 + $0xb4] sm:$0xf]
        %v6768 = vld [vmem:[%s6 + $0xb8] sm:$0xf]
        %v6769 = vld [vmem:[%s6 + $0xbc] sm:$0xf]
        %v6770 = vld [vmem:[%s6 + $0xc0] sm:$0xf]
        %v6771 = vld [vmem:[%s6 + $0xc4] sm:$0xf]
        %v6772 = vld [vmem:[%s6 + $0xc8] sm:$0xf]
        %v6773 = vld [vmem:[%s6 + $0xcc] sm:$0xf]
        %v6774 = vld [vmem:[%s6 + $0xd0] sm:$0xf]
        %v6775 = vld [vmem:[%s6 + $0xd4] sm:$0xf]
        %v6776 = vld [vmem:[%s6 + $0xd8] sm:$0xf]
        %v6777 = vld [vmem:[%s6 + $0xdc] sm:$0xf]
        %v6778 = vld [vmem:[%s6 + $0xe0] sm:$0xf]
        %v6779 = vld [vmem:[%s6 + $0xe4] sm:$0xf]
        %v6780 = vld [vmem:[%s6 + $0xe8] sm:$0xf]
        %v6781 = vld [vmem:[%s6 + $0xec] sm:$0xf]
        %v6782 = vld [vmem:[%s6 + $0xf0] sm:$0xf]
        %v6783 = vld [vmem:[%s6 + $0xf4] sm:$0xf]
        %v6784 = vld [vmem:[%s6 + $0xf8] sm:$0xf]
        %v6785 = vld [vmem:[%s6 + $0xfc] sm:$0xf]
        %v6786 = vld [vmem:[%s6 + $0x100] sm:$0xf]
        %v6787 = vld [vmem:[%s6 + $0x104] sm:$0xf]
        %v6788 = vld [vmem:[%s6 + $0x108] sm:$0xf]
        %v6789 = vld [vmem:[%s6 + $0x10c] sm:$0xf]
        %v6790 = vld [vmem:[%s6 + $0x110] sm:$0xf]
        %v6791 = vld [vmem:[%s6 + $0x114] sm:$0xf]
        %v6792 = vld [vmem:[%s6 + $0x118] sm:$0xf]
        %v6793 = vld [vmem:[%s6 + $0x11c] sm:$0xf]
        %v6794 = vld [vmem:[%s6 + $0x120] sm:$0xf]
        %v6795 = vld [vmem:[%s6 + $0x124] sm:$0xf]
        %v6796 = vld [vmem:[%s6 + $0x128] sm:$0xf]
        %v6797 = vld [vmem:[%s6 + $0x12c] sm:$0xf]
        %v6798 = vld [vmem:[%s6 + $0x130] sm:$0xf]
        %v6799 = vld [vmem:[%s6 + $0x134] sm:$0xf]
        %v6800 = vld [vmem:[%s6 + $0x138] sm:$0xf]
        %v6801 = vld [vmem:[%s6 + $0x13c] sm:$0xf]
        %v6802 = vld [vmem:[%s6 + $0x140] sm:$0xf]
        %v6803 = vld [vmem:[%s6 + $0x144] sm:$0xf]
        %v6804 = vld [vmem:[%s6 + $0x148] sm:$0xf]
        %v6805 = vld [vmem:[%s6 + $0x14c] sm:$0xf]
        %v6806 = vld [vmem:[%s6 + $0x150] sm:$0xf]
        %v6807 = vld [vmem:[%s6 + $0x154] sm:$0xf]
        %v6808 = vld [vmem:[%s6 + $0x158] sm:$0xf]
        %v6809 = vld [vmem:[%s6 + $0x15c] sm:$0xf]
        %v6810 = vld [vmem:[%s6 + $0x160] sm:$0xf]
        %v6811 = vld [vmem:[%s6 + $0x164] sm:$0xf]
        %v6812 = vld [vmem:[%s6 + $0x168] sm:$0xf]
        %v6813 = vld [vmem:[%s6 + $0x16c] sm:$0xf]
        %v6814 = vld [vmem:[%s6 + $0x170] sm:$0xf]
        %v6815 = vld [vmem:[%s6 + $0x174] sm:$0xf]
        %v6816 = vld [vmem:[%s6 + $0x178] sm:$0xf]
        %v6817 = vld [vmem:[%s6 + $0x17c] sm:$0xf]
        %v6818 = vld [vmem:[%s6 + $0x180] sm:$0xf]
        %v6819 = vld [vmem:[%s6 + $0x184] sm:$0xf]
        %v6820 = vld [vmem:[%s6 + $0x188] sm:$0xf]
        %v6821 = vld [vmem:[%s6 + $0x18c] sm:$0xf]
        %v6822 = vld [vmem:[%s6 + $0x190] sm:$0xf]
        %v6823 = vld [vmem:[%s6 + $0x194] sm:$0xf]
        %v6824 = vld [vmem:[%s6 + $0x198] sm:$0xf]
        %v6825 = vld [vmem:[%s6 + $0x19c] sm:$0xf]
        %v6826 = vld [vmem:[%s6 + $0x1a0] sm:$0xf]
        %v6827 = vld [vmem:[%s6 + $0x1a4] sm:$0xf]
        %v6828 = vld [vmem:[%s6 + $0x1a8] sm:$0xf]
        %v6829 = vld [vmem:[%s6 + $0x1ac] sm:$0xf]
        %v6830 = vld [vmem:[%s6 + $0x1b0] sm:$0xf]
        %v6831 = vld [vmem:[%s6 + $0x1b4] sm:$0xf]
        %v6832 = vld [vmem:[%s6 + $0x1b8] sm:$0xf]
        %v6833 = vld [vmem:[%s6 + $0x1bc] sm:$0xf]
        %v6834 = vld [vmem:[%s6 + $0x1c0] sm:$0xf]
        %v6835 = vld [vmem:[%s6 + $0x1c4] sm:$0xf]
        %v6836 = vld [vmem:[%s6 + $0x1c8] sm:$0xf]
        %v6837 = vld [vmem:[%s6 + $0x1cc] sm:$0xf]
        %v6838 = vld [vmem:[%s6 + $0x1d0] sm:$0xf]
        %v6839 = vld [vmem:[%s6 + $0x1d4] sm:$0xf]
        %v6840 = vld [vmem:[%s6 + $0x1d8] sm:$0xf]
        %v6841 = vld [vmem:[%s6 + $0x1dc] sm:$0xf]
        %v6842 = vld [vmem:[%s6 + $0x1e0] sm:$0xf]
        %v6843 = vld [vmem:[%s6 + $0x1e4] sm:$0xf]
        %v6844 = vld [vmem:[%s6 + $0x1e8] sm:$0xf]
        %v6845 = vld [vmem:[%s6 + $0x1ec] sm:$0xf]
        %v6846 = vld [vmem:[%s6 + $0x1f0] sm:$0xf]
        %v6847 = vld [vmem:[%s6 + $0x1f4] sm:$0xf]
        %v6848 = vld [vmem:[%s6 + $0x1f8] sm:$0xf]
        %v6849 = vld [vmem:[%s6 + $0x1fc] sm:$0xf]
        %v6850 = vld [vmem:[%s6 + $0x200] sm:$0xf]
        %v6851 = vld [vmem:[%s6 + $0x204] sm:$0xf]
        %v6852 = vld [vmem:[%s6 + $0x208] sm:$0xf]
        %v6853 = vld [vmem:[%s6 + $0x20c] sm:$0xf]
        %v6854 = vld [vmem:[%s6 + $0x210] sm:$0xf]
        %v6855 = vld [vmem:[%s6 + $0x214] sm:$0xf]
        %v6856 = vld [vmem:[%s6 + $0x218] sm:$0xf]
        %v6857 = vld [vmem:[%s6 + $0x21c] sm:$0xf]
        %v6858 = vld [vmem:[%s6 + $0x220] sm:$0xf]
        %v6859 = vld [vmem:[%s6 + $0x224] sm:$0xf]
        %v6860 = vld [vmem:[%s6 + $0x228] sm:$0xf]
        %v6861 = vld [vmem:[%s6 + $0x22c] sm:$0xf]
        %v6862 = vld [vmem:[%s6 + $0x230] sm:$0xf]
        %v6863 = vld [vmem:[%s6 + $0x234] sm:$0xf]
        %v6864 = vld [vmem:[%s6 + $0x238] sm:$0xf]
        %v6865 = vld [vmem:[%s6 + $0x23c] sm:$0xf]
        %v6866 = vld [vmem:[#allocation5] sm:$0xff]
        %v6867 = vld [vmem:[#allocation5 + $0x8] sm:$0xff]
        %v6868 = vld [vmem:[#allocation5 + $0x10] sm:$0xff]
        %v6869 = vld [vmem:[#allocation5 + $0x18] sm:$0xff]
        %v6870 = vld [vmem:[#allocation5 + $0x20] sm:$0xff]
        %v6871 = vld [vmem:[#allocation5 + $0x28] sm:$0xff]
        %v6872 = vld [vmem:[#allocation5 + $0x30] sm:$0xff]
        %v6873 = vld [vmem:[#allocation5 + $0x38] sm:$0xff]
        %v6874 = vld [vmem:[#allocation5 + $0x40] sm:$0xff]
        %v6875 = vld [vmem:[#allocation5 + $0x48] sm:$0xff]
        %v6876 = vld [vmem:[#allocation5 + $0x50] sm:$0xff]
        %v6877 = vld [vmem:[#allocation5 + $0x58] sm:$0xff]
        %v6878 = vld [vmem:[#allocation5 + $0x60] sm:$0xff]
        %v6879 = vld [vmem:[#allocation5 + $0x68] sm:$0xff]
        %v6880 = vld [vmem:[#allocation5 + $0x70] sm:$0xff]
        %v6881 = vld [vmem:[#allocation5 + $0x78] sm:$0xff]
        %v6882 = vld [vmem:[#allocation5 + $0x80] sm:$0xff]
        %v6883 = vld [vmem:[#allocation5 + $0x88] sm:$0xff]
        %v6884 = vld [vmem:[#allocation5 + $0x90] sm:$0xff]
        %v6885 = vld [vmem:[#allocation5 + $0x98] sm:$0xff]
        %v6886 = vld [vmem:[#allocation5 + $0xa0] sm:$0xff]
        %v6887 = vld [vmem:[#allocation5 + $0xa8] sm:$0xff]
        %v6888 = vld [vmem:[#allocation5 + $0xb0] sm:$0xff]
        %v6889 = vld [vmem:[#allocation5 + $0xb8] sm:$0xff]
        %v6890 = vld [vmem:[#allocation5 + $0xc0] sm:$0xff]
        %v6891 = vld [vmem:[#allocation5 + $0xc8] sm:$0xff]
        %v6892 = vld [vmem:[#allocation5 + $0xd0] sm:$0xff]
        %v6893 = vld [vmem:[#allocation5 + $0xd8] sm:$0xff]
        %v6894 = vld [vmem:[#allocation5 + $0xe0] sm:$0xff]
        %v6895 = vld [vmem:[#allocation5 + $0xe8] sm:$0xff]
        %v6896 = vld [vmem:[#allocation5 + $0xf0] sm:$0xff]
        %v6897 = vld [vmem:[#allocation5 + $0xf8] sm:$0xff]
        %v7042 = vunpack.c.l.b16 %v6722
        %v7043 = vunpack.c.l.b16 %v6723
        %v7044 = vunpack.c.l.b16 %v6724
        %v7045 = vunpack.c.l.b16 %v6725
        %v7046 = vunpack.c.l.b16 %v6726
        %v7047 = vunpack.c.l.b16 %v6727
        %v7048 = vunpack.c.l.b16 %v6728
        %v7049 = vunpack.c.l.b16 %v6729
        %v7050 = vunpack.c.l.b16 %v6730
        %v7051 = vunpack.c.l.b16 %v6731
        %v7052 = vunpack.c.l.b16 %v6732
        %v7053 = vunpack.c.l.b16 %v6733
        %v7054 = vunpack.c.l.b16 %v6734
        %v7055 = vunpack.c.l.b16 %v6735
        %v7056 = vunpack.c.l.b16 %v6736
        %v7057 = vunpack.c.l.b16 %v6737
        %v7058 = vunpack.c.l.b16 %v6738
        %v7059 = vunpack.c.l.b16 %v6739
        %v7060 = vunpack.c.l.b16 %v6740
        %v7061 = vunpack.c.l.b16 %v6741
        %v7062 = vunpack.c.l.b16 %v6742
        %v7063 = vunpack.c.l.b16 %v6743
        %v7064 = vunpack.c.l.b16 %v6744
        %v7065 = vunpack.c.l.b16 %v6745
        %v7066 = vunpack.c.l.b16 %v6746
        %v7067 = vunpack.c.l.b16 %v6747
        %v7068 = vunpack.c.l.b16 %v6748
        %v7069 = vunpack.c.l.b16 %v6749
        %v7070 = vunpack.c.l.b16 %v6750
        %v7071 = vunpack.c.l.b16 %v6751
        %v7072 = vunpack.c.l.b16 %v6752
        %v7073 = vunpack.c.l.b16 %v6753
        %v7074 = vunpack.c.l.b16 %v6754
        %v7075 = vunpack.c.l.b16 %v6755
        %v7076 = vunpack.c.l.b16 %v6756
        %v7077 = vunpack.c.l.b16 %v6757
        %v7078 = vunpack.c.l.b16 %v6758
        %v7079 = vunpack.c.l.b16 %v6759
        %v7080 = vunpack.c.l.b16 %v6760
        %v7081 = vunpack.c.l.b16 %v6761
        %v7082 = vunpack.c.l.b16 %v6762
        %v7083 = vunpack.c.l.b16 %v6763
        %v7084 = vunpack.c.l.b16 %v6764
        %v7085 = vunpack.c.l.b16 %v6765
        %v7086 = vunpack.c.l.b16 %v6766
        %v7087 = vunpack.c.l.b16 %v6767
        %v7088 = vunpack.c.l.b16 %v6768
        %v7089 = vunpack.c.l.b16 %v6769
        %v7090 = vunpack.c.l.b16 %v6770
        %v7091 = vunpack.c.l.b16 %v6771
        %v7092 = vunpack.c.l.b16 %v6772
        %v7093 = vunpack.c.l.b16 %v6773
        %v7094 = vunpack.c.l.b16 %v6774
        %v7095 = vunpack.c.l.b16 %v6775
        %v7096 = vunpack.c.l.b16 %v6776
        %v7097 = vunpack.c.l.b16 %v6777
        %v7098 = vunpack.c.l.b16 %v6778
        %v7099 = vunpack.c.l.b16 %v6779
        %v7100 = vunpack.c.l.b16 %v6780
        %v7101 = vunpack.c.l.b16 %v6781
        %v7102 = vunpack.c.l.b16 %v6782
        %v7103 = vunpack.c.l.b16 %v6783
        %v7104 = vunpack.c.l.b16 %v6784
        %v7105 = vunpack.c.l.b16 %v6785
        %v7106 = vunpack.c.l.b16 %v6786
        %v7107 = vunpack.c.l.b16 %v6787
        %v7108 = vunpack.c.l.b16 %v6788
        %v7109 = vunpack.c.l.b16 %v6789
        %v7110 = vunpack.c.l.b16 %v6790
        %v7111 = vunpack.c.l.b16 %v6791
        %v7112 = vunpack.c.l.b16 %v6792
        %v7113 = vunpack.c.l.b16 %v6793
        %v7114 = vunpack.c.l.b16 %v6794
        %v7115 = vunpack.c.l.b16 %v6795
        %v7116 = vunpack.c.l.b16 %v6796
        %v7117 = vunpack.c.l.b16 %v6797
        %v7118 = vunpack.c.l.b16 %v6798
        %v7119 = vunpack.c.l.b16 %v6799
        %v7120 = vunpack.c.l.b16 %v6800
        %v7121 = vunpack.c.l.b16 %v6801
        %v7122 = vunpack.c.l.b16 %v6802
        %v7123 = vunpack.c.l.b16 %v6803
        %v7124 = vunpack.c.l.b16 %v6804
        %v7125 = vunpack.c.l.b16 %v6805
        %v7126 = vunpack.c.l.b16 %v6806
        %v7127 = vunpack.c.l.b16 %v6807
        %v7128 = vunpack.c.l.b16 %v6808
        %v7129 = vunpack.c.l.b16 %v6809
        %v7130 = vunpack.c.l.b16 %v6810
        %v7131 = vunpack.c.l.b16 %v6811
        %v7132 = vunpack.c.l.b16 %v6812
        %v7133 = vunpack.c.l.b16 %v6813
        %v7134 = vunpack.c.l.b16 %v6814
        %v7135 = vunpack.c.l.b16 %v6815
        %v7136 = vunpack.c.l.b16 %v6816
        %v7137 = vunpack.c.l.b16 %v6817
        %v7138 = vunpack.c.l.b16 %v6818
        %v7139 = vunpack.c.l.b16 %v6819
        %v7140 = vunpack.c.l.b16 %v6820
        %v7141 = vunpack.c.l.b16 %v6821
        %v7142 = vunpack.c.l.b16 %v6822
        %v7143 = vunpack.c.l.b16 %v6823
        %v7144 = vunpack.c.l.b16 %v6824
        %v7145 = vunpack.c.l.b16 %v6825
        %v7146 = vunpack.c.l.b16 %v6826
        %v7147 = vunpack.c.l.b16 %v6827
        %v7148 = vunpack.c.l.b16 %v6828
        %v7149 = vunpack.c.l.b16 %v6829
        %v7150 = vunpack.c.l.b16 %v6830
        %v7151 = vunpack.c.l.b16 %v6831
        %v7152 = vunpack.c.l.b16 %v6832
        %v7153 = vunpack.c.l.b16 %v6833
        %v7154 = vunpack.c.l.b16 %v6834
        %v7155 = vunpack.c.l.b16 %v6835
        %v7156 = vunpack.c.l.b16 %v6836
        %v7157 = vunpack.c.l.b16 %v6837
        %v7158 = vunpack.c.l.b16 %v6838
        %v7159 = vunpack.c.l.b16 %v6839
        %v7160 = vunpack.c.l.b16 %v6840
        %v7161 = vunpack.c.l.b16 %v6841
        %v7162 = vunpack.c.l.b16 %v6842
        %v7163 = vunpack.c.l.b16 %v6843
        %v7164 = vunpack.c.l.b16 %v6844
        %v7165 = vunpack.c.l.b16 %v6845
        %v7166 = vunpack.c.l.b16 %v6846
        %v7167 = vunpack.c.l.b16 %v6847
        %v7168 = vunpack.c.l.b16 %v6848
        %v7169 = vunpack.c.l.b16 %v6849
        %v7170 = vunpack.c.l.b16 %v6850
        %v7171 = vunpack.c.l.b16 %v6851
        %v7172 = vunpack.c.l.b16 %v6852
        %v7173 = vunpack.c.l.b16 %v6853
        %v7174 = vunpack.c.l.b16 %v6854
        %v7175 = vunpack.c.l.b16 %v6855
        %v7176 = vunpack.c.l.b16 %v6856
        %v7177 = vunpack.c.l.b16 %v6857
        %v7178 = vunpack.c.l.b16 %v6858
        %v7179 = vunpack.c.l.b16 %v6859
        %v7180 = vunpack.c.l.b16 %v6860
        %v7181 = vunpack.c.l.b16 %v6861
        %v7182 = vunpack.c.l.b16 %v6862
        %v7183 = vunpack.c.l.b16 %v6863
        %v7184 = vunpack.c.l.b16 %v6864
        %v7185 = vunpack.c.l.b16 %v6865
        %v7186 = vpack.c.b16 %v7043, %v7042
        %v7187 = vpack.c.b16 %v7045, %v7044
        %v7188 = vpack.c.b16 %v7047, %v7046
        %v7189 = vpack.c.b16 %v7049, %v7048
        %v7190 = vpack.c.b16 %v7051, %v7050
        %v7191 = vpack.c.b16 %v7053, %v7052
        %v7192 = vpack.c.b16 %v7055, %v7054
        %v7193 = vpack.c.b16 %v7057, %v7056
        %v7194 = vpack.c.b16 %v7059, %v7058
        %v7195 = vpack.c.b16 %v7061, %v7060
        %v7196 = vpack.c.b16 %v7063, %v7062
        %v7197 = vpack.c.b16 %v7065, %v7064
        %v7198 = vpack.c.b16 %v7067, %v7066
        %v7199 = vpack.c.b16 %v7069, %v7068
        %v7200 = vpack.c.b16 %v7071, %v7070
        %v7201 = vpack.c.b16 %v7073, %v7072
        %v7202 = vpack.c.b16 %v7075, %v7074
        %v7203 = vpack.c.b16 %v7077, %v7076
        %v7204 = vpack.c.b16 %v7079, %v7078
        %v7205 = vpack.c.b16 %v7081, %v7080
        %v7206 = vpack.c.b16 %v7083, %v7082
        %v7207 = vpack.c.b16 %v7085, %v7084
        %v7208 = vpack.c.b16 %v7087, %v7086
        %v7209 = vpack.c.b16 %v7089, %v7088
        %v7210 = vpack.c.b16 %v7091, %v7090
        %v7211 = vpack.c.b16 %v7093, %v7092
        %v7212 = vpack.c.b16 %v7095, %v7094
        %v7213 = vpack.c.b16 %v7097, %v7096
        %v7214 = vpack.c.b16 %v7099, %v7098
        %v7215 = vpack.c.b16 %v7101, %v7100
        %v7216 = vpack.c.b16 %v7103, %v7102
        %v7217 = vpack.c.b16 %v7105, %v7104
        %v7218 = vpack.c.b16 %v7107, %v7106
        %v7219 = vpack.c.b16 %v7109, %v7108
        %v7220 = vpack.c.b16 %v7111, %v7110
        %v7221 = vpack.c.b16 %v7113, %v7112
        %v7222 = vpack.c.b16 %v7115, %v7114
        %v7223 = vpack.c.b16 %v7117, %v7116
        %v7224 = vpack.c.b16 %v7119, %v7118
        %v7225 = vpack.c.b16 %v7121, %v7120
        %v7226 = vpack.c.b16 %v7123, %v7122
        %v7227 = vpack.c.b16 %v7125, %v7124
        %v7228 = vpack.c.b16 %v7127, %v7126
        %v7229 = vpack.c.b16 %v7129, %v7128
        %v7230 = vpack.c.b16 %v7131, %v7130
        %v7231 = vpack.c.b16 %v7133, %v7132
        %v7232 = vpack.c.b16 %v7135, %v7134
        %v7233 = vpack.c.b16 %v7137, %v7136
        %v7234 = vpack.c.b16 %v7139, %v7138
        %v7235 = vpack.c.b16 %v7141, %v7140
        %v7236 = vpack.c.b16 %v7143, %v7142
        %v7237 = vpack.c.b16 %v7145, %v7144
        %v7238 = vpack.c.b16 %v7147, %v7146
        %v7239 = vpack.c.b16 %v7149, %v7148
        %v7240 = vpack.c.b16 %v7151, %v7150
        %v7241 = vpack.c.b16 %v7153, %v7152
        %v7242 = vpack.c.b16 %v7155, %v7154
        %v7243 = vpack.c.b16 %v7157, %v7156
        %v7244 = vpack.c.b16 %v7159, %v7158
        %v7245 = vpack.c.b16 %v7161, %v7160
        %v7246 = vpack.c.b16 %v7163, %v7162
        %v7247 = vpack.c.b16 %v7165, %v7164
        %v7248 = vpack.c.b16 %v7167, %v7166
        %v7249 = vpack.c.b16 %v7169, %v7168
        %v7250 = vpack.c.b16 %v7171, %v7170
        %v7251 = vpack.c.b16 %v7173, %v7172
        %v7252 = vpack.c.b16 %v7175, %v7174
        %v7253 = vpack.c.b16 %v7177, %v7176
        %v7254 = vpack.c.b16 %v7179, %v7178
        %v7255 = vpack.c.b16 %v7181, %v7180
        %v7256 = vpack.c.b16 %v7183, %v7182
        %v7257 = vpack.c.b16 %v7185, %v7184
        %7330 = vmatpush.bf16.msra.mxu0 %v7193
        %7331 = vmatpush.bf16.msra.mxu0 %v7192
        %7332 = vmatpush.bf16.msra.mxu0 %v7191
        %7333 = vmatpush.bf16.msra.mxu0 %v7190
        %7334 = vmatpush.bf16.msra.mxu0 %v7189
        %7335 = vmatpush.bf16.msra.mxu0 %v7188
        %7336 = vmatpush.bf16.msra.mxu0 %v7187
        %7337 = vmatpush.bf16.msra.mxu0 %v7186
        %7338 = vmatmul.bf16.gmra.mxu0 %v6102
        %v7339 = vpop.f32.mrf.mxu0
        %v7340 = vadd.f32 %v6866, %v7339
        %v7341 = vpop.f32.mrf.mxu0
        %v7342 = vadd.f32 %v6867, %v7341
        %7343 = vmatmul.bf16.gmra.mxu0 %v6103
        %v7344 = vpop.f32.mrf.mxu0
        %v7345 = vadd.f32 %v6868, %v7344
        %v7346 = vpop.f32.mrf.mxu0
        %v7347 = vadd.f32 %v6869, %v7346
        %7348 = vmatmul.bf16.gmra.mxu0 %v6104
        %v7349 = vpop.f32.mrf.mxu0
        %v7350 = vadd.f32 %v6870, %v7349
        %v7351 = vpop.f32.mrf.mxu0
        %v7352 = vadd.f32 %v6871, %v7351
        %7353 = vmatmul.bf16.gmra.mxu0 %v6105
        %v7354 = vpop.f32.mrf.mxu0
        %v7355 = vadd.f32 %v6872, %v7354
        %v7356 = vpop.f32.mrf.mxu0
        %v7357 = vadd.f32 %v6873, %v7356
        %7358 = vmatmul.bf16.gmra.mxu0 %v6106
        %v7359 = vpop.f32.mrf.mxu0
        %v7360 = vadd.f32 %v6874, %v7359
        %v7361 = vpop.f32.mrf.mxu0
        %v7362 = vadd.f32 %v6875, %v7361
        %7363 = vmatmul.bf16.gmra.mxu0 %v6107
        %v7364 = vpop.f32.mrf.mxu0
        %v7365 = vadd.f32 %v6876, %v7364
        %v7366 = vpop.f32.mrf.mxu0
        %v7367 = vadd.f32 %v6877, %v7366
        %7368 = vmatmul.bf16.gmra.mxu0 %v6108
        %v7369 = vpop.f32.mrf.mxu0
        %v7370 = vadd.f32 %v6878, %v7369
        %v7371 = vpop.f32.mrf.mxu0
        %v7372 = vadd.f32 %v6879, %v7371
        %7373 = vmatmul.bf16.gmra.mxu0 %v6109
        %v7374 = vpop.f32.mrf.mxu0
        %v7375 = vadd.f32 %v6880, %v7374
        %v7376 = vpop.f32.mrf.mxu0
        %v7377 = vadd.f32 %v6881, %v7376
        %7378 = vmatmul.bf16.gmra.mxu0 %v6110
        %v7379 = vpop.f32.mrf.mxu0
        %v7380 = vadd.f32 %v6882, %v7379
        %v7381 = vpop.f32.mrf.mxu0
        %v7382 = vadd.f32 %v6883, %v7381
        %7383 = vmatmul.bf16.gmra.mxu0 %v6111
        %v7384 = vpop.f32.mrf.mxu0
        %v7385 = vadd.f32 %v6884, %v7384
        %v7386 = vpop.f32.mrf.mxu0
        %v7387 = vadd.f32 %v6885, %v7386
        %7388 = vmatmul.bf16.gmra.mxu0 %v6112
        %v7389 = vpop.f32.mrf.mxu0
        %v7390 = vadd.f32 %v6886, %v7389
        %v7391 = vpop.f32.mrf.mxu0
        %v7392 = vadd.f32 %v6887, %v7391
        %7393 = vmatmul.bf16.gmra.mxu0 %v6113
        %v7394 = vpop.f32.mrf.mxu0
        %v7395 = vadd.f32 %v6888, %v7394
        %v7396 = vpop.f32.mrf.mxu0
        %v7397 = vadd.f32 %v6889, %v7396
        %7398 = vmatmul.bf16.gmra.mxu0 %v6114
        %v7399 = vpop.f32.mrf.mxu0
        %v7400 = vadd.f32 %v6890, %v7399
        %v7401 = vpop.f32.mrf.mxu0
        %v7402 = vadd.f32 %v6891, %v7401
        %7403 = vmatmul.bf16.gmra.mxu0 %v6115
        %v7404 = vpop.f32.mrf.mxu0
        %v7405 = vadd.f32 %v6892, %v7404
        %v7406 = vpop.f32.mrf.mxu0
        %v7407 = vadd.f32 %v6893, %v7406
        %7408 = vmatmul.bf16.gmra.mxu0 %v6116
        %v7409 = vpop.f32.mrf.mxu0
        %v7410 = vadd.f32 %v6894, %v7409
        %v7411 = vpop.f32.mrf.mxu0
        %v7412 = vadd.f32 %v6895, %v7411
        %7413 = vmatmul.bf16.gmra.mxu0 %v6117
        %v7414 = vpop.f32.mrf.mxu0
        %v7415 = vadd.f32 %v6896, %v7414
        %v7416 = vpop.f32.mrf.mxu0
        %v7417 = vadd.f32 %v6897, %v7416
        %7418 = vdwg.mxu0
        %7419 = vmatpush.bf16.msra.mxu0 %v7201
        %7420 = vmatpush.bf16.msra.mxu0 %v7200
        %7421 = vmatpush.bf16.msra.mxu0 %v7199
        %7422 = vmatpush.bf16.msra.mxu0 %v7198
        %7423 = vmatpush.bf16.msra.mxu0 %v7197
        %7424 = vmatpush.bf16.msra.mxu0 %v7196
        %7425 = vmatpush.bf16.msra.mxu0 %v7195
        %7426 = vmatpush.bf16.msra.mxu0 %v7194
        %7427 = vmatmul.bf16.gmra.mxu0 %v6198
        %v7428 = vpop.f32.mrf.mxu0
        %v7429 = vadd.f32 %v7340, %v7428
        %v7430 = vpop.f32.mrf.mxu0
        %v7431 = vadd.f32 %v7342, %v7430
        %7432 = vmatmul.bf16.gmra.mxu0 %v6199
        %v7433 = vpop.f32.mrf.mxu0
        %v7434 = vadd.f32 %v7345, %v7433
        %v7435 = vpop.f32.mrf.mxu0
        %v7436 = vadd.f32 %v7347, %v7435
        %7437 = vmatmul.bf16.gmra.mxu0 %v6200
        %v7438 = vpop.f32.mrf.mxu0
        %v7439 = vadd.f32 %v7350, %v7438
        %v7440 = vpop.f32.mrf.mxu0
        %v7441 = vadd.f32 %v7352, %v7440
        %7442 = vmatmul.bf16.gmra.mxu0 %v6201
        %v7443 = vpop.f32.mrf.mxu0
        %v7444 = vadd.f32 %v7355, %v7443
        %v7445 = vpop.f32.mrf.mxu0
        %v7446 = vadd.f32 %v7357, %v7445
        %7447 = vmatmul.bf16.gmra.mxu0 %v6202
        %v7448 = vpop.f32.mrf.mxu0
        %v7449 = vadd.f32 %v7360, %v7448
        %v7450 = vpop.f32.mrf.mxu0
        %v7451 = vadd.f32 %v7362, %v7450
        %7452 = vmatmul.bf16.gmra.mxu0 %v6203
        %v7453 = vpop.f32.mrf.mxu0
        %v7454 = vadd.f32 %v7365, %v7453
        %v7455 = vpop.f32.mrf.mxu0
        %v7456 = vadd.f32 %v7367, %v7455
        %7457 = vmatmul.bf16.gmra.mxu0 %v6204
        %v7458 = vpop.f32.mrf.mxu0
        %v7459 = vadd.f32 %v7370, %v7458
        %v7460 = vpop.f32.mrf.mxu0
        %v7461 = vadd.f32 %v7372, %v7460
        %7462 = vmatmul.bf16.gmra.mxu0 %v6205
        %v7463 = vpop.f32.mrf.mxu0
        %v7464 = vadd.f32 %v7375, %v7463
        %v7465 = vpop.f32.mrf.mxu0
        %v7466 = vadd.f32 %v7377, %v7465
        %7467 = vmatmul.bf16.gmra.mxu0 %v6206
        %v7468 = vpop.f32.mrf.mxu0
        %v7469 = vadd.f32 %v7380, %v7468
        %v7470 = vpop.f32.mrf.mxu0
        %v7471 = vadd.f32 %v7382, %v7470
        %7472 = vmatmul.bf16.gmra.mxu0 %v6207
        %v7473 = vpop.f32.mrf.mxu0
        %v7474 = vadd.f32 %v7385, %v7473
        %v7475 = vpop.f32.mrf.mxu0
        %v7476 = vadd.f32 %v7387, %v7475
        %7477 = vmatmul.bf16.gmra.mxu0 %v6208
        %v7478 = vpop.f32.mrf.mxu0
        %v7479 = vadd.f32 %v7390, %v7478
        %v7480 = vpop.f32.mrf.mxu0
        %v7481 = vadd.f32 %v7392, %v7480
        %7482 = vmatmul.bf16.gmra.mxu0 %v6209
        %v7483 = vpop.f32.mrf.mxu0
        %v7484 = vadd.f32 %v7395, %v7483
        %v7485 = vpop.f32.mrf.mxu0
        %v7486 = vadd.f32 %v7397, %v7485
        %7487 = vmatmul.bf16.gmra.mxu0 %v6210
        %v7488 = vpop.f32.mrf.mxu0
        %v7489 = vadd.f32 %v7400, %v7488
        %v7490 = vpop.f32.mrf.mxu0
        %v7491 = vadd.f32 %v7402, %v7490
        %7492 = vmatmul.bf16.gmra.mxu0 %v6211
        %v7493 = vpop.f32.mrf.mxu0
        %v7494 = vadd.f32 %v7405, %v7493
        %v7495 = vpop.f32.mrf.mxu0
        %v7496 = vadd.f32 %v7407, %v7495
        %7497 = vmatmul.bf16.gmra.mxu0 %v6212
        %v7498 = vpop.f32.mrf.mxu0
        %v7499 = vadd.f32 %v7410, %v7498
        %v7500 = vpop.f32.mrf.mxu0
        %v7501 = vadd.f32 %v7412, %v7500
        %7502 = vmatmul.bf16.gmra.mxu0 %v6213
        %v7503 = vpop.f32.mrf.mxu0
        %v7504 = vadd.f32 %v7415, %v7503
        %v7505 = vpop.f32.mrf.mxu0
        %v7506 = vadd.f32 %v7417, %v7505
        %7507 = vdwg.mxu0
        %7508 = vmatpush.bf16.msra.mxu0 %v7209
        %7509 = vmatpush.bf16.msra.mxu0 %v7208
        %7510 = vmatpush.bf16.msra.mxu0 %v7207
        %7511 = vmatpush.bf16.msra.mxu0 %v7206
        %7512 = vmatpush.bf16.msra.mxu0 %v7205
        %7513 = vmatpush.bf16.msra.mxu0 %v7204
        %7514 = vmatpush.bf16.msra.mxu0 %v7203
        %7515 = vmatpush.bf16.msra.mxu0 %v7202
        %7516 = vmatmul.bf16.gmra.mxu0 %v6294
        %v7517 = vpop.f32.mrf.mxu0
        %v7518 = vadd.f32 %v7429, %v7517
        %v7519 = vpop.f32.mrf.mxu0
        %v7520 = vadd.f32 %v7431, %v7519
        %7521 = vmatmul.bf16.gmra.mxu0 %v6295
        %v7522 = vpop.f32.mrf.mxu0
        %v7523 = vadd.f32 %v7434, %v7522
        %v7524 = vpop.f32.mrf.mxu0
        %v7525 = vadd.f32 %v7436, %v7524
        %7526 = vmatmul.bf16.gmra.mxu0 %v6296
        %v7527 = vpop.f32.mrf.mxu0
        %v7528 = vadd.f32 %v7439, %v7527
        %v7529 = vpop.f32.mrf.mxu0
        %v7530 = vadd.f32 %v7441, %v7529
        %7531 = vmatmul.bf16.gmra.mxu0 %v6297
        %v7532 = vpop.f32.mrf.mxu0
        %v7533 = vadd.f32 %v7444, %v7532
        %v7534 = vpop.f32.mrf.mxu0
        %v7535 = vadd.f32 %v7446, %v7534
        %7536 = vmatmul.bf16.gmra.mxu0 %v6298
        %v7537 = vpop.f32.mrf.mxu0
        %v7538 = vadd.f32 %v7449, %v7537
        %v7539 = vpop.f32.mrf.mxu0
        %v7540 = vadd.f32 %v7451, %v7539
        %7541 = vmatmul.bf16.gmra.mxu0 %v6299
        %v7542 = vpop.f32.mrf.mxu0
        %v7543 = vadd.f32 %v7454, %v7542
        %v7544 = vpop.f32.mrf.mxu0
        %v7545 = vadd.f32 %v7456, %v7544
        %7546 = vmatmul.bf16.gmra.mxu0 %v6300
        %v7547 = vpop.f32.mrf.mxu0
        %v7548 = vadd.f32 %v7459, %v7547
        %v7549 = vpop.f32.mrf.mxu0
        %v7550 = vadd.f32 %v7461, %v7549
        %7551 = vmatmul.bf16.gmra.mxu0 %v6301
        %v7552 = vpop.f32.mrf.mxu0
        %v7553 = vadd.f32 %v7464, %v7552
        %v7554 = vpop.f32.mrf.mxu0
        %v7555 = vadd.f32 %v7466, %v7554
        %7556 = vmatmul.bf16.gmra.mxu0 %v6302
        %v7557 = vpop.f32.mrf.mxu0
        %v7558 = vadd.f32 %v7469, %v7557
        %v7559 = vpop.f32.mrf.mxu0
        %v7560 = vadd.f32 %v7471, %v7559
        %7561 = vmatmul.bf16.gmra.mxu0 %v6303
        %v7562 = vpop.f32.mrf.mxu0
        %v7563 = vadd.f32 %v7474, %v7562
        %v7564 = vpop.f32.mrf.mxu0
        %v7565 = vadd.f32 %v7476, %v7564
        %7566 = vmatmul.bf16.gmra.mxu0 %v6304
        %v7567 = vpop.f32.mrf.mxu0
        %v7568 = vadd.f32 %v7479, %v7567
        %v7569 = vpop.f32.mrf.mxu0
        %v7570 = vadd.f32 %v7481, %v7569
        %7571 = vmatmul.bf16.gmra.mxu0 %v6305
        %v7572 = vpop.f32.mrf.mxu0
        %v7573 = vadd.f32 %v7484, %v7572
        %v7574 = vpop.f32.mrf.mxu0
        %v7575 = vadd.f32 %v7486, %v7574
        %7576 = vmatmul.bf16.gmra.mxu0 %v6306
        %v7577 = vpop.f32.mrf.mxu0
        %v7578 = vadd.f32 %v7489, %v7577
        %v7579 = vpop.f32.mrf.mxu0
        %v7580 = vadd.f32 %v7491, %v7579
        %7581 = vmatmul.bf16.gmra.mxu0 %v6307
        %v7582 = vpop.f32.mrf.mxu0
        %v7583 = vadd.f32 %v7494, %v7582
        %v7584 = vpop.f32.mrf.mxu0
        %v7585 = vadd.f32 %v7496, %v7584
        %7586 = vmatmul.bf16.gmra.mxu0 %v6308
        %v7587 = vpop.f32.mrf.mxu0
        %v7588 = vadd.f32 %v7499, %v7587
        %v7589 = vpop.f32.mrf.mxu0
        %v7590 = vadd.f32 %v7501, %v7589
        %7591 = vmatmul.bf16.gmra.mxu0 %v6309
        %v7592 = vpop.f32.mrf.mxu0
        %v7593 = vadd.f32 %v7504, %v7592
        %v7594 = vpop.f32.mrf.mxu0
        %v7595 = vadd.f32 %v7506, %v7594
        %7596 = vdwg.mxu0
        %7597 = vmatpush.bf16.msra.mxu0 %v7217
        %7598 = vmatpush.bf16.msra.mxu0 %v7216
        %7599 = vmatpush.bf16.msra.mxu0 %v7215
        %7600 = vmatpush.bf16.msra.mxu0 %v7214
        %7601 = vmatpush.bf16.msra.mxu0 %v7213
        %7602 = vmatpush.bf16.msra.mxu0 %v7212
        %7603 = vmatpush.bf16.msra.mxu0 %v7211
        %7604 = vmatpush.bf16.msra.mxu0 %v7210
        %7605 = vmatmul.bf16.gmra.mxu0 %v6390
        %v7606 = vpop.f32.mrf.mxu0
        %v7607 = vadd.f32 %v7518, %v7606
        %v7608 = vpop.f32.mrf.mxu0
        %v7609 = vadd.f32 %v7520, %v7608
        %7610 = vmatmul.bf16.gmra.mxu0 %v6391
        %v7611 = vpop.f32.mrf.mxu0
        %v7612 = vadd.f32 %v7523, %v7611
        %v7613 = vpop.f32.mrf.mxu0
        %v7614 = vadd.f32 %v7525, %v7613
        %7615 = vmatmul.bf16.gmra.mxu0 %v6392
        %v7616 = vpop.f32.mrf.mxu0
        %v7617 = vadd.f32 %v7528, %v7616
        %v7618 = vpop.f32.mrf.mxu0
        %v7619 = vadd.f32 %v7530, %v7618
        %7620 = vmatmul.bf16.gmra.mxu0 %v6393
        %v7621 = vpop.f32.mrf.mxu0
        %v7622 = vadd.f32 %v7533, %v7621
        %v7623 = vpop.f32.mrf.mxu0
        %v7624 = vadd.f32 %v7535, %v7623
        %7625 = vmatmul.bf16.gmra.mxu0 %v6394
        %v7626 = vpop.f32.mrf.mxu0
        %v7627 = vadd.f32 %v7538, %v7626
        %v7628 = vpop.f32.mrf.mxu0
        %v7629 = vadd.f32 %v7540, %v7628
        %7630 = vmatmul.bf16.gmra.mxu0 %v6395
        %v7631 = vpop.f32.mrf.mxu0
        %v7632 = vadd.f32 %v7543, %v7631
        %v7633 = vpop.f32.mrf.mxu0
        %v7634 = vadd.f32 %v7545, %v7633
        %7635 = vmatmul.bf16.gmra.mxu0 %v6396
        %v7636 = vpop.f32.mrf.mxu0
        %v7637 = vadd.f32 %v7548, %v7636
        %v7638 = vpop.f32.mrf.mxu0
        %v7639 = vadd.f32 %v7550, %v7638
        %7640 = vmatmul.bf16.gmra.mxu0 %v6397
        %v7641 = vpop.f32.mrf.mxu0
        %v7642 = vadd.f32 %v7553, %v7641
        %v7643 = vpop.f32.mrf.mxu0
        %v7644 = vadd.f32 %v7555, %v7643
        %7645 = vmatmul.bf16.gmra.mxu0 %v6398
        %v7646 = vpop.f32.mrf.mxu0
        %v7647 = vadd.f32 %v7558, %v7646
        %v7648 = vpop.f32.mrf.mxu0
        %v7649 = vadd.f32 %v7560, %v7648
        %7650 = vmatmul.bf16.gmra.mxu0 %v6399
        %v7651 = vpop.f32.mrf.mxu0
        %v7652 = vadd.f32 %v7563, %v7651
        %v7653 = vpop.f32.mrf.mxu0
        %v7654 = vadd.f32 %v7565, %v7653
        %7655 = vmatmul.bf16.gmra.mxu0 %v6400
        %v7656 = vpop.f32.mrf.mxu0
        %v7657 = vadd.f32 %v7568, %v7656
        %v7658 = vpop.f32.mrf.mxu0
        %v7659 = vadd.f32 %v7570, %v7658
        %7660 = vmatmul.bf16.gmra.mxu0 %v6401
        %v7661 = vpop.f32.mrf.mxu0
        %v7662 = vadd.f32 %v7573, %v7661
        %v7663 = vpop.f32.mrf.mxu0
        %v7664 = vadd.f32 %v7575, %v7663
        %7665 = vmatmul.bf16.gmra.mxu0 %v6402
        %v7666 = vpop.f32.mrf.mxu0
        %v7667 = vadd.f32 %v7578, %v7666
        %v7668 = vpop.f32.mrf.mxu0
        %v7669 = vadd.f32 %v7580, %v7668
        %7670 = vmatmul.bf16.gmra.mxu0 %v6403
        %v7671 = vpop.f32.mrf.mxu0
        %v7672 = vadd.f32 %v7583, %v7671
        %v7673 = vpop.f32.mrf.mxu0
        %v7674 = vadd.f32 %v7585, %v7673
        %7675 = vmatmul.bf16.gmra.mxu0 %v6404
        %v7676 = vpop.f32.mrf.mxu0
        %v7677 = vadd.f32 %v7588, %v7676
        %v7678 = vpop.f32.mrf.mxu0
        %v7679 = vadd.f32 %v7590, %v7678
        %7680 = vmatmul.bf16.gmra.mxu0 %v6405
        %v7681 = vpop.f32.mrf.mxu0
        %v7682 = vadd.f32 %v7593, %v7681
        %v7683 = vpop.f32.mrf.mxu0
        %v7684 = vadd.f32 %v7595, %v7683
        %7685 = vdwg.mxu0
        %7686 = vmatpush.bf16.msra.mxu0 %v7225
        %7687 = vmatpush.bf16.msra.mxu0 %v7224
        %7688 = vmatpush.bf16.msra.mxu0 %v7223
        %7689 = vmatpush.bf16.msra.mxu0 %v7222
        %7690 = vmatpush.bf16.msra.mxu0 %v7221
        %7691 = vmatpush.bf16.msra.mxu0 %v7220
        %7692 = vmatpush.bf16.msra.mxu0 %v7219
        %7693 = vmatpush.bf16.msra.mxu0 %v7218
        %7694 = vmatmul.bf16.gmra.mxu0 %v6199
        %v7695 = vpop.f32.mrf.mxu0
        %v7696 = vadd.f32 %v7607, %v7695
        %v7697 = vpop.f32.mrf.mxu0
        %v7698 = vadd.f32 %v7609, %v7697
        %7699 = vmatmul.bf16.gmra.mxu0 %v6200
        %v7700 = vpop.f32.mrf.mxu0
        %v7701 = vadd.f32 %v7612, %v7700
        %v7702 = vpop.f32.mrf.mxu0
        %v7703 = vadd.f32 %v7614, %v7702
        %7704 = vmatmul.bf16.gmra.mxu0 %v6201
        %v7705 = vpop.f32.mrf.mxu0
        %v7706 = vadd.f32 %v7617, %v7705
        %v7707 = vpop.f32.mrf.mxu0
        %v7708 = vadd.f32 %v7619, %v7707
        %7709 = vmatmul.bf16.gmra.mxu0 %v6202
        %v7710 = vpop.f32.mrf.mxu0
        %v7711 = vadd.f32 %v7622, %v7710
        %v7712 = vpop.f32.mrf.mxu0
        %v7713 = vadd.f32 %v7624, %v7712
        %7714 = vmatmul.bf16.gmra.mxu0 %v6203
        %v7715 = vpop.f32.mrf.mxu0
        %v7716 = vadd.f32 %v7627, %v7715
        %v7717 = vpop.f32.mrf.mxu0
        %v7718 = vadd.f32 %v7629, %v7717
        %7719 = vmatmul.bf16.gmra.mxu0 %v6204
        %v7720 = vpop.f32.mrf.mxu0
        %v7721 = vadd.f32 %v7632, %v7720
        %v7722 = vpop.f32.mrf.mxu0
        %v7723 = vadd.f32 %v7634, %v7722
        %7724 = vmatmul.bf16.gmra.mxu0 %v6205
        %v7725 = vpop.f32.mrf.mxu0
        %v7726 = vadd.f32 %v7637, %v7725
        %v7727 = vpop.f32.mrf.mxu0
        %v7728 = vadd.f32 %v7639, %v7727
        %7729 = vmatmul.bf16.gmra.mxu0 %v6206
        %v7730 = vpop.f32.mrf.mxu0
        %v7731 = vadd.f32 %v7642, %v7730
        %v7732 = vpop.f32.mrf.mxu0
        %v7733 = vadd.f32 %v7644, %v7732
        %7734 = vmatmul.bf16.gmra.mxu0 %v6207
        %v7735 = vpop.f32.mrf.mxu0
        %v7736 = vadd.f32 %v7647, %v7735
        %v7737 = vpop.f32.mrf.mxu0
        %v7738 = vadd.f32 %v7649, %v7737
        %7739 = vmatmul.bf16.gmra.mxu0 %v6208
        %v7740 = vpop.f32.mrf.mxu0
        %v7741 = vadd.f32 %v7652, %v7740
        %v7742 = vpop.f32.mrf.mxu0
        %v7743 = vadd.f32 %v7654, %v7742
        %7744 = vmatmul.bf16.gmra.mxu0 %v6209
        %v7745 = vpop.f32.mrf.mxu0
        %v7746 = vadd.f32 %v7657, %v7745
        %v7747 = vpop.f32.mrf.mxu0
        %v7748 = vadd.f32 %v7659, %v7747
        %7749 = vmatmul.bf16.gmra.mxu0 %v6210
        %v7750 = vpop.f32.mrf.mxu0
        %v7751 = vadd.f32 %v7662, %v7750
        %v7752 = vpop.f32.mrf.mxu0
        %v7753 = vadd.f32 %v7664, %v7752
        %7754 = vmatmul.bf16.gmra.mxu0 %v6211
        %v7755 = vpop.f32.mrf.mxu0
        %v7756 = vadd.f32 %v7667, %v7755
        %v7757 = vpop.f32.mrf.mxu0
        %v7758 = vadd.f32 %v7669, %v7757
        %7759 = vmatmul.bf16.gmra.mxu0 %v6212
        %v7760 = vpop.f32.mrf.mxu0
        %v7761 = vadd.f32 %v7672, %v7760
        %v7762 = vpop.f32.mrf.mxu0
        %v7763 = vadd.f32 %v7674, %v7762
        %7764 = vmatmul.bf16.gmra.mxu0 %v6213
        %v7765 = vpop.f32.mrf.mxu0
        %v7766 = vadd.f32 %v7677, %v7765
        %v7767 = vpop.f32.mrf.mxu0
        %v7768 = vadd.f32 %v7679, %v7767
        %7769 = vmatmul.bf16.gmra.mxu0 %v6426
        %v7770 = vpop.f32.mrf.mxu0
        %v7771 = vadd.f32 %v7682, %v7770
        %v7772 = vpop.f32.mrf.mxu0
        %v7773 = vadd.f32 %v7684, %v7772
        %7774 = vdwg.mxu0
        %7775 = vmatpush.bf16.msra.mxu0 %v7233
        %7776 = vmatpush.bf16.msra.mxu0 %v7232
        %7777 = vmatpush.bf16.msra.mxu0 %v7231
        %7778 = vmatpush.bf16.msra.mxu0 %v7230
        %7779 = vmatpush.bf16.msra.mxu0 %v7229
        %7780 = vmatpush.bf16.msra.mxu0 %v7228
        %7781 = vmatpush.bf16.msra.mxu0 %v7227
        %7782 = vmatpush.bf16.msra.mxu0 %v7226
        %7783 = vmatmul.bf16.gmra.mxu0 %v6492
        %v7784 = vpop.f32.mrf.mxu0
        %v7785 = vadd.f32 %v7696, %v7784
        %v7786 = vpop.f32.mrf.mxu0
        %v7787 = vadd.f32 %v7698, %v7786
        %7788 = vmatmul.bf16.gmra.mxu0 %v6493
        %v7789 = vpop.f32.mrf.mxu0
        %v7790 = vadd.f32 %v7701, %v7789
        %v7791 = vpop.f32.mrf.mxu0
        %v7792 = vadd.f32 %v7703, %v7791
        %7793 = vmatmul.bf16.gmra.mxu0 %v6494
        %v7794 = vpop.f32.mrf.mxu0
        %v7795 = vadd.f32 %v7706, %v7794
        %v7796 = vpop.f32.mrf.mxu0
        %v7797 = vadd.f32 %v7708, %v7796
        %7798 = vmatmul.bf16.gmra.mxu0 %v6495
        %v7799 = vpop.f32.mrf.mxu0
        %v7800 = vadd.f32 %v7711, %v7799
        %v7801 = vpop.f32.mrf.mxu0
        %v7802 = vadd.f32 %v7713, %v7801
        %7803 = vmatmul.bf16.gmra.mxu0 %v6496
        %v7804 = vpop.f32.mrf.mxu0
        %v7805 = vadd.f32 %v7716, %v7804
        %v7806 = vpop.f32.mrf.mxu0
        %v7807 = vadd.f32 %v7718, %v7806
        %7808 = vmatmul.bf16.gmra.mxu0 %v6497
        %v7809 = vpop.f32.mrf.mxu0
        %v7810 = vadd.f32 %v7721, %v7809
        %v7811 = vpop.f32.mrf.mxu0
        %v7812 = vadd.f32 %v7723, %v7811
        %7813 = vmatmul.bf16.gmra.mxu0 %v6498
        %v7814 = vpop.f32.mrf.mxu0
        %v7815 = vadd.f32 %v7726, %v7814
        %v7816 = vpop.f32.mrf.mxu0
        %v7817 = vadd.f32 %v7728, %v7816
        %7818 = vmatmul.bf16.gmra.mxu0 %v6499
        %v7819 = vpop.f32.mrf.mxu0
        %v7820 = vadd.f32 %v7731, %v7819
        %v7821 = vpop.f32.mrf.mxu0
        %v7822 = vadd.f32 %v7733, %v7821
        %7823 = vmatmul.bf16.gmra.mxu0 %v6500
        %v7824 = vpop.f32.mrf.mxu0
        %v7825 = vadd.f32 %v7736, %v7824
        %v7826 = vpop.f32.mrf.mxu0
        %v7827 = vadd.f32 %v7738, %v7826
        %7828 = vmatmul.bf16.gmra.mxu0 %v6501
        %v7829 = vpop.f32.mrf.mxu0
        %v7830 = vadd.f32 %v7741, %v7829
        %v7831 = vpop.f32.mrf.mxu0
        %v7832 = vadd.f32 %v7743, %v7831
        %7833 = vmatmul.bf16.gmra.mxu0 %v6502
        %v7834 = vpop.f32.mrf.mxu0
        %v7835 = vadd.f32 %v7746, %v7834
        %v7836 = vpop.f32.mrf.mxu0
        %v7837 = vadd.f32 %v7748, %v7836
        %7838 = vmatmul.bf16.gmra.mxu0 %v6503
        %v7839 = vpop.f32.mrf.mxu0
        %v7840 = vadd.f32 %v7751, %v7839
        %v7841 = vpop.f32.mrf.mxu0
        %v7842 = vadd.f32 %v7753, %v7841
        %7843 = vmatmul.bf16.gmra.mxu0 %v6504
        %v7844 = vpop.f32.mrf.mxu0
        %v7845 = vadd.f32 %v7756, %v7844
        %v7846 = vpop.f32.mrf.mxu0
        %v7847 = vadd.f32 %v7758, %v7846
        %7848 = vmatmul.bf16.gmra.mxu0 %v6505
        %v7849 = vpop.f32.mrf.mxu0
        %v7850 = vadd.f32 %v7761, %v7849
        %v7851 = vpop.f32.mrf.mxu0
        %v7852 = vadd.f32 %v7763, %v7851
        %7853 = vmatmul.bf16.gmra.mxu0 %v6506
        %v7854 = vpop.f32.mrf.mxu0
        %v7855 = vadd.f32 %v7766, %v7854
        %v7856 = vpop.f32.mrf.mxu0
        %v7857 = vadd.f32 %v7768, %v7856
        %7858 = vmatmul.bf16.gmra.mxu0 %v6507
        %v7859 = vpop.f32.mrf.mxu0
        %v7860 = vadd.f32 %v7771, %v7859
        %v7861 = vpop.f32.mrf.mxu0
        %v7862 = vadd.f32 %v7773, %v7861
        %7863 = vdwg.mxu0
        %7864 = vmatpush.bf16.msra.mxu0 %v7241
        %7865 = vmatpush.bf16.msra.mxu0 %v7240
        %7866 = vmatpush.bf16.msra.mxu0 %v7239
        %7867 = vmatpush.bf16.msra.mxu0 %v7238
        %7868 = vmatpush.bf16.msra.mxu0 %v7237
        %7869 = vmatpush.bf16.msra.mxu0 %v7236
        %7870 = vmatpush.bf16.msra.mxu0 %v7235
        %7871 = vmatpush.bf16.msra.mxu0 %v7234
        %7872 = vmatmul.bf16.gmra.mxu0 %v6588
        %v7873 = vpop.f32.mrf.mxu0
        %v7874 = vadd.f32 %v7785, %v7873
        %v7875 = vpop.f32.mrf.mxu0
        %v7876 = vadd.f32 %v7787, %v7875
        %7877 = vmatmul.bf16.gmra.mxu0 %v6589
        %v7878 = vpop.f32.mrf.mxu0
        %v7879 = vadd.f32 %v7790, %v7878
        %v7880 = vpop.f32.mrf.mxu0
        %v7881 = vadd.f32 %v7792, %v7880
        %7882 = vmatmul.bf16.gmra.mxu0 %v6590
        %v7883 = vpop.f32.mrf.mxu0
        %v7884 = vadd.f32 %v7795, %v7883
        %v7885 = vpop.f32.mrf.mxu0
        %v7886 = vadd.f32 %v7797, %v7885
        %7887 = vmatmul.bf16.gmra.mxu0 %v6591
        %v7888 = vpop.f32.mrf.mxu0
        %v7889 = vadd.f32 %v7800, %v7888
        %v7890 = vpop.f32.mrf.mxu0
        %v7891 = vadd.f32 %v7802, %v7890
        %7892 = vmatmul.bf16.gmra.mxu0 %v6592
        %v7893 = vpop.f32.mrf.mxu0
        %v7894 = vadd.f32 %v7805, %v7893
        %v7895 = vpop.f32.mrf.mxu0
        %v7896 = vadd.f32 %v7807, %v7895
        %7897 = vmatmul.bf16.gmra.mxu0 %v6593
        %v7898 = vpop.f32.mrf.mxu0
        %v7899 = vadd.f32 %v7810, %v7898
        %v7900 = vpop.f32.mrf.mxu0
        %v7901 = vadd.f32 %v7812, %v7900
        %7902 = vmatmul.bf16.gmra.mxu0 %v6594
        %v7903 = vpop.f32.mrf.mxu0
        %v7904 = vadd.f32 %v7815, %v7903
        %v7905 = vpop.f32.mrf.mxu0
        %v7906 = vadd.f32 %v7817, %v7905
        %7907 = vmatmul.bf16.gmra.mxu0 %v6595
        %v7908 = vpop.f32.mrf.mxu0
        %v7909 = vadd.f32 %v7820, %v7908
        %v7910 = vpop.f32.mrf.mxu0
        %v7911 = vadd.f32 %v7822, %v7910
        %7912 = vmatmul.bf16.gmra.mxu0 %v6596
        %v7913 = vpop.f32.mrf.mxu0
        %v7914 = vadd.f32 %v7825, %v7913
        %v7915 = vpop.f32.mrf.mxu0
        %v7916 = vadd.f32 %v7827, %v7915
        %7917 = vmatmul.bf16.gmra.mxu0 %v6597
        %v7918 = vpop.f32.mrf.mxu0
        %v7919 = vadd.f32 %v7830, %v7918
        %v7920 = vpop.f32.mrf.mxu0
        %v7921 = vadd.f32 %v7832, %v7920
        %7922 = vmatmul.bf16.gmra.mxu0 %v6598
        %v7923 = vpop.f32.mrf.mxu0
        %v7924 = vadd.f32 %v7835, %v7923
        %v7925 = vpop.f32.mrf.mxu0
        %v7926 = vadd.f32 %v7837, %v7925
        %7927 = vmatmul.bf16.gmra.mxu0 %v6599
        %v7928 = vpop.f32.mrf.mxu0
        %v7929 = vadd.f32 %v7840, %v7928
        %v7930 = vpop.f32.mrf.mxu0
        %v7931 = vadd.f32 %v7842, %v7930
        %7932 = vmatmul.bf16.gmra.mxu0 %v6600
        %v7933 = vpop.f32.mrf.mxu0
        %v7934 = vadd.f32 %v7845, %v7933
        %v7935 = vpop.f32.mrf.mxu0
        %v7936 = vadd.f32 %v7847, %v7935
        %7937 = vmatmul.bf16.gmra.mxu0 %v6601
        %v7938 = vpop.f32.mrf.mxu0
        %v7939 = vadd.f32 %v7850, %v7938
        %v7940 = vpop.f32.mrf.mxu0
        %v7941 = vadd.f32 %v7852, %v7940
        %7942 = vmatmul.bf16.gmra.mxu0 %v6602
        %v7943 = vpop.f32.mrf.mxu0
        %v7944 = vadd.f32 %v7855, %v7943
        %v7945 = vpop.f32.mrf.mxu0
        %v7946 = vadd.f32 %v7857, %v7945
        %7947 = vmatmul.bf16.gmra.mxu0 %v6603
        %v7948 = vpop.f32.mrf.mxu0
        %v7949 = vadd.f32 %v7860, %v7948
        %v7950 = vpop.f32.mrf.mxu0
        %v7951 = vadd.f32 %v7862, %v7950
        %7952 = vdwg.mxu0
        %7953 = vmatpush.bf16.msra.mxu0 %v7249
        %7954 = vmatpush.bf16.msra.mxu0 %v7248
        %7955 = vmatpush.bf16.msra.mxu0 %v7247
        %7956 = vmatpush.bf16.msra.mxu0 %v7246
        %7957 = vmatpush.bf16.msra.mxu0 %v7245
        %7958 = vmatpush.bf16.msra.mxu0 %v7244
        %7959 = vmatpush.bf16.msra.mxu0 %v7243
        %7960 = vmatpush.bf16.msra.mxu0 %v7242
        %7961 = vmatmul.bf16.gmra.mxu0 %v6200
        %v7962 = vpop.f32.mrf.mxu0
        %v7963 = vadd.f32 %v7874, %v7962
        %v7964 = vpop.f32.mrf.mxu0
        %v7965 = vadd.f32 %v7876, %v7964
        %7966 = vmatmul.bf16.gmra.mxu0 %v6201
        %v7967 = vpop.f32.mrf.mxu0
        %v7968 = vadd.f32 %v7879, %v7967
        %v7969 = vpop.f32.mrf.mxu0
        %v7970 = vadd.f32 %v7881, %v7969
        %7971 = vmatmul.bf16.gmra.mxu0 %v6202
        %v7972 = vpop.f32.mrf.mxu0
        %v7973 = vadd.f32 %v7884, %v7972
        %v7974 = vpop.f32.mrf.mxu0
        %v7975 = vadd.f32 %v7886, %v7974
        %7976 = vmatmul.bf16.gmra.mxu0 %v6203
        %v7977 = vpop.f32.mrf.mxu0
        %v7978 = vadd.f32 %v7889, %v7977
        %v7979 = vpop.f32.mrf.mxu0
        %v7980 = vadd.f32 %v7891, %v7979
        %7981 = vmatmul.bf16.gmra.mxu0 %v6204
        %v7982 = vpop.f32.mrf.mxu0
        %v7983 = vadd.f32 %v7894, %v7982
        %v7984 = vpop.f32.mrf.mxu0
        %v7985 = vadd.f32 %v7896, %v7984
        %7986 = vmatmul.bf16.gmra.mxu0 %v6205
        %v7987 = vpop.f32.mrf.mxu0
        %v7988 = vadd.f32 %v7899, %v7987
        %v7989 = vpop.f32.mrf.mxu0
        %v7990 = vadd.f32 %v7901, %v7989
        %7991 = vmatmul.bf16.gmra.mxu0 %v6206
        %v7992 = vpop.f32.mrf.mxu0
        %v7993 = vadd.f32 %v7904, %v7992
        %v7994 = vpop.f32.mrf.mxu0
        %v7995 = vadd.f32 %v7906, %v7994
        %7996 = vmatmul.bf16.gmra.mxu0 %v6207
        %v7997 = vpop.f32.mrf.mxu0
        %v7998 = vadd.f32 %v7909, %v7997
        %v7999 = vpop.f32.mrf.mxu0
        %v8000 = vadd.f32 %v7911, %v7999
        %8001 = vmatmul.bf16.gmra.mxu0 %v6208
        %v8002 = vpop.f32.mrf.mxu0
        %v8003 = vadd.f32 %v7914, %v8002
        %v8004 = vpop.f32.mrf.mxu0
        %v8005 = vadd.f32 %v7916, %v8004
        %8006 = vmatmul.bf16.gmra.mxu0 %v6209
        %v8007 = vpop.f32.mrf.mxu0
        %v8008 = vadd.f32 %v7919, %v8007
        %v8009 = vpop.f32.mrf.mxu0
        %v8010 = vadd.f32 %v7921, %v8009
        %8011 = vmatmul.bf16.gmra.mxu0 %v6210
        %v8012 = vpop.f32.mrf.mxu0
        %v8013 = vadd.f32 %v7924, %v8012
        %v8014 = vpop.f32.mrf.mxu0
        %v8015 = vadd.f32 %v7926, %v8014
        %8016 = vmatmul.bf16.gmra.mxu0 %v6211
        %v8017 = vpop.f32.mrf.mxu0
        %v8018 = vadd.f32 %v7929, %v8017
        %v8019 = vpop.f32.mrf.mxu0
        %v8020 = vadd.f32 %v7931, %v8019
        %8021 = vmatmul.bf16.gmra.mxu0 %v6212
        %v8022 = vpop.f32.mrf.mxu0
        %v8023 = vadd.f32 %v7934, %v8022
        %v8024 = vpop.f32.mrf.mxu0
        %v8025 = vadd.f32 %v7936, %v8024
        %8026 = vmatmul.bf16.gmra.mxu0 %v6213
        %v8027 = vpop.f32.mrf.mxu0
        %v8028 = vadd.f32 %v7939, %v8027
        %v8029 = vpop.f32.mrf.mxu0
        %v8030 = vadd.f32 %v7941, %v8029
        %8031 = vmatmul.bf16.gmra.mxu0 %v6426
        %v8032 = vpop.f32.mrf.mxu0
        %v8033 = vadd.f32 %v7944, %v8032
        %v8034 = vpop.f32.mrf.mxu0
        %v8035 = vadd.f32 %v7946, %v8034
        %8036 = vmatmul.bf16.gmra.mxu0 %v6624
        %v8037 = vpop.f32.mrf.mxu0
        %v8038 = vadd.f32 %v7949, %v8037
        %v8039 = vpop.f32.mrf.mxu0
        %v8040 = vadd.f32 %v7951, %v8039
        %8041 = vdwg.mxu0
        %8042 = vmatpush.bf16.msra.mxu0 %v7257
        %8043 = vmatpush.bf16.msra.mxu0 %v7256
        %8044 = vmatpush.bf16.msra.mxu0 %v7255
        %8045 = vmatpush.bf16.msra.mxu0 %v7254
        %8046 = vmatpush.bf16.msra.mxu0 %v7253
        %8047 = vmatpush.bf16.msra.mxu0 %v7252
        %8048 = vmatpush.bf16.msra.mxu0 %v7251
        %8049 = vmatpush.bf16.msra.mxu0 %v7250
        %8050 = vmatmul.bf16.gmra.mxu0 %v6690
        %v8051 = vpop.f32.mrf.mxu0
        %v8052 = vadd.f32 %v7963, %v8051
        %v8053 = vpop.f32.mrf.mxu0
        %v8054 = vadd.f32 %v7965, %v8053
        %8055 = vmatmul.bf16.gmra.mxu0 %v6691
        %v8056 = vpop.f32.mrf.mxu0
        %v8057 = vadd.f32 %v7968, %v8056
        %v8058 = vpop.f32.mrf.mxu0
        %v8059 = vadd.f32 %v7970, %v8058
        %8060 = vmatmul.bf16.gmra.mxu0 %v6692
        %v8061 = vpop.f32.mrf.mxu0
        %v8062 = vadd.f32 %v7973, %v8061
        %v8063 = vpop.f32.mrf.mxu0
        %v8064 = vadd.f32 %v7975, %v8063
        %8065 = vmatmul.bf16.gmra.mxu0 %v6693
        %v8066 = vpop.f32.mrf.mxu0
        %v8067 = vadd.f32 %v7978, %v8066
        %v8068 = vpop.f32.mrf.mxu0
        %v8069 = vadd.f32 %v7980, %v8068
        %8070 = vmatmul.bf16.gmra.mxu0 %v6694
        %v8071 = vpop.f32.mrf.mxu0
        %v8072 = vadd.f32 %v7983, %v8071
        %v8073 = vpop.f32.mrf.mxu0
        %v8074 = vadd.f32 %v7985, %v8073
        %8075 = vmatmul.bf16.gmra.mxu0 %v6695
        %v8076 = vpop.f32.mrf.mxu0
        %v8077 = vadd.f32 %v7988, %v8076
        %v8078 = vpop.f32.mrf.mxu0
        %v8079 = vadd.f32 %v7990, %v8078
        %8080 = vmatmul.bf16.gmra.mxu0 %v6696
        %v8081 = vpop.f32.mrf.mxu0
        %v8082 = vadd.f32 %v7993, %v8081
        %v8083 = vpop.f32.mrf.mxu0
        %v8084 = vadd.f32 %v7995, %v8083
        %8085 = vmatmul.bf16.gmra.mxu0 %v6697
        %v8086 = vpop.f32.mrf.mxu0
        %v8087 = vadd.f32 %v7998, %v8086
        %v8088 = vpop.f32.mrf.mxu0
        %v8089 = vadd.f32 %v8000, %v8088
        %8090 = vmatmul.bf16.gmra.mxu0 %v6698
        %v8091 = vpop.f32.mrf.mxu0
        %v8092 = vadd.f32 %v8003, %v8091
        %v8093 = vpop.f32.mrf.mxu0
        %v8094 = vadd.f32 %v8005, %v8093
        %8095 = vmatmul.bf16.gmra.mxu0 %v6699
        %v8096 = vpop.f32.mrf.mxu0
        %v8097 = vadd.f32 %v8008, %v8096
        %v8098 = vpop.f32.mrf.mxu0
        %v8099 = vadd.f32 %v8010, %v8098
        %8100 = vmatmul.bf16.gmra.mxu0 %v6700
        %v8101 = vpop.f32.mrf.mxu0
        %v8102 = vadd.f32 %v8013, %v8101
        %v8103 = vpop.f32.mrf.mxu0
        %v8104 = vadd.f32 %v8015, %v8103
        %8105 = vmatmul.bf16.gmra.mxu0 %v6701
        %v8106 = vpop.f32.mrf.mxu0
        %v8107 = vadd.f32 %v8018, %v8106
        %v8108 = vpop.f32.mrf.mxu0
        %v8109 = vadd.f32 %v8020, %v8108
        %8110 = vmatmul.bf16.gmra.mxu0 %v6702
        %v8111 = vpop.f32.mrf.mxu0
        %v8112 = vadd.f32 %v8023, %v8111
        %v8113 = vpop.f32.mrf.mxu0
        %v8114 = vadd.f32 %v8025, %v8113
        %8115 = vmatmul.bf16.gmra.mxu0 %v6703
        %v8116 = vpop.f32.mrf.mxu0
        %v8117 = vadd.f32 %v8028, %v8116
        %v8118 = vpop.f32.mrf.mxu0
        %v8119 = vadd.f32 %v8030, %v8118
        %8120 = vmatmul.bf16.gmra.mxu0 %v6704
        %v8121 = vpop.f32.mrf.mxu0
        %v8122 = vadd.f32 %v8033, %v8121
        %v8123 = vpop.f32.mrf.mxu0
        %v8124 = vadd.f32 %v8035, %v8123
        %8125 = vmatmul.bf16.gmra.mxu0 %v6705
        %v8126 = vpop.f32.mrf.mxu0
        %v8127 = vadd.f32 %v8038, %v8126
        %v8128 = vpop.f32.mrf.mxu0
        %v8129 = vadd.f32 %v8040, %v8128
        %8130 = vdwg.mxu0
        %v8131 = vmax.f32 %v8052, 0.0
        %v8132 = vmax.f32 %v8054, 0.0
        %v8133 = vmax.f32 %v8057, 0.0
        %v8134 = vmax.f32 %v8059, 0.0
        %v8135 = vmax.f32 %v8062, 0.0
        %v8136 = vmax.f32 %v8064, 0.0
        %v8137 = vmax.f32 %v8067, 0.0
        %v8138 = vmax.f32 %v8069, 0.0
        %v8139 = vmax.f32 %v8072, 0.0
        %v8140 = vmax.f32 %v8074, 0.0
        %v8141 = vmax.f32 %v8077, 0.0
        %v8142 = vmax.f32 %v8079, 0.0
        %v8143 = vmax.f32 %v8082, 0.0
        %v8144 = vmax.f32 %v8084, 0.0
        %v8145 = vmax.f32 %v8087, 0.0
        %v8146 = vmax.f32 %v8089, 0.0
        %v8147 = vmax.f32 %v8092, 0.0
        %v8148 = vmax.f32 %v8094, 0.0
        %v8149 = vmax.f32 %v8097, 0.0
        %v8150 = vmax.f32 %v8099, 0.0
        %v8151 = vmax.f32 %v8102, 0.0
        %v8152 = vmax.f32 %v8104, 0.0
        %v8153 = vmax.f32 %v8107, 0.0
        %v8154 = vmax.f32 %v8109, 0.0
        %v8155 = vmax.f32 %v8112, 0.0
        %v8156 = vmax.f32 %v8114, 0.0
        %v8157 = vmax.f32 %v8117, 0.0
        %v8158 = vmax.f32 %v8119, 0.0
        %v8159 = vmax.f32 %v8122, 0.0
        %v8160 = vmax.f32 %v8124, 0.0
        %v8161 = vmax.f32 %v8127, 0.0
        %v8162 = vmax.f32 %v8129, 0.0
        %8163 = vst [vmem:[#allocation2 + $0x20] sm:$0xff] %v8131
        %8164 = vst [vmem:[#allocation2 + $0x28] sm:$0xff] %v8132
        %8165 = vst [vmem:[#allocation2 + $0x30] sm:$0xff] %v8133
        %8166 = vst [vmem:[#allocation2 + $0x38] sm:$0xff] %v8134
        %8167 = vst [vmem:[#allocation2 + $0x40] sm:$0xff] %v8135
        %8168 = vst [vmem:[#allocation2 + $0x48] sm:$0xff] %v8136
        %8169 = vst [vmem:[#allocation2 + $0x50] sm:$0xff] %v8137
        %8170 = vst [vmem:[#allocation2 + $0x58] sm:$0xff] %v8138
        %8171 = vst [vmem:[#allocation2 + $0x60] sm:$0xff] %v8139
        %8172 = vst [vmem:[#allocation2 + $0x68] sm:$0xff] %v8140
        %8173 = vst [vmem:[#allocation2 + $0x70] sm:$0xff] %v8141
        %8174 = vst [vmem:[#allocation2 + $0x78] sm:$0xff] %v8142
        %8175 = vst [vmem:[#allocation2 + $0x80] sm:$0xff] %v8143
        %8176 = vst [vmem:[#allocation2 + $0x88] sm:$0xff] %v8144
        %8177 = vst [vmem:[#allocation2 + $0x90] sm:$0xff] %v8145
        %8178 = vst [vmem:[#allocation2 + $0x98] sm:$0xff] %v8146
        %8179 = vst [vmem:[#allocation2 + $0xa0] sm:$0xff] %v8147
        %8180 = vst [vmem:[#allocation2 + $0xa8] sm:$0xff] %v8148
        %8181 = vst [vmem:[#allocation2 + $0xb0] sm:$0xff] %v8149
        %8182 = vst [vmem:[#allocation2 + $0xb8] sm:$0xff] %v8150
        %8183 = vst [vmem:[#allocation2 + $0xc0] sm:$0xff] %v8151
        %8184 = vst [vmem:[#allocation2 + $0xc8] sm:$0xff] %v8152
        %8185 = vst [vmem:[#allocation2 + $0xd0] sm:$0xff] %v8153
        %8186 = vst [vmem:[#allocation2 + $0xd8] sm:$0xff] %v8154
        %8187 = vst [vmem:[#allocation2 + $0xe0] sm:$0xff] %v8155
        %8188 = vst [vmem:[#allocation2 + $0xe8] sm:$0xff] %v8156
        %8189 = vst [vmem:[#allocation2 + $0xf0] sm:$0xff] %v8157
        %8190 = vst [vmem:[#allocation2 + $0xf8] sm:$0xff] %v8158
        %8191 = vst [vmem:[#allocation2 + $0x100] sm:$0xff] %v8159
        %8192 = vst [vmem:[#allocation2 + $0x108] sm:$0xff] %v8160
        %8193 = vst [vmem:[#allocation2 + $0x110] sm:$0xff] %v8161
        %8194 = vst [vmem:[#allocation2 + $0x118] sm:$0xff] %v8162
      $region57: #{net_forward.1} parent=51 // loop_footer
        %s2856 = sadd.s32 1, %s2852
      $region58: #{net_forward.1} parent=51 // loop_footer_branch
        %2851 = sbr.rel target = $region54
      $region59: #{net_forward.1} parent=51 // loop_exit
        _
      %v8195 = vld [vmem:[#allocation2 + $0xf] sm:$0xff]
      %v8196 = vld [vmem:[#allocation2 + $0x17] sm:$0xff]
      %v8197 = vld [vmem:[#allocation2 + $0x1f] sm:$0xff]
      %v8198 = vld [vmem:[#allocation2 + $0x27] sm:$0xff]
      %v8199 = vld [vmem:[#allocation2 + $0x2f] sm:$0xff]
      %v8200 = vld [vmem:[#allocation2 + $0x37] sm:$0xff]
      %v8201 = vld [vmem:[#allocation2 + $0x3f] sm:$0xff]
      %v8202 = vld [vmem:[#allocation2 + $0x47] sm:$0xff]
      %v8203 = vld [vmem:[#allocation2 + $0x4f] sm:$0xff]
      %v8204 = vld [vmem:[#allocation2 + $0x57] sm:$0xff]
      %v8205 = vld [vmem:[#allocation2 + $0x5f] sm:$0xff]
      %v8206 = vld [vmem:[#allocation2 + $0x67] sm:$0xff]
      %v8207 = vld [vmem:[#allocation2 + $0x6f] sm:$0xff]
      %v8208 = vld [vmem:[#allocation2 + $0x77] sm:$0xff]
      %v8209 = vld [vmem:[#allocation2 + $0x7f] sm:$0xff]
      %v8210 = vld [vmem:[#allocation2 + $0x87] sm:$0xff]
      %v8211 = vld [vmem:[#allocation2 + $0x8f] sm:$0xff]
      %v8212 = vld [vmem:[#allocation2 + $0x97] sm:$0xff]
      %v8213 = vld [vmem:[#allocation2 + $0x9f] sm:$0xff]
      %v8214 = vld [vmem:[#allocation2 + $0xa7] sm:$0xff]
      %v8215 = vld [vmem:[#allocation2 + $0xaf] sm:$0xff]
      %v8216 = vld [vmem:[#allocation2 + $0xb7] sm:$0xff]
      %v8217 = vld [vmem:[#allocation2 + $0xbf] sm:$0xff]
      %v8218 = vld [vmem:[#allocation2 + $0xc7] sm:$0xff]
      %v8219 = vld [vmem:[#allocation2 + $0xcf] sm:$0xff]
      %v8220 = vld [vmem:[#allocation2 + $0xd7] sm:$0xff]
      %v8221 = vld [vmem:[#allocation2 + $0xdf] sm:$0xff]
      %v8222 = vld [vmem:[#allocation2 + $0xe7] sm:$0xff]
      %v8223 = vld [vmem:[#allocation2 + $0xef] sm:$0xff]
      %v8224 = vld [vmem:[#allocation2 + $0xf7] sm:$0xff]
      %v8225 = vld [vmem:[#allocation2 + $0xff] sm:$0xff]
      %v8226 = vld [vmem:[#allocation2 + $0x107] sm:$0xff]
      %v8227 = vmul.f32 %v8195, %v789
      %v8228 = vmul.f32 %v8196, %v790
      %v8229 = vmul.f32 %v8197, %v791
      %v8230 = vmul.f32 %v8198, %v792
      %v8231 = vmul.f32 %v8199, %v793
      %v8232 = vmul.f32 %v8200, %v794
      %v8233 = vmul.f32 %v8201, %v795
      %v8234 = vmul.f32 %v8202, %v796
      %v8235 = vmul.f32 %v8203, %v797
      %v8236 = vmul.f32 %v8204, %v798
      %v8237 = vmul.f32 %v8205, %v799
      %v8238 = vmul.f32 %v8206, %v800
      %v8239 = vmul.f32 %v8207, %v801
      %v8240 = vmul.f32 %v8208, %v802
      %v8241 = vmul.f32 %v8209, %v803
      %v8242 = vmul.f32 %v8210, %v804
      %v8243 = vmul.f32 %v8211, %v805
      %v8244 = vmul.f32 %v8212, %v806
      %v8245 = vmul.f32 %v8213, %v807
      %v8246 = vmul.f32 %v8214, %v808
      %v8247 = vmul.f32 %v8215, %v809
      %v8248 = vmul.f32 %v8216, %v810
      %v8249 = vmul.f32 %v8217, %v811
      %v8250 = vmul.f32 %v8218, %v812
      %v8251 = vmul.f32 %v8219, %v813
      %v8252 = vmul.f32 %v8220, %v814
      %v8253 = vmul.f32 %v8221, %v815
      %v8254 = vmul.f32 %v8222, %v816
      %v8255 = vmul.f32 %v8223, %v817
      %v8256 = vmul.f32 %v8224, %v818
      %v8257 = vmul.f32 %v8225, %v819
      %v8258 = vmul.f32 %v8226, %v820
      %v8259 = vld [vmem:[%s7] sm:$0x1]
      %v8261 = vperm.slane %v8259, 0
      %v8263 = vmul.f32 %v8227, %v8261
      %v8264 = vmul.f32 %v8228, %v8261
      %v8265 = vmul.f32 %v8229, %v8261
      %v8266 = vmul.f32 %v8230, %v8261
      %v8267 = vmul.f32 %v8231, %v8261
      %v8268 = vmul.f32 %v8232, %v8261
      %v8269 = vmul.f32 %v8233, %v8261
      %v8270 = vmul.f32 %v8234, %v8261
      %v8271 = vmul.f32 %v8235, %v8261
      %v8272 = vmul.f32 %v8236, %v8261
      %v8273 = vmul.f32 %v8237, %v8261
      %v8274 = vmul.f32 %v8238, %v8261
      %v8275 = vmul.f32 %v8239, %v8261
      %v8276 = vmul.f32 %v8240, %v8261
      %v8277 = vmul.f32 %v8241, %v8261
      %v8278 = vmul.f32 %v8242, %v8261
      %v8279 = vmul.f32 %v8243, %v8261
      %v8280 = vmul.f32 %v8244, %v8261
      %v8281 = vmul.f32 %v8245, %v8261
      %v8282 = vmul.f32 %v8246, %v8261
      %v8283 = vmul.f32 %v8247, %v8261
      %v8284 = vmul.f32 %v8248, %v8261
      %v8285 = vmul.f32 %v8249, %v8261
      %v8286 = vmul.f32 %v8250, %v8261
      %v8287 = vmul.f32 %v8251, %v8261
      %v8288 = vmul.f32 %v8252, %v8261
      %v8289 = vmul.f32 %v8253, %v8261
      %v8290 = vmul.f32 %v8254, %v8261
      %v8291 = vmul.f32 %v8255, %v8261
      %v8292 = vmul.f32 %v8256, %v8261
      %v8293 = vmul.f32 %v8257, %v8261
      %v8294 = vmul.f32 %v8258, %v8261
      %v8295 = vadd.f32 %v8263, 0.0
      %v8296 = vadd.f32 %v8264, 0.0
      %v8297 = vadd.f32 %v8265, 0.0
      %v8298 = vadd.f32 %v8266, 0.0
      %v8299 = vadd.f32 %v8267, 0.0
      %v8300 = vadd.f32 %v8268, 0.0
      %v8301 = vadd.f32 %v8269, 0.0
      %v8302 = vadd.f32 %v8270, 0.0
      %v8303 = vadd.f32 %v8271, 0.0
      %v8304 = vadd.f32 %v8272, 0.0
      %v8305 = vadd.f32 %v8273, 0.0
      %v8306 = vadd.f32 %v8274, 0.0
      %v8307 = vadd.f32 %v8275, 0.0
      %v8308 = vadd.f32 %v8276, 0.0
      %v8309 = vadd.f32 %v8277, 0.0
      %v8310 = vadd.f32 %v8278, 0.0
      %v8311 = vadd.f32 %v8279, 0.0
      %v8312 = vadd.f32 %v8280, 0.0
      %v8313 = vadd.f32 %v8281, 0.0
      %v8314 = vadd.f32 %v8282, 0.0
      %v8315 = vadd.f32 %v8283, 0.0
      %v8316 = vadd.f32 %v8284, 0.0
      %v8317 = vadd.f32 %v8285, 0.0
      %v8318 = vadd.f32 %v8286, 0.0
      %v8319 = vadd.f32 %v8287, 0.0
      %v8320 = vadd.f32 %v8288, 0.0
      %v8321 = vadd.f32 %v8289, 0.0
      %v8322 = vadd.f32 %v8290, 0.0
      %v8323 = vadd.f32 %v8291, 0.0
      %v8324 = vadd.f32 %v8292, 0.0
      %v8325 = vadd.f32 %v8293, 0.0
      %v8326 = vadd.f32 %v8294, 0.0
      %v8327 = vld [vmem:[#allocation2 + $0x10] sm:$0xff]
      %v8328 = vld [vmem:[#allocation2 + $0x18] sm:$0xff]
      %v8329 = vld [vmem:[#allocation2 + $0x20] sm:$0xff]
      %v8330 = vld [vmem:[#allocation2 + $0x28] sm:$0xff]
      %v8331 = vld [vmem:[#allocation2 + $0x30] sm:$0xff]
      %v8332 = vld [vmem:[#allocation2 + $0x38] sm:$0xff]
      %v8333 = vld [vmem:[#allocation2 + $0x40] sm:$0xff]
      %v8334 = vld [vmem:[#allocation2 + $0x48] sm:$0xff]
      %v8335 = vld [vmem:[#allocation2 + $0x50] sm:$0xff]
      %v8336 = vld [vmem:[#allocation2 + $0x58] sm:$0xff]
      %v8337 = vld [vmem:[#allocation2 + $0x60] sm:$0xff]
      %v8338 = vld [vmem:[#allocation2 + $0x68] sm:$0xff]
      %v8339 = vld [vmem:[#allocation2 + $0x70] sm:$0xff]
      %v8340 = vld [vmem:[#allocation2 + $0x78] sm:$0xff]
      %v8341 = vld [vmem:[#allocation2 + $0x80] sm:$0xff]
      %v8342 = vld [vmem:[#allocation2 + $0x88] sm:$0xff]
      %v8343 = vld [vmem:[#allocation2 + $0x90] sm:$0xff]
      %v8344 = vld [vmem:[#allocation2 + $0x98] sm:$0xff]
      %v8345 = vld [vmem:[#allocation2 + $0xa0] sm:$0xff]
      %v8346 = vld [vmem:[#allocation2 + $0xa8] sm:$0xff]
      %v8347 = vld [vmem:[#allocation2 + $0xb0] sm:$0xff]
      %v8348 = vld [vmem:[#allocation2 + $0xb8] sm:$0xff]
      %v8349 = vld [vmem:[#allocation2 + $0xc0] sm:$0xff]
      %v8350 = vld [vmem:[#allocation2 + $0xc8] sm:$0xff]
      %v8351 = vld [vmem:[#allocation2 + $0xd0] sm:$0xff]
      %v8352 = vld [vmem:[#allocation2 + $0xd8] sm:$0xff]
      %v8353 = vld [vmem:[#allocation2 + $0xe0] sm:$0xff]
      %v8354 = vld [vmem:[#allocation2 + $0xe8] sm:$0xff]
      %v8355 = vld [vmem:[#allocation2 + $0xf0] sm:$0xff]
      %v8356 = vld [vmem:[#allocation2 + $0xf8] sm:$0xff]
      %v8357 = vld [vmem:[#allocation2 + $0x100] sm:$0xff]
      %v8358 = vld [vmem:[#allocation2 + $0x108] sm:$0xff]
      %s8359 = scalar_lea.vmem %s7, 1
      %v8360 = vld [vmem:[%s8359] sm:$0x1]
      %v8362 = vperm.slane %v8360, 0
      %v8364 = vmul.f32 %v8327, %v8362
      %v8365 = vmul.f32 %v8328, %v8362
      %v8366 = vmul.f32 %v8329, %v8362
      %v8367 = vmul.f32 %v8330, %v8362
      %v8368 = vmul.f32 %v8331, %v8362
      %v8369 = vmul.f32 %v8332, %v8362
      %v8370 = vmul.f32 %v8333, %v8362
      %v8371 = vmul.f32 %v8334, %v8362
      %v8372 = vmul.f32 %v8335, %v8362
      %v8373 = vmul.f32 %v8336, %v8362
      %v8374 = vmul.f32 %v8337, %v8362
      %v8375 = vmul.f32 %v8338, %v8362
      %v8376 = vmul.f32 %v8339, %v8362
      %v8377 = vmul.f32 %v8340, %v8362
      %v8378 = vmul.f32 %v8341, %v8362
      %v8379 = vmul.f32 %v8342, %v8362
      %v8380 = vmul.f32 %v8343, %v8362
      %v8381 = vmul.f32 %v8344, %v8362
      %v8382 = vmul.f32 %v8345, %v8362
      %v8383 = vmul.f32 %v8346, %v8362
      %v8384 = vmul.f32 %v8347, %v8362
      %v8385 = vmul.f32 %v8348, %v8362
      %v8386 = vmul.f32 %v8349, %v8362
      %v8387 = vmul.f32 %v8350, %v8362
      %v8388 = vmul.f32 %v8351, %v8362
      %v8389 = vmul.f32 %v8352, %v8362
      %v8390 = vmul.f32 %v8353, %v8362
      %v8391 = vmul.f32 %v8354, %v8362
      %v8392 = vmul.f32 %v8355, %v8362
      %v8393 = vmul.f32 %v8356, %v8362
      %v8394 = vmul.f32 %v8357, %v8362
      %v8395 = vmul.f32 %v8358, %v8362
      %v8396 = vadd.f32 %v8295, %v8364
      %v8397 = vadd.f32 %v8296, %v8365
      %v8398 = vadd.f32 %v8297, %v8366
      %v8399 = vadd.f32 %v8298, %v8367
      %v8400 = vadd.f32 %v8299, %v8368
      %v8401 = vadd.f32 %v8300, %v8369
      %v8402 = vadd.f32 %v8301, %v8370
      %v8403 = vadd.f32 %v8302, %v8371
      %v8404 = vadd.f32 %v8303, %v8372
      %v8405 = vadd.f32 %v8304, %v8373
      %v8406 = vadd.f32 %v8305, %v8374
      %v8407 = vadd.f32 %v8306, %v8375
      %v8408 = vadd.f32 %v8307, %v8376
      %v8409 = vadd.f32 %v8308, %v8377
      %v8410 = vadd.f32 %v8309, %v8378
      %v8411 = vadd.f32 %v8310, %v8379
      %v8412 = vadd.f32 %v8311, %v8380
      %v8413 = vadd.f32 %v8312, %v8381
      %v8414 = vadd.f32 %v8313, %v8382
      %v8415 = vadd.f32 %v8314, %v8383
      %v8416 = vadd.f32 %v8315, %v8384
      %v8417 = vadd.f32 %v8316, %v8385
      %v8418 = vadd.f32 %v8317, %v8386
      %v8419 = vadd.f32 %v8318, %v8387
      %v8420 = vadd.f32 %v8319, %v8388
      %v8421 = vadd.f32 %v8320, %v8389
      %v8422 = vadd.f32 %v8321, %v8390
      %v8423 = vadd.f32 %v8322, %v8391
      %v8424 = vadd.f32 %v8323, %v8392
      %v8425 = vadd.f32 %v8324, %v8393
      %v8426 = vadd.f32 %v8325, %v8394
      %v8427 = vadd.f32 %v8326, %v8395
      %v8428 = vld [vmem:[#allocation2 + $0x11] sm:$0xff]
      %v8429 = vld [vmem:[#allocation2 + $0x19] sm:$0xff]
      %v8430 = vld [vmem:[#allocation2 + $0x21] sm:$0xff]
      %v8431 = vld [vmem:[#allocation2 + $0x29] sm:$0xff]
      %v8432 = vld [vmem:[#allocation2 + $0x31] sm:$0xff]
      %v8433 = vld [vmem:[#allocation2 + $0x39] sm:$0xff]
      %v8434 = vld [vmem:[#allocation2 + $0x41] sm:$0xff]
      %v8435 = vld [vmem:[#allocation2 + $0x49] sm:$0xff]
      %v8436 = vld [vmem:[#allocation2 + $0x51] sm:$0xff]
      %v8437 = vld [vmem:[#allocation2 + $0x59] sm:$0xff]
      %v8438 = vld [vmem:[#allocation2 + $0x61] sm:$0xff]
      %v8439 = vld [vmem:[#allocation2 + $0x69] sm:$0xff]
      %v8440 = vld [vmem:[#allocation2 + $0x71] sm:$0xff]
      %v8441 = vld [vmem:[#allocation2 + $0x79] sm:$0xff]
      %v8442 = vld [vmem:[#allocation2 + $0x81] sm:$0xff]
      %v8443 = vld [vmem:[#allocation2 + $0x89] sm:$0xff]
      %v8444 = vld [vmem:[#allocation2 + $0x91] sm:$0xff]
      %v8445 = vld [vmem:[#allocation2 + $0x99] sm:$0xff]
      %v8446 = vld [vmem:[#allocation2 + $0xa1] sm:$0xff]
      %v8447 = vld [vmem:[#allocation2 + $0xa9] sm:$0xff]
      %v8448 = vld [vmem:[#allocation2 + $0xb1] sm:$0xff]
      %v8449 = vld [vmem:[#allocation2 + $0xb9] sm:$0xff]
      %v8450 = vld [vmem:[#allocation2 + $0xc1] sm:$0xff]
      %v8451 = vld [vmem:[#allocation2 + $0xc9] sm:$0xff]
      %v8452 = vld [vmem:[#allocation2 + $0xd1] sm:$0xff]
      %v8453 = vld [vmem:[#allocation2 + $0xd9] sm:$0xff]
      %v8454 = vld [vmem:[#allocation2 + $0xe1] sm:$0xff]
      %v8455 = vld [vmem:[#allocation2 + $0xe9] sm:$0xff]
      %v8456 = vld [vmem:[#allocation2 + $0xf1] sm:$0xff]
      %v8457 = vld [vmem:[#allocation2 + $0xf9] sm:$0xff]
      %v8458 = vld [vmem:[#allocation2 + $0x101] sm:$0xff]
      %v8459 = vld [vmem:[#allocation2 + $0x109] sm:$0xff]
      %v8460 = vmul.f32 %v8428, %v885
      %v8461 = vmul.f32 %v8429, %v886
      %v8462 = vmul.f32 %v8430, %v887
      %v8463 = vmul.f32 %v8431, %v888
      %v8464 = vmul.f32 %v8432, %v889
      %v8465 = vmul.f32 %v8433, %v890
      %v8466 = vmul.f32 %v8434, %v891
      %v8467 = vmul.f32 %v8435, %v892
      %v8468 = vmul.f32 %v8436, %v893
      %v8469 = vmul.f32 %v8437, %v894
      %v8470 = vmul.f32 %v8438, %v895
      %v8471 = vmul.f32 %v8439, %v896
      %v8472 = vmul.f32 %v8440, %v897
      %v8473 = vmul.f32 %v8441, %v898
      %v8474 = vmul.f32 %v8442, %v899
      %v8475 = vmul.f32 %v8443, %v900
      %v8476 = vmul.f32 %v8444, %v901
      %v8477 = vmul.f32 %v8445, %v902
      %v8478 = vmul.f32 %v8446, %v903
      %v8479 = vmul.f32 %v8447, %v904
      %v8480 = vmul.f32 %v8448, %v905
      %v8481 = vmul.f32 %v8449, %v906
      %v8482 = vmul.f32 %v8450, %v907
      %v8483 = vmul.f32 %v8451, %v908
      %v8484 = vmul.f32 %v8452, %v909
      %v8485 = vmul.f32 %v8453, %v910
      %v8486 = vmul.f32 %v8454, %v911
      %v8487 = vmul.f32 %v8455, %v912
      %v8488 = vmul.f32 %v8456, %v913
      %v8489 = vmul.f32 %v8457, %v914
      %v8490 = vmul.f32 %v8458, %v915
      %v8491 = vmul.f32 %v8459, %v916
      %s8492 = scalar_lea.vmem %s7, 2
      %v8493 = vld [vmem:[%s8492] sm:$0x1]
      %v8495 = vperm.slane %v8493, 0
      %v8497 = vmul.f32 %v8460, %v8495
      %v8498 = vmul.f32 %v8461, %v8495
      %v8499 = vmul.f32 %v8462, %v8495
      %v8500 = vmul.f32 %v8463, %v8495
      %v8501 = vmul.f32 %v8464, %v8495
      %v8502 = vmul.f32 %v8465, %v8495
      %v8503 = vmul.f32 %v8466, %v8495
      %v8504 = vmul.f32 %v8467, %v8495
      %v8505 = vmul.f32 %v8468, %v8495
      %v8506 = vmul.f32 %v8469, %v8495
      %v8507 = vmul.f32 %v8470, %v8495
      %v8508 = vmul.f32 %v8471, %v8495
      %v8509 = vmul.f32 %v8472, %v8495
      %v8510 = vmul.f32 %v8473, %v8495
      %v8511 = vmul.f32 %v8474, %v8495
      %v8512 = vmul.f32 %v8475, %v8495
      %v8513 = vmul.f32 %v8476, %v8495
      %v8514 = vmul.f32 %v8477, %v8495
      %v8515 = vmul.f32 %v8478, %v8495
      %v8516 = vmul.f32 %v8479, %v8495
      %v8517 = vmul.f32 %v8480, %v8495
      %v8518 = vmul.f32 %v8481, %v8495
      %v8519 = vmul.f32 %v8482, %v8495
      %v8520 = vmul.f32 %v8483, %v8495
      %v8521 = vmul.f32 %v8484, %v8495
      %v8522 = vmul.f32 %v8485, %v8495
      %v8523 = vmul.f32 %v8486, %v8495
      %v8524 = vmul.f32 %v8487, %v8495
      %v8525 = vmul.f32 %v8488, %v8495
      %v8526 = vmul.f32 %v8489, %v8495
      %v8527 = vmul.f32 %v8490, %v8495
      %v8528 = vmul.f32 %v8491, %v8495
      %v8529 = vadd.f32 %v8396, %v8497
      %v8530 = vadd.f32 %v8397, %v8498
      %v8531 = vadd.f32 %v8398, %v8499
      %v8532 = vadd.f32 %v8399, %v8500
      %v8533 = vadd.f32 %v8400, %v8501
      %v8534 = vadd.f32 %v8401, %v8502
      %v8535 = vadd.f32 %v8402, %v8503
      %v8536 = vadd.f32 %v8403, %v8504
      %v8537 = vadd.f32 %v8404, %v8505
      %v8538 = vadd.f32 %v8405, %v8506
      %v8539 = vadd.f32 %v8406, %v8507
      %v8540 = vadd.f32 %v8407, %v8508
      %v8541 = vadd.f32 %v8408, %v8509
      %v8542 = vadd.f32 %v8409, %v8510
      %v8543 = vadd.f32 %v8410, %v8511
      %v8544 = vadd.f32 %v8411, %v8512
      %v8545 = vadd.f32 %v8412, %v8513
      %v8546 = vadd.f32 %v8413, %v8514
      %v8547 = vadd.f32 %v8414, %v8515
      %v8548 = vadd.f32 %v8415, %v8516
      %v8549 = vadd.f32 %v8416, %v8517
      %v8550 = vadd.f32 %v8417, %v8518
      %v8551 = vadd.f32 %v8418, %v8519
      %v8552 = vadd.f32 %v8419, %v8520
      %v8553 = vadd.f32 %v8420, %v8521
      %v8554 = vadd.f32 %v8421, %v8522
      %v8555 = vadd.f32 %v8422, %v8523
      %v8556 = vadd.f32 %v8423, %v8524
      %v8557 = vadd.f32 %v8424, %v8525
      %v8558 = vadd.f32 %v8425, %v8526
      %v8559 = vadd.f32 %v8426, %v8527
      %v8560 = vadd.f32 %v8427, %v8528
      %v8561 = vld [vmem:[#allocation2 + $0x10f] sm:$0xff]
      %v8562 = vld [vmem:[#allocation2 + $0x117] sm:$0xff]
      %v8563 = vmul.f32 %v8197, %v789
      %v8564 = vmul.f32 %v8198, %v790
      %v8565 = vmul.f32 %v8199, %v791
      %v8566 = vmul.f32 %v8200, %v792
      %v8567 = vmul.f32 %v8201, %v793
      %v8568 = vmul.f32 %v8202, %v794
      %v8569 = vmul.f32 %v8203, %v795
      %v8570 = vmul.f32 %v8204, %v796
      %v8571 = vmul.f32 %v8205, %v797
      %v8572 = vmul.f32 %v8206, %v798
      %v8573 = vmul.f32 %v8207, %v799
      %v8574 = vmul.f32 %v8208, %v800
      %v8575 = vmul.f32 %v8209, %v801
      %v8576 = vmul.f32 %v8210, %v802
      %v8577 = vmul.f32 %v8211, %v803
      %v8578 = vmul.f32 %v8212, %v804
      %v8579 = vmul.f32 %v8213, %v805
      %v8580 = vmul.f32 %v8214, %v806
      %v8581 = vmul.f32 %v8215, %v807
      %v8582 = vmul.f32 %v8216, %v808
      %v8583 = vmul.f32 %v8217, %v809
      %v8584 = vmul.f32 %v8218, %v810
      %v8585 = vmul.f32 %v8219, %v811
      %v8586 = vmul.f32 %v8220, %v812
      %v8587 = vmul.f32 %v8221, %v813
      %v8588 = vmul.f32 %v8222, %v814
      %v8589 = vmul.f32 %v8223, %v815
      %v8590 = vmul.f32 %v8224, %v816
      %v8591 = vmul.f32 %v8225, %v817
      %v8592 = vmul.f32 %v8226, %v818
      %v8593 = vmul.f32 %v8561, %v819
      %v8594 = vmul.f32 %v8562, %v820
      %s8595 = scalar_lea.vmem %s7, 3
      %v8596 = vld [vmem:[%s8595] sm:$0x1]
      %v8598 = vperm.slane %v8596, 0
      %v8600 = vmul.f32 %v8563, %v8598
      %v8601 = vmul.f32 %v8564, %v8598
      %v8602 = vmul.f32 %v8565, %v8598
      %v8603 = vmul.f32 %v8566, %v8598
      %v8604 = vmul.f32 %v8567, %v8598
      %v8605 = vmul.f32 %v8568, %v8598
      %v8606 = vmul.f32 %v8569, %v8598
      %v8607 = vmul.f32 %v8570, %v8598
      %v8608 = vmul.f32 %v8571, %v8598
      %v8609 = vmul.f32 %v8572, %v8598
      %v8610 = vmul.f32 %v8573, %v8598
      %v8611 = vmul.f32 %v8574, %v8598
      %v8612 = vmul.f32 %v8575, %v8598
      %v8613 = vmul.f32 %v8576, %v8598
      %v8614 = vmul.f32 %v8577, %v8598
      %v8615 = vmul.f32 %v8578, %v8598
      %v8616 = vmul.f32 %v8579, %v8598
      %v8617 = vmul.f32 %v8580, %v8598
      %v8618 = vmul.f32 %v8581, %v8598
      %v8619 = vmul.f32 %v8582, %v8598
      %v8620 = vmul.f32 %v8583, %v8598
      %v8621 = vmul.f32 %v8584, %v8598
      %v8622 = vmul.f32 %v8585, %v8598
      %v8623 = vmul.f32 %v8586, %v8598
      %v8624 = vmul.f32 %v8587, %v8598
      %v8625 = vmul.f32 %v8588, %v8598
      %v8626 = vmul.f32 %v8589, %v8598
      %v8627 = vmul.f32 %v8590, %v8598
      %v8628 = vmul.f32 %v8591, %v8598
      %v8629 = vmul.f32 %v8592, %v8598
      %v8630 = vmul.f32 %v8593, %v8598
      %v8631 = vmul.f32 %v8594, %v8598
      %v8632 = vadd.f32 %v8529, %v8600
      %v8633 = vadd.f32 %v8530, %v8601
      %v8634 = vadd.f32 %v8531, %v8602
      %v8635 = vadd.f32 %v8532, %v8603
      %v8636 = vadd.f32 %v8533, %v8604
      %v8637 = vadd.f32 %v8534, %v8605
      %v8638 = vadd.f32 %v8535, %v8606
      %v8639 = vadd.f32 %v8536, %v8607
      %v8640 = vadd.f32 %v8537, %v8608
      %v8641 = vadd.f32 %v8538, %v8609
      %v8642 = vadd.f32 %v8539, %v8610
      %v8643 = vadd.f32 %v8540, %v8611
      %v8644 = vadd.f32 %v8541, %v8612
      %v8645 = vadd.f32 %v8542, %v8613
      %v8646 = vadd.f32 %v8543, %v8614
      %v8647 = vadd.f32 %v8544, %v8615
      %v8648 = vadd.f32 %v8545, %v8616
      %v8649 = vadd.f32 %v8546, %v8617
      %v8650 = vadd.f32 %v8547, %v8618
      %v8651 = vadd.f32 %v8548, %v8619
      %v8652 = vadd.f32 %v8549, %v8620
      %v8653 = vadd.f32 %v8550, %v8621
      %v8654 = vadd.f32 %v8551, %v8622
      %v8655 = vadd.f32 %v8552, %v8623
      %v8656 = vadd.f32 %v8553, %v8624
      %v8657 = vadd.f32 %v8554, %v8625
      %v8658 = vadd.f32 %v8555, %v8626
      %v8659 = vadd.f32 %v8556, %v8627
      %v8660 = vadd.f32 %v8557, %v8628
      %v8661 = vadd.f32 %v8558, %v8629
      %v8662 = vadd.f32 %v8559, %v8630
      %v8663 = vadd.f32 %v8560, %v8631
      %v8664 = vld [vmem:[#allocation2 + $0x110] sm:$0xff]
      %v8665 = vld [vmem:[#allocation2 + $0x118] sm:$0xff]
      %s8666 = scalar_lea.vmem %s7, 4
      %v8667 = vld [vmem:[%s8666] sm:$0x1]
      %v8669 = vperm.slane %v8667, 0
      %v8671 = vmul.f32 %v8329, %v8669
      %v8672 = vmul.f32 %v8330, %v8669
      %v8673 = vmul.f32 %v8331, %v8669
      %v8674 = vmul.f32 %v8332, %v8669
      %v8675 = vmul.f32 %v8333, %v8669
      %v8676 = vmul.f32 %v8334, %v8669
      %v8677 = vmul.f32 %v8335, %v8669
      %v8678 = vmul.f32 %v8336, %v8669
      %v8679 = vmul.f32 %v8337, %v8669
      %v8680 = vmul.f32 %v8338, %v8669
      %v8681 = vmul.f32 %v8339, %v8669
      %v8682 = vmul.f32 %v8340, %v8669
      %v8683 = vmul.f32 %v8341, %v8669
      %v8684 = vmul.f32 %v8342, %v8669
      %v8685 = vmul.f32 %v8343, %v8669
      %v8686 = vmul.f32 %v8344, %v8669
      %v8687 = vmul.f32 %v8345, %v8669
      %v8688 = vmul.f32 %v8346, %v8669
      %v8689 = vmul.f32 %v8347, %v8669
      %v8690 = vmul.f32 %v8348, %v8669
      %v8691 = vmul.f32 %v8349, %v8669
      %v8692 = vmul.f32 %v8350, %v8669
      %v8693 = vmul.f32 %v8351, %v8669
      %v8694 = vmul.f32 %v8352, %v8669
      %v8695 = vmul.f32 %v8353, %v8669
      %v8696 = vmul.f32 %v8354, %v8669
      %v8697 = vmul.f32 %v8355, %v8669
      %v8698 = vmul.f32 %v8356, %v8669
      %v8699 = vmul.f32 %v8357, %v8669
      %v8700 = vmul.f32 %v8358, %v8669
      %v8701 = vmul.f32 %v8664, %v8669
      %v8702 = vmul.f32 %v8665, %v8669
      %v8703 = vadd.f32 %v8632, %v8671
      %v8704 = vadd.f32 %v8633, %v8672
      %v8705 = vadd.f32 %v8634, %v8673
      %v8706 = vadd.f32 %v8635, %v8674
      %v8707 = vadd.f32 %v8636, %v8675
      %v8708 = vadd.f32 %v8637, %v8676
      %v8709 = vadd.f32 %v8638, %v8677
      %v8710 = vadd.f32 %v8639, %v8678
      %v8711 = vadd.f32 %v8640, %v8679
      %v8712 = vadd.f32 %v8641, %v8680
      %v8713 = vadd.f32 %v8642, %v8681
      %v8714 = vadd.f32 %v8643, %v8682
      %v8715 = vadd.f32 %v8644, %v8683
      %v8716 = vadd.f32 %v8645, %v8684
      %v8717 = vadd.f32 %v8646, %v8685
      %v8718 = vadd.f32 %v8647, %v8686
      %v8719 = vadd.f32 %v8648, %v8687
      %v8720 = vadd.f32 %v8649, %v8688
      %v8721 = vadd.f32 %v8650, %v8689
      %v8722 = vadd.f32 %v8651, %v8690
      %v8723 = vadd.f32 %v8652, %v8691
      %v8724 = vadd.f32 %v8653, %v8692
      %v8725 = vadd.f32 %v8654, %v8693
      %v8726 = vadd.f32 %v8655, %v8694
      %v8727 = vadd.f32 %v8656, %v8695
      %v8728 = vadd.f32 %v8657, %v8696
      %v8729 = vadd.f32 %v8658, %v8697
      %v8730 = vadd.f32 %v8659, %v8698
      %v8731 = vadd.f32 %v8660, %v8699
      %v8732 = vadd.f32 %v8661, %v8700
      %v8733 = vadd.f32 %v8662, %v8701
      %v8734 = vadd.f32 %v8663, %v8702
      %v8735 = vld [vmem:[#allocation2 + $0x111] sm:$0xff]
      %v8736 = vld [vmem:[#allocation2 + $0x119] sm:$0xff]
      %v8737 = vmul.f32 %v8430, %v885
      %v8738 = vmul.f32 %v8431, %v886
      %v8739 = vmul.f32 %v8432, %v887
      %v8740 = vmul.f32 %v8433, %v888
      %v8741 = vmul.f32 %v8434, %v889
      %v8742 = vmul.f32 %v8435, %v890
      %v8743 = vmul.f32 %v8436, %v891
      %v8744 = vmul.f32 %v8437, %v892
      %v8745 = vmul.f32 %v8438, %v893
      %v8746 = vmul.f32 %v8439, %v894
      %v8747 = vmul.f32 %v8440, %v895
      %v8748 = vmul.f32 %v8441, %v896
      %v8749 = vmul.f32 %v8442, %v897
      %v8750 = vmul.f32 %v8443, %v898
      %v8751 = vmul.f32 %v8444, %v899
      %v8752 = vmul.f32 %v8445, %v900
      %v8753 = vmul.f32 %v8446, %v901
      %v8754 = vmul.f32 %v8447, %v902
      %v8755 = vmul.f32 %v8448, %v903
      %v8756 = vmul.f32 %v8449, %v904
      %v8757 = vmul.f32 %v8450, %v905
      %v8758 = vmul.f32 %v8451, %v906
      %v8759 = vmul.f32 %v8452, %v907
      %v8760 = vmul.f32 %v8453, %v908
      %v8761 = vmul.f32 %v8454, %v909
      %v8762 = vmul.f32 %v8455, %v910
      %v8763 = vmul.f32 %v8456, %v911
      %v8764 = vmul.f32 %v8457, %v912
      %v8765 = vmul.f32 %v8458, %v913
      %v8766 = vmul.f32 %v8459, %v914
      %v8767 = vmul.f32 %v8735, %v915
      %v8768 = vmul.f32 %v8736, %v916
      %s8769 = scalar_lea.vmem %s7, 5
      %v8770 = vld [vmem:[%s8769] sm:$0x1]
      %v8772 = vperm.slane %v8770, 0
      %v8774 = vmul.f32 %v8737, %v8772
      %v8775 = vmul.f32 %v8738, %v8772
      %v8776 = vmul.f32 %v8739, %v8772
      %v8777 = vmul.f32 %v8740, %v8772
      %v8778 = vmul.f32 %v8741, %v8772
      %v8779 = vmul.f32 %v8742, %v8772
      %v8780 = vmul.f32 %v8743, %v8772
      %v8781 = vmul.f32 %v8744, %v8772
      %v8782 = vmul.f32 %v8745, %v8772
      %v8783 = vmul.f32 %v8746, %v8772
      %v8784 = vmul.f32 %v8747, %v8772
      %v8785 = vmul.f32 %v8748, %v8772
      %v8786 = vmul.f32 %v8749, %v8772
      %v8787 = vmul.f32 %v8750, %v8772
      %v8788 = vmul.f32 %v8751, %v8772
      %v8789 = vmul.f32 %v8752, %v8772
      %v8790 = vmul.f32 %v8753, %v8772
      %v8791 = vmul.f32 %v8754, %v8772
      %v8792 = vmul.f32 %v8755, %v8772
      %v8793 = vmul.f32 %v8756, %v8772
      %v8794 = vmul.f32 %v8757, %v8772
      %v8795 = vmul.f32 %v8758, %v8772
      %v8796 = vmul.f32 %v8759, %v8772
      %v8797 = vmul.f32 %v8760, %v8772
      %v8798 = vmul.f32 %v8761, %v8772
      %v8799 = vmul.f32 %v8762, %v8772
      %v8800 = vmul.f32 %v8763, %v8772
      %v8801 = vmul.f32 %v8764, %v8772
      %v8802 = vmul.f32 %v8765, %v8772
      %v8803 = vmul.f32 %v8766, %v8772
      %v8804 = vmul.f32 %v8767, %v8772
      %v8805 = vmul.f32 %v8768, %v8772
      %v8806 = vadd.f32 %v8703, %v8774
      %v8807 = vadd.f32 %v8704, %v8775
      %v8808 = vadd.f32 %v8705, %v8776
      %v8809 = vadd.f32 %v8706, %v8777
      %v8810 = vadd.f32 %v8707, %v8778
      %v8811 = vadd.f32 %v8708, %v8779
      %v8812 = vadd.f32 %v8709, %v8780
      %v8813 = vadd.f32 %v8710, %v8781
      %v8814 = vadd.f32 %v8711, %v8782
      %v8815 = vadd.f32 %v8712, %v8783
      %v8816 = vadd.f32 %v8713, %v8784
      %v8817 = vadd.f32 %v8714, %v8785
      %v8818 = vadd.f32 %v8715, %v8786
      %v8819 = vadd.f32 %v8716, %v8787
      %v8820 = vadd.f32 %v8717, %v8788
      %v8821 = vadd.f32 %v8718, %v8789
      %v8822 = vadd.f32 %v8719, %v8790
      %v8823 = vadd.f32 %v8720, %v8791
      %v8824 = vadd.f32 %v8721, %v8792
      %v8825 = vadd.f32 %v8722, %v8793
      %v8826 = vadd.f32 %v8723, %v8794
      %v8827 = vadd.f32 %v8724, %v8795
      %v8828 = vadd.f32 %v8725, %v8796
      %v8829 = vadd.f32 %v8726, %v8797
      %v8830 = vadd.f32 %v8727, %v8798
      %v8831 = vadd.f32 %v8728, %v8799
      %v8832 = vadd.f32 %v8729, %v8800
      %v8833 = vadd.f32 %v8730, %v8801
      %v8834 = vadd.f32 %v8731, %v8802
      %v8835 = vadd.f32 %v8732, %v8803
      %v8836 = vadd.f32 %v8733, %v8804
      %v8837 = vadd.f32 %v8734, %v8805
      %v8838 = vld [vmem:[#allocation2 + $0x11f] sm:$0xff]
      %v8839 = vld [vmem:[#allocation2 + $0x127] sm:$0xff]
      %v8840 = vmul.f32 %v8199, %v789
      %v8841 = vmul.f32 %v8200, %v790
      %v8842 = vmul.f32 %v8201, %v791
      %v8843 = vmul.f32 %v8202, %v792
      %v8844 = vmul.f32 %v8203, %v793
      %v8845 = vmul.f32 %v8204, %v794
      %v8846 = vmul.f32 %v8205, %v795
      %v8847 = vmul.f32 %v8206, %v796
      %v8848 = vmul.f32 %v8207, %v797
      %v8849 = vmul.f32 %v8208, %v798
      %v8850 = vmul.f32 %v8209, %v799
      %v8851 = vmul.f32 %v8210, %v800
      %v8852 = vmul.f32 %v8211, %v801
      %v8853 = vmul.f32 %v8212, %v802
      %v8854 = vmul.f32 %v8213, %v803
      %v8855 = vmul.f32 %v8214, %v804
      %v8856 = vmul.f32 %v8215, %v805
      %v8857 = vmul.f32 %v8216, %v806
      %v8858 = vmul.f32 %v8217, %v807
      %v8859 = vmul.f32 %v8218, %v808
      %v8860 = vmul.f32 %v8219, %v809
      %v8861 = vmul.f32 %v8220, %v810
      %v8862 = vmul.f32 %v8221, %v811
      %v8863 = vmul.f32 %v8222, %v812
      %v8864 = vmul.f32 %v8223, %v813
      %v8865 = vmul.f32 %v8224, %v814
      %v8866 = vmul.f32 %v8225, %v815
      %v8867 = vmul.f32 %v8226, %v816
      %v8868 = vmul.f32 %v8561, %v817
      %v8869 = vmul.f32 %v8562, %v818
      %v8870 = vmul.f32 %v8838, %v819
      %v8871 = vmul.f32 %v8839, %v820
      %s8872 = scalar_lea.vmem %s7, 6
      %v8873 = vld [vmem:[%s8872] sm:$0x1]
      %v8875 = vperm.slane %v8873, 0
      %v8877 = vmul.f32 %v8840, %v8875
      %v8878 = vmul.f32 %v8841, %v8875
      %v8879 = vmul.f32 %v8842, %v8875
      %v8880 = vmul.f32 %v8843, %v8875
      %v8881 = vmul.f32 %v8844, %v8875
      %v8882 = vmul.f32 %v8845, %v8875
      %v8883 = vmul.f32 %v8846, %v8875
      %v8884 = vmul.f32 %v8847, %v8875
      %v8885 = vmul.f32 %v8848, %v8875
      %v8886 = vmul.f32 %v8849, %v8875
      %v8887 = vmul.f32 %v8850, %v8875
      %v8888 = vmul.f32 %v8851, %v8875
      %v8889 = vmul.f32 %v8852, %v8875
      %v8890 = vmul.f32 %v8853, %v8875
      %v8891 = vmul.f32 %v8854, %v8875
      %v8892 = vmul.f32 %v8855, %v8875
      %v8893 = vmul.f32 %v8856, %v8875
      %v8894 = vmul.f32 %v8857, %v8875
      %v8895 = vmul.f32 %v8858, %v8875
      %v8896 = vmul.f32 %v8859, %v8875
      %v8897 = vmul.f32 %v8860, %v8875
      %v8898 = vmul.f32 %v8861, %v8875
      %v8899 = vmul.f32 %v8862, %v8875
      %v8900 = vmul.f32 %v8863, %v8875
      %v8901 = vmul.f32 %v8864, %v8875
      %v8902 = vmul.f32 %v8865, %v8875
      %v8903 = vmul.f32 %v8866, %v8875
      %v8904 = vmul.f32 %v8867, %v8875
      %v8905 = vmul.f32 %v8868, %v8875
      %v8906 = vmul.f32 %v8869, %v8875
      %v8907 = vmul.f32 %v8870, %v8875
      %v8908 = vmul.f32 %v8871, %v8875
      %v8909 = vadd.f32 %v8806, %v8877
      %v8910 = vadd.f32 %v8807, %v8878
      %v8911 = vadd.f32 %v8808, %v8879
      %v8912 = vadd.f32 %v8809, %v8880
      %v8913 = vadd.f32 %v8810, %v8881
      %v8914 = vadd.f32 %v8811, %v8882
      %v8915 = vadd.f32 %v8812, %v8883
      %v8916 = vadd.f32 %v8813, %v8884
      %v8917 = vadd.f32 %v8814, %v8885
      %v8918 = vadd.f32 %v8815, %v8886
      %v8919 = vadd.f32 %v8816, %v8887
      %v8920 = vadd.f32 %v8817, %v8888
      %v8921 = vadd.f32 %v8818, %v8889
      %v8922 = vadd.f32 %v8819, %v8890
      %v8923 = vadd.f32 %v8820, %v8891
      %v8924 = vadd.f32 %v8821, %v8892
      %v8925 = vadd.f32 %v8822, %v8893
      %v8926 = vadd.f32 %v8823, %v8894
      %v8927 = vadd.f32 %v8824, %v8895
      %v8928 = vadd.f32 %v8825, %v8896
      %v8929 = vadd.f32 %v8826, %v8897
      %v8930 = vadd.f32 %v8827, %v8898
      %v8931 = vadd.f32 %v8828, %v8899
      %v8932 = vadd.f32 %v8829, %v8900
      %v8933 = vadd.f32 %v8830, %v8901
      %v8934 = vadd.f32 %v8831, %v8902
      %v8935 = vadd.f32 %v8832, %v8903
      %v8936 = vadd.f32 %v8833, %v8904
      %v8937 = vadd.f32 %v8834, %v8905
      %v8938 = vadd.f32 %v8835, %v8906
      %v8939 = vadd.f32 %v8836, %v8907
      %v8940 = vadd.f32 %v8837, %v8908
      %v8941 = vld [vmem:[#allocation2 + $0x120] sm:$0xff]
      %v8942 = vld [vmem:[#allocation2 + $0x128] sm:$0xff]
      %s8943 = scalar_lea.vmem %s7, 7
      %v8944 = vld [vmem:[%s8943] sm:$0x1]
      %v8946 = vperm.slane %v8944, 0
      %v8948 = vmul.f32 %v8331, %v8946
      %v8949 = vmul.f32 %v8332, %v8946
      %v8950 = vmul.f32 %v8333, %v8946
      %v8951 = vmul.f32 %v8334, %v8946
      %v8952 = vmul.f32 %v8335, %v8946
      %v8953 = vmul.f32 %v8336, %v8946
      %v8954 = vmul.f32 %v8337, %v8946
      %v8955 = vmul.f32 %v8338, %v8946
      %v8956 = vmul.f32 %v8339, %v8946
      %v8957 = vmul.f32 %v8340, %v8946
      %v8958 = vmul.f32 %v8341, %v8946
      %v8959 = vmul.f32 %v8342, %v8946
      %v8960 = vmul.f32 %v8343, %v8946
      %v8961 = vmul.f32 %v8344, %v8946
      %v8962 = vmul.f32 %v8345, %v8946
      %v8963 = vmul.f32 %v8346, %v8946
      %v8964 = vmul.f32 %v8347, %v8946
      %v8965 = vmul.f32 %v8348, %v8946
      %v8966 = vmul.f32 %v8349, %v8946
      %v8967 = vmul.f32 %v8350, %v8946
      %v8968 = vmul.f32 %v8351, %v8946
      %v8969 = vmul.f32 %v8352, %v8946
      %v8970 = vmul.f32 %v8353, %v8946
      %v8971 = vmul.f32 %v8354, %v8946
      %v8972 = vmul.f32 %v8355, %v8946
      %v8973 = vmul.f32 %v8356, %v8946
      %v8974 = vmul.f32 %v8357, %v8946
      %v8975 = vmul.f32 %v8358, %v8946
      %v8976 = vmul.f32 %v8664, %v8946
      %v8977 = vmul.f32 %v8665, %v8946
      %v8978 = vmul.f32 %v8941, %v8946
      %v8979 = vmul.f32 %v8942, %v8946
      %v8980 = vadd.f32 %v8909, %v8948
      %v8981 = vadd.f32 %v8910, %v8949
      %v8982 = vadd.f32 %v8911, %v8950
      %v8983 = vadd.f32 %v8912, %v8951
      %v8984 = vadd.f32 %v8913, %v8952
      %v8985 = vadd.f32 %v8914, %v8953
      %v8986 = vadd.f32 %v8915, %v8954
      %v8987 = vadd.f32 %v8916, %v8955
      %v8988 = vadd.f32 %v8917, %v8956
      %v8989 = vadd.f32 %v8918, %v8957
      %v8990 = vadd.f32 %v8919, %v8958
      %v8991 = vadd.f32 %v8920, %v8959
      %v8992 = vadd.f32 %v8921, %v8960
      %v8993 = vadd.f32 %v8922, %v8961
      %v8994 = vadd.f32 %v8923, %v8962
      %v8995 = vadd.f32 %v8924, %v8963
      %v8996 = vadd.f32 %v8925, %v8964
      %v8997 = vadd.f32 %v8926, %v8965
      %v8998 = vadd.f32 %v8927, %v8966
      %v8999 = vadd.f32 %v8928, %v8967
      %v9000 = vadd.f32 %v8929, %v8968
      %v9001 = vadd.f32 %v8930, %v8969
      %v9002 = vadd.f32 %v8931, %v8970
      %v9003 = vadd.f32 %v8932, %v8971
      %v9004 = vadd.f32 %v8933, %v8972
      %v9005 = vadd.f32 %v8934, %v8973
      %v9006 = vadd.f32 %v8935, %v8974
      %v9007 = vadd.f32 %v8936, %v8975
      %v9008 = vadd.f32 %v8937, %v8976
      %v9009 = vadd.f32 %v8938, %v8977
      %v9010 = vadd.f32 %v8939, %v8978
      %v9011 = vadd.f32 %v8940, %v8979
      %v9012 = vld [vmem:[#allocation2 + $0x121] sm:$0xff]
      %v9013 = vld [vmem:[#allocation2 + $0x129] sm:$0xff]
      %v9014 = vmul.f32 %v8432, %v885
      %v9015 = vmul.f32 %v8433, %v886
      %v9016 = vmul.f32 %v8434, %v887
      %v9017 = vmul.f32 %v8435, %v888
      %v9018 = vmul.f32 %v8436, %v889
      %v9019 = vmul.f32 %v8437, %v890
      %v9020 = vmul.f32 %v8438, %v891
      %v9021 = vmul.f32 %v8439, %v892
      %v9022 = vmul.f32 %v8440, %v893
      %v9023 = vmul.f32 %v8441, %v894
      %v9024 = vmul.f32 %v8442, %v895
      %v9025 = vmul.f32 %v8443, %v896
      %v9026 = vmul.f32 %v8444, %v897
      %v9027 = vmul.f32 %v8445, %v898
      %v9028 = vmul.f32 %v8446, %v899
      %v9029 = vmul.f32 %v8447, %v900
      %v9030 = vmul.f32 %v8448, %v901
      %v9031 = vmul.f32 %v8449, %v902
      %v9032 = vmul.f32 %v8450, %v903
      %v9033 = vmul.f32 %v8451, %v904
      %v9034 = vmul.f32 %v8452, %v905
      %v9035 = vmul.f32 %v8453, %v906
      %v9036 = vmul.f32 %v8454, %v907
      %v9037 = vmul.f32 %v8455, %v908
      %v9038 = vmul.f32 %v8456, %v909
      %v9039 = vmul.f32 %v8457, %v910
      %v9040 = vmul.f32 %v8458, %v911
      %v9041 = vmul.f32 %v8459, %v912
      %v9042 = vmul.f32 %v8735, %v913
      %v9043 = vmul.f32 %v8736, %v914
      %v9044 = vmul.f32 %v9012, %v915
      %v9045 = vmul.f32 %v9013, %v916
      %s9046 = scalar_lea.vmem %s7, 8
      %v9047 = vld [vmem:[%s9046] sm:$0x1]
      %v9049 = vperm.slane %v9047, 0
      %v9051 = vmul.f32 %v9014, %v9049
      %v9052 = vmul.f32 %v9015, %v9049
      %v9053 = vmul.f32 %v9016, %v9049
      %v9054 = vmul.f32 %v9017, %v9049
      %v9055 = vmul.f32 %v9018, %v9049
      %v9056 = vmul.f32 %v9019, %v9049
      %v9057 = vmul.f32 %v9020, %v9049
      %v9058 = vmul.f32 %v9021, %v9049
      %v9059 = vmul.f32 %v9022, %v9049
      %v9060 = vmul.f32 %v9023, %v9049
      %v9061 = vmul.f32 %v9024, %v9049
      %v9062 = vmul.f32 %v9025, %v9049
      %v9063 = vmul.f32 %v9026, %v9049
      %v9064 = vmul.f32 %v9027, %v9049
      %v9065 = vmul.f32 %v9028, %v9049
      %v9066 = vmul.f32 %v9029, %v9049
      %v9067 = vmul.f32 %v9030, %v9049
      %v9068 = vmul.f32 %v9031, %v9049
      %v9069 = vmul.f32 %v9032, %v9049
      %v9070 = vmul.f32 %v9033, %v9049
      %v9071 = vmul.f32 %v9034, %v9049
      %v9072 = vmul.f32 %v9035, %v9049
      %v9073 = vmul.f32 %v9036, %v9049
      %v9074 = vmul.f32 %v9037, %v9049
      %v9075 = vmul.f32 %v9038, %v9049
      %v9076 = vmul.f32 %v9039, %v9049
      %v9077 = vmul.f32 %v9040, %v9049
      %v9078 = vmul.f32 %v9041, %v9049
      %v9079 = vmul.f32 %v9042, %v9049
      %v9080 = vmul.f32 %v9043, %v9049
      %v9081 = vmul.f32 %v9044, %v9049
      %v9082 = vmul.f32 %v9045, %v9049
      %v9083 = vadd.f32 %v8980, %v9051
      %v9084 = vadd.f32 %v8981, %v9052
      %v9085 = vadd.f32 %v8982, %v9053
      %v9086 = vadd.f32 %v8983, %v9054
      %v9087 = vadd.f32 %v8984, %v9055
      %v9088 = vadd.f32 %v8985, %v9056
      %v9089 = vadd.f32 %v8986, %v9057
      %v9090 = vadd.f32 %v8987, %v9058
      %v9091 = vadd.f32 %v8988, %v9059
      %v9092 = vadd.f32 %v8989, %v9060
      %v9093 = vadd.f32 %v8990, %v9061
      %v9094 = vadd.f32 %v8991, %v9062
      %v9095 = vadd.f32 %v8992, %v9063
      %v9096 = vadd.f32 %v8993, %v9064
      %v9097 = vadd.f32 %v8994, %v9065
      %v9098 = vadd.f32 %v8995, %v9066
      %v9099 = vadd.f32 %v8996, %v9067
      %v9100 = vadd.f32 %v8997, %v9068
      %v9101 = vadd.f32 %v8998, %v9069
      %v9102 = vadd.f32 %v8999, %v9070
      %v9103 = vadd.f32 %v9000, %v9071
      %v9104 = vadd.f32 %v9001, %v9072
      %v9105 = vadd.f32 %v9002, %v9073
      %v9106 = vadd.f32 %v9003, %v9074
      %v9107 = vadd.f32 %v9004, %v9075
      %v9108 = vadd.f32 %v9005, %v9076
      %v9109 = vadd.f32 %v9006, %v9077
      %v9110 = vadd.f32 %v9007, %v9078
      %v9111 = vadd.f32 %v9008, %v9079
      %v9112 = vadd.f32 %v9009, %v9080
      %v9113 = vadd.f32 %v9010, %v9081
      %v9114 = vadd.f32 %v9011, %v9082
      %9115 = vadd.xlane.f32.xlu0 %v9083
      %v9116 = vpop.xlane.xlu0 %9115
      %9117 = vadd.xlane.f32.xlu0 %v9084
      %v9118 = vpop.xlane.xlu0 %9117
      %9119 = vadd.xlane.f32.xlu0 %v9085
      %v9120 = vpop.xlane.xlu0 %9119
      %9121 = vadd.xlane.f32.xlu0 %v9086
      %v9122 = vpop.xlane.xlu0 %9121
      %9123 = vadd.xlane.f32.xlu0 %v9087
      %v9124 = vpop.xlane.xlu0 %9123
      %9125 = vadd.xlane.f32.xlu0 %v9088
      %v9126 = vpop.xlane.xlu0 %9125
      %9127 = vadd.xlane.f32.xlu0 %v9089
      %v9128 = vpop.xlane.xlu0 %9127
      %9129 = vadd.xlane.f32.xlu0 %v9090
      %v9130 = vpop.xlane.xlu0 %9129
      %9131 = vadd.xlane.f32.xlu0 %v9091
      %v9132 = vpop.xlane.xlu0 %9131
      %9133 = vadd.xlane.f32.xlu0 %v9092
      %v9134 = vpop.xlane.xlu0 %9133
      %9135 = vadd.xlane.f32.xlu0 %v9093
      %v9136 = vpop.xlane.xlu0 %9135
      %9137 = vadd.xlane.f32.xlu0 %v9094
      %v9138 = vpop.xlane.xlu0 %9137
      %9139 = vadd.xlane.f32.xlu0 %v9095
      %v9140 = vpop.xlane.xlu0 %9139
      %9141 = vadd.xlane.f32.xlu0 %v9096
      %v9142 = vpop.xlane.xlu0 %9141
      %9143 = vadd.xlane.f32.xlu0 %v9097
      %v9144 = vpop.xlane.xlu0 %9143
      %9145 = vadd.xlane.f32.xlu0 %v9098
      %v9146 = vpop.xlane.xlu0 %9145
      %9147 = vadd.xlane.f32.xlu0 %v9099
      %v9148 = vpop.xlane.xlu0 %9147
      %9149 = vadd.xlane.f32.xlu0 %v9100
      %v9150 = vpop.xlane.xlu0 %9149
      %9151 = vadd.xlane.f32.xlu0 %v9101
      %v9152 = vpop.xlane.xlu0 %9151
      %9153 = vadd.xlane.f32.xlu0 %v9102
      %v9154 = vpop.xlane.xlu0 %9153
      %9155 = vadd.xlane.f32.xlu0 %v9103
      %v9156 = vpop.xlane.xlu0 %9155
      %9157 = vadd.xlane.f32.xlu0 %v9104
      %v9158 = vpop.xlane.xlu0 %9157
      %9159 = vadd.xlane.f32.xlu0 %v9105
      %v9160 = vpop.xlane.xlu0 %9159
      %9161 = vadd.xlane.f32.xlu0 %v9106
      %v9162 = vpop.xlane.xlu0 %9161
      %9163 = vadd.xlane.f32.xlu0 %v9107
      %v9164 = vpop.xlane.xlu0 %9163
      %9165 = vadd.xlane.f32.xlu0 %v9108
      %v9166 = vpop.xlane.xlu0 %9165
      %9167 = vadd.xlane.f32.xlu0 %v9109
      %v9168 = vpop.xlane.xlu0 %9167
      %9169 = vadd.xlane.f32.xlu0 %v9110
      %v9170 = vpop.xlane.xlu0 %9169
      %9171 = vadd.xlane.f32.xlu0 %v9111
      %v9172 = vpop.xlane.xlu0 %9171
      %9173 = vadd.xlane.f32.xlu0 %v9112
      %v9174 = vpop.xlane.xlu0 %9173
      %9175 = vadd.xlane.f32.xlu0 %v9113
      %v9176 = vpop.xlane.xlu0 %9175
      %9177 = vadd.xlane.f32.xlu0 %v9114
      %v9178 = vpop.xlane.xlu0 %9177
      %v9179 = vld [vmem:[#allocation4 + $0x20] sm:$0xff]
      %v9180 = vld [vmem:[#allocation4 + $0x28] sm:$0xff]
      %v9181 = vld [vmem:[#allocation4 + $0x30] sm:$0xff]
      %v9182 = vld [vmem:[#allocation4 + $0x38] sm:$0xff]
      %v9183 = vld [vmem:[#allocation4 + $0x40] sm:$0xff]
      %v9184 = vld [vmem:[#allocation4 + $0x48] sm:$0xff]
      %v9185 = vld [vmem:[#allocation4 + $0x50] sm:$0xff]
      %v9186 = vld [vmem:[#allocation4 + $0x58] sm:$0xff]
      %v9187 = vld [vmem:[#allocation4 + $0x60] sm:$0xff]
      %v9188 = vld [vmem:[#allocation4 + $0x68] sm:$0xff]
      %v9189 = vld [vmem:[#allocation4 + $0x70] sm:$0xff]
      %v9190 = vld [vmem:[#allocation4 + $0x78] sm:$0xff]
      %v9191 = vld [vmem:[#allocation4 + $0x80] sm:$0xff]
      %v9192 = vld [vmem:[#allocation4 + $0x88] sm:$0xff]
      %v9193 = vld [vmem:[#allocation4 + $0x90] sm:$0xff]
      %v9194 = vld [vmem:[#allocation4 + $0x98] sm:$0xff]
      %v9195 = vld [vmem:[#allocation4 + $0xa0] sm:$0xff]
      %v9196 = vld [vmem:[#allocation4 + $0xa8] sm:$0xff]
      %v9197 = vld [vmem:[#allocation4 + $0xb0] sm:$0xff]
      %v9198 = vld [vmem:[#allocation4 + $0xb8] sm:$0xff]
      %v9199 = vld [vmem:[#allocation4 + $0xc0] sm:$0xff]
      %v9200 = vld [vmem:[#allocation4 + $0xc8] sm:$0xff]
      %v9201 = vld [vmem:[#allocation4 + $0xd0] sm:$0xff]
      %v9202 = vld [vmem:[#allocation4 + $0xd8] sm:$0xff]
      %v9203 = vld [vmem:[#allocation4 + $0xe0] sm:$0xff]
      %v9204 = vld [vmem:[#allocation4 + $0xe8] sm:$0xff]
      %v9205 = vld [vmem:[#allocation4 + $0xf0] sm:$0xff]
      %v9206 = vld [vmem:[#allocation4 + $0xf8] sm:$0xff]
      %v9207 = vld [vmem:[#allocation4 + $0x100] sm:$0xff]
      %v9208 = vld [vmem:[#allocation4 + $0x108] sm:$0xff]
      %v9209 = vld [vmem:[#allocation4 + $0x110] sm:$0xff]
      %v9210 = vld [vmem:[#allocation4 + $0x118] sm:$0xff]
      %9211 = vmax.xlane.f32.xlu0 %v9179
      %v9212 = vpop.xlane.xlu0 %9211
      %9213 = vmax.xlane.f32.xlu0 %v9180
      %v9214 = vpop.xlane.xlu0 %9213
      %9215 = vmax.xlane.f32.xlu0 %v9181
      %v9216 = vpop.xlane.xlu0 %9215
      %9217 = vmax.xlane.f32.xlu0 %v9182
      %v9218 = vpop.xlane.xlu0 %9217
      %9219 = vmax.xlane.f32.xlu0 %v9183
      %v9220 = vpop.xlane.xlu0 %9219
      %9221 = vmax.xlane.f32.xlu0 %v9184
      %v9222 = vpop.xlane.xlu0 %9221
      %9223 = vmax.xlane.f32.xlu0 %v9185
      %v9224 = vpop.xlane.xlu0 %9223
      %9225 = vmax.xlane.f32.xlu0 %v9186
      %v9226 = vpop.xlane.xlu0 %9225
      %9227 = vmax.xlane.f32.xlu0 %v9187
      %v9228 = vpop.xlane.xlu0 %9227
      %9229 = vmax.xlane.f32.xlu0 %v9188
      %v9230 = vpop.xlane.xlu0 %9229
      %9231 = vmax.xlane.f32.xlu0 %v9189
      %v9232 = vpop.xlane.xlu0 %9231
      %9233 = vmax.xlane.f32.xlu0 %v9190
      %v9234 = vpop.xlane.xlu0 %9233
      %9235 = vmax.xlane.f32.xlu0 %v9191
      %v9236 = vpop.xlane.xlu0 %9235
      %9237 = vmax.xlane.f32.xlu0 %v9192
      %v9238 = vpop.xlane.xlu0 %9237
      %9239 = vmax.xlane.f32.xlu0 %v9193
      %v9240 = vpop.xlane.xlu0 %9239
      %9241 = vmax.xlane.f32.xlu0 %v9194
      %v9242 = vpop.xlane.xlu0 %9241
      %9243 = vmax.xlane.f32.xlu0 %v9195
      %v9244 = vpop.xlane.xlu0 %9243
      %9245 = vmax.xlane.f32.xlu0 %v9196
      %v9246 = vpop.xlane.xlu0 %9245
      %9247 = vmax.xlane.f32.xlu0 %v9197
      %v9248 = vpop.xlane.xlu0 %9247
      %9249 = vmax.xlane.f32.xlu0 %v9198
      %v9250 = vpop.xlane.xlu0 %9249
      %9251 = vmax.xlane.f32.xlu0 %v9199
      %v9252 = vpop.xlane.xlu0 %9251
      %9253 = vmax.xlane.f32.xlu0 %v9200
      %v9254 = vpop.xlane.xlu0 %9253
      %9255 = vmax.xlane.f32.xlu0 %v9201
      %v9256 = vpop.xlane.xlu0 %9255
      %9257 = vmax.xlane.f32.xlu0 %v9202
      %v9258 = vpop.xlane.xlu0 %9257
      %9259 = vmax.xlane.f32.xlu0 %v9203
      %v9260 = vpop.xlane.xlu0 %9259
      %9261 = vmax.xlane.f32.xlu0 %v9204
      %v9262 = vpop.xlane.xlu0 %9261
      %9263 = vmax.xlane.f32.xlu0 %v9205
      %v9264 = vpop.xlane.xlu0 %9263
      %9265 = vmax.xlane.f32.xlu0 %v9206
      %v9266 = vpop.xlane.xlu0 %9265
      %9267 = vmax.xlane.f32.xlu0 %v9207
      %v9268 = vpop.xlane.xlu0 %9267
      %9269 = vmax.xlane.f32.xlu0 %v9208
      %v9270 = vpop.xlane.xlu0 %9269
      %9271 = vmax.xlane.f32.xlu0 %v9209
      %v9272 = vpop.xlane.xlu0 %9271
      %9273 = vmax.xlane.f32.xlu0 %v9210
      %v9274 = vpop.xlane.xlu0 %9273
      %v9275 = vadd.f32 %v9116, %v9212
      %v9276 = vadd.f32 %v9118, %v9214
      %v9277 = vadd.f32 %v9120, %v9216
      %v9278 = vadd.f32 %v9122, %v9218
      %v9279 = vadd.f32 %v9124, %v9220
      %v9280 = vadd.f32 %v9126, %v9222
      %v9281 = vadd.f32 %v9128, %v9224
      %v9282 = vadd.f32 %v9130, %v9226
      %v9283 = vadd.f32 %v9132, %v9228
      %v9284 = vadd.f32 %v9134, %v9230
      %v9285 = vadd.f32 %v9136, %v9232
      %v9286 = vadd.f32 %v9138, %v9234
      %v9287 = vadd.f32 %v9140, %v9236
      %v9288 = vadd.f32 %v9142, %v9238
      %v9289 = vadd.f32 %v9144, %v9240
      %v9290 = vadd.f32 %v9146, %v9242
      %v9291 = vadd.f32 %v9148, %v9244
      %v9292 = vadd.f32 %v9150, %v9246
      %v9293 = vadd.f32 %v9152, %v9248
      %v9294 = vadd.f32 %v9154, %v9250
      %v9295 = vadd.f32 %v9156, %v9252
      %v9296 = vadd.f32 %v9158, %v9254
      %v9297 = vadd.f32 %v9160, %v9256
      %v9298 = vadd.f32 %v9162, %v9258
      %v9299 = vadd.f32 %v9164, %v9260
      %v9300 = vadd.f32 %v9166, %v9262
      %v9301 = vadd.f32 %v9168, %v9264
      %v9302 = vadd.f32 %v9170, %v9266
      %v9303 = vadd.f32 %v9172, %v9268
      %v9304 = vadd.f32 %v9174, %v9270
      %v9305 = vadd.f32 %v9176, %v9272
      %v9306 = vadd.f32 %v9178, %v9274
      %vm9307 = vcmask 7168
      %9308 = vst.msk [vmem:[%s307] sm:$0xff] %vm9307, %v9275
      %9309 = vst.msk [vmem:[%s307 + $0x8] sm:$0xff] %vm9307, %v9276
      %9310 = vst.msk [vmem:[%s307 + $0x10] sm:$0xff] %vm9307, %v9277
      %9311 = vst.msk [vmem:[%s307 + $0x18] sm:$0xff] %vm9307, %v9278
      %9312 = vst.msk [vmem:[%s307 + $0x20] sm:$0xff] %vm9307, %v9279
      %9313 = vst.msk [vmem:[%s307 + $0x28] sm:$0xff] %vm9307, %v9280
      %9314 = vst.msk [vmem:[%s307 + $0x30] sm:$0xff] %vm9307, %v9281
      %9315 = vst.msk [vmem:[%s307 + $0x38] sm:$0xff] %vm9307, %v9282
      %9316 = vst.msk [vmem:[%s307 + $0x40] sm:$0xff] %vm9307, %v9283
      %9317 = vst.msk [vmem:[%s307 + $0x48] sm:$0xff] %vm9307, %v9284
      %9318 = vst.msk [vmem:[%s307 + $0x50] sm:$0xff] %vm9307, %v9285
      %9319 = vst.msk [vmem:[%s307 + $0x58] sm:$0xff] %vm9307, %v9286
      %9320 = vst.msk [vmem:[%s307 + $0x60] sm:$0xff] %vm9307, %v9287
      %9321 = vst.msk [vmem:[%s307 + $0x68] sm:$0xff] %vm9307, %v9288
      %9322 = vst.msk [vmem:[%s307 + $0x70] sm:$0xff] %vm9307, %v9289
      %9323 = vst.msk [vmem:[%s307 + $0x78] sm:$0xff] %vm9307, %v9290
      %9324 = vst.msk [vmem:[%s307 + $0x80] sm:$0xff] %vm9307, %v9291
      %9325 = vst.msk [vmem:[%s307 + $0x88] sm:$0xff] %vm9307, %v9292
      %9326 = vst.msk [vmem:[%s307 + $0x90] sm:$0xff] %vm9307, %v9293
      %9327 = vst.msk [vmem:[%s307 + $0x98] sm:$0xff] %vm9307, %v9294
      %9328 = vst.msk [vmem:[%s307 + $0xa0] sm:$0xff] %vm9307, %v9295
      %9329 = vst.msk [vmem:[%s307 + $0xa8] sm:$0xff] %vm9307, %v9296
      %9330 = vst.msk [vmem:[%s307 + $0xb0] sm:$0xff] %vm9307, %v9297
      %9331 = vst.msk [vmem:[%s307 + $0xb8] sm:$0xff] %vm9307, %v9298
      %9332 = vst.msk [vmem:[%s307 + $0xc0] sm:$0xff] %vm9307, %v9299
      %9333 = vst.msk [vmem:[%s307 + $0xc8] sm:$0xff] %vm9307, %v9300
      %9334 = vst.msk [vmem:[%s307 + $0xd0] sm:$0xff] %vm9307, %v9301
      %9335 = vst.msk [vmem:[%s307 + $0xd8] sm:$0xff] %vm9307, %v9302
      %9336 = vst.msk [vmem:[%s307 + $0xe0] sm:$0xff] %vm9307, %v9303
      %9337 = vst.msk [vmem:[%s307 + $0xe8] sm:$0xff] %vm9307, %v9304
      %9338 = vst.msk [vmem:[%s307 + $0xf0] sm:$0xff] %vm9307, %v9305
      %9339 = vst.msk [vmem:[%s307 + $0xf8] sm:$0xff] %vm9307, %v9306
      %p9340 = scmp.lt.s32.totalorder %s21, 1
      %s9341 = scalar_select %p9340, %s21, 1
      %s9342 = smul.addr %s9341, 32
      %s9343 = smul.addr %s9342, 8
      %s9344 = scalar_lea.vmem %s8, %s9343
      // Predicated region
      $region60: #{net_forward.1} parent=51 // pred_check
        %p9345 = pneg %p212
      $region61: #{net_forward.1} parent=51 // pred_check_branch
        %9347 = sbr.rel (%p9345) target = $region63
      $region62: #{net_forward.1} parent=51 // pred_region
        _
      $region63: #{net_forward.1} parent=51 // pred_fallthru
        _
    $region52: #{net_forward.1} parent=5 // pred_fallthru
      _
    %p9348 = scmp.le.s32.totalorder 2, %s16
    // Predicated region
    $region64: #{net_forward.1} parent=5 // pred_check
      %p9349 = pneg %p9348
    $region65: #{net_forward.1} parent=5 // pred_check_branch
      %9351 = sbr.rel (%p9349) target = $region67
    $region66: #{net_forward.1} parent=5 // pred_region
      %s9352 = ssub.s32 %s16, 2
      // Predicated region
      $region68: #{net_forward.1} parent=66 // pred_check
        %p9353 = pneg %p218
      $region69: #{net_forward.1} parent=66 // pred_check_branch
        %9355 = sbr.rel (%p9353) target = $region71
      $region70: #{net_forward.1} parent=66 // pred_region
        %p9356 = scmp.lt.s32.totalorder %s22, 1
        %s9357 = scalar_select %p9356, %s22, 1
        %s9358 = smul.addr %s9357, 32
        %s9359 = smul.addr %s9358, 8
        %s9360 = scalar_lea.vmem %s8, %s9359
      $region71: #{net_forward.1} parent=66 // pred_fallthru
        _
    $region67: #{net_forward.1} parent=5 // pred_fallthru
      _
  $region6: #{net_forward.1} parent=0 // loop_footer
    %s20 = sadd.s32 1, %s16
  $region7: #{net_forward.1} parent=0 // loop_footer_branch
    %15 = sbr.rel target = $region3
  $region8: #{net_forward.1} parent=0 // loop_exit
    _

</llo_original>
